<compile_context>
chip_gen: v6e
topology: v6e:2x2x1
jax: 0.10.0
libtpu: 0.0.40
codegen_flags: <defaults>
</compile_context>

<pallas_src>
import jax
import jax.numpy as jnp
from jax.experimental import pallas as pl
from jax.experimental.pallas import tpu as pltpu

IN_FEATURES = 2400
H1 = 1000
H1_PAD = 1024   # layer-1 outputs padded to a lane multiple (128)
H2 = 10
H2_PAD = 128    # layer-2 outputs padded lane-dense


def _round_up(x, m):
    return (x + m - 1) // m * m


def _ffnn_kernel(x_ref, w1_ref, b1_ref, w2_ref, b2_ref, w3_ref, b3_ref, o_ref):
    # Layer 1 on the MXU: bf16 operands, f32 accumulation (dominant weight stream).
    h1 = jnp.dot(x_ref[...], w1_ref[...], preferred_element_type=jnp.float32)
    h1 = jnp.maximum(h1 + b1_ref[...], 0.0)                        # (TM, 1024) f32
    # Layer 2 (f32 MXU, lane-dense padded outputs).
    h2 = jnp.dot(h1, w2_ref[...], preferred_element_type=jnp.float32)
    h2 = jnp.maximum(h2 + b2_ref[...], 0.0)                        # (TM, 128) f32
    # Layer 3 is tiny (128 -> 1): VPU multiply + cross-lane reduction (XLU).
    h3 = jnp.sum(h2 * w3_ref[...], axis=-1, keepdims=True) + b3_ref[...]
    o_ref[...] = jax.nn.sigmoid(h3)                                # (TM, 1)


def prepare_params(params):
    """One-time weight preprocessing (cast + (in,out) layout + lane padding).

    Input params (PyTorch-equivalent values, weights already stored as (in, out)):
      w1 (2400,1000) b1 (1000,)  w2 (1000,10) b2 (10,)  w3 (10,1) b3 (1,)
    """
    w1 = jnp.asarray(params["w1"]).astype(jnp.bfloat16)                    # (2400,1000)
    b1 = jnp.asarray(params["b1"]).astype(jnp.float32).reshape(1, H1)
    w2 = jnp.asarray(params["w2"]).astype(jnp.float32)                     # (1000,10)
    b2 = jnp.asarray(params["b2"]).astype(jnp.float32).reshape(1, H2)
    w3 = jnp.asarray(params["w3"]).astype(jnp.float32).reshape(1, H2)      # (10,1)->(1,10)
    b3 = jnp.asarray(params["b3"]).astype(jnp.float32).reshape(1, 1)

    w1p = jnp.zeros((IN_FEATURES, H1_PAD), jnp.bfloat16).at[:, :H1].set(w1)
    b1p = jnp.zeros((1, H1_PAD), jnp.float32).at[:, :H1].set(b1)
    w2p = jnp.zeros((H1_PAD, H2_PAD), jnp.float32).at[:H1, :H2].set(w2)
    b2p = jnp.zeros((1, H2_PAD), jnp.float32).at[:, :H2].set(b2)
    w3p = jnp.zeros((1, H2_PAD), jnp.float32).at[:, :H2].set(w3)
    return {"w1": w1p, "b1": b1p, "w2": w2p, "b2": b2p, "w3": w3p, "b3": b3}


@jax.jit
def feedforward_nn_forward_batched(x2d, prepared):
    """Batched forward: x2d (B, 2400) -> (B,) float32 sigmoid outputs."""
    B = x2d.shape[0]
    tm = min(128, _round_up(B, 8))
    m_pad = _round_up(B, tm)

    xb = x2d.astype(jnp.bfloat16)
    if m_pad == B:
        xp = xb                                        # aligned batch: no extra copy
    else:
        xp = jnp.zeros((m_pad, IN_FEATURES), jnp.bfloat16).at[:B].set(xb)

    out = pl.pallas_call(
        _ffnn_kernel,
        out_shape=jax.ShapeDtypeStruct((m_pad, 1), jnp.float32),
        grid=(m_pad // tm,),
        in_specs=[
            pl.BlockSpec((tm, IN_FEATURES), lambda i: (i, 0)),   # x row block
            pl.BlockSpec((IN_FEATURES, H1_PAD), lambda i: (0, 0)),
            pl.BlockSpec((1, H1_PAD), lambda i: (0, 0)),
            pl.BlockSpec((H1_PAD, H2_PAD), lambda i: (0, 0)),
            pl.BlockSpec((1, H2_PAD), lambda i: (0, 0)),
            pl.BlockSpec((1, H2_PAD), lambda i: (0, 0)),
            pl.BlockSpec((1, 1), lambda i: (0, 0)),
        ],
        out_specs=pl.BlockSpec((tm, 1), lambda i: (i, 0)),
        compiler_params=pltpu.CompilerParams(
            dimension_semantics=("parallel",),
            vmem_limit_bytes=32 << 20,
        ),
    )(xp, prepared["w1"], prepared["b1"], prepared["w2"], prepared["b2"],
      prepared["w3"], prepared["b3"])
    return out[:B, 0]


def feedforward_nn_forward(x, prepared):
    """Module-equivalent forward: any array with 2400 elements -> shape (1,)."""
    x2d = jnp.reshape(x, (1, IN_FEATURES)).astype(jnp.float32)
    return feedforward_nn_forward_batched(x2d, prepared)   # (1,)


def init_params(key):
    """Deterministic init mimicking nn.Linear's default U(-1/sqrt(in), 1/sqrt(in))."""
    ks = jax.random.split(key, 6)

    def lin(kw, kb, fan_in, fan_out):
        bound = 1.0 / jnp.sqrt(jnp.float32(fan_in))
        w = jax.random.uniform(kw, (fan_in, fan_out), jnp.float32, -bound, bound)
        b = jax.random.uniform(kb, (fan_out,), jnp.float32, -bound, bound)
        return w, b

    w1, b1 = lin(ks[0], ks[1], IN_FEATURES, H1)
    w2, b2 = lin(ks[2], ks[3], H1, H2)
    w3, b3 = lin(ks[4], ks[5], H2, 1)
    return {"w1": w1, "b1": b1, "w2": w2, "b2": b2, "w3": w3, "b3": b3}


def _reference(x2d, params):
    """bf16-layer-1 reference (matches kernel numerics) and full-f32 reference."""
    h1_bf = jnp.maximum(
        jnp.dot(x2d.astype(jnp.bfloat16), params["w1"].astype(jnp.bfloat16),
                preferred_element_type=jnp.float32) + params["b1"], 0.0)
    h2_bf = jnp.maximum(h1_bf @ params["w2"] + params["b2"], 0.0)
    ref_bf = jax.nn.sigmoid((h2_bf @ params["w3"]).reshape(-1) + params["b3"])

    h1 = jnp.maximum(x2d @ params["w1"] + params["b1"], 0.0)
    h2 = jnp.maximum(h1 @ params["w2"] + params["b2"], 0.0)
    ref_f32 = jax.nn.sigmoid((h2 @ params["w3"]).reshape(-1) + params["b3"])
    return ref_bf, ref_f32


if __name__ == "__main__":
    key = jax.random.PRNGKey(0)
    k_x, k_xb, k_xl, k_p = jax.random.split(key, 4)

    # The module hard-codes reshape((1, 2400)); use a small 2D shape that
    # flattens to 2400 elements.
    x = jax.random.normal(k_x, (60, 40), dtype=jnp.float32)
    params = init_params(k_p)
    prepared = jax.tree_util.tree_map(jax.block_until_ready, prepare_params(params))

    # --- single-sample (module contract) ---
    out = feedforward_nn_forward(x, prepared)
    out = jax.block_until_ready(out)
    assert out.shape == (1,)
    assert bool(jnp.all((out > 0.0) & (out < 1.0)))

    x2d = x.reshape(1, IN_FEATURES)
    ref_bf, ref_f32 = _reference(x2d, params)
    assert jnp.allclose(out, ref_bf, atol=2e-3), (out, ref_bf)     # matches kernel numerics
    assert jnp.allclose(out, ref_f32, atol=5e-2), (out, ref_f32)   # close to full-f32 torch path

    # --- small batched path (amortizes the layer-1 weight stream) ---
    xb = jax.random.normal(k_xb, (4, IN_FEATURES), dtype=jnp.float32)
    outb = jax.block_until_ready(feedforward_nn_forward_batched(xb, prepared))
    refb_bf, refb_f32 = _reference(xb, params)
    assert outb.shape == (4,)
    assert jnp.allclose(outb, refb_bf, atol=2e-3), (outb, refb_bf)
    assert jnp.allclose(outb, refb_f32, atol=5e-2), (outb, refb_f32)

    # --- multi-block batched path (grid > 1, exercises row-block pipelining) ---
    xl = jax.random.normal(k_xl, (256, IN_FEATURES), dtype=jnp.float32)
    outl = jax.block_until_ready(feedforward_nn_forward_batched(xl, prepared))
    refl_bf, _ = _reference(xl, params)
    assert outl.shape == (256,)
    assert jnp.allclose(outl, refl_bf, atol=2e-3)

    print("KERNEL_OK")
</pallas_src>

<mosaic_0001>
module attributes {stable_mosaic.version = 11 : i64} {
  func.func @_ffnn_kernel(%arg0: i32, %arg1: memref<8x2400xbf16, #tpu.memory_space<vmem>>, %arg2: memref<2400x1024xbf16, #tpu.memory_space<vmem>>, %arg3: memref<1x1024xf32, #tpu.memory_space<vmem>>, %arg4: memref<1024x128xf32, #tpu.memory_space<vmem>>, %arg5: memref<1x128xf32, #tpu.memory_space<vmem>>, %arg6: memref<1x128xf32, #tpu.memory_space<vmem>>, %arg7: memref<1x1xf32, #tpu.memory_space<vmem>>, %arg8: memref<8x1xf32, #tpu.memory_space<vmem>>) attributes {dimension_semantics = [#tpu.dimension_semantics<parallel>], iteration_bounds = array<i64: 1>, scalar_prefetch = 0 : i64, scratch_operands = 0 : i64, tpu.core_type = #tpu.core_type<tc>, window_params = [{transform_indices = @transform_0, window_bounds = array<i64: 8, 2400>}, {pipeline_mode = #tpu.pipeline_mode<synchronous>, transform_indices = @transform_1, window_bounds = array<i64: 2400, 1024>}, {pipeline_mode = #tpu.pipeline_mode<synchronous>, transform_indices = @transform_2, window_bounds = array<i64: 1, 1024>}, {pipeline_mode = #tpu.pipeline_mode<synchronous>, transform_indices = @transform_3, window_bounds = array<i64: 1024, 128>}, {pipeline_mode = #tpu.pipeline_mode<synchronous>, transform_indices = @transform_4, window_bounds = array<i64: 1, 128>}, {pipeline_mode = #tpu.pipeline_mode<synchronous>, transform_indices = @transform_5, window_bounds = array<i64: 1, 128>}, {pipeline_mode = #tpu.pipeline_mode<synchronous>, transform_indices = @transform_6, window_bounds = array<i64: 1, 1>}, {transform_indices = @transform_7, window_bounds = array<i64: 8, 1>}]} {
    %c0 = arith.constant 0 : index
    %c0_0 = arith.constant 0 : index
    %0 = vector.load %arg1[%c0, %c0_0] : memref<8x2400xbf16, #tpu.memory_space<vmem>>, vector<8x2400xbf16>
    %c0_1 = arith.constant 0 : index
    %c0_2 = arith.constant 0 : index
    %1 = vector.load %arg2[%c0_1, %c0_2] : memref<2400x1024xbf16, #tpu.memory_space<vmem>>, vector<2400x1024xbf16>
    %cst = arith.constant dense<0.000000e+00> : vector<8x1024xf32>
    %2 = tpu.matmul %0, %1, %cst {dimension_numbers = #tpu.dot_dimension_numbers<[1], [0], [0], [1], [0, 0, 1, 1], [], []>} : vector<8x2400xbf16>, vector<2400x1024xbf16>, vector<8x1024xf32> -> vector<8x1024xf32>
    %c0_3 = arith.constant 0 : index
    %c0_4 = arith.constant 0 : index
    %3 = vector.load %arg3[%c0_3, %c0_4] : memref<1x1024xf32, #tpu.memory_space<vmem>>, vector<1x1024xf32>
    %4 = vector.broadcast %3 : vector<1x1024xf32> to vector<8x1024xf32>
    %5 = arith.addf %2, %4 : vector<8x1024xf32>
    %cst_5 = arith.constant 0.000000e+00 : f32
    %6 = vector.broadcast %cst_5 : f32 to vector<8x1024xf32>
    %7 = arith.maximumf %5, %6 : vector<8x1024xf32>
    %c0_6 = arith.constant 0 : index
    %c0_7 = arith.constant 0 : index
    %8 = vector.load %arg4[%c0_6, %c0_7] : memref<1024x128xf32, #tpu.memory_space<vmem>>, vector<1024x128xf32>
    %cst_8 = arith.constant dense<0.000000e+00> : vector<8x128xf32>
    %9 = tpu.matmul %7, %8, %cst_8 {dimension_numbers = #tpu.dot_dimension_numbers<[1], [0], [0], [1], [0, 0, 1, 1], [], []>} : vector<8x1024xf32>, vector<1024x128xf32>, vector<8x128xf32> -> vector<8x128xf32>
    %c0_9 = arith.constant 0 : index
    %c0_10 = arith.constant 0 : index
    %10 = vector.load %arg5[%c0_9, %c0_10] : memref<1x128xf32, #tpu.memory_space<vmem>>, vector<1x128xf32>
    %11 = vector.broadcast %10 : vector<1x128xf32> to vector<8x128xf32>
    %12 = arith.addf %9, %11 : vector<8x128xf32>
    %cst_11 = arith.constant 0.000000e+00 : f32
    %13 = vector.broadcast %cst_11 : f32 to vector<8x128xf32>
    %14 = arith.maximumf %12, %13 : vector<8x128xf32>
    %c0_12 = arith.constant 0 : index
    %c0_13 = arith.constant 0 : index
    %15 = vector.load %arg6[%c0_12, %c0_13] : memref<1x128xf32, #tpu.memory_space<vmem>>, vector<1x128xf32>
    %16 = vector.broadcast %15 : vector<1x128xf32> to vector<8x128xf32>
    %17 = arith.mulf %14, %16 : vector<8x128xf32>
    %cst_14 = arith.constant dense<0.000000e+00> : vector<8xf32>
    %18 = vector.multi_reduction <add>, %17, %cst_14 [1] : vector<8x128xf32> to vector<8xf32>
    %19 = vector.shape_cast %18 : vector<8xf32> to vector<8x1xf32>
    %c0_15 = arith.constant 0 : index
    %c0_16 = arith.constant 0 : index
    %20 = vector.load %arg7[%c0_15, %c0_16] : memref<1x1xf32, #tpu.memory_space<vmem>>, vector<1x1xf32>
    %21 = vector.broadcast %20 : vector<1x1xf32> to vector<8x1xf32>
    %22 = arith.addf %19, %21 : vector<8x1xf32>
    %23 = arith.negf %22 : vector<8x1xf32>
    %24 = math.exp %23 : vector<8x1xf32>
    %cst_17 = arith.constant 1.000000e+00 : f32
    %25 = vector.broadcast %cst_17 : f32 to vector<8x1xf32>
    %26 = arith.addf %25, %24 : vector<8x1xf32>
    %27 = arith.divf %25, %26 : vector<8x1xf32>
    %c0_18 = arith.constant 0 : index
    %c0_19 = arith.constant 0 : index
    %28 = vector.load %arg8[%c0_18, %c0_19] : memref<8x1xf32, #tpu.memory_space<vmem>>, vector<8x1xf32>
    tpu.vector_store %arg8[%c0_18, %c0_19], %27 {strides = array<i32>} : memref<8x1xf32, #tpu.memory_space<vmem>>, vector<8x1xf32>,
    return
  }
  func.func @transform_0(%arg0: i32) -> (i32, i32) {
    %c0_i32 = arith.constant 0 : i32
    %c0_i32_0 = arith.constant 0 : i32
    return %arg0, %c0_i32 : i32, i32
  }
  func.func @transform_1(%arg0: i32) -> (i32, i32) {
    %c0_i32 = arith.constant 0 : i32
    %c0_i32_0 = arith.constant 0 : i32
    %c0_i32_1 = arith.constant 0 : i32
    return %c0_i32, %c0_i32_0 : i32, i32
  }
  func.func @transform_2(%arg0: i32) -> (i32, i32) {
    %c0_i32 = arith.constant 0 : i32
    %c0_i32_0 = arith.constant 0 : i32
    %c0_i32_1 = arith.constant 0 : i32
    return %c0_i32, %c0_i32_0 : i32, i32
  }
  func.func @transform_3(%arg0: i32) -> (i32, i32) {
    %c0_i32 = arith.constant 0 : i32
    %c0_i32_0 = arith.constant 0 : i32
    %c0_i32_1 = arith.constant 0 : i32
    return %c0_i32, %c0_i32_0 : i32, i32
  }
  func.func @transform_4(%arg0: i32) -> (i32, i32) {
    %c0_i32 = arith.constant 0 : i32
    %c0_i32_0 = arith.constant 0 : i32
    %c0_i32_1 = arith.constant 0 : i32
    return %c0_i32, %c0_i32_0 : i32, i32
  }
  func.func @transform_5(%arg0: i32) -> (i32, i32) {
    %c0_i32 = arith.constant 0 : i32
    %c0_i32_0 = arith.constant 0 : i32
    %c0_i32_1 = arith.constant 0 : i32
    return %c0_i32, %c0_i32_0 : i32, i32
  }
  func.func @transform_6(%arg0: i32) -> (i32, i32) {
    %c0_i32 = arith.constant 0 : i32
    %c0_i32_0 = arith.constant 0 : i32
    %c0_i32_1 = arith.constant 0 : i32
    return %c0_i32, %c0_i32_0 : i32, i32
  }
  func.func @transform_7(%arg0: i32) -> (i32, i32) {
    %c0_i32 = arith.constant 0 : i32
    %c0_i32_0 = arith.constant 0 : i32
    return %arg0, %c0_i32 : i32, i32
  }
}

</mosaic_0001>

<llo_original>
// kernel: feedforward_nn_forward_batched.1
$region0: #{feedforward_nn_forward_batched.1}
  #allocation0 [shape = 'u32[]', space=smem, size = 0x4, offset = 0x4, fixed_abs, tag = 'smem constant byte address 0x4 - core index']
  #allocation1 [shape = 'u32[144,128]{1,0:T(1,128)}', space=vmem, size = 0x12000, scoped, tag = 'internal scratch']
  #allocation2 [shape = 'f32[1,1]{1,0:T(1,128)S(1)}', space=vmem, size = 0x200, scoped, tag = 'scoped memory for feedforward_nn_forward_batched.1']
  %s0 = inlined_call_operand.vmem [shape: bf16[8,2400], index: 0, kind: input, shape index: {}]
  %s1 = inlined_call_operand.hbm [shape: bf16[2400,1024], index: 1, kind: input, shape index: {}]
  %s2 = inlined_call_operand.hbm [shape: f32[1,1024], index: 2, kind: input, shape index: {}]
  %s3 = inlined_call_operand.hbm [shape: f32[1024,128], index: 3, kind: input, shape index: {}]
  %s4 = inlined_call_operand.hbm [shape: f32[1,128], index: 4, kind: input, shape index: {}]
  %s5 = inlined_call_operand.hbm [shape: f32[1,128], index: 5, kind: input, shape index: {}]
  %s6 = inlined_call_operand.<no memory space> [shape: f32[1,1], index: 6, kind: input, shape index: {}]
  %s7 = inlined_call_operand.vmem [shape: f32[8,1], index: 7, kind: output, shape index: {}]
  %s8 = sld [smem:[#allocation0]]
  $region58: #{feedforward_nn_forward_batched.1} parent=0
    _
  %s10 = ssub.s32 1, %s8
  %s11 = scalar_select 0, %s10, %s8
  %v12 = vstv %s6
  %13 = vst [vmem:[#allocation2] sm:$0x1] %v12
  $region1: #{feedforward_nn_forward_batched.1} parent=0
    #allocation3 [shape = 'u8[4915200]{0}', space=vmem, size = 0x4b0000, scoped, tag = 'input window, operand 1, single buffered']
    #allocation4 [shape = 's32[1]{0}', space=sflag, size = 0x4, scoped, tag = 'scoped memory for feedforward_nn_forward_batched.1']
    #allocation5 [shape = 'u8[4096]{0}', space=vmem, size = 0x1000, scoped, tag = 'input window, operand 2, single buffered']
    #allocation6 [shape = 's32[1]{0}', space=sflag, size = 0x4, scoped, tag = 'scoped memory for feedforward_nn_forward_batched.1']
    #allocation7 [shape = 'u8[524288]{0}', space=vmem, size = 0x80000, scoped, tag = 'input window, operand 3, single buffered']
    #allocation8 [shape = 'u8[512]{0}', space=vmem, size = 0x400, scoped, tag = 'input window, operand 4, single buffered']
    #allocation9 [shape = 's32[1]{0}', space=sflag, size = 0x4, scoped, tag = 'scoped memory for feedforward_nn_forward_batched.1']
    #allocation10 [shape = 'u8[512]{0}', space=vmem, size = 0x400, scoped, tag = 'input window, operand 5, single buffered']
    %14 = vsyncpa [#allocation4], 0
    %15 = vsyncpa [#allocation6], 0
    %16 = vsyncpa [#allocation9], 0
    // Predicated region
    $region2: #{feedforward_nn_forward_batched.1} parent=1 // pred_check
      _
    $region3: #{feedforward_nn_forward_batched.1} parent=1 // pred_check_branch
      %18 = sbr.rel (0) target = $region5
    $region4: #{feedforward_nn_forward_batched.1} parent=1 // pred_region
      _
    $region5: #{feedforward_nn_forward_batched.1} parent=1 // pred_fallthru
      _
    // Predicated region
    $region6: #{feedforward_nn_forward_batched.1} parent=1 // pred_check
      _
    $region7: #{feedforward_nn_forward_batched.1} parent=1 // pred_check_branch
      %20 = sbr.rel (0) target = $region9
    $region8: #{feedforward_nn_forward_batched.1} parent=1 // pred_region
      %s22 = ssub.s32 153600, 153600
      %23 = vsyncadd [#allocation4], %s22
      %s24 = sshll.u32 [#allocation3], 4
      %s25 = int_to_ptr.vmem [resolvable:$true] %s24
      %30 = dma.hbm_to_vmem [thread:$0]  %s1, 153600, %s25, [#allocation4], 512, 512, 32
    $region9: #{feedforward_nn_forward_batched.1} parent=1 // pred_fallthru
      _
    // Predicated region
    $region10: #{feedforward_nn_forward_batched.1} parent=1 // pred_check
      _
    $region11: #{feedforward_nn_forward_batched.1} parent=1 // pred_check_branch
      %32 = sbr.rel (0) target = $region13
    $region12: #{feedforward_nn_forward_batched.1} parent=1 // pred_region
      %s34 = ssub.s32 128, 128
      %35 = vsyncadd [#allocation6], %s34
      %s37 = sshll.u32 [#allocation5], 4
      %s38 = int_to_ptr.vmem [resolvable:$true] %s37
      %40 = dma.hbm_to_vmem [thread:$0]  %s2, 128, %s38, [#allocation6]
    $region13: #{feedforward_nn_forward_batched.1} parent=1 // pred_fallthru
      _
    // Predicated region
    $region14: #{feedforward_nn_forward_batched.1} parent=1 // pred_check
      _
    $region15: #{feedforward_nn_forward_batched.1} parent=1 // pred_check_branch
      %42 = sbr.rel (0) target = $region17
    $region16: #{feedforward_nn_forward_batched.1} parent=1 // pred_region
      %s44 = ssub.s32 16384, 16384
      %45 = vsyncadd [#allocation6], %s44
      %s46 = sshll.u32 [#allocation7], 4
      %s47 = int_to_ptr.vmem [resolvable:$true] %s46
      %52 = dma.hbm_to_vmem [thread:$0]  %s3, 16384, %s47, [#allocation6], 128, 128, 8
    $region17: #{feedforward_nn_forward_batched.1} parent=1 // pred_fallthru
      _
    // Predicated region
    $region18: #{feedforward_nn_forward_batched.1} parent=1 // pred_check
      _
    $region19: #{feedforward_nn_forward_batched.1} parent=1 // pred_check_branch
      %54 = sbr.rel (0) target = $region21
    $region20: #{feedforward_nn_forward_batched.1} parent=1 // pred_region
      %s56 = ssub.s32 16, 16
      %57 = vsyncadd [#allocation9], %s56
      %s59 = sshll.u32 [#allocation8], 4
      %s60 = int_to_ptr.vmem [resolvable:$true] %s59
      %62 = dma.hbm_to_vmem [thread:$0]  %s4, 16, %s60, [#allocation9]
    $region21: #{feedforward_nn_forward_batched.1} parent=1 // pred_fallthru
      _
    // Predicated region
    $region22: #{feedforward_nn_forward_batched.1} parent=1 // pred_check
      _
    $region23: #{feedforward_nn_forward_batched.1} parent=1 // pred_check_branch
      %64 = sbr.rel (0) target = $region25
    $region24: #{feedforward_nn_forward_batched.1} parent=1 // pred_region
      %s66 = ssub.s32 16, 16
      %67 = vsyncadd [#allocation9], %s66
      %s69 = sshll.u32 [#allocation10], 4
      %s70 = int_to_ptr.vmem [resolvable:$true] %s69
      %72 = dma.hbm_to_vmem [thread:$0]  %s5, 16, %s70, [#allocation9]
    $region25: #{feedforward_nn_forward_batched.1} parent=1 // pred_fallthru
      _
    // Predicated region
    $region26: #{feedforward_nn_forward_batched.1} parent=1 // pred_check
      _
    $region27: #{feedforward_nn_forward_batched.1} parent=1 // pred_check_branch
      %74 = sbr.rel (0) target = $region29
    $region28: #{feedforward_nn_forward_batched.1} parent=1 // pred_region
      _
    $region29: #{feedforward_nn_forward_batched.1} parent=1 // pred_fallthru
      _
    // Predicated region
    $region30: #{feedforward_nn_forward_batched.1} parent=1 // pred_check
      _
    $region31: #{feedforward_nn_forward_batched.1} parent=1 // pred_check_branch
      %76 = sbr.rel (0) target = $region33
    $region32: #{feedforward_nn_forward_batched.1} parent=1 // pred_region
      %77 = dma.done [#allocation4], 153600
    $region33: #{feedforward_nn_forward_batched.1} parent=1 // pred_fallthru
      _
    // Predicated region
    $region34: #{feedforward_nn_forward_batched.1} parent=1 // pred_check
      _
    $region35: #{feedforward_nn_forward_batched.1} parent=1 // pred_check_branch
      %79 = sbr.rel (0) target = $region37
    $region36: #{feedforward_nn_forward_batched.1} parent=1 // pred_region
      %80 = dma.done [#allocation6], 128
    $region37: #{feedforward_nn_forward_batched.1} parent=1 // pred_fallthru
      _
    // Predicated region
    $region38: #{feedforward_nn_forward_batched.1} parent=1 // pred_check
      _
    $region39: #{feedforward_nn_forward_batched.1} parent=1 // pred_check_branch
      %82 = sbr.rel (0) target = $region41
    $region40: #{feedforward_nn_forward_batched.1} parent=1 // pred_region
      %83 = dma.done [#allocation6], 16384
    $region41: #{feedforward_nn_forward_batched.1} parent=1 // pred_fallthru
      _
    // Predicated region
    $region42: #{feedforward_nn_forward_batched.1} parent=1 // pred_check
      _
    $region43: #{feedforward_nn_forward_batched.1} parent=1 // pred_check_branch
      %85 = sbr.rel (0) target = $region45
    $region44: #{feedforward_nn_forward_batched.1} parent=1 // pred_region
      %86 = dma.done [#allocation9], 16
    $region45: #{feedforward_nn_forward_batched.1} parent=1 // pred_fallthru
      _
    // Predicated region
    $region46: #{feedforward_nn_forward_batched.1} parent=1 // pred_check
      _
    $region47: #{feedforward_nn_forward_batched.1} parent=1 // pred_check_branch
      %88 = sbr.rel (0) target = $region49
    $region48: #{feedforward_nn_forward_batched.1} parent=1 // pred_region
      %89 = dma.done [#allocation9], 16
    $region49: #{feedforward_nn_forward_batched.1} parent=1 // pred_fallthru
      _
    %v91 = vld [vmem:[%s0] sm:$0xff]
    %v92 = vld [vmem:[%s0 + $0x8] sm:$0xff]
    %v93 = vld [vmem:[%s0 + $0x10] sm:$0xff]
    %v94 = vld [vmem:[%s0 + $0x18] sm:$0xff]
    %v95 = vld [vmem:[%s0 + $0x20] sm:$0xff]
    %v96 = vld [vmem:[%s0 + $0x28] sm:$0xff]
    %v97 = vld [vmem:[%s0 + $0x30] sm:$0xff]
    %v98 = vld [vmem:[%s0 + $0x38] sm:$0xff]
    %v99 = vld [vmem:[%s0 + $0x40] sm:$0xff]
    %v100 = vld [vmem:[%s0 + $0x48] sm:$0xf]
    %v101 = vld [vmem:[#allocation3] sm:$0xff]
    %v102 = vld [vmem:[#allocation3 + $0x8] sm:$0xff]
    %v103 = vld [vmem:[#allocation3 + $0x10] sm:$0xff]
    %v104 = vld [vmem:[#allocation3 + $0x18] sm:$0xff]
    %v105 = vld [vmem:[#allocation3 + $0x20] sm:$0xff]
    %v106 = vld [vmem:[#allocation3 + $0x28] sm:$0xff]
    %v107 = vld [vmem:[#allocation3 + $0x30] sm:$0xff]
    %v108 = vld [vmem:[#allocation3 + $0x38] sm:$0xff]
    %v109 = vld [vmem:[#allocation3 + $0x40] sm:$0xff]
    %v110 = vld [vmem:[#allocation3 + $0x48] sm:$0xff]
    %v111 = vld [vmem:[#allocation3 + $0x50] sm:$0xff]
    %v112 = vld [vmem:[#allocation3 + $0x58] sm:$0xff]
    %v113 = vld [vmem:[#allocation3 + $0x60] sm:$0xff]
    %v114 = vld [vmem:[#allocation3 + $0x68] sm:$0xff]
    %v115 = vld [vmem:[#allocation3 + $0x70] sm:$0xff]
    %v116 = vld [vmem:[#allocation3 + $0x78] sm:$0xff]
    %v117 = vld [vmem:[#allocation3 + $0x80] sm:$0xff]
    %v118 = vld [vmem:[#allocation3 + $0x88] sm:$0xff]
    %v119 = vld [vmem:[#allocation3 + $0x90] sm:$0xff]
    %v120 = vld [vmem:[#allocation3 + $0x98] sm:$0xff]
    %v121 = vld [vmem:[#allocation3 + $0xa0] sm:$0xff]
    %v122 = vld [vmem:[#allocation3 + $0xa8] sm:$0xff]
    %v123 = vld [vmem:[#allocation3 + $0xb0] sm:$0xff]
    %v124 = vld [vmem:[#allocation3 + $0xb8] sm:$0xff]
    %v125 = vld [vmem:[#allocation3 + $0xc0] sm:$0xff]
    %v126 = vld [vmem:[#allocation3 + $0xc8] sm:$0xff]
    %v127 = vld [vmem:[#allocation3 + $0xd0] sm:$0xff]
    %v128 = vld [vmem:[#allocation3 + $0xd8] sm:$0xff]
    %v129 = vld [vmem:[#allocation3 + $0xe0] sm:$0xff]
    %v130 = vld [vmem:[#allocation3 + $0xe8] sm:$0xff]
    %v131 = vld [vmem:[#allocation3 + $0xf0] sm:$0xff]
    %v132 = vld [vmem:[#allocation3 + $0xf8] sm:$0xff]
    %v133 = vld [vmem:[#allocation3 + $0x100] sm:$0xff]
    %v134 = vld [vmem:[#allocation3 + $0x108] sm:$0xff]
    %v135 = vld [vmem:[#allocation3 + $0x110] sm:$0xff]
    %v136 = vld [vmem:[#allocation3 + $0x118] sm:$0xff]
    %v137 = vld [vmem:[#allocation3 + $0x120] sm:$0xff]
    %v138 = vld [vmem:[#allocation3 + $0x128] sm:$0xff]
    %v139 = vld [vmem:[#allocation3 + $0x130] sm:$0xff]
    %v140 = vld [vmem:[#allocation3 + $0x138] sm:$0xff]
    %v141 = vld [vmem:[#allocation3 + $0x140] sm:$0xff]
    %v142 = vld [vmem:[#allocation3 + $0x148] sm:$0xff]
    %v143 = vld [vmem:[#allocation3 + $0x150] sm:$0xff]
    %v144 = vld [vmem:[#allocation3 + $0x158] sm:$0xff]
    %v145 = vld [vmem:[#allocation3 + $0x160] sm:$0xff]
    %v146 = vld [vmem:[#allocation3 + $0x168] sm:$0xff]
    %v147 = vld [vmem:[#allocation3 + $0x170] sm:$0xff]
    %v148 = vld [vmem:[#allocation3 + $0x178] sm:$0xff]
    %v149 = vld [vmem:[#allocation3 + $0x180] sm:$0xff]
    %v150 = vld [vmem:[#allocation3 + $0x188] sm:$0xff]
    %v151 = vld [vmem:[#allocation3 + $0x190] sm:$0xff]
    %v152 = vld [vmem:[#allocation3 + $0x198] sm:$0xff]
    %v153 = vld [vmem:[#allocation3 + $0x1a0] sm:$0xff]
    %v154 = vld [vmem:[#allocation3 + $0x1a8] sm:$0xff]
    %v155 = vld [vmem:[#allocation3 + $0x1b0] sm:$0xff]
    %v156 = vld [vmem:[#allocation3 + $0x1b8] sm:$0xff]
    %v157 = vld [vmem:[#allocation3 + $0x1c0] sm:$0xff]
    %v158 = vld [vmem:[#allocation3 + $0x1c8] sm:$0xff]
    %v159 = vld [vmem:[#allocation3 + $0x1d0] sm:$0xff]
    %v160 = vld [vmem:[#allocation3 + $0x1d8] sm:$0xff]
    %v161 = vld [vmem:[#allocation3 + $0x1e0] sm:$0xff]
    %v162 = vld [vmem:[#allocation3 + $0x1e8] sm:$0xff]
    %v163 = vld [vmem:[#allocation3 + $0x1f0] sm:$0xff]
    %v164 = vld [vmem:[#allocation3 + $0x1f8] sm:$0xff]
    %v165 = vld [vmem:[#allocation3 + $0x200] sm:$0xff]
    %v166 = vld [vmem:[#allocation3 + $0x208] sm:$0xff]
    %v167 = vld [vmem:[#allocation3 + $0x210] sm:$0xff]
    %v168 = vld [vmem:[#allocation3 + $0x218] sm:$0xff]
    %v169 = vld [vmem:[#allocation3 + $0x220] sm:$0xff]
    %v170 = vld [vmem:[#allocation3 + $0x228] sm:$0xff]
    %v171 = vld [vmem:[#allocation3 + $0x230] sm:$0xff]
    %v172 = vld [vmem:[#allocation3 + $0x238] sm:$0xff]
    %v173 = vld [vmem:[#allocation3 + $0x240] sm:$0xff]
    %v174 = vld [vmem:[#allocation3 + $0x248] sm:$0xff]
    %v175 = vld [vmem:[#allocation3 + $0x250] sm:$0xff]
    %v176 = vld [vmem:[#allocation3 + $0x258] sm:$0xff]
    %v177 = vld [vmem:[#allocation3 + $0x260] sm:$0xff]
    %v178 = vld [vmem:[#allocation3 + $0x268] sm:$0xff]
    %v179 = vld [vmem:[#allocation3 + $0x270] sm:$0xff]
    %v180 = vld [vmem:[#allocation3 + $0x278] sm:$0xff]
    %v181 = vld [vmem:[#allocation3 + $0x280] sm:$0xff]
    %v182 = vld [vmem:[#allocation3 + $0x288] sm:$0xff]
    %v183 = vld [vmem:[#allocation3 + $0x290] sm:$0xff]
    %v184 = vld [vmem:[#allocation3 + $0x298] sm:$0xff]
    %v185 = vld [vmem:[#allocation3 + $0x2a0] sm:$0xff]
    %v186 = vld [vmem:[#allocation3 + $0x2a8] sm:$0xff]
    %v187 = vld [vmem:[#allocation3 + $0x2b0] sm:$0xff]
    %v188 = vld [vmem:[#allocation3 + $0x2b8] sm:$0xff]
    %v189 = vld [vmem:[#allocation3 + $0x2c0] sm:$0xff]
    %v190 = vld [vmem:[#allocation3 + $0x2c8] sm:$0xff]
    %v191 = vld [vmem:[#allocation3 + $0x2d0] sm:$0xff]
    %v192 = vld [vmem:[#allocation3 + $0x2d8] sm:$0xff]
    %v193 = vld [vmem:[#allocation3 + $0x2e0] sm:$0xff]
    %v194 = vld [vmem:[#allocation3 + $0x2e8] sm:$0xff]
    %v195 = vld [vmem:[#allocation3 + $0x2f0] sm:$0xff]
    %v196 = vld [vmem:[#allocation3 + $0x2f8] sm:$0xff]
    %v197 = vld [vmem:[#allocation3 + $0x300] sm:$0xff]
    %v198 = vld [vmem:[#allocation3 + $0x308] sm:$0xff]
    %v199 = vld [vmem:[#allocation3 + $0x310] sm:$0xff]
    %v200 = vld [vmem:[#allocation3 + $0x318] sm:$0xff]
    %v201 = vld [vmem:[#allocation3 + $0x320] sm:$0xff]
    %v202 = vld [vmem:[#allocation3 + $0x328] sm:$0xff]
    %v203 = vld [vmem:[#allocation3 + $0x330] sm:$0xff]
    %v204 = vld [vmem:[#allocation3 + $0x338] sm:$0xff]
    %v205 = vld [vmem:[#allocation3 + $0x340] sm:$0xff]
    %v206 = vld [vmem:[#allocation3 + $0x348] sm:$0xff]
    %v207 = vld [vmem:[#allocation3 + $0x350] sm:$0xff]
    %v208 = vld [vmem:[#allocation3 + $0x358] sm:$0xff]
    %v209 = vld [vmem:[#allocation3 + $0x360] sm:$0xff]
    %v210 = vld [vmem:[#allocation3 + $0x368] sm:$0xff]
    %v211 = vld [vmem:[#allocation3 + $0x370] sm:$0xff]
    %v212 = vld [vmem:[#allocation3 + $0x378] sm:$0xff]
    %v213 = vld [vmem:[#allocation3 + $0x380] sm:$0xff]
    %v214 = vld [vmem:[#allocation3 + $0x388] sm:$0xff]
    %v215 = vld [vmem:[#allocation3 + $0x390] sm:$0xff]
    %v216 = vld [vmem:[#allocation3 + $0x398] sm:$0xff]
    %v217 = vld [vmem:[#allocation3 + $0x3a0] sm:$0xff]
    %v218 = vld [vmem:[#allocation3 + $0x3a8] sm:$0xff]
    %v219 = vld [vmem:[#allocation3 + $0x3b0] sm:$0xff]
    %v220 = vld [vmem:[#allocation3 + $0x3b8] sm:$0xff]
    %v221 = vld [vmem:[#allocation3 + $0x3c0] sm:$0xff]
    %v222 = vld [vmem:[#allocation3 + $0x3c8] sm:$0xff]
    %v223 = vld [vmem:[#allocation3 + $0x3d0] sm:$0xff]
    %v224 = vld [vmem:[#allocation3 + $0x3d8] sm:$0xff]
    %v225 = vld [vmem:[#allocation3 + $0x3e0] sm:$0xff]
    %v226 = vld [vmem:[#allocation3 + $0x3e8] sm:$0xff]
    %v227 = vld [vmem:[#allocation3 + $0x3f0] sm:$0xff]
    %v228 = vld [vmem:[#allocation3 + $0x3f8] sm:$0xff]
    %v229 = vld [vmem:[#allocation3 + $0x400] sm:$0xff]
    %v230 = vld [vmem:[#allocation3 + $0x408] sm:$0xff]
    %v231 = vld [vmem:[#allocation3 + $0x410] sm:$0xff]
    %v232 = vld [vmem:[#allocation3 + $0x418] sm:$0xff]
    %v233 = vld [vmem:[#allocation3 + $0x420] sm:$0xff]
    %v234 = vld [vmem:[#allocation3 + $0x428] sm:$0xff]
    %v235 = vld [vmem:[#allocation3 + $0x430] sm:$0xff]
    %v236 = vld [vmem:[#allocation3 + $0x438] sm:$0xff]
    %v237 = vld [vmem:[#allocation3 + $0x440] sm:$0xff]
    %v238 = vld [vmem:[#allocation3 + $0x448] sm:$0xff]
    %v239 = vld [vmem:[#allocation3 + $0x450] sm:$0xff]
    %v240 = vld [vmem:[#allocation3 + $0x458] sm:$0xff]
    %v241 = vld [vmem:[#allocation3 + $0x460] sm:$0xff]
    %v242 = vld [vmem:[#allocation3 + $0x468] sm:$0xff]
    %v243 = vld [vmem:[#allocation3 + $0x470] sm:$0xff]
    %v244 = vld [vmem:[#allocation3 + $0x478] sm:$0xff]
    %v245 = vld [vmem:[#allocation3 + $0x480] sm:$0xff]
    %v246 = vld [vmem:[#allocation3 + $0x488] sm:$0xff]
    %v247 = vld [vmem:[#allocation3 + $0x490] sm:$0xff]
    %v248 = vld [vmem:[#allocation3 + $0x498] sm:$0xff]
    %v249 = vld [vmem:[#allocation3 + $0x4a0] sm:$0xff]
    %v250 = vld [vmem:[#allocation3 + $0x4a8] sm:$0xff]
    %v251 = vld [vmem:[#allocation3 + $0x4b0] sm:$0xff]
    %v252 = vld [vmem:[#allocation3 + $0x4b8] sm:$0xff]
    %v253 = vld [vmem:[#allocation3 + $0x4c0] sm:$0xff]
    %v254 = vld [vmem:[#allocation3 + $0x4c8] sm:$0xff]
    %v255 = vld [vmem:[#allocation3 + $0x4d0] sm:$0xff]
    %v256 = vld [vmem:[#allocation3 + $0x4d8] sm:$0xff]
    %v257 = vld [vmem:[#allocation3 + $0x4e0] sm:$0xff]
    %v258 = vld [vmem:[#allocation3 + $0x4e8] sm:$0xff]
    %v259 = vld [vmem:[#allocation3 + $0x4f0] sm:$0xff]
    %v260 = vld [vmem:[#allocation3 + $0x4f8] sm:$0xff]
    %v261 = vld [vmem:[#allocation3 + $0x500] sm:$0xff]
    %v262 = vld [vmem:[#allocation3 + $0x508] sm:$0xff]
    %v263 = vld [vmem:[#allocation3 + $0x510] sm:$0xff]
    %v264 = vld [vmem:[#allocation3 + $0x518] sm:$0xff]
    %v265 = vld [vmem:[#allocation3 + $0x520] sm:$0xff]
    %v266 = vld [vmem:[#allocation3 + $0x528] sm:$0xff]
    %v267 = vld [vmem:[#allocation3 + $0x530] sm:$0xff]
    %v268 = vld [vmem:[#allocation3 + $0x538] sm:$0xff]
    %v269 = vld [vmem:[#allocation3 + $0x540] sm:$0xff]
    %v270 = vld [vmem:[#allocation3 + $0x548] sm:$0xff]
    %v271 = vld [vmem:[#allocation3 + $0x550] sm:$0xff]
    %v272 = vld [vmem:[#allocation3 + $0x558] sm:$0xff]
    %v273 = vld [vmem:[#allocation3 + $0x560] sm:$0xff]
    %v274 = vld [vmem:[#allocation3 + $0x568] sm:$0xff]
    %v275 = vld [vmem:[#allocation3 + $0x570] sm:$0xff]
    %v276 = vld [vmem:[#allocation3 + $0x578] sm:$0xff]
    %v277 = vld [vmem:[#allocation3 + $0x580] sm:$0xff]
    %v278 = vld [vmem:[#allocation3 + $0x588] sm:$0xff]
    %v279 = vld [vmem:[#allocation3 + $0x590] sm:$0xff]
    %v280 = vld [vmem:[#allocation3 + $0x598] sm:$0xff]
    %v281 = vld [vmem:[#allocation3 + $0x5a0] sm:$0xff]
    %v282 = vld [vmem:[#allocation3 + $0x5a8] sm:$0xff]
    %v283 = vld [vmem:[#allocation3 + $0x5b0] sm:$0xff]
    %v284 = vld [vmem:[#allocation3 + $0x5b8] sm:$0xff]
    %v285 = vld [vmem:[#allocation3 + $0x5c0] sm:$0xff]
    %v286 = vld [vmem:[#allocation3 + $0x5c8] sm:$0xff]
    %v287 = vld [vmem:[#allocation3 + $0x5d0] sm:$0xff]
    %v288 = vld [vmem:[#allocation3 + $0x5d8] sm:$0xff]
    %v289 = vld [vmem:[#allocation3 + $0x5e0] sm:$0xff]
    %v290 = vld [vmem:[#allocation3 + $0x5e8] sm:$0xff]
    %v291 = vld [vmem:[#allocation3 + $0x5f0] sm:$0xff]
    %v292 = vld [vmem:[#allocation3 + $0x5f8] sm:$0xff]
    %v293 = vld [vmem:[#allocation3 + $0x600] sm:$0xff]
    %v294 = vld [vmem:[#allocation3 + $0x608] sm:$0xff]
    %v295 = vld [vmem:[#allocation3 + $0x610] sm:$0xff]
    %v296 = vld [vmem:[#allocation3 + $0x618] sm:$0xff]
    %v297 = vld [vmem:[#allocation3 + $0x620] sm:$0xff]
    %v298 = vld [vmem:[#allocation3 + $0x628] sm:$0xff]
    %v299 = vld [vmem:[#allocation3 + $0x630] sm:$0xff]
    %v300 = vld [vmem:[#allocation3 + $0x638] sm:$0xff]
    %v301 = vld [vmem:[#allocation3 + $0x640] sm:$0xff]
    %v302 = vld [vmem:[#allocation3 + $0x648] sm:$0xff]
    %v303 = vld [vmem:[#allocation3 + $0x650] sm:$0xff]
    %v304 = vld [vmem:[#allocation3 + $0x658] sm:$0xff]
    %v305 = vld [vmem:[#allocation3 + $0x660] sm:$0xff]
    %v306 = vld [vmem:[#allocation3 + $0x668] sm:$0xff]
    %v307 = vld [vmem:[#allocation3 + $0x670] sm:$0xff]
    %v308 = vld [vmem:[#allocation3 + $0x678] sm:$0xff]
    %v309 = vld [vmem:[#allocation3 + $0x680] sm:$0xff]
    %v310 = vld [vmem:[#allocation3 + $0x688] sm:$0xff]
    %v311 = vld [vmem:[#allocation3 + $0x690] sm:$0xff]
    %v312 = vld [vmem:[#allocation3 + $0x698] sm:$0xff]
    %v313 = vld [vmem:[#allocation3 + $0x6a0] sm:$0xff]
    %v314 = vld [vmem:[#allocation3 + $0x6a8] sm:$0xff]
    %v315 = vld [vmem:[#allocation3 + $0x6b0] sm:$0xff]
    %v316 = vld [vmem:[#allocation3 + $0x6b8] sm:$0xff]
    %v317 = vld [vmem:[#allocation3 + $0x6c0] sm:$0xff]
    %v318 = vld [vmem:[#allocation3 + $0x6c8] sm:$0xff]
    %v319 = vld [vmem:[#allocation3 + $0x6d0] sm:$0xff]
    %v320 = vld [vmem:[#allocation3 + $0x6d8] sm:$0xff]
    %v321 = vld [vmem:[#allocation3 + $0x6e0] sm:$0xff]
    %v322 = vld [vmem:[#allocation3 + $0x6e8] sm:$0xff]
    %v323 = vld [vmem:[#allocation3 + $0x6f0] sm:$0xff]
    %v324 = vld [vmem:[#allocation3 + $0x6f8] sm:$0xff]
    %v325 = vld [vmem:[#allocation3 + $0x700] sm:$0xff]
    %v326 = vld [vmem:[#allocation3 + $0x708] sm:$0xff]
    %v327 = vld [vmem:[#allocation3 + $0x710] sm:$0xff]
    %v328 = vld [vmem:[#allocation3 + $0x718] sm:$0xff]
    %v329 = vld [vmem:[#allocation3 + $0x720] sm:$0xff]
    %v330 = vld [vmem:[#allocation3 + $0x728] sm:$0xff]
    %v331 = vld [vmem:[#allocation3 + $0x730] sm:$0xff]
    %v332 = vld [vmem:[#allocation3 + $0x738] sm:$0xff]
    %v333 = vld [vmem:[#allocation3 + $0x740] sm:$0xff]
    %v334 = vld [vmem:[#allocation3 + $0x748] sm:$0xff]
    %v335 = vld [vmem:[#allocation3 + $0x750] sm:$0xff]
    %v336 = vld [vmem:[#allocation3 + $0x758] sm:$0xff]
    %v337 = vld [vmem:[#allocation3 + $0x760] sm:$0xff]
    %v338 = vld [vmem:[#allocation3 + $0x768] sm:$0xff]
    %v339 = vld [vmem:[#allocation3 + $0x770] sm:$0xff]
    %v340 = vld [vmem:[#allocation3 + $0x778] sm:$0xff]
    %v341 = vld [vmem:[#allocation3 + $0x780] sm:$0xff]
    %v342 = vld [vmem:[#allocation3 + $0x788] sm:$0xff]
    %v343 = vld [vmem:[#allocation3 + $0x790] sm:$0xff]
    %v344 = vld [vmem:[#allocation3 + $0x798] sm:$0xff]
    %v345 = vld [vmem:[#allocation3 + $0x7a0] sm:$0xff]
    %v346 = vld [vmem:[#allocation3 + $0x7a8] sm:$0xff]
    %v347 = vld [vmem:[#allocation3 + $0x7b0] sm:$0xff]
    %v348 = vld [vmem:[#allocation3 + $0x7b8] sm:$0xff]
    %v349 = vld [vmem:[#allocation3 + $0x7c0] sm:$0xff]
    %v350 = vld [vmem:[#allocation3 + $0x7c8] sm:$0xff]
    %v351 = vld [vmem:[#allocation3 + $0x7d0] sm:$0xff]
    %v352 = vld [vmem:[#allocation3 + $0x7d8] sm:$0xff]
    %v353 = vld [vmem:[#allocation3 + $0x7e0] sm:$0xff]
    %v354 = vld [vmem:[#allocation3 + $0x7e8] sm:$0xff]
    %v355 = vld [vmem:[#allocation3 + $0x7f0] sm:$0xff]
    %v356 = vld [vmem:[#allocation3 + $0x7f8] sm:$0xff]
    %v357 = vld [vmem:[#allocation3 + $0x800] sm:$0xff]
    %v358 = vld [vmem:[#allocation3 + $0x808] sm:$0xff]
    %v359 = vld [vmem:[#allocation3 + $0x810] sm:$0xff]
    %v360 = vld [vmem:[#allocation3 + $0x818] sm:$0xff]
    %v361 = vld [vmem:[#allocation3 + $0x820] sm:$0xff]
    %v362 = vld [vmem:[#allocation3 + $0x828] sm:$0xff]
    %v363 = vld [vmem:[#allocation3 + $0x830] sm:$0xff]
    %v364 = vld [vmem:[#allocation3 + $0x838] sm:$0xff]
    %v365 = vld [vmem:[#allocation3 + $0x840] sm:$0xff]
    %v366 = vld [vmem:[#allocation3 + $0x848] sm:$0xff]
    %v367 = vld [vmem:[#allocation3 + $0x850] sm:$0xff]
    %v368 = vld [vmem:[#allocation3 + $0x858] sm:$0xff]
    %v369 = vld [vmem:[#allocation3 + $0x860] sm:$0xff]
    %v370 = vld [vmem:[#allocation3 + $0x868] sm:$0xff]
    %v371 = vld [vmem:[#allocation3 + $0x870] sm:$0xff]
    %v372 = vld [vmem:[#allocation3 + $0x878] sm:$0xff]
    %v373 = vld [vmem:[#allocation3 + $0x880] sm:$0xff]
    %v374 = vld [vmem:[#allocation3 + $0x888] sm:$0xff]
    %v375 = vld [vmem:[#allocation3 + $0x890] sm:$0xff]
    %v376 = vld [vmem:[#allocation3 + $0x898] sm:$0xff]
    %v377 = vld [vmem:[#allocation3 + $0x8a0] sm:$0xff]
    %v378 = vld [vmem:[#allocation3 + $0x8a8] sm:$0xff]
    %v379 = vld [vmem:[#allocation3 + $0x8b0] sm:$0xff]
    %v380 = vld [vmem:[#allocation3 + $0x8b8] sm:$0xff]
    %v381 = vld [vmem:[#allocation3 + $0x8c0] sm:$0xff]
    %v382 = vld [vmem:[#allocation3 + $0x8c8] sm:$0xff]
    %v383 = vld [vmem:[#allocation3 + $0x8d0] sm:$0xff]
    %v384 = vld [vmem:[#allocation3 + $0x8d8] sm:$0xff]
    %v385 = vld [vmem:[#allocation3 + $0x8e0] sm:$0xff]
    %v386 = vld [vmem:[#allocation3 + $0x8e8] sm:$0xff]
    %v387 = vld [vmem:[#allocation3 + $0x8f0] sm:$0xff]
    %v388 = vld [vmem:[#allocation3 + $0x8f8] sm:$0xff]
    %v389 = vld [vmem:[#allocation3 + $0x900] sm:$0xff]
    %v390 = vld [vmem:[#allocation3 + $0x908] sm:$0xff]
    %v391 = vld [vmem:[#allocation3 + $0x910] sm:$0xff]
    %v392 = vld [vmem:[#allocation3 + $0x918] sm:$0xff]
    %v393 = vld [vmem:[#allocation3 + $0x920] sm:$0xff]
    %v394 = vld [vmem:[#allocation3 + $0x928] sm:$0xff]
    %v395 = vld [vmem:[#allocation3 + $0x930] sm:$0xff]
    %v396 = vld [vmem:[#allocation3 + $0x938] sm:$0xff]
    %v397 = vld [vmem:[#allocation3 + $0x940] sm:$0xff]
    %v398 = vld [vmem:[#allocation3 + $0x948] sm:$0xff]
    %v399 = vld [vmem:[#allocation3 + $0x950] sm:$0xff]
    %v400 = vld [vmem:[#allocation3 + $0x958] sm:$0xff]
    %v401 = vld [vmem:[#allocation3 + $0x960] sm:$0xff]
    %v402 = vld [vmem:[#allocation3 + $0x968] sm:$0xff]
    %v403 = vld [vmem:[#allocation3 + $0x970] sm:$0xff]
    %v404 = vld [vmem:[#allocation3 + $0x978] sm:$0xff]
    %v405 = vld [vmem:[#allocation3 + $0x980] sm:$0xff]
    %v406 = vld [vmem:[#allocation3 + $0x988] sm:$0xff]
    %v407 = vld [vmem:[#allocation3 + $0x990] sm:$0xff]
    %v408 = vld [vmem:[#allocation3 + $0x998] sm:$0xff]
    %v409 = vld [vmem:[#allocation3 + $0x9a0] sm:$0xff]
    %v410 = vld [vmem:[#allocation3 + $0x9a8] sm:$0xff]
    %v411 = vld [vmem:[#allocation3 + $0x9b0] sm:$0xff]
    %v412 = vld [vmem:[#allocation3 + $0x9b8] sm:$0xff]
    %v413 = vld [vmem:[#allocation3 + $0x9c0] sm:$0xff]
    %v414 = vld [vmem:[#allocation3 + $0x9c8] sm:$0xff]
    %v415 = vld [vmem:[#allocation3 + $0x9d0] sm:$0xff]
    %v416 = vld [vmem:[#allocation3 + $0x9d8] sm:$0xff]
    %v417 = vld [vmem:[#allocation3 + $0x9e0] sm:$0xff]
    %v418 = vld [vmem:[#allocation3 + $0x9e8] sm:$0xff]
    %v419 = vld [vmem:[#allocation3 + $0x9f0] sm:$0xff]
    %v420 = vld [vmem:[#allocation3 + $0x9f8] sm:$0xff]
    %v421 = vld [vmem:[#allocation3 + $0xa00] sm:$0xff]
    %v422 = vld [vmem:[#allocation3 + $0xa08] sm:$0xff]
    %v423 = vld [vmem:[#allocation3 + $0xa10] sm:$0xff]
    %v424 = vld [vmem:[#allocation3 + $0xa18] sm:$0xff]
    %v425 = vld [vmem:[#allocation3 + $0xa20] sm:$0xff]
    %v426 = vld [vmem:[#allocation3 + $0xa28] sm:$0xff]
    %v427 = vld [vmem:[#allocation3 + $0xa30] sm:$0xff]
    %v428 = vld [vmem:[#allocation3 + $0xa38] sm:$0xff]
    %v429 = vld [vmem:[#allocation3 + $0xa40] sm:$0xff]
    %v430 = vld [vmem:[#allocation3 + $0xa48] sm:$0xff]
    %v431 = vld [vmem:[#allocation3 + $0xa50] sm:$0xff]
    %v432 = vld [vmem:[#allocation3 + $0xa58] sm:$0xff]
    %v433 = vld [vmem:[#allocation3 + $0xa60] sm:$0xff]
    %v434 = vld [vmem:[#allocation3 + $0xa68] sm:$0xff]
    %v435 = vld [vmem:[#allocation3 + $0xa70] sm:$0xff]
    %v436 = vld [vmem:[#allocation3 + $0xa78] sm:$0xff]
    %v437 = vld [vmem:[#allocation3 + $0xa80] sm:$0xff]
    %v438 = vld [vmem:[#allocation3 + $0xa88] sm:$0xff]
    %v439 = vld [vmem:[#allocation3 + $0xa90] sm:$0xff]
    %v440 = vld [vmem:[#allocation3 + $0xa98] sm:$0xff]
    %v441 = vld [vmem:[#allocation3 + $0xaa0] sm:$0xff]
    %v442 = vld [vmem:[#allocation3 + $0xaa8] sm:$0xff]
    %v443 = vld [vmem:[#allocation3 + $0xab0] sm:$0xff]
    %v444 = vld [vmem:[#allocation3 + $0xab8] sm:$0xff]
    %v445 = vld [vmem:[#allocation3 + $0xac0] sm:$0xff]
    %v446 = vld [vmem:[#allocation3 + $0xac8] sm:$0xff]
    %v447 = vld [vmem:[#allocation3 + $0xad0] sm:$0xff]
    %v448 = vld [vmem:[#allocation3 + $0xad8] sm:$0xff]
    %v449 = vld [vmem:[#allocation3 + $0xae0] sm:$0xff]
    %v450 = vld [vmem:[#allocation3 + $0xae8] sm:$0xff]
    %v451 = vld [vmem:[#allocation3 + $0xaf0] sm:$0xff]
    %v452 = vld [vmem:[#allocation3 + $0xaf8] sm:$0xff]
    %v453 = vld [vmem:[#allocation3 + $0xb00] sm:$0xff]
    %v454 = vld [vmem:[#allocation3 + $0xb08] sm:$0xff]
    %v455 = vld [vmem:[#allocation3 + $0xb10] sm:$0xff]
    %v456 = vld [vmem:[#allocation3 + $0xb18] sm:$0xff]
    %v457 = vld [vmem:[#allocation3 + $0xb20] sm:$0xff]
    %v458 = vld [vmem:[#allocation3 + $0xb28] sm:$0xff]
    %v459 = vld [vmem:[#allocation3 + $0xb30] sm:$0xff]
    %v460 = vld [vmem:[#allocation3 + $0xb38] sm:$0xff]
    %v461 = vld [vmem:[#allocation3 + $0xb40] sm:$0xff]
    %v462 = vld [vmem:[#allocation3 + $0xb48] sm:$0xff]
    %v463 = vld [vmem:[#allocation3 + $0xb50] sm:$0xff]
    %v464 = vld [vmem:[#allocation3 + $0xb58] sm:$0xff]
    %v465 = vld [vmem:[#allocation3 + $0xb60] sm:$0xff]
    %v466 = vld [vmem:[#allocation3 + $0xb68] sm:$0xff]
    %v467 = vld [vmem:[#allocation3 + $0xb70] sm:$0xff]
    %v468 = vld [vmem:[#allocation3 + $0xb78] sm:$0xff]
    %v469 = vld [vmem:[#allocation3 + $0xb80] sm:$0xff]
    %v470 = vld [vmem:[#allocation3 + $0xb88] sm:$0xff]
    %v471 = vld [vmem:[#allocation3 + $0xb90] sm:$0xff]
    %v472 = vld [vmem:[#allocation3 + $0xb98] sm:$0xff]
    %v473 = vld [vmem:[#allocation3 + $0xba0] sm:$0xff]
    %v474 = vld [vmem:[#allocation3 + $0xba8] sm:$0xff]
    %v475 = vld [vmem:[#allocation3 + $0xbb0] sm:$0xff]
    %v476 = vld [vmem:[#allocation3 + $0xbb8] sm:$0xff]
    %v477 = vld [vmem:[#allocation3 + $0xbc0] sm:$0xff]
    %v478 = vld [vmem:[#allocation3 + $0xbc8] sm:$0xff]
    %v479 = vld [vmem:[#allocation3 + $0xbd0] sm:$0xff]
    %v480 = vld [vmem:[#allocation3 + $0xbd8] sm:$0xff]
    %v481 = vld [vmem:[#allocation3 + $0xbe0] sm:$0xff]
    %v482 = vld [vmem:[#allocation3 + $0xbe8] sm:$0xff]
    %v483 = vld [vmem:[#allocation3 + $0xbf0] sm:$0xff]
    %v484 = vld [vmem:[#allocation3 + $0xbf8] sm:$0xff]
    %v485 = vld [vmem:[#allocation3 + $0xc00] sm:$0xff]
    %v486 = vld [vmem:[#allocation3 + $0xc08] sm:$0xff]
    %v487 = vld [vmem:[#allocation3 + $0xc10] sm:$0xff]
    %v488 = vld [vmem:[#allocation3 + $0xc18] sm:$0xff]
    %v489 = vld [vmem:[#allocation3 + $0xc20] sm:$0xff]
    %v490 = vld [vmem:[#allocation3 + $0xc28] sm:$0xff]
    %v491 = vld [vmem:[#allocation3 + $0xc30] sm:$0xff]
    %v492 = vld [vmem:[#allocation3 + $0xc38] sm:$0xff]
    %v493 = vld [vmem:[#allocation3 + $0xc40] sm:$0xff]
    %v494 = vld [vmem:[#allocation3 + $0xc48] sm:$0xff]
    %v495 = vld [vmem:[#allocation3 + $0xc50] sm:$0xff]
    %v496 = vld [vmem:[#allocation3 + $0xc58] sm:$0xff]
    %v497 = vld [vmem:[#allocation3 + $0xc60] sm:$0xff]
    %v498 = vld [vmem:[#allocation3 + $0xc68] sm:$0xff]
    %v499 = vld [vmem:[#allocation3 + $0xc70] sm:$0xff]
    %v500 = vld [vmem:[#allocation3 + $0xc78] sm:$0xff]
    %v501 = vld [vmem:[#allocation3 + $0xc80] sm:$0xff]
    %v502 = vld [vmem:[#allocation3 + $0xc88] sm:$0xff]
    %v503 = vld [vmem:[#allocation3 + $0xc90] sm:$0xff]
    %v504 = vld [vmem:[#allocation3 + $0xc98] sm:$0xff]
    %v505 = vld [vmem:[#allocation3 + $0xca0] sm:$0xff]
    %v506 = vld [vmem:[#allocation3 + $0xca8] sm:$0xff]
    %v507 = vld [vmem:[#allocation3 + $0xcb0] sm:$0xff]
    %v508 = vld [vmem:[#allocation3 + $0xcb8] sm:$0xff]
    %v509 = vld [vmem:[#allocation3 + $0xcc0] sm:$0xff]
    %v510 = vld [vmem:[#allocation3 + $0xcc8] sm:$0xff]
    %v511 = vld [vmem:[#allocation3 + $0xcd0] sm:$0xff]
    %v512 = vld [vmem:[#allocation3 + $0xcd8] sm:$0xff]
    %v513 = vld [vmem:[#allocation3 + $0xce0] sm:$0xff]
    %v514 = vld [vmem:[#allocation3 + $0xce8] sm:$0xff]
    %v515 = vld [vmem:[#allocation3 + $0xcf0] sm:$0xff]
    %v516 = vld [vmem:[#allocation3 + $0xcf8] sm:$0xff]
    %v517 = vld [vmem:[#allocation3 + $0xd00] sm:$0xff]
    %v518 = vld [vmem:[#allocation3 + $0xd08] sm:$0xff]
    %v519 = vld [vmem:[#allocation3 + $0xd10] sm:$0xff]
    %v520 = vld [vmem:[#allocation3 + $0xd18] sm:$0xff]
    %v521 = vld [vmem:[#allocation3 + $0xd20] sm:$0xff]
    %v522 = vld [vmem:[#allocation3 + $0xd28] sm:$0xff]
    %v523 = vld [vmem:[#allocation3 + $0xd30] sm:$0xff]
    %v524 = vld [vmem:[#allocation3 + $0xd38] sm:$0xff]
    %v525 = vld [vmem:[#allocation3 + $0xd40] sm:$0xff]
    %v526 = vld [vmem:[#allocation3 + $0xd48] sm:$0xff]
    %v527 = vld [vmem:[#allocation3 + $0xd50] sm:$0xff]
    %v528 = vld [vmem:[#allocation3 + $0xd58] sm:$0xff]
    %v529 = vld [vmem:[#allocation3 + $0xd60] sm:$0xff]
    %v530 = vld [vmem:[#allocation3 + $0xd68] sm:$0xff]
    %v531 = vld [vmem:[#allocation3 + $0xd70] sm:$0xff]
    %v532 = vld [vmem:[#allocation3 + $0xd78] sm:$0xff]
    %v533 = vld [vmem:[#allocation3 + $0xd80] sm:$0xff]
    %v534 = vld [vmem:[#allocation3 + $0xd88] sm:$0xff]
    %v535 = vld [vmem:[#allocation3 + $0xd90] sm:$0xff]
    %v536 = vld [vmem:[#allocation3 + $0xd98] sm:$0xff]
    %v537 = vld [vmem:[#allocation3 + $0xda0] sm:$0xff]
    %v538 = vld [vmem:[#allocation3 + $0xda8] sm:$0xff]
    %v539 = vld [vmem:[#allocation3 + $0xdb0] sm:$0xff]
    %v540 = vld [vmem:[#allocation3 + $0xdb8] sm:$0xff]
    %v541 = vld [vmem:[#allocation3 + $0xdc0] sm:$0xff]
    %v542 = vld [vmem:[#allocation3 + $0xdc8] sm:$0xff]
    %v543 = vld [vmem:[#allocation3 + $0xdd0] sm:$0xff]
    %v544 = vld [vmem:[#allocation3 + $0xdd8] sm:$0xff]
    %v545 = vld [vmem:[#allocation3 + $0xde0] sm:$0xff]
    %v546 = vld [vmem:[#allocation3 + $0xde8] sm:$0xff]
    %v547 = vld [vmem:[#allocation3 + $0xdf0] sm:$0xff]
    %v548 = vld [vmem:[#allocation3 + $0xdf8] sm:$0xff]
    %v549 = vld [vmem:[#allocation3 + $0xe00] sm:$0xff]
    %v550 = vld [vmem:[#allocation3 + $0xe08] sm:$0xff]
    %v551 = vld [vmem:[#allocation3 + $0xe10] sm:$0xff]
    %v552 = vld [vmem:[#allocation3 + $0xe18] sm:$0xff]
    %v553 = vld [vmem:[#allocation3 + $0xe20] sm:$0xff]
    %v554 = vld [vmem:[#allocation3 + $0xe28] sm:$0xff]
    %v555 = vld [vmem:[#allocation3 + $0xe30] sm:$0xff]
    %v556 = vld [vmem:[#allocation3 + $0xe38] sm:$0xff]
    %v557 = vld [vmem:[#allocation3 + $0xe40] sm:$0xff]
    %v558 = vld [vmem:[#allocation3 + $0xe48] sm:$0xff]
    %v559 = vld [vmem:[#allocation3 + $0xe50] sm:$0xff]
    %v560 = vld [vmem:[#allocation3 + $0xe58] sm:$0xff]
    %v561 = vld [vmem:[#allocation3 + $0xe60] sm:$0xff]
    %v562 = vld [vmem:[#allocation3 + $0xe68] sm:$0xff]
    %v563 = vld [vmem:[#allocation3 + $0xe70] sm:$0xff]
    %v564 = vld [vmem:[#allocation3 + $0xe78] sm:$0xff]
    %v565 = vld [vmem:[#allocation3 + $0xe80] sm:$0xff]
    %v566 = vld [vmem:[#allocation3 + $0xe88] sm:$0xff]
    %v567 = vld [vmem:[#allocation3 + $0xe90] sm:$0xff]
    %v568 = vld [vmem:[#allocation3 + $0xe98] sm:$0xff]
    %v569 = vld [vmem:[#allocation3 + $0xea0] sm:$0xff]
    %v570 = vld [vmem:[#allocation3 + $0xea8] sm:$0xff]
    %v571 = vld [vmem:[#allocation3 + $0xeb0] sm:$0xff]
    %v572 = vld [vmem:[#allocation3 + $0xeb8] sm:$0xff]
    %v573 = vld [vmem:[#allocation3 + $0xec0] sm:$0xff]
    %v574 = vld [vmem:[#allocation3 + $0xec8] sm:$0xff]
    %v575 = vld [vmem:[#allocation3 + $0xed0] sm:$0xff]
    %v576 = vld [vmem:[#allocation3 + $0xed8] sm:$0xff]
    %v577 = vld [vmem:[#allocation3 + $0xee0] sm:$0xff]
    %v578 = vld [vmem:[#allocation3 + $0xee8] sm:$0xff]
    %v579 = vld [vmem:[#allocation3 + $0xef0] sm:$0xff]
    %v580 = vld [vmem:[#allocation3 + $0xef8] sm:$0xff]
    %v581 = vld [vmem:[#allocation3 + $0xf00] sm:$0xff]
    %v582 = vld [vmem:[#allocation3 + $0xf08] sm:$0xff]
    %v583 = vld [vmem:[#allocation3 + $0xf10] sm:$0xff]
    %v584 = vld [vmem:[#allocation3 + $0xf18] sm:$0xff]
    %v585 = vld [vmem:[#allocation3 + $0xf20] sm:$0xff]
    %v586 = vld [vmem:[#allocation3 + $0xf28] sm:$0xff]
    %v587 = vld [vmem:[#allocation3 + $0xf30] sm:$0xff]
    %v588 = vld [vmem:[#allocation3 + $0xf38] sm:$0xff]
    %v589 = vld [vmem:[#allocation3 + $0xf40] sm:$0xff]
    %v590 = vld [vmem:[#allocation3 + $0xf48] sm:$0xff]
    %v591 = vld [vmem:[#allocation3 + $0xf50] sm:$0xff]
    %v592 = vld [vmem:[#allocation3 + $0xf58] sm:$0xff]
    %v593 = vld [vmem:[#allocation3 + $0xf60] sm:$0xff]
    %v594 = vld [vmem:[#allocation3 + $0xf68] sm:$0xff]
    %v595 = vld [vmem:[#allocation3 + $0xf70] sm:$0xff]
    %v596 = vld [vmem:[#allocation3 + $0xf78] sm:$0xff]
    %v597 = vld [vmem:[#allocation3 + $0xf80] sm:$0xff]
    %v598 = vld [vmem:[#allocation3 + $0xf88] sm:$0xff]
    %v599 = vld [vmem:[#allocation3 + $0xf90] sm:$0xff]
    %v600 = vld [vmem:[#allocation3 + $0xf98] sm:$0xff]
    %v601 = vld [vmem:[#allocation3 + $0xfa0] sm:$0xff]
    %v602 = vld [vmem:[#allocation3 + $0xfa8] sm:$0xff]
    %v603 = vld [vmem:[#allocation3 + $0xfb0] sm:$0xff]
    %v604 = vld [vmem:[#allocation3 + $0xfb8] sm:$0xff]
    %v605 = vld [vmem:[#allocation3 + $0xfc0] sm:$0xff]
    %v606 = vld [vmem:[#allocation3 + $0xfc8] sm:$0xff]
    %v607 = vld [vmem:[#allocation3 + $0xfd0] sm:$0xff]
    %v608 = vld [vmem:[#allocation3 + $0xfd8] sm:$0xff]
    %v609 = vld [vmem:[#allocation3 + $0xfe0] sm:$0xff]
    %v610 = vld [vmem:[#allocation3 + $0xfe8] sm:$0xff]
    %v611 = vld [vmem:[#allocation3 + $0xff0] sm:$0xff]
    %v612 = vld [vmem:[#allocation3 + $0xff8] sm:$0xff]
    %v613 = vld [vmem:[#allocation3 + $0x1000] sm:$0xff]
    %v614 = vld [vmem:[#allocation3 + $0x1008] sm:$0xff]
    %v615 = vld [vmem:[#allocation3 + $0x1010] sm:$0xff]
    %v616 = vld [vmem:[#allocation3 + $0x1018] sm:$0xff]
    %v617 = vld [vmem:[#allocation3 + $0x1020] sm:$0xff]
    %v618 = vld [vmem:[#allocation3 + $0x1028] sm:$0xff]
    %v619 = vld [vmem:[#allocation3 + $0x1030] sm:$0xff]
    %v620 = vld [vmem:[#allocation3 + $0x1038] sm:$0xff]
    %v621 = vld [vmem:[#allocation3 + $0x1040] sm:$0xff]
    %v622 = vld [vmem:[#allocation3 + $0x1048] sm:$0xff]
    %v623 = vld [vmem:[#allocation3 + $0x1050] sm:$0xff]
    %v624 = vld [vmem:[#allocation3 + $0x1058] sm:$0xff]
    %v625 = vld [vmem:[#allocation3 + $0x1060] sm:$0xff]
    %v626 = vld [vmem:[#allocation3 + $0x1068] sm:$0xff]
    %v627 = vld [vmem:[#allocation3 + $0x1070] sm:$0xff]
    %v628 = vld [vmem:[#allocation3 + $0x1078] sm:$0xff]
    %v629 = vld [vmem:[#allocation3 + $0x1080] sm:$0xff]
    %v630 = vld [vmem:[#allocation3 + $0x1088] sm:$0xff]
    %v631 = vld [vmem:[#allocation3 + $0x1090] sm:$0xff]
    %v632 = vld [vmem:[#allocation3 + $0x1098] sm:$0xff]
    %v633 = vld [vmem:[#allocation3 + $0x10a0] sm:$0xff]
    %v634 = vld [vmem:[#allocation3 + $0x10a8] sm:$0xff]
    %v635 = vld [vmem:[#allocation3 + $0x10b0] sm:$0xff]
    %v636 = vld [vmem:[#allocation3 + $0x10b8] sm:$0xff]
    %v637 = vld [vmem:[#allocation3 + $0x10c0] sm:$0xff]
    %v638 = vld [vmem:[#allocation3 + $0x10c8] sm:$0xff]
    %v639 = vld [vmem:[#allocation3 + $0x10d0] sm:$0xff]
    %v640 = vld [vmem:[#allocation3 + $0x10d8] sm:$0xff]
    %v641 = vld [vmem:[#allocation3 + $0x10e0] sm:$0xff]
    %v642 = vld [vmem:[#allocation3 + $0x10e8] sm:$0xff]
    %v643 = vld [vmem:[#allocation3 + $0x10f0] sm:$0xff]
    %v644 = vld [vmem:[#allocation3 + $0x10f8] sm:$0xff]
    %v645 = vld [vmem:[#allocation3 + $0x1100] sm:$0xff]
    %v646 = vld [vmem:[#allocation3 + $0x1108] sm:$0xff]
    %v647 = vld [vmem:[#allocation3 + $0x1110] sm:$0xff]
    %v648 = vld [vmem:[#allocation3 + $0x1118] sm:$0xff]
    %v649 = vld [vmem:[#allocation3 + $0x1120] sm:$0xff]
    %v650 = vld [vmem:[#allocation3 + $0x1128] sm:$0xff]
    %v651 = vld [vmem:[#allocation3 + $0x1130] sm:$0xff]
    %v652 = vld [vmem:[#allocation3 + $0x1138] sm:$0xff]
    %v653 = vld [vmem:[#allocation3 + $0x1140] sm:$0xff]
    %v654 = vld [vmem:[#allocation3 + $0x1148] sm:$0xff]
    %v655 = vld [vmem:[#allocation3 + $0x1150] sm:$0xff]
    %v656 = vld [vmem:[#allocation3 + $0x1158] sm:$0xff]
    %v657 = vld [vmem:[#allocation3 + $0x1160] sm:$0xff]
    %v658 = vld [vmem:[#allocation3 + $0x1168] sm:$0xff]
    %v659 = vld [vmem:[#allocation3 + $0x1170] sm:$0xff]
    %v660 = vld [vmem:[#allocation3 + $0x1178] sm:$0xff]
    %v661 = vld [vmem:[#allocation3 + $0x1180] sm:$0xff]
    %v662 = vld [vmem:[#allocation3 + $0x1188] sm:$0xff]
    %v663 = vld [vmem:[#allocation3 + $0x1190] sm:$0xff]
    %v664 = vld [vmem:[#allocation3 + $0x1198] sm:$0xff]
    %v665 = vld [vmem:[#allocation3 + $0x11a0] sm:$0xff]
    %v666 = vld [vmem:[#allocation3 + $0x11a8] sm:$0xff]
    %v667 = vld [vmem:[#allocation3 + $0x11b0] sm:$0xff]
    %v668 = vld [vmem:[#allocation3 + $0x11b8] sm:$0xff]
    %v669 = vld [vmem:[#allocation3 + $0x11c0] sm:$0xff]
    %v670 = vld [vmem:[#allocation3 + $0x11c8] sm:$0xff]
    %v671 = vld [vmem:[#allocation3 + $0x11d0] sm:$0xff]
    %v672 = vld [vmem:[#allocation3 + $0x11d8] sm:$0xff]
    %v673 = vld [vmem:[#allocation3 + $0x11e0] sm:$0xff]
    %v674 = vld [vmem:[#allocation3 + $0x11e8] sm:$0xff]
    %v675 = vld [vmem:[#allocation3 + $0x11f0] sm:$0xff]
    %v676 = vld [vmem:[#allocation3 + $0x11f8] sm:$0xff]
    %v677 = vld [vmem:[#allocation3 + $0x1200] sm:$0xff]
    %v678 = vld [vmem:[#allocation3 + $0x1208] sm:$0xff]
    %v679 = vld [vmem:[#allocation3 + $0x1210] sm:$0xff]
    %v680 = vld [vmem:[#allocation3 + $0x1218] sm:$0xff]
    %v681 = vld [vmem:[#allocation3 + $0x1220] sm:$0xff]
    %v682 = vld [vmem:[#allocation3 + $0x1228] sm:$0xff]
    %v683 = vld [vmem:[#allocation3 + $0x1230] sm:$0xff]
    %v684 = vld [vmem:[#allocation3 + $0x1238] sm:$0xff]
    %v685 = vld [vmem:[#allocation3 + $0x1240] sm:$0xff]
    %v686 = vld [vmem:[#allocation3 + $0x1248] sm:$0xff]
    %v687 = vld [vmem:[#allocation3 + $0x1250] sm:$0xff]
    %v688 = vld [vmem:[#allocation3 + $0x1258] sm:$0xff]
    %v689 = vld [vmem:[#allocation3 + $0x1260] sm:$0xff]
    %v690 = vld [vmem:[#allocation3 + $0x1268] sm:$0xff]
    %v691 = vld [vmem:[#allocation3 + $0x1270] sm:$0xff]
    %v692 = vld [vmem:[#allocation3 + $0x1278] sm:$0xff]
    %v693 = vld [vmem:[#allocation3 + $0x1280] sm:$0xff]
    %v694 = vld [vmem:[#allocation3 + $0x1288] sm:$0xff]
    %v695 = vld [vmem:[#allocation3 + $0x1290] sm:$0xff]
    %v696 = vld [vmem:[#allocation3 + $0x1298] sm:$0xff]
    %v697 = vld [vmem:[#allocation3 + $0x12a0] sm:$0xff]
    %v698 = vld [vmem:[#allocation3 + $0x12a8] sm:$0xff]
    %v699 = vld [vmem:[#allocation3 + $0x12b0] sm:$0xff]
    %v700 = vld [vmem:[#allocation3 + $0x12b8] sm:$0xff]
    %v701 = vld [vmem:[#allocation3 + $0x12c0] sm:$0xff]
    %v702 = vld [vmem:[#allocation3 + $0x12c8] sm:$0xff]
    %v703 = vld [vmem:[#allocation3 + $0x12d0] sm:$0xff]
    %v704 = vld [vmem:[#allocation3 + $0x12d8] sm:$0xff]
    %v705 = vld [vmem:[#allocation3 + $0x12e0] sm:$0xff]
    %v706 = vld [vmem:[#allocation3 + $0x12e8] sm:$0xff]
    %v707 = vld [vmem:[#allocation3 + $0x12f0] sm:$0xff]
    %v708 = vld [vmem:[#allocation3 + $0x12f8] sm:$0xff]
    %v709 = vld [vmem:[#allocation3 + $0x1300] sm:$0xff]
    %v710 = vld [vmem:[#allocation3 + $0x1308] sm:$0xff]
    %v711 = vld [vmem:[#allocation3 + $0x1310] sm:$0xff]
    %v712 = vld [vmem:[#allocation3 + $0x1318] sm:$0xff]
    %v713 = vld [vmem:[#allocation3 + $0x1320] sm:$0xff]
    %v714 = vld [vmem:[#allocation3 + $0x1328] sm:$0xff]
    %v715 = vld [vmem:[#allocation3 + $0x1330] sm:$0xff]
    %v716 = vld [vmem:[#allocation3 + $0x1338] sm:$0xff]
    %v717 = vld [vmem:[#allocation3 + $0x1340] sm:$0xff]
    %v718 = vld [vmem:[#allocation3 + $0x1348] sm:$0xff]
    %v719 = vld [vmem:[#allocation3 + $0x1350] sm:$0xff]
    %v720 = vld [vmem:[#allocation3 + $0x1358] sm:$0xff]
    %v721 = vld [vmem:[#allocation3 + $0x1360] sm:$0xff]
    %v722 = vld [vmem:[#allocation3 + $0x1368] sm:$0xff]
    %v723 = vld [vmem:[#allocation3 + $0x1370] sm:$0xff]
    %v724 = vld [vmem:[#allocation3 + $0x1378] sm:$0xff]
    %v725 = vld [vmem:[#allocation3 + $0x1380] sm:$0xff]
    %v726 = vld [vmem:[#allocation3 + $0x1388] sm:$0xff]
    %v727 = vld [vmem:[#allocation3 + $0x1390] sm:$0xff]
    %v728 = vld [vmem:[#allocation3 + $0x1398] sm:$0xff]
    %v729 = vld [vmem:[#allocation3 + $0x13a0] sm:$0xff]
    %v730 = vld [vmem:[#allocation3 + $0x13a8] sm:$0xff]
    %v731 = vld [vmem:[#allocation3 + $0x13b0] sm:$0xff]
    %v732 = vld [vmem:[#allocation3 + $0x13b8] sm:$0xff]
    %v733 = vld [vmem:[#allocation3 + $0x13c0] sm:$0xff]
    %v734 = vld [vmem:[#allocation3 + $0x13c8] sm:$0xff]
    %v735 = vld [vmem:[#allocation3 + $0x13d0] sm:$0xff]
    %v736 = vld [vmem:[#allocation3 + $0x13d8] sm:$0xff]
    %v737 = vld [vmem:[#allocation3 + $0x13e0] sm:$0xff]
    %v738 = vld [vmem:[#allocation3 + $0x13e8] sm:$0xff]
    %v739 = vld [vmem:[#allocation3 + $0x13f0] sm:$0xff]
    %v740 = vld [vmem:[#allocation3 + $0x13f8] sm:$0xff]
    %v741 = vld [vmem:[#allocation3 + $0x1400] sm:$0xff]
    %v742 = vld [vmem:[#allocation3 + $0x1408] sm:$0xff]
    %v743 = vld [vmem:[#allocation3 + $0x1410] sm:$0xff]
    %v744 = vld [vmem:[#allocation3 + $0x1418] sm:$0xff]
    %v745 = vld [vmem:[#allocation3 + $0x1420] sm:$0xff]
    %v746 = vld [vmem:[#allocation3 + $0x1428] sm:$0xff]
    %v747 = vld [vmem:[#allocation3 + $0x1430] sm:$0xff]
    %v748 = vld [vmem:[#allocation3 + $0x1438] sm:$0xff]
    %v749 = vld [vmem:[#allocation3 + $0x1440] sm:$0xff]
    %v750 = vld [vmem:[#allocation3 + $0x1448] sm:$0xff]
    %v751 = vld [vmem:[#allocation3 + $0x1450] sm:$0xff]
    %v752 = vld [vmem:[#allocation3 + $0x1458] sm:$0xff]
    %v753 = vld [vmem:[#allocation3 + $0x1460] sm:$0xff]
    %v754 = vld [vmem:[#allocation3 + $0x1468] sm:$0xff]
    %v755 = vld [vmem:[#allocation3 + $0x1470] sm:$0xff]
    %v756 = vld [vmem:[#allocation3 + $0x1478] sm:$0xff]
    %v757 = vld [vmem:[#allocation3 + $0x1480] sm:$0xff]
    %v758 = vld [vmem:[#allocation3 + $0x1488] sm:$0xff]
    %v759 = vld [vmem:[#allocation3 + $0x1490] sm:$0xff]
    %v760 = vld [vmem:[#allocation3 + $0x1498] sm:$0xff]
    %v761 = vld [vmem:[#allocation3 + $0x14a0] sm:$0xff]
    %v762 = vld [vmem:[#allocation3 + $0x14a8] sm:$0xff]
    %v763 = vld [vmem:[#allocation3 + $0x14b0] sm:$0xff]
    %v764 = vld [vmem:[#allocation3 + $0x14b8] sm:$0xff]
    %v765 = vld [vmem:[#allocation3 + $0x14c0] sm:$0xff]
    %v766 = vld [vmem:[#allocation3 + $0x14c8] sm:$0xff]
    %v767 = vld [vmem:[#allocation3 + $0x14d0] sm:$0xff]
    %v768 = vld [vmem:[#allocation3 + $0x14d8] sm:$0xff]
    %v769 = vld [vmem:[#allocation3 + $0x14e0] sm:$0xff]
    %v770 = vld [vmem:[#allocation3 + $0x14e8] sm:$0xff]
    %v771 = vld [vmem:[#allocation3 + $0x14f0] sm:$0xff]
    %v772 = vld [vmem:[#allocation3 + $0x14f8] sm:$0xff]
    %v773 = vld [vmem:[#allocation3 + $0x1500] sm:$0xff]
    %v774 = vld [vmem:[#allocation3 + $0x1508] sm:$0xff]
    %v775 = vld [vmem:[#allocation3 + $0x1510] sm:$0xff]
    %v776 = vld [vmem:[#allocation3 + $0x1518] sm:$0xff]
    %v777 = vld [vmem:[#allocation3 + $0x1520] sm:$0xff]
    %v778 = vld [vmem:[#allocation3 + $0x1528] sm:$0xff]
    %v779 = vld [vmem:[#allocation3 + $0x1530] sm:$0xff]
    %v780 = vld [vmem:[#allocation3 + $0x1538] sm:$0xff]
    %v781 = vld [vmem:[#allocation3 + $0x1540] sm:$0xff]
    %v782 = vld [vmem:[#allocation3 + $0x1548] sm:$0xff]
    %v783 = vld [vmem:[#allocation3 + $0x1550] sm:$0xff]
    %v784 = vld [vmem:[#allocation3 + $0x1558] sm:$0xff]
    %v785 = vld [vmem:[#allocation3 + $0x1560] sm:$0xff]
    %v786 = vld [vmem:[#allocation3 + $0x1568] sm:$0xff]
    %v787 = vld [vmem:[#allocation3 + $0x1570] sm:$0xff]
    %v788 = vld [vmem:[#allocation3 + $0x1578] sm:$0xff]
    %v789 = vld [vmem:[#allocation3 + $0x1580] sm:$0xff]
    %v790 = vld [vmem:[#allocation3 + $0x1588] sm:$0xff]
    %v791 = vld [vmem:[#allocation3 + $0x1590] sm:$0xff]
    %v792 = vld [vmem:[#allocation3 + $0x1598] sm:$0xff]
    %v793 = vld [vmem:[#allocation3 + $0x15a0] sm:$0xff]
    %v794 = vld [vmem:[#allocation3 + $0x15a8] sm:$0xff]
    %v795 = vld [vmem:[#allocation3 + $0x15b0] sm:$0xff]
    %v796 = vld [vmem:[#allocation3 + $0x15b8] sm:$0xff]
    %v797 = vld [vmem:[#allocation3 + $0x15c0] sm:$0xff]
    %v798 = vld [vmem:[#allocation3 + $0x15c8] sm:$0xff]
    %v799 = vld [vmem:[#allocation3 + $0x15d0] sm:$0xff]
    %v800 = vld [vmem:[#allocation3 + $0x15d8] sm:$0xff]
    %v801 = vld [vmem:[#allocation3 + $0x15e0] sm:$0xff]
    %v802 = vld [vmem:[#allocation3 + $0x15e8] sm:$0xff]
    %v803 = vld [vmem:[#allocation3 + $0x15f0] sm:$0xff]
    %v804 = vld [vmem:[#allocation3 + $0x15f8] sm:$0xff]
    %v805 = vld [vmem:[#allocation3 + $0x1600] sm:$0xff]
    %v806 = vld [vmem:[#allocation3 + $0x1608] sm:$0xff]
    %v807 = vld [vmem:[#allocation3 + $0x1610] sm:$0xff]
    %v808 = vld [vmem:[#allocation3 + $0x1618] sm:$0xff]
    %v809 = vld [vmem:[#allocation3 + $0x1620] sm:$0xff]
    %v810 = vld [vmem:[#allocation3 + $0x1628] sm:$0xff]
    %v811 = vld [vmem:[#allocation3 + $0x1630] sm:$0xff]
    %v812 = vld [vmem:[#allocation3 + $0x1638] sm:$0xff]
    %v813 = vld [vmem:[#allocation3 + $0x1640] sm:$0xff]
    %v814 = vld [vmem:[#allocation3 + $0x1648] sm:$0xff]
    %v815 = vld [vmem:[#allocation3 + $0x1650] sm:$0xff]
    %v816 = vld [vmem:[#allocation3 + $0x1658] sm:$0xff]
    %v817 = vld [vmem:[#allocation3 + $0x1660] sm:$0xff]
    %v818 = vld [vmem:[#allocation3 + $0x1668] sm:$0xff]
    %v819 = vld [vmem:[#allocation3 + $0x1670] sm:$0xff]
    %v820 = vld [vmem:[#allocation3 + $0x1678] sm:$0xff]
    %v821 = vld [vmem:[#allocation3 + $0x1680] sm:$0xff]
    %v822 = vld [vmem:[#allocation3 + $0x1688] sm:$0xff]
    %v823 = vld [vmem:[#allocation3 + $0x1690] sm:$0xff]
    %v824 = vld [vmem:[#allocation3 + $0x1698] sm:$0xff]
    %v825 = vld [vmem:[#allocation3 + $0x16a0] sm:$0xff]
    %v826 = vld [vmem:[#allocation3 + $0x16a8] sm:$0xff]
    %v827 = vld [vmem:[#allocation3 + $0x16b0] sm:$0xff]
    %v828 = vld [vmem:[#allocation3 + $0x16b8] sm:$0xff]
    %v829 = vld [vmem:[#allocation3 + $0x16c0] sm:$0xff]
    %v830 = vld [vmem:[#allocation3 + $0x16c8] sm:$0xff]
    %v831 = vld [vmem:[#allocation3 + $0x16d0] sm:$0xff]
    %v832 = vld [vmem:[#allocation3 + $0x16d8] sm:$0xff]
    %v833 = vld [vmem:[#allocation3 + $0x16e0] sm:$0xff]
    %v834 = vld [vmem:[#allocation3 + $0x16e8] sm:$0xff]
    %v835 = vld [vmem:[#allocation3 + $0x16f0] sm:$0xff]
    %v836 = vld [vmem:[#allocation3 + $0x16f8] sm:$0xff]
    %v837 = vld [vmem:[#allocation3 + $0x1700] sm:$0xff]
    %v838 = vld [vmem:[#allocation3 + $0x1708] sm:$0xff]
    %v839 = vld [vmem:[#allocation3 + $0x1710] sm:$0xff]
    %v840 = vld [vmem:[#allocation3 + $0x1718] sm:$0xff]
    %v841 = vld [vmem:[#allocation3 + $0x1720] sm:$0xff]
    %v842 = vld [vmem:[#allocation3 + $0x1728] sm:$0xff]
    %v843 = vld [vmem:[#allocation3 + $0x1730] sm:$0xff]
    %v844 = vld [vmem:[#allocation3 + $0x1738] sm:$0xff]
    %v845 = vld [vmem:[#allocation3 + $0x1740] sm:$0xff]
    %v846 = vld [vmem:[#allocation3 + $0x1748] sm:$0xff]
    %v847 = vld [vmem:[#allocation3 + $0x1750] sm:$0xff]
    %v848 = vld [vmem:[#allocation3 + $0x1758] sm:$0xff]
    %v849 = vld [vmem:[#allocation3 + $0x1760] sm:$0xff]
    %v850 = vld [vmem:[#allocation3 + $0x1768] sm:$0xff]
    %v851 = vld [vmem:[#allocation3 + $0x1770] sm:$0xff]
    %v852 = vld [vmem:[#allocation3 + $0x1778] sm:$0xff]
    %v853 = vld [vmem:[#allocation3 + $0x1780] sm:$0xff]
    %v854 = vld [vmem:[#allocation3 + $0x1788] sm:$0xff]
    %v855 = vld [vmem:[#allocation3 + $0x1790] sm:$0xff]
    %v856 = vld [vmem:[#allocation3 + $0x1798] sm:$0xff]
    %v857 = vld [vmem:[#allocation3 + $0x17a0] sm:$0xff]
    %v858 = vld [vmem:[#allocation3 + $0x17a8] sm:$0xff]
    %v859 = vld [vmem:[#allocation3 + $0x17b0] sm:$0xff]
    %v860 = vld [vmem:[#allocation3 + $0x17b8] sm:$0xff]
    %v861 = vld [vmem:[#allocation3 + $0x17c0] sm:$0xff]
    %v862 = vld [vmem:[#allocation3 + $0x17c8] sm:$0xff]
    %v863 = vld [vmem:[#allocation3 + $0x17d0] sm:$0xff]
    %v864 = vld [vmem:[#allocation3 + $0x17d8] sm:$0xff]
    %v865 = vld [vmem:[#allocation3 + $0x17e0] sm:$0xff]
    %v866 = vld [vmem:[#allocation3 + $0x17e8] sm:$0xff]
    %v867 = vld [vmem:[#allocation3 + $0x17f0] sm:$0xff]
    %v868 = vld [vmem:[#allocation3 + $0x17f8] sm:$0xff]
    %v869 = vld [vmem:[#allocation3 + $0x1800] sm:$0xff]
    %v870 = vld [vmem:[#allocation3 + $0x1808] sm:$0xff]
    %v871 = vld [vmem:[#allocation3 + $0x1810] sm:$0xff]
    %v872 = vld [vmem:[#allocation3 + $0x1818] sm:$0xff]
    %v873 = vld [vmem:[#allocation3 + $0x1820] sm:$0xff]
    %v874 = vld [vmem:[#allocation3 + $0x1828] sm:$0xff]
    %v875 = vld [vmem:[#allocation3 + $0x1830] sm:$0xff]
    %v876 = vld [vmem:[#allocation3 + $0x1838] sm:$0xff]
    %v877 = vld [vmem:[#allocation3 + $0x1840] sm:$0xff]
    %v878 = vld [vmem:[#allocation3 + $0x1848] sm:$0xff]
    %v879 = vld [vmem:[#allocation3 + $0x1850] sm:$0xff]
    %v880 = vld [vmem:[#allocation3 + $0x1858] sm:$0xff]
    %v881 = vld [vmem:[#allocation3 + $0x1860] sm:$0xff]
    %v882 = vld [vmem:[#allocation3 + $0x1868] sm:$0xff]
    %v883 = vld [vmem:[#allocation3 + $0x1870] sm:$0xff]
    %v884 = vld [vmem:[#allocation3 + $0x1878] sm:$0xff]
    %v885 = vld [vmem:[#allocation3 + $0x1880] sm:$0xff]
    %v886 = vld [vmem:[#allocation3 + $0x1888] sm:$0xff]
    %v887 = vld [vmem:[#allocation3 + $0x1890] sm:$0xff]
    %v888 = vld [vmem:[#allocation3 + $0x1898] sm:$0xff]
    %v889 = vld [vmem:[#allocation3 + $0x18a0] sm:$0xff]
    %v890 = vld [vmem:[#allocation3 + $0x18a8] sm:$0xff]
    %v891 = vld [vmem:[#allocation3 + $0x18b0] sm:$0xff]
    %v892 = vld [vmem:[#allocation3 + $0x18b8] sm:$0xff]
    %v893 = vld [vmem:[#allocation3 + $0x18c0] sm:$0xff]
    %v894 = vld [vmem:[#allocation3 + $0x18c8] sm:$0xff]
    %v895 = vld [vmem:[#allocation3 + $0x18d0] sm:$0xff]
    %v896 = vld [vmem:[#allocation3 + $0x18d8] sm:$0xff]
    %v897 = vld [vmem:[#allocation3 + $0x18e0] sm:$0xff]
    %v898 = vld [vmem:[#allocation3 + $0x18e8] sm:$0xff]
    %v899 = vld [vmem:[#allocation3 + $0x18f0] sm:$0xff]
    %v900 = vld [vmem:[#allocation3 + $0x18f8] sm:$0xff]
    %v901 = vld [vmem:[#allocation3 + $0x1900] sm:$0xff]
    %v902 = vld [vmem:[#allocation3 + $0x1908] sm:$0xff]
    %v903 = vld [vmem:[#allocation3 + $0x1910] sm:$0xff]
    %v904 = vld [vmem:[#allocation3 + $0x1918] sm:$0xff]
    %v905 = vld [vmem:[#allocation3 + $0x1920] sm:$0xff]
    %v906 = vld [vmem:[#allocation3 + $0x1928] sm:$0xff]
    %v907 = vld [vmem:[#allocation3 + $0x1930] sm:$0xff]
    %v908 = vld [vmem:[#allocation3 + $0x1938] sm:$0xff]
    %v909 = vld [vmem:[#allocation3 + $0x1940] sm:$0xff]
    %v910 = vld [vmem:[#allocation3 + $0x1948] sm:$0xff]
    %v911 = vld [vmem:[#allocation3 + $0x1950] sm:$0xff]
    %v912 = vld [vmem:[#allocation3 + $0x1958] sm:$0xff]
    %v913 = vld [vmem:[#allocation3 + $0x1960] sm:$0xff]
    %v914 = vld [vmem:[#allocation3 + $0x1968] sm:$0xff]
    %v915 = vld [vmem:[#allocation3 + $0x1970] sm:$0xff]
    %v916 = vld [vmem:[#allocation3 + $0x1978] sm:$0xff]
    %v917 = vld [vmem:[#allocation3 + $0x1980] sm:$0xff]
    %v918 = vld [vmem:[#allocation3 + $0x1988] sm:$0xff]
    %v919 = vld [vmem:[#allocation3 + $0x1990] sm:$0xff]
    %v920 = vld [vmem:[#allocation3 + $0x1998] sm:$0xff]
    %v921 = vld [vmem:[#allocation3 + $0x19a0] sm:$0xff]
    %v922 = vld [vmem:[#allocation3 + $0x19a8] sm:$0xff]
    %v923 = vld [vmem:[#allocation3 + $0x19b0] sm:$0xff]
    %v924 = vld [vmem:[#allocation3 + $0x19b8] sm:$0xff]
    %v925 = vld [vmem:[#allocation3 + $0x19c0] sm:$0xff]
    %v926 = vld [vmem:[#allocation3 + $0x19c8] sm:$0xff]
    %v927 = vld [vmem:[#allocation3 + $0x19d0] sm:$0xff]
    %v928 = vld [vmem:[#allocation3 + $0x19d8] sm:$0xff]
    %v929 = vld [vmem:[#allocation3 + $0x19e0] sm:$0xff]
    %v930 = vld [vmem:[#allocation3 + $0x19e8] sm:$0xff]
    %v931 = vld [vmem:[#allocation3 + $0x19f0] sm:$0xff]
    %v932 = vld [vmem:[#allocation3 + $0x19f8] sm:$0xff]
    %v933 = vld [vmem:[#allocation3 + $0x1a00] sm:$0xff]
    %v934 = vld [vmem:[#allocation3 + $0x1a08] sm:$0xff]
    %v935 = vld [vmem:[#allocation3 + $0x1a10] sm:$0xff]
    %v936 = vld [vmem:[#allocation3 + $0x1a18] sm:$0xff]
    %v937 = vld [vmem:[#allocation3 + $0x1a20] sm:$0xff]
    %v938 = vld [vmem:[#allocation3 + $0x1a28] sm:$0xff]
    %v939 = vld [vmem:[#allocation3 + $0x1a30] sm:$0xff]
    %v940 = vld [vmem:[#allocation3 + $0x1a38] sm:$0xff]
    %v941 = vld [vmem:[#allocation3 + $0x1a40] sm:$0xff]
    %v942 = vld [vmem:[#allocation3 + $0x1a48] sm:$0xff]
    %v943 = vld [vmem:[#allocation3 + $0x1a50] sm:$0xff]
    %v944 = vld [vmem:[#allocation3 + $0x1a58] sm:$0xff]
    %v945 = vld [vmem:[#allocation3 + $0x1a60] sm:$0xff]
    %v946 = vld [vmem:[#allocation3 + $0x1a68] sm:$0xff]
    %v947 = vld [vmem:[#allocation3 + $0x1a70] sm:$0xff]
    %v948 = vld [vmem:[#allocation3 + $0x1a78] sm:$0xff]
    %v949 = vld [vmem:[#allocation3 + $0x1a80] sm:$0xff]
    %v950 = vld [vmem:[#allocation3 + $0x1a88] sm:$0xff]
    %v951 = vld [vmem:[#allocation3 + $0x1a90] sm:$0xff]
    %v952 = vld [vmem:[#allocation3 + $0x1a98] sm:$0xff]
    %v953 = vld [vmem:[#allocation3 + $0x1aa0] sm:$0xff]
    %v954 = vld [vmem:[#allocation3 + $0x1aa8] sm:$0xff]
    %v955 = vld [vmem:[#allocation3 + $0x1ab0] sm:$0xff]
    %v956 = vld [vmem:[#allocation3 + $0x1ab8] sm:$0xff]
    %v957 = vld [vmem:[#allocation3 + $0x1ac0] sm:$0xff]
    %v958 = vld [vmem:[#allocation3 + $0x1ac8] sm:$0xff]
    %v959 = vld [vmem:[#allocation3 + $0x1ad0] sm:$0xff]
    %v960 = vld [vmem:[#allocation3 + $0x1ad8] sm:$0xff]
    %v961 = vld [vmem:[#allocation3 + $0x1ae0] sm:$0xff]
    %v962 = vld [vmem:[#allocation3 + $0x1ae8] sm:$0xff]
    %v963 = vld [vmem:[#allocation3 + $0x1af0] sm:$0xff]
    %v964 = vld [vmem:[#allocation3 + $0x1af8] sm:$0xff]
    %v965 = vld [vmem:[#allocation3 + $0x1b00] sm:$0xff]
    %v966 = vld [vmem:[#allocation3 + $0x1b08] sm:$0xff]
    %v967 = vld [vmem:[#allocation3 + $0x1b10] sm:$0xff]
    %v968 = vld [vmem:[#allocation3 + $0x1b18] sm:$0xff]
    %v969 = vld [vmem:[#allocation3 + $0x1b20] sm:$0xff]
    %v970 = vld [vmem:[#allocation3 + $0x1b28] sm:$0xff]
    %v971 = vld [vmem:[#allocation3 + $0x1b30] sm:$0xff]
    %v972 = vld [vmem:[#allocation3 + $0x1b38] sm:$0xff]
    %v973 = vld [vmem:[#allocation3 + $0x1b40] sm:$0xff]
    %v974 = vld [vmem:[#allocation3 + $0x1b48] sm:$0xff]
    %v975 = vld [vmem:[#allocation3 + $0x1b50] sm:$0xff]
    %v976 = vld [vmem:[#allocation3 + $0x1b58] sm:$0xff]
    %v977 = vld [vmem:[#allocation3 + $0x1b60] sm:$0xff]
    %v978 = vld [vmem:[#allocation3 + $0x1b68] sm:$0xff]
    %v979 = vld [vmem:[#allocation3 + $0x1b70] sm:$0xff]
    %v980 = vld [vmem:[#allocation3 + $0x1b78] sm:$0xff]
    %v981 = vld [vmem:[#allocation3 + $0x1b80] sm:$0xff]
    %v982 = vld [vmem:[#allocation3 + $0x1b88] sm:$0xff]
    %v983 = vld [vmem:[#allocation3 + $0x1b90] sm:$0xff]
    %v984 = vld [vmem:[#allocation3 + $0x1b98] sm:$0xff]
    %v985 = vld [vmem:[#allocation3 + $0x1ba0] sm:$0xff]
    %v986 = vld [vmem:[#allocation3 + $0x1ba8] sm:$0xff]
    %v987 = vld [vmem:[#allocation3 + $0x1bb0] sm:$0xff]
    %v988 = vld [vmem:[#allocation3 + $0x1bb8] sm:$0xff]
    %v989 = vld [vmem:[#allocation3 + $0x1bc0] sm:$0xff]
    %v990 = vld [vmem:[#allocation3 + $0x1bc8] sm:$0xff]
    %v991 = vld [vmem:[#allocation3 + $0x1bd0] sm:$0xff]
    %v992 = vld [vmem:[#allocation3 + $0x1bd8] sm:$0xff]
    %v993 = vld [vmem:[#allocation3 + $0x1be0] sm:$0xff]
    %v994 = vld [vmem:[#allocation3 + $0x1be8] sm:$0xff]
    %v995 = vld [vmem:[#allocation3 + $0x1bf0] sm:$0xff]
    %v996 = vld [vmem:[#allocation3 + $0x1bf8] sm:$0xff]
    %v997 = vld [vmem:[#allocation3 + $0x1c00] sm:$0xff]
    %v998 = vld [vmem:[#allocation3 + $0x1c08] sm:$0xff]
    %v999 = vld [vmem:[#allocation3 + $0x1c10] sm:$0xff]
    %v1000 = vld [vmem:[#allocation3 + $0x1c18] sm:$0xff]
    %v1001 = vld [vmem:[#allocation3 + $0x1c20] sm:$0xff]
    %v1002 = vld [vmem:[#allocation3 + $0x1c28] sm:$0xff]
    %v1003 = vld [vmem:[#allocation3 + $0x1c30] sm:$0xff]
    %v1004 = vld [vmem:[#allocation3 + $0x1c38] sm:$0xff]
    %v1005 = vld [vmem:[#allocation3 + $0x1c40] sm:$0xff]
    %v1006 = vld [vmem:[#allocation3 + $0x1c48] sm:$0xff]
    %v1007 = vld [vmem:[#allocation3 + $0x1c50] sm:$0xff]
    %v1008 = vld [vmem:[#allocation3 + $0x1c58] sm:$0xff]
    %v1009 = vld [vmem:[#allocation3 + $0x1c60] sm:$0xff]
    %v1010 = vld [vmem:[#allocation3 + $0x1c68] sm:$0xff]
    %v1011 = vld [vmem:[#allocation3 + $0x1c70] sm:$0xff]
    %v1012 = vld [vmem:[#allocation3 + $0x1c78] sm:$0xff]
    %v1013 = vld [vmem:[#allocation3 + $0x1c80] sm:$0xff]
    %v1014 = vld [vmem:[#allocation3 + $0x1c88] sm:$0xff]
    %v1015 = vld [vmem:[#allocation3 + $0x1c90] sm:$0xff]
    %v1016 = vld [vmem:[#allocation3 + $0x1c98] sm:$0xff]
    %v1017 = vld [vmem:[#allocation3 + $0x1ca0] sm:$0xff]
    %v1018 = vld [vmem:[#allocation3 + $0x1ca8] sm:$0xff]
    %v1019 = vld [vmem:[#allocation3 + $0x1cb0] sm:$0xff]
    %v1020 = vld [vmem:[#allocation3 + $0x1cb8] sm:$0xff]
    %v1021 = vld [vmem:[#allocation3 + $0x1cc0] sm:$0xff]
    %v1022 = vld [vmem:[#allocation3 + $0x1cc8] sm:$0xff]
    %v1023 = vld [vmem:[#allocation3 + $0x1cd0] sm:$0xff]
    %v1024 = vld [vmem:[#allocation3 + $0x1cd8] sm:$0xff]
    %v1025 = vld [vmem:[#allocation3 + $0x1ce0] sm:$0xff]
    %v1026 = vld [vmem:[#allocation3 + $0x1ce8] sm:$0xff]
    %v1027 = vld [vmem:[#allocation3 + $0x1cf0] sm:$0xff]
    %v1028 = vld [vmem:[#allocation3 + $0x1cf8] sm:$0xff]
    %v1029 = vld [vmem:[#allocation3 + $0x1d00] sm:$0xff]
    %v1030 = vld [vmem:[#allocation3 + $0x1d08] sm:$0xff]
    %v1031 = vld [vmem:[#allocation3 + $0x1d10] sm:$0xff]
    %v1032 = vld [vmem:[#allocation3 + $0x1d18] sm:$0xff]
    %v1033 = vld [vmem:[#allocation3 + $0x1d20] sm:$0xff]
    %v1034 = vld [vmem:[#allocation3 + $0x1d28] sm:$0xff]
    %v1035 = vld [vmem:[#allocation3 + $0x1d30] sm:$0xff]
    %v1036 = vld [vmem:[#allocation3 + $0x1d38] sm:$0xff]
    %v1037 = vld [vmem:[#allocation3 + $0x1d40] sm:$0xff]
    %v1038 = vld [vmem:[#allocation3 + $0x1d48] sm:$0xff]
    %v1039 = vld [vmem:[#allocation3 + $0x1d50] sm:$0xff]
    %v1040 = vld [vmem:[#allocation3 + $0x1d58] sm:$0xff]
    %v1041 = vld [vmem:[#allocation3 + $0x1d60] sm:$0xff]
    %v1042 = vld [vmem:[#allocation3 + $0x1d68] sm:$0xff]
    %v1043 = vld [vmem:[#allocation3 + $0x1d70] sm:$0xff]
    %v1044 = vld [vmem:[#allocation3 + $0x1d78] sm:$0xff]
    %v1045 = vld [vmem:[#allocation3 + $0x1d80] sm:$0xff]
    %v1046 = vld [vmem:[#allocation3 + $0x1d88] sm:$0xff]
    %v1047 = vld [vmem:[#allocation3 + $0x1d90] sm:$0xff]
    %v1048 = vld [vmem:[#allocation3 + $0x1d98] sm:$0xff]
    %v1049 = vld [vmem:[#allocation3 + $0x1da0] sm:$0xff]
    %v1050 = vld [vmem:[#allocation3 + $0x1da8] sm:$0xff]
    %v1051 = vld [vmem:[#allocation3 + $0x1db0] sm:$0xff]
    %v1052 = vld [vmem:[#allocation3 + $0x1db8] sm:$0xff]
    %v1053 = vld [vmem:[#allocation3 + $0x1dc0] sm:$0xff]
    %v1054 = vld [vmem:[#allocation3 + $0x1dc8] sm:$0xff]
    %v1055 = vld [vmem:[#allocation3 + $0x1dd0] sm:$0xff]
    %v1056 = vld [vmem:[#allocation3 + $0x1dd8] sm:$0xff]
    %v1057 = vld [vmem:[#allocation3 + $0x1de0] sm:$0xff]
    %v1058 = vld [vmem:[#allocation3 + $0x1de8] sm:$0xff]
    %v1059 = vld [vmem:[#allocation3 + $0x1df0] sm:$0xff]
    %v1060 = vld [vmem:[#allocation3 + $0x1df8] sm:$0xff]
    %v1061 = vld [vmem:[#allocation3 + $0x1e00] sm:$0xff]
    %v1062 = vld [vmem:[#allocation3 + $0x1e08] sm:$0xff]
    %v1063 = vld [vmem:[#allocation3 + $0x1e10] sm:$0xff]
    %v1064 = vld [vmem:[#allocation3 + $0x1e18] sm:$0xff]
    %v1065 = vld [vmem:[#allocation3 + $0x1e20] sm:$0xff]
    %v1066 = vld [vmem:[#allocation3 + $0x1e28] sm:$0xff]
    %v1067 = vld [vmem:[#allocation3 + $0x1e30] sm:$0xff]
    %v1068 = vld [vmem:[#allocation3 + $0x1e38] sm:$0xff]
    %v1069 = vld [vmem:[#allocation3 + $0x1e40] sm:$0xff]
    %v1070 = vld [vmem:[#allocation3 + $0x1e48] sm:$0xff]
    %v1071 = vld [vmem:[#allocation3 + $0x1e50] sm:$0xff]
    %v1072 = vld [vmem:[#allocation3 + $0x1e58] sm:$0xff]
    %v1073 = vld [vmem:[#allocation3 + $0x1e60] sm:$0xff]
    %v1074 = vld [vmem:[#allocation3 + $0x1e68] sm:$0xff]
    %v1075 = vld [vmem:[#allocation3 + $0x1e70] sm:$0xff]
    %v1076 = vld [vmem:[#allocation3 + $0x1e78] sm:$0xff]
    %v1077 = vld [vmem:[#allocation3 + $0x1e80] sm:$0xff]
    %v1078 = vld [vmem:[#allocation3 + $0x1e88] sm:$0xff]
    %v1079 = vld [vmem:[#allocation3 + $0x1e90] sm:$0xff]
    %v1080 = vld [vmem:[#allocation3 + $0x1e98] sm:$0xff]
    %v1081 = vld [vmem:[#allocation3 + $0x1ea0] sm:$0xff]
    %v1082 = vld [vmem:[#allocation3 + $0x1ea8] sm:$0xff]
    %v1083 = vld [vmem:[#allocation3 + $0x1eb0] sm:$0xff]
    %v1084 = vld [vmem:[#allocation3 + $0x1eb8] sm:$0xff]
    %v1085 = vld [vmem:[#allocation3 + $0x1ec0] sm:$0xff]
    %v1086 = vld [vmem:[#allocation3 + $0x1ec8] sm:$0xff]
    %v1087 = vld [vmem:[#allocation3 + $0x1ed0] sm:$0xff]
    %v1088 = vld [vmem:[#allocation3 + $0x1ed8] sm:$0xff]
    %v1089 = vld [vmem:[#allocation3 + $0x1ee0] sm:$0xff]
    %v1090 = vld [vmem:[#allocation3 + $0x1ee8] sm:$0xff]
    %v1091 = vld [vmem:[#allocation3 + $0x1ef0] sm:$0xff]
    %v1092 = vld [vmem:[#allocation3 + $0x1ef8] sm:$0xff]
    %v1093 = vld [vmem:[#allocation3 + $0x1f00] sm:$0xff]
    %v1094 = vld [vmem:[#allocation3 + $0x1f08] sm:$0xff]
    %v1095 = vld [vmem:[#allocation3 + $0x1f10] sm:$0xff]
    %v1096 = vld [vmem:[#allocation3 + $0x1f18] sm:$0xff]
    %v1097 = vld [vmem:[#allocation3 + $0x1f20] sm:$0xff]
    %v1098 = vld [vmem:[#allocation3 + $0x1f28] sm:$0xff]
    %v1099 = vld [vmem:[#allocation3 + $0x1f30] sm:$0xff]
    %v1100 = vld [vmem:[#allocation3 + $0x1f38] sm:$0xff]
    %v1101 = vld [vmem:[#allocation3 + $0x1f40] sm:$0xff]
    %v1102 = vld [vmem:[#allocation3 + $0x1f48] sm:$0xff]
    %v1103 = vld [vmem:[#allocation3 + $0x1f50] sm:$0xff]
    %v1104 = vld [vmem:[#allocation3 + $0x1f58] sm:$0xff]
    %v1105 = vld [vmem:[#allocation3 + $0x1f60] sm:$0xff]
    %v1106 = vld [vmem:[#allocation3 + $0x1f68] sm:$0xff]
    %v1107 = vld [vmem:[#allocation3 + $0x1f70] sm:$0xff]
    %v1108 = vld [vmem:[#allocation3 + $0x1f78] sm:$0xff]
    %v1109 = vld [vmem:[#allocation3 + $0x1f80] sm:$0xff]
    %v1110 = vld [vmem:[#allocation3 + $0x1f88] sm:$0xff]
    %v1111 = vld [vmem:[#allocation3 + $0x1f90] sm:$0xff]
    %v1112 = vld [vmem:[#allocation3 + $0x1f98] sm:$0xff]
    %v1113 = vld [vmem:[#allocation3 + $0x1fa0] sm:$0xff]
    %v1114 = vld [vmem:[#allocation3 + $0x1fa8] sm:$0xff]
    %v1115 = vld [vmem:[#allocation3 + $0x1fb0] sm:$0xff]
    %v1116 = vld [vmem:[#allocation3 + $0x1fb8] sm:$0xff]
    %v1117 = vld [vmem:[#allocation3 + $0x1fc0] sm:$0xff]
    %v1118 = vld [vmem:[#allocation3 + $0x1fc8] sm:$0xff]
    %v1119 = vld [vmem:[#allocation3 + $0x1fd0] sm:$0xff]
    %v1120 = vld [vmem:[#allocation3 + $0x1fd8] sm:$0xff]
    %v1121 = vld [vmem:[#allocation3 + $0x1fe0] sm:$0xff]
    %v1122 = vld [vmem:[#allocation3 + $0x1fe8] sm:$0xff]
    %v1123 = vld [vmem:[#allocation3 + $0x1ff0] sm:$0xff]
    %v1124 = vld [vmem:[#allocation3 + $0x1ff8] sm:$0xff]
    %v1125 = vld [vmem:[#allocation3 + $0x2000] sm:$0xff]
    %v1126 = vld [vmem:[#allocation3 + $0x2008] sm:$0xff]
    %v1127 = vld [vmem:[#allocation3 + $0x2010] sm:$0xff]
    %v1128 = vld [vmem:[#allocation3 + $0x2018] sm:$0xff]
    %v1129 = vld [vmem:[#allocation3 + $0x2020] sm:$0xff]
    %v1130 = vld [vmem:[#allocation3 + $0x2028] sm:$0xff]
    %v1131 = vld [vmem:[#allocation3 + $0x2030] sm:$0xff]
    %v1132 = vld [vmem:[#allocation3 + $0x2038] sm:$0xff]
    %v1133 = vld [vmem:[#allocation3 + $0x2040] sm:$0xff]
    %v1134 = vld [vmem:[#allocation3 + $0x2048] sm:$0xff]
    %v1135 = vld [vmem:[#allocation3 + $0x2050] sm:$0xff]
    %v1136 = vld [vmem:[#allocation3 + $0x2058] sm:$0xff]
    %v1137 = vld [vmem:[#allocation3 + $0x2060] sm:$0xff]
    %v1138 = vld [vmem:[#allocation3 + $0x2068] sm:$0xff]
    %v1139 = vld [vmem:[#allocation3 + $0x2070] sm:$0xff]
    %v1140 = vld [vmem:[#allocation3 + $0x2078] sm:$0xff]
    %v1141 = vld [vmem:[#allocation3 + $0x2080] sm:$0xff]
    %v1142 = vld [vmem:[#allocation3 + $0x2088] sm:$0xff]
    %v1143 = vld [vmem:[#allocation3 + $0x2090] sm:$0xff]
    %v1144 = vld [vmem:[#allocation3 + $0x2098] sm:$0xff]
    %v1145 = vld [vmem:[#allocation3 + $0x20a0] sm:$0xff]
    %v1146 = vld [vmem:[#allocation3 + $0x20a8] sm:$0xff]
    %v1147 = vld [vmem:[#allocation3 + $0x20b0] sm:$0xff]
    %v1148 = vld [vmem:[#allocation3 + $0x20b8] sm:$0xff]
    %v1149 = vld [vmem:[#allocation3 + $0x20c0] sm:$0xff]
    %v1150 = vld [vmem:[#allocation3 + $0x20c8] sm:$0xff]
    %v1151 = vld [vmem:[#allocation3 + $0x20d0] sm:$0xff]
    %v1152 = vld [vmem:[#allocation3 + $0x20d8] sm:$0xff]
    %v1153 = vld [vmem:[#allocation3 + $0x20e0] sm:$0xff]
    %v1154 = vld [vmem:[#allocation3 + $0x20e8] sm:$0xff]
    %v1155 = vld [vmem:[#allocation3 + $0x20f0] sm:$0xff]
    %v1156 = vld [vmem:[#allocation3 + $0x20f8] sm:$0xff]
    %v1157 = vld [vmem:[#allocation3 + $0x2100] sm:$0xff]
    %v1158 = vld [vmem:[#allocation3 + $0x2108] sm:$0xff]
    %v1159 = vld [vmem:[#allocation3 + $0x2110] sm:$0xff]
    %v1160 = vld [vmem:[#allocation3 + $0x2118] sm:$0xff]
    %v1161 = vld [vmem:[#allocation3 + $0x2120] sm:$0xff]
    %v1162 = vld [vmem:[#allocation3 + $0x2128] sm:$0xff]
    %v1163 = vld [vmem:[#allocation3 + $0x2130] sm:$0xff]
    %v1164 = vld [vmem:[#allocation3 + $0x2138] sm:$0xff]
    %v1165 = vld [vmem:[#allocation3 + $0x2140] sm:$0xff]
    %v1166 = vld [vmem:[#allocation3 + $0x2148] sm:$0xff]
    %v1167 = vld [vmem:[#allocation3 + $0x2150] sm:$0xff]
    %v1168 = vld [vmem:[#allocation3 + $0x2158] sm:$0xff]
    %v1169 = vld [vmem:[#allocation3 + $0x2160] sm:$0xff]
    %v1170 = vld [vmem:[#allocation3 + $0x2168] sm:$0xff]
    %v1171 = vld [vmem:[#allocation3 + $0x2170] sm:$0xff]
    %v1172 = vld [vmem:[#allocation3 + $0x2178] sm:$0xff]
    %v1173 = vld [vmem:[#allocation3 + $0x2180] sm:$0xff]
    %v1174 = vld [vmem:[#allocation3 + $0x2188] sm:$0xff]
    %v1175 = vld [vmem:[#allocation3 + $0x2190] sm:$0xff]
    %v1176 = vld [vmem:[#allocation3 + $0x2198] sm:$0xff]
    %v1177 = vld [vmem:[#allocation3 + $0x21a0] sm:$0xff]
    %v1178 = vld [vmem:[#allocation3 + $0x21a8] sm:$0xff]
    %v1179 = vld [vmem:[#allocation3 + $0x21b0] sm:$0xff]
    %v1180 = vld [vmem:[#allocation3 + $0x21b8] sm:$0xff]
    %v1181 = vld [vmem:[#allocation3 + $0x21c0] sm:$0xff]
    %v1182 = vld [vmem:[#allocation3 + $0x21c8] sm:$0xff]
    %v1183 = vld [vmem:[#allocation3 + $0x21d0] sm:$0xff]
    %v1184 = vld [vmem:[#allocation3 + $0x21d8] sm:$0xff]
    %v1185 = vld [vmem:[#allocation3 + $0x21e0] sm:$0xff]
    %v1186 = vld [vmem:[#allocation3 + $0x21e8] sm:$0xff]
    %v1187 = vld [vmem:[#allocation3 + $0x21f0] sm:$0xff]
    %v1188 = vld [vmem:[#allocation3 + $0x21f8] sm:$0xff]
    %v1189 = vld [vmem:[#allocation3 + $0x2200] sm:$0xff]
    %v1190 = vld [vmem:[#allocation3 + $0x2208] sm:$0xff]
    %v1191 = vld [vmem:[#allocation3 + $0x2210] sm:$0xff]
    %v1192 = vld [vmem:[#allocation3 + $0x2218] sm:$0xff]
    %v1193 = vld [vmem:[#allocation3 + $0x2220] sm:$0xff]
    %v1194 = vld [vmem:[#allocation3 + $0x2228] sm:$0xff]
    %v1195 = vld [vmem:[#allocation3 + $0x2230] sm:$0xff]
    %v1196 = vld [vmem:[#allocation3 + $0x2238] sm:$0xff]
    %v1197 = vld [vmem:[#allocation3 + $0x2240] sm:$0xff]
    %v1198 = vld [vmem:[#allocation3 + $0x2248] sm:$0xff]
    %v1199 = vld [vmem:[#allocation3 + $0x2250] sm:$0xff]
    %v1200 = vld [vmem:[#allocation3 + $0x2258] sm:$0xff]
    %v1201 = vld [vmem:[#allocation3 + $0x2260] sm:$0xff]
    %v1202 = vld [vmem:[#allocation3 + $0x2268] sm:$0xff]
    %v1203 = vld [vmem:[#allocation3 + $0x2270] sm:$0xff]
    %v1204 = vld [vmem:[#allocation3 + $0x2278] sm:$0xff]
    %v1205 = vld [vmem:[#allocation3 + $0x2280] sm:$0xff]
    %v1206 = vld [vmem:[#allocation3 + $0x2288] sm:$0xff]
    %v1207 = vld [vmem:[#allocation3 + $0x2290] sm:$0xff]
    %v1208 = vld [vmem:[#allocation3 + $0x2298] sm:$0xff]
    %v1209 = vld [vmem:[#allocation3 + $0x22a0] sm:$0xff]
    %v1210 = vld [vmem:[#allocation3 + $0x22a8] sm:$0xff]
    %v1211 = vld [vmem:[#allocation3 + $0x22b0] sm:$0xff]
    %v1212 = vld [vmem:[#allocation3 + $0x22b8] sm:$0xff]
    %v1213 = vld [vmem:[#allocation3 + $0x22c0] sm:$0xff]
    %v1214 = vld [vmem:[#allocation3 + $0x22c8] sm:$0xff]
    %v1215 = vld [vmem:[#allocation3 + $0x22d0] sm:$0xff]
    %v1216 = vld [vmem:[#allocation3 + $0x22d8] sm:$0xff]
    %v1217 = vld [vmem:[#allocation3 + $0x22e0] sm:$0xff]
    %v1218 = vld [vmem:[#allocation3 + $0x22e8] sm:$0xff]
    %v1219 = vld [vmem:[#allocation3 + $0x22f0] sm:$0xff]
    %v1220 = vld [vmem:[#allocation3 + $0x22f8] sm:$0xff]
    %v1221 = vld [vmem:[#allocation3 + $0x2300] sm:$0xff]
    %v1222 = vld [vmem:[#allocation3 + $0x2308] sm:$0xff]
    %v1223 = vld [vmem:[#allocation3 + $0x2310] sm:$0xff]
    %v1224 = vld [vmem:[#allocation3 + $0x2318] sm:$0xff]
    %v1225 = vld [vmem:[#allocation3 + $0x2320] sm:$0xff]
    %v1226 = vld [vmem:[#allocation3 + $0x2328] sm:$0xff]
    %v1227 = vld [vmem:[#allocation3 + $0x2330] sm:$0xff]
    %v1228 = vld [vmem:[#allocation3 + $0x2338] sm:$0xff]
    %v1229 = vld [vmem:[#allocation3 + $0x2340] sm:$0xff]
    %v1230 = vld [vmem:[#allocation3 + $0x2348] sm:$0xff]
    %v1231 = vld [vmem:[#allocation3 + $0x2350] sm:$0xff]
    %v1232 = vld [vmem:[#allocation3 + $0x2358] sm:$0xff]
    %v1233 = vld [vmem:[#allocation3 + $0x2360] sm:$0xff]
    %v1234 = vld [vmem:[#allocation3 + $0x2368] sm:$0xff]
    %v1235 = vld [vmem:[#allocation3 + $0x2370] sm:$0xff]
    %v1236 = vld [vmem:[#allocation3 + $0x2378] sm:$0xff]
    %v1237 = vld [vmem:[#allocation3 + $0x2380] sm:$0xff]
    %v1238 = vld [vmem:[#allocation3 + $0x2388] sm:$0xff]
    %v1239 = vld [vmem:[#allocation3 + $0x2390] sm:$0xff]
    %v1240 = vld [vmem:[#allocation3 + $0x2398] sm:$0xff]
    %v1241 = vld [vmem:[#allocation3 + $0x23a0] sm:$0xff]
    %v1242 = vld [vmem:[#allocation3 + $0x23a8] sm:$0xff]
    %v1243 = vld [vmem:[#allocation3 + $0x23b0] sm:$0xff]
    %v1244 = vld [vmem:[#allocation3 + $0x23b8] sm:$0xff]
    %v1245 = vld [vmem:[#allocation3 + $0x23c0] sm:$0xff]
    %v1246 = vld [vmem:[#allocation3 + $0x23c8] sm:$0xff]
    %v1247 = vld [vmem:[#allocation3 + $0x23d0] sm:$0xff]
    %v1248 = vld [vmem:[#allocation3 + $0x23d8] sm:$0xff]
    %v1249 = vld [vmem:[#allocation3 + $0x23e0] sm:$0xff]
    %v1250 = vld [vmem:[#allocation3 + $0x23e8] sm:$0xff]
    %v1251 = vld [vmem:[#allocation3 + $0x23f0] sm:$0xff]
    %v1252 = vld [vmem:[#allocation3 + $0x23f8] sm:$0xff]
    %v1253 = vld [vmem:[#allocation3 + $0x2400] sm:$0xff]
    %v1254 = vld [vmem:[#allocation3 + $0x2408] sm:$0xff]
    %v1255 = vld [vmem:[#allocation3 + $0x2410] sm:$0xff]
    %v1256 = vld [vmem:[#allocation3 + $0x2418] sm:$0xff]
    %v1257 = vld [vmem:[#allocation3 + $0x2420] sm:$0xff]
    %v1258 = vld [vmem:[#allocation3 + $0x2428] sm:$0xff]
    %v1259 = vld [vmem:[#allocation3 + $0x2430] sm:$0xff]
    %v1260 = vld [vmem:[#allocation3 + $0x2438] sm:$0xff]
    %v1261 = vld [vmem:[#allocation3 + $0x2440] sm:$0xff]
    %v1262 = vld [vmem:[#allocation3 + $0x2448] sm:$0xff]
    %v1263 = vld [vmem:[#allocation3 + $0x2450] sm:$0xff]
    %v1264 = vld [vmem:[#allocation3 + $0x2458] sm:$0xff]
    %v1265 = vld [vmem:[#allocation3 + $0x2460] sm:$0xff]
    %v1266 = vld [vmem:[#allocation3 + $0x2468] sm:$0xff]
    %v1267 = vld [vmem:[#allocation3 + $0x2470] sm:$0xff]
    %v1268 = vld [vmem:[#allocation3 + $0x2478] sm:$0xff]
    %v1269 = vld [vmem:[#allocation3 + $0x2480] sm:$0xff]
    %v1270 = vld [vmem:[#allocation3 + $0x2488] sm:$0xff]
    %v1271 = vld [vmem:[#allocation3 + $0x2490] sm:$0xff]
    %v1272 = vld [vmem:[#allocation3 + $0x2498] sm:$0xff]
    %v1273 = vld [vmem:[#allocation3 + $0x24a0] sm:$0xff]
    %v1274 = vld [vmem:[#allocation3 + $0x24a8] sm:$0xff]
    %v1275 = vld [vmem:[#allocation3 + $0x24b0] sm:$0xff]
    %v1276 = vld [vmem:[#allocation3 + $0x24b8] sm:$0xff]
    %v1277 = vld [vmem:[#allocation3 + $0x24c0] sm:$0xff]
    %v1278 = vld [vmem:[#allocation3 + $0x24c8] sm:$0xff]
    %v1279 = vld [vmem:[#allocation3 + $0x24d0] sm:$0xff]
    %v1280 = vld [vmem:[#allocation3 + $0x24d8] sm:$0xff]
    %v1281 = vld [vmem:[#allocation3 + $0x24e0] sm:$0xff]
    %v1282 = vld [vmem:[#allocation3 + $0x24e8] sm:$0xff]
    %v1283 = vld [vmem:[#allocation3 + $0x24f0] sm:$0xff]
    %v1284 = vld [vmem:[#allocation3 + $0x24f8] sm:$0xff]
    %v1285 = vld [vmem:[#allocation3 + $0x2500] sm:$0xff]
    %v1286 = vld [vmem:[#allocation3 + $0x2508] sm:$0xff]
    %v1287 = vld [vmem:[#allocation3 + $0x2510] sm:$0xff]
    %v1288 = vld [vmem:[#allocation3 + $0x2518] sm:$0xff]
    %v1289 = vld [vmem:[#allocation3 + $0x2520] sm:$0xff]
    %v1290 = vld [vmem:[#allocation3 + $0x2528] sm:$0xff]
    %v1291 = vld [vmem:[#allocation3 + $0x2530] sm:$0xff]
    %v1292 = vld [vmem:[#allocation3 + $0x2538] sm:$0xff]
    %v1293 = vld [vmem:[#allocation3 + $0x2540] sm:$0xff]
    %v1294 = vld [vmem:[#allocation3 + $0x2548] sm:$0xff]
    %v1295 = vld [vmem:[#allocation3 + $0x2550] sm:$0xff]
    %v1296 = vld [vmem:[#allocation3 + $0x2558] sm:$0xff]
    %v1297 = vld [vmem:[#allocation3 + $0x2560] sm:$0xff]
    %v1298 = vld [vmem:[#allocation3 + $0x2568] sm:$0xff]
    %v1299 = vld [vmem:[#allocation3 + $0x2570] sm:$0xff]
    %v1300 = vld [vmem:[#allocation3 + $0x2578] sm:$0xff]
    %v1301 = vld [vmem:[#allocation5] sm:$0xff]
    %v1303 = vlaneseq
    %v1304 = vshrl.u32 %v1303, 7
    %v1305 = vsub.s32 0, %v1304
    %v1306 = vrot.slane %v1301, %v1305
    %v1307 = vlaneseq
    %v1308 = vshrl.u32 %v1307, 7
    %v1309 = vsub.s32 1, %v1308
    %v1310 = vrot.slane %v1301, %v1309
    %v1311 = vlaneseq
    %v1312 = vshrl.u32 %v1311, 7
    %v1313 = vsub.s32 2, %v1312
    %v1314 = vrot.slane %v1301, %v1313
    %v1315 = vlaneseq
    %v1316 = vshrl.u32 %v1315, 7
    %v1317 = vsub.s32 3, %v1316
    %v1318 = vrot.slane %v1301, %v1317
    %v1319 = vlaneseq
    %v1320 = vshrl.u32 %v1319, 7
    %v1321 = vsub.s32 4, %v1320
    %v1322 = vrot.slane %v1301, %v1321
    %v1323 = vlaneseq
    %v1324 = vshrl.u32 %v1323, 7
    %v1325 = vsub.s32 5, %v1324
    %v1326 = vrot.slane %v1301, %v1325
    %v1327 = vlaneseq
    %v1328 = vshrl.u32 %v1327, 7
    %v1329 = vsub.s32 6, %v1328
    %v1330 = vrot.slane %v1301, %v1329
    %v1331 = vlaneseq
    %v1332 = vshrl.u32 %v1331, 7
    %v1333 = vsub.s32 7, %v1332
    %v1334 = vrot.slane %v1301, %v1333
    %v1353 = vunpack.c.l.b16 %v91
    %v1354 = vunpack.c.h.b16 %v91
    %v1355 = vunpack.c.l.b16 %v92
    %v1356 = vunpack.c.h.b16 %v92
    %v1357 = vunpack.c.l.b16 %v93
    %v1358 = vunpack.c.h.b16 %v93
    %v1359 = vunpack.c.l.b16 %v94
    %v1360 = vunpack.c.h.b16 %v94
    %v1361 = vunpack.c.l.b16 %v95
    %v1362 = vunpack.c.h.b16 %v95
    %v1363 = vunpack.c.l.b16 %v96
    %v1364 = vunpack.c.h.b16 %v96
    %v1365 = vunpack.c.l.b16 %v97
    %v1366 = vunpack.c.h.b16 %v97
    %v1367 = vunpack.c.l.b16 %v98
    %v1368 = vunpack.c.h.b16 %v98
    %v1369 = vunpack.c.l.b16 %v99
    %v1370 = vunpack.c.h.b16 %v99
    %v1371 = vunpack.c.l.b16 %v100
    %v1372 = vpack.c.b16 %v1353, %v1353
    %v1373 = vpack.c.b16 %v1354, %v1354
    %v1374 = vpack.c.b16 %v1355, %v1355
    %v1375 = vpack.c.b16 %v1356, %v1356
    %v1376 = vpack.c.b16 %v1357, %v1357
    %v1377 = vpack.c.b16 %v1358, %v1358
    %v1378 = vpack.c.b16 %v1359, %v1359
    %v1379 = vpack.c.b16 %v1360, %v1360
    %v1380 = vpack.c.b16 %v1361, %v1361
    %v1381 = vpack.c.b16 %v1362, %v1362
    %v1382 = vpack.c.b16 %v1363, %v1363
    %v1383 = vpack.c.b16 %v1364, %v1364
    %v1384 = vpack.c.b16 %v1365, %v1365
    %v1385 = vpack.c.b16 %v1366, %v1366
    %v1386 = vpack.c.b16 %v1367, %v1367
    %v1387 = vpack.c.b16 %v1368, %v1368
    %v1388 = vpack.c.b16 %v1369, %v1369
    %v1389 = vpack.c.b16 %v1370, %v1370
    %v1390 = vpack.c.b16 %v1371, %v1371
    %v2609 = vunpack.c.l.b16 %v101
    %v2610 = vunpack.c.h.b16 %v101
    %v2611 = vunpack.c.l.b16 %v102
    %v2612 = vunpack.c.h.b16 %v102
    %v2613 = vunpack.c.l.b16 %v103
    %v2614 = vunpack.c.h.b16 %v103
    %v2615 = vunpack.c.l.b16 %v104
    %v2616 = vunpack.c.h.b16 %v104
    %v2617 = vunpack.c.l.b16 %v105
    %v2618 = vunpack.c.h.b16 %v105
    %v2619 = vunpack.c.l.b16 %v106
    %v2620 = vunpack.c.h.b16 %v106
    %v2621 = vunpack.c.l.b16 %v107
    %v2622 = vunpack.c.h.b16 %v107
    %v2623 = vunpack.c.l.b16 %v108
    %v2624 = vunpack.c.h.b16 %v108
    %v2625 = vunpack.c.l.b16 %v109
    %v2626 = vunpack.c.h.b16 %v109
    %v2627 = vunpack.c.l.b16 %v110
    %v2628 = vunpack.c.h.b16 %v110
    %v2629 = vunpack.c.l.b16 %v111
    %v2630 = vunpack.c.h.b16 %v111
    %v2631 = vunpack.c.l.b16 %v112
    %v2632 = vunpack.c.h.b16 %v112
    %v2633 = vunpack.c.l.b16 %v113
    %v2634 = vunpack.c.h.b16 %v113
    %v2635 = vunpack.c.l.b16 %v114
    %v2636 = vunpack.c.h.b16 %v114
    %v2637 = vunpack.c.l.b16 %v115
    %v2638 = vunpack.c.h.b16 %v115
    %v2639 = vunpack.c.l.b16 %v116
    %v2640 = vunpack.c.h.b16 %v116
    %v2641 = vunpack.c.l.b16 %v117
    %v2642 = vunpack.c.h.b16 %v117
    %v2643 = vunpack.c.l.b16 %v118
    %v2644 = vunpack.c.h.b16 %v118
    %v2645 = vunpack.c.l.b16 %v119
    %v2646 = vunpack.c.h.b16 %v119
    %v2647 = vunpack.c.l.b16 %v120
    %v2648 = vunpack.c.h.b16 %v120
    %v2649 = vunpack.c.l.b16 %v121
    %v2650 = vunpack.c.h.b16 %v121
    %v2651 = vunpack.c.l.b16 %v122
    %v2652 = vunpack.c.h.b16 %v122
    %v2653 = vunpack.c.l.b16 %v123
    %v2654 = vunpack.c.h.b16 %v123
    %v2655 = vunpack.c.l.b16 %v124
    %v2656 = vunpack.c.h.b16 %v124
    %v2657 = vunpack.c.l.b16 %v125
    %v2658 = vunpack.c.h.b16 %v125
    %v2659 = vunpack.c.l.b16 %v126
    %v2660 = vunpack.c.h.b16 %v126
    %v2661 = vunpack.c.l.b16 %v127
    %v2662 = vunpack.c.h.b16 %v127
    %v2663 = vunpack.c.l.b16 %v128
    %v2664 = vunpack.c.h.b16 %v128
    %v2665 = vunpack.c.l.b16 %v129
    %v2666 = vunpack.c.h.b16 %v129
    %v2667 = vunpack.c.l.b16 %v130
    %v2668 = vunpack.c.h.b16 %v130
    %v2669 = vunpack.c.l.b16 %v131
    %v2670 = vunpack.c.h.b16 %v131
    %v2671 = vunpack.c.l.b16 %v132
    %v2672 = vunpack.c.h.b16 %v132
    %v2673 = vunpack.c.l.b16 %v133
    %v2674 = vunpack.c.h.b16 %v133
    %v2675 = vunpack.c.l.b16 %v134
    %v2676 = vunpack.c.h.b16 %v134
    %v2677 = vunpack.c.l.b16 %v135
    %v2678 = vunpack.c.h.b16 %v135
    %v2679 = vunpack.c.l.b16 %v136
    %v2680 = vunpack.c.h.b16 %v136
    %v2681 = vunpack.c.l.b16 %v137
    %v2682 = vunpack.c.h.b16 %v137
    %v2683 = vunpack.c.l.b16 %v138
    %v2684 = vunpack.c.h.b16 %v138
    %v2685 = vunpack.c.l.b16 %v139
    %v2686 = vunpack.c.h.b16 %v139
    %v2687 = vunpack.c.l.b16 %v140
    %v2688 = vunpack.c.h.b16 %v140
    %v2689 = vunpack.c.l.b16 %v141
    %v2690 = vunpack.c.h.b16 %v141
    %v2691 = vunpack.c.l.b16 %v142
    %v2692 = vunpack.c.h.b16 %v142
    %v2693 = vunpack.c.l.b16 %v143
    %v2694 = vunpack.c.h.b16 %v143
    %v2695 = vunpack.c.l.b16 %v144
    %v2696 = vunpack.c.h.b16 %v144
    %v2697 = vunpack.c.l.b16 %v145
    %v2698 = vunpack.c.h.b16 %v145
    %v2699 = vunpack.c.l.b16 %v146
    %v2700 = vunpack.c.h.b16 %v146
    %v2701 = vunpack.c.l.b16 %v147
    %v2702 = vunpack.c.h.b16 %v147
    %v2703 = vunpack.c.l.b16 %v148
    %v2704 = vunpack.c.h.b16 %v148
    %v2705 = vunpack.c.l.b16 %v149
    %v2706 = vunpack.c.h.b16 %v149
    %v2707 = vunpack.c.l.b16 %v150
    %v2708 = vunpack.c.h.b16 %v150
    %v2709 = vunpack.c.l.b16 %v151
    %v2710 = vunpack.c.h.b16 %v151
    %v2711 = vunpack.c.l.b16 %v152
    %v2712 = vunpack.c.h.b16 %v152
    %v2713 = vunpack.c.l.b16 %v153
    %v2714 = vunpack.c.h.b16 %v153
    %v2715 = vunpack.c.l.b16 %v154
    %v2716 = vunpack.c.h.b16 %v154
    %v2717 = vunpack.c.l.b16 %v155
    %v2718 = vunpack.c.h.b16 %v155
    %v2719 = vunpack.c.l.b16 %v156
    %v2720 = vunpack.c.h.b16 %v156
    %v2721 = vunpack.c.l.b16 %v157
    %v2722 = vunpack.c.h.b16 %v157
    %v2723 = vunpack.c.l.b16 %v158
    %v2724 = vunpack.c.h.b16 %v158
    %v2725 = vunpack.c.l.b16 %v159
    %v2726 = vunpack.c.h.b16 %v159
    %v2727 = vunpack.c.l.b16 %v160
    %v2728 = vunpack.c.h.b16 %v160
    %v2729 = vunpack.c.l.b16 %v161
    %v2730 = vunpack.c.h.b16 %v161
    %v2731 = vunpack.c.l.b16 %v162
    %v2732 = vunpack.c.h.b16 %v162
    %v2733 = vunpack.c.l.b16 %v163
    %v2734 = vunpack.c.h.b16 %v163
    %v2735 = vunpack.c.l.b16 %v164
    %v2736 = vunpack.c.h.b16 %v164
    %v2737 = vunpack.c.l.b16 %v165
    %v2738 = vunpack.c.h.b16 %v165
    %v2739 = vunpack.c.l.b16 %v166
    %v2740 = vunpack.c.h.b16 %v166
    %v2741 = vunpack.c.l.b16 %v167
    %v2742 = vunpack.c.h.b16 %v167
    %v2743 = vunpack.c.l.b16 %v168
    %v2744 = vunpack.c.h.b16 %v168
    %v2745 = vunpack.c.l.b16 %v169
    %v2746 = vunpack.c.h.b16 %v169
    %v2747 = vunpack.c.l.b16 %v170
    %v2748 = vunpack.c.h.b16 %v170
    %v2749 = vunpack.c.l.b16 %v171
    %v2750 = vunpack.c.h.b16 %v171
    %v2751 = vunpack.c.l.b16 %v172
    %v2752 = vunpack.c.h.b16 %v172
    %v2753 = vunpack.c.l.b16 %v173
    %v2754 = vunpack.c.h.b16 %v173
    %v2755 = vunpack.c.l.b16 %v174
    %v2756 = vunpack.c.h.b16 %v174
    %v2757 = vunpack.c.l.b16 %v175
    %v2758 = vunpack.c.h.b16 %v175
    %v2759 = vunpack.c.l.b16 %v176
    %v2760 = vunpack.c.h.b16 %v176
    %v2761 = vunpack.c.l.b16 %v177
    %v2762 = vunpack.c.h.b16 %v177
    %v2763 = vunpack.c.l.b16 %v178
    %v2764 = vunpack.c.h.b16 %v178
    %v2765 = vunpack.c.l.b16 %v179
    %v2766 = vunpack.c.h.b16 %v179
    %v2767 = vunpack.c.l.b16 %v180
    %v2768 = vunpack.c.h.b16 %v180
    %v2769 = vunpack.c.l.b16 %v181
    %v2770 = vunpack.c.h.b16 %v181
    %v2771 = vunpack.c.l.b16 %v182
    %v2772 = vunpack.c.h.b16 %v182
    %v2773 = vunpack.c.l.b16 %v183
    %v2774 = vunpack.c.h.b16 %v183
    %v2775 = vunpack.c.l.b16 %v184
    %v2776 = vunpack.c.h.b16 %v184
    %v2777 = vunpack.c.l.b16 %v185
    %v2778 = vunpack.c.h.b16 %v185
    %v2779 = vunpack.c.l.b16 %v186
    %v2780 = vunpack.c.h.b16 %v186
    %v2781 = vunpack.c.l.b16 %v187
    %v2782 = vunpack.c.h.b16 %v187
    %v2783 = vunpack.c.l.b16 %v188
    %v2784 = vunpack.c.h.b16 %v188
    %v2785 = vunpack.c.l.b16 %v189
    %v2786 = vunpack.c.h.b16 %v189
    %v2787 = vunpack.c.l.b16 %v190
    %v2788 = vunpack.c.h.b16 %v190
    %v2789 = vunpack.c.l.b16 %v191
    %v2790 = vunpack.c.h.b16 %v191
    %v2791 = vunpack.c.l.b16 %v192
    %v2792 = vunpack.c.h.b16 %v192
    %v2793 = vunpack.c.l.b16 %v193
    %v2794 = vunpack.c.h.b16 %v193
    %v2795 = vunpack.c.l.b16 %v194
    %v2796 = vunpack.c.h.b16 %v194
    %v2797 = vunpack.c.l.b16 %v195
    %v2798 = vunpack.c.h.b16 %v195
    %v2799 = vunpack.c.l.b16 %v196
    %v2800 = vunpack.c.h.b16 %v196
    %v2801 = vunpack.c.l.b16 %v197
    %v2802 = vunpack.c.h.b16 %v197
    %v2803 = vunpack.c.l.b16 %v198
    %v2804 = vunpack.c.h.b16 %v198
    %v2805 = vunpack.c.l.b16 %v199
    %v2806 = vunpack.c.h.b16 %v199
    %v2807 = vunpack.c.l.b16 %v200
    %v2808 = vunpack.c.h.b16 %v200
    %v2809 = vunpack.c.l.b16 %v201
    %v2810 = vunpack.c.h.b16 %v201
    %v2811 = vunpack.c.l.b16 %v202
    %v2812 = vunpack.c.h.b16 %v202
    %v2813 = vunpack.c.l.b16 %v203
    %v2814 = vunpack.c.h.b16 %v203
    %v2815 = vunpack.c.l.b16 %v204
    %v2816 = vunpack.c.h.b16 %v204
    %v2817 = vunpack.c.l.b16 %v205
    %v2818 = vunpack.c.h.b16 %v205
    %v2819 = vunpack.c.l.b16 %v206
    %v2820 = vunpack.c.h.b16 %v206
    %v2821 = vunpack.c.l.b16 %v207
    %v2822 = vunpack.c.h.b16 %v207
    %v2823 = vunpack.c.l.b16 %v208
    %v2824 = vunpack.c.h.b16 %v208
    %v2825 = vunpack.c.l.b16 %v209
    %v2826 = vunpack.c.h.b16 %v209
    %v2827 = vunpack.c.l.b16 %v210
    %v2828 = vunpack.c.h.b16 %v210
    %v2829 = vunpack.c.l.b16 %v211
    %v2830 = vunpack.c.h.b16 %v211
    %v2831 = vunpack.c.l.b16 %v212
    %v2832 = vunpack.c.h.b16 %v212
    %v2833 = vunpack.c.l.b16 %v213
    %v2834 = vunpack.c.h.b16 %v213
    %v2835 = vunpack.c.l.b16 %v214
    %v2836 = vunpack.c.h.b16 %v214
    %v2837 = vunpack.c.l.b16 %v215
    %v2838 = vunpack.c.h.b16 %v215
    %v2839 = vunpack.c.l.b16 %v216
    %v2840 = vunpack.c.h.b16 %v216
    %v2841 = vunpack.c.l.b16 %v217
    %v2842 = vunpack.c.h.b16 %v217
    %v2843 = vunpack.c.l.b16 %v218
    %v2844 = vunpack.c.h.b16 %v218
    %v2845 = vunpack.c.l.b16 %v219
    %v2846 = vunpack.c.h.b16 %v219
    %v2847 = vunpack.c.l.b16 %v220
    %v2848 = vunpack.c.h.b16 %v220
    %v2849 = vunpack.c.l.b16 %v221
    %v2850 = vunpack.c.h.b16 %v221
    %v2851 = vunpack.c.l.b16 %v222
    %v2852 = vunpack.c.h.b16 %v222
    %v2853 = vunpack.c.l.b16 %v223
    %v2854 = vunpack.c.h.b16 %v223
    %v2855 = vunpack.c.l.b16 %v224
    %v2856 = vunpack.c.h.b16 %v224
    %v2857 = vunpack.c.l.b16 %v225
    %v2858 = vunpack.c.h.b16 %v225
    %v2859 = vunpack.c.l.b16 %v226
    %v2860 = vunpack.c.h.b16 %v226
    %v2861 = vunpack.c.l.b16 %v227
    %v2862 = vunpack.c.h.b16 %v227
    %v2863 = vunpack.c.l.b16 %v228
    %v2864 = vunpack.c.h.b16 %v228
    %v2865 = vunpack.c.l.b16 %v229
    %v2866 = vunpack.c.h.b16 %v229
    %v2867 = vunpack.c.l.b16 %v230
    %v2868 = vunpack.c.h.b16 %v230
    %v2869 = vunpack.c.l.b16 %v231
    %v2870 = vunpack.c.h.b16 %v231
    %v2871 = vunpack.c.l.b16 %v232
    %v2872 = vunpack.c.h.b16 %v232
    %v2873 = vunpack.c.l.b16 %v233
    %v2874 = vunpack.c.h.b16 %v233
    %v2875 = vunpack.c.l.b16 %v234
    %v2876 = vunpack.c.h.b16 %v234
    %v2877 = vunpack.c.l.b16 %v235
    %v2878 = vunpack.c.h.b16 %v235
    %v2879 = vunpack.c.l.b16 %v236
    %v2880 = vunpack.c.h.b16 %v236
    %v2881 = vunpack.c.l.b16 %v237
    %v2882 = vunpack.c.h.b16 %v237
    %v2883 = vunpack.c.l.b16 %v238
    %v2884 = vunpack.c.h.b16 %v238
    %v2885 = vunpack.c.l.b16 %v239
    %v2886 = vunpack.c.h.b16 %v239
    %v2887 = vunpack.c.l.b16 %v240
    %v2888 = vunpack.c.h.b16 %v240
    %v2889 = vunpack.c.l.b16 %v241
    %v2890 = vunpack.c.h.b16 %v241
    %v2891 = vunpack.c.l.b16 %v242
    %v2892 = vunpack.c.h.b16 %v242
    %v2893 = vunpack.c.l.b16 %v243
    %v2894 = vunpack.c.h.b16 %v243
    %v2895 = vunpack.c.l.b16 %v244
    %v2896 = vunpack.c.h.b16 %v244
    %v2897 = vunpack.c.l.b16 %v245
    %v2898 = vunpack.c.h.b16 %v245
    %v2899 = vunpack.c.l.b16 %v246
    %v2900 = vunpack.c.h.b16 %v246
    %v2901 = vunpack.c.l.b16 %v247
    %v2902 = vunpack.c.h.b16 %v247
    %v2903 = vunpack.c.l.b16 %v248
    %v2904 = vunpack.c.h.b16 %v248
    %v2905 = vunpack.c.l.b16 %v249
    %v2906 = vunpack.c.h.b16 %v249
    %v2907 = vunpack.c.l.b16 %v250
    %v2908 = vunpack.c.h.b16 %v250
    %v2909 = vunpack.c.l.b16 %v251
    %v2910 = vunpack.c.h.b16 %v251
    %v2911 = vunpack.c.l.b16 %v252
    %v2912 = vunpack.c.h.b16 %v252
    %v2913 = vunpack.c.l.b16 %v253
    %v2914 = vunpack.c.h.b16 %v253
    %v2915 = vunpack.c.l.b16 %v254
    %v2916 = vunpack.c.h.b16 %v254
    %v2917 = vunpack.c.l.b16 %v255
    %v2918 = vunpack.c.h.b16 %v255
    %v2919 = vunpack.c.l.b16 %v256
    %v2920 = vunpack.c.h.b16 %v256
    %v2921 = vunpack.c.l.b16 %v257
    %v2922 = vunpack.c.h.b16 %v257
    %v2923 = vunpack.c.l.b16 %v258
    %v2924 = vunpack.c.h.b16 %v258
    %v2925 = vunpack.c.l.b16 %v259
    %v2926 = vunpack.c.h.b16 %v259
    %v2927 = vunpack.c.l.b16 %v260
    %v2928 = vunpack.c.h.b16 %v260
    %v2929 = vunpack.c.l.b16 %v261
    %v2930 = vunpack.c.h.b16 %v261
    %v2931 = vunpack.c.l.b16 %v262
    %v2932 = vunpack.c.h.b16 %v262
    %v2933 = vunpack.c.l.b16 %v263
    %v2934 = vunpack.c.h.b16 %v263
    %v2935 = vunpack.c.l.b16 %v264
    %v2936 = vunpack.c.h.b16 %v264
    %v2937 = vunpack.c.l.b16 %v265
    %v2938 = vunpack.c.h.b16 %v265
    %v2939 = vunpack.c.l.b16 %v266
    %v2940 = vunpack.c.h.b16 %v266
    %v2941 = vunpack.c.l.b16 %v267
    %v2942 = vunpack.c.h.b16 %v267
    %v2943 = vunpack.c.l.b16 %v268
    %v2944 = vunpack.c.h.b16 %v268
    %v2945 = vunpack.c.l.b16 %v269
    %v2946 = vunpack.c.h.b16 %v269
    %v2947 = vunpack.c.l.b16 %v270
    %v2948 = vunpack.c.h.b16 %v270
    %v2949 = vunpack.c.l.b16 %v271
    %v2950 = vunpack.c.h.b16 %v271
    %v2951 = vunpack.c.l.b16 %v272
    %v2952 = vunpack.c.h.b16 %v272
    %v2953 = vunpack.c.l.b16 %v273
    %v2954 = vunpack.c.h.b16 %v273
    %v2955 = vunpack.c.l.b16 %v274
    %v2956 = vunpack.c.h.b16 %v274
    %v2957 = vunpack.c.l.b16 %v275
    %v2958 = vunpack.c.h.b16 %v275
    %v2959 = vunpack.c.l.b16 %v276
    %v2960 = vunpack.c.h.b16 %v276
    %v2961 = vunpack.c.l.b16 %v277
    %v2962 = vunpack.c.h.b16 %v277
    %v2963 = vunpack.c.l.b16 %v278
    %v2964 = vunpack.c.h.b16 %v278
    %v2965 = vunpack.c.l.b16 %v279
    %v2966 = vunpack.c.h.b16 %v279
    %v2967 = vunpack.c.l.b16 %v280
    %v2968 = vunpack.c.h.b16 %v280
    %v2969 = vunpack.c.l.b16 %v281
    %v2970 = vunpack.c.h.b16 %v281
    %v2971 = vunpack.c.l.b16 %v282
    %v2972 = vunpack.c.h.b16 %v282
    %v2973 = vunpack.c.l.b16 %v283
    %v2974 = vunpack.c.h.b16 %v283
    %v2975 = vunpack.c.l.b16 %v284
    %v2976 = vunpack.c.h.b16 %v284
    %v2977 = vunpack.c.l.b16 %v285
    %v2978 = vunpack.c.h.b16 %v285
    %v2979 = vunpack.c.l.b16 %v286
    %v2980 = vunpack.c.h.b16 %v286
    %v2981 = vunpack.c.l.b16 %v287
    %v2982 = vunpack.c.h.b16 %v287
    %v2983 = vunpack.c.l.b16 %v288
    %v2984 = vunpack.c.h.b16 %v288
    %v2985 = vunpack.c.l.b16 %v289
    %v2986 = vunpack.c.h.b16 %v289
    %v2987 = vunpack.c.l.b16 %v290
    %v2988 = vunpack.c.h.b16 %v290
    %v2989 = vunpack.c.l.b16 %v291
    %v2990 = vunpack.c.h.b16 %v291
    %v2991 = vunpack.c.l.b16 %v292
    %v2992 = vunpack.c.h.b16 %v292
    %v2993 = vunpack.c.l.b16 %v293
    %v2994 = vunpack.c.h.b16 %v293
    %v2995 = vunpack.c.l.b16 %v294
    %v2996 = vunpack.c.h.b16 %v294
    %v2997 = vunpack.c.l.b16 %v295
    %v2998 = vunpack.c.h.b16 %v295
    %v2999 = vunpack.c.l.b16 %v296
    %v3000 = vunpack.c.h.b16 %v296
    %v3001 = vunpack.c.l.b16 %v297
    %v3002 = vunpack.c.h.b16 %v297
    %v3003 = vunpack.c.l.b16 %v298
    %v3004 = vunpack.c.h.b16 %v298
    %v3005 = vunpack.c.l.b16 %v299
    %v3006 = vunpack.c.h.b16 %v299
    %v3007 = vunpack.c.l.b16 %v300
    %v3008 = vunpack.c.h.b16 %v300
    %v3009 = vunpack.c.l.b16 %v301
    %v3010 = vunpack.c.h.b16 %v301
    %v3011 = vunpack.c.l.b16 %v302
    %v3012 = vunpack.c.h.b16 %v302
    %v3013 = vunpack.c.l.b16 %v303
    %v3014 = vunpack.c.h.b16 %v303
    %v3015 = vunpack.c.l.b16 %v304
    %v3016 = vunpack.c.h.b16 %v304
    %v3017 = vunpack.c.l.b16 %v305
    %v3018 = vunpack.c.h.b16 %v305
    %v3019 = vunpack.c.l.b16 %v306
    %v3020 = vunpack.c.h.b16 %v306
    %v3021 = vunpack.c.l.b16 %v307
    %v3022 = vunpack.c.h.b16 %v307
    %v3023 = vunpack.c.l.b16 %v308
    %v3024 = vunpack.c.h.b16 %v308
    %v3025 = vunpack.c.l.b16 %v309
    %v3026 = vunpack.c.h.b16 %v309
    %v3027 = vunpack.c.l.b16 %v310
    %v3028 = vunpack.c.h.b16 %v310
    %v3029 = vunpack.c.l.b16 %v311
    %v3030 = vunpack.c.h.b16 %v311
    %v3031 = vunpack.c.l.b16 %v312
    %v3032 = vunpack.c.h.b16 %v312
    %v3033 = vunpack.c.l.b16 %v313
    %v3034 = vunpack.c.h.b16 %v313
    %v3035 = vunpack.c.l.b16 %v314
    %v3036 = vunpack.c.h.b16 %v314
    %v3037 = vunpack.c.l.b16 %v315
    %v3038 = vunpack.c.h.b16 %v315
    %v3039 = vunpack.c.l.b16 %v316
    %v3040 = vunpack.c.h.b16 %v316
    %v3041 = vunpack.c.l.b16 %v317
    %v3042 = vunpack.c.h.b16 %v317
    %v3043 = vunpack.c.l.b16 %v318
    %v3044 = vunpack.c.h.b16 %v318
    %v3045 = vunpack.c.l.b16 %v319
    %v3046 = vunpack.c.h.b16 %v319
    %v3047 = vunpack.c.l.b16 %v320
    %v3048 = vunpack.c.h.b16 %v320
    %v3049 = vunpack.c.l.b16 %v321
    %v3050 = vunpack.c.h.b16 %v321
    %v3051 = vunpack.c.l.b16 %v322
    %v3052 = vunpack.c.h.b16 %v322
    %v3053 = vunpack.c.l.b16 %v323
    %v3054 = vunpack.c.h.b16 %v323
    %v3055 = vunpack.c.l.b16 %v324
    %v3056 = vunpack.c.h.b16 %v324
    %v3057 = vunpack.c.l.b16 %v325
    %v3058 = vunpack.c.h.b16 %v325
    %v3059 = vunpack.c.l.b16 %v326
    %v3060 = vunpack.c.h.b16 %v326
    %v3061 = vunpack.c.l.b16 %v327
    %v3062 = vunpack.c.h.b16 %v327
    %v3063 = vunpack.c.l.b16 %v328
    %v3064 = vunpack.c.h.b16 %v328
    %v3065 = vunpack.c.l.b16 %v329
    %v3066 = vunpack.c.h.b16 %v329
    %v3067 = vunpack.c.l.b16 %v330
    %v3068 = vunpack.c.h.b16 %v330
    %v3069 = vunpack.c.l.b16 %v331
    %v3070 = vunpack.c.h.b16 %v331
    %v3071 = vunpack.c.l.b16 %v332
    %v3072 = vunpack.c.h.b16 %v332
    %v3073 = vunpack.c.l.b16 %v333
    %v3074 = vunpack.c.h.b16 %v333
    %v3075 = vunpack.c.l.b16 %v334
    %v3076 = vunpack.c.h.b16 %v334
    %v3077 = vunpack.c.l.b16 %v335
    %v3078 = vunpack.c.h.b16 %v335
    %v3079 = vunpack.c.l.b16 %v336
    %v3080 = vunpack.c.h.b16 %v336
    %v3081 = vunpack.c.l.b16 %v337
    %v3082 = vunpack.c.h.b16 %v337
    %v3083 = vunpack.c.l.b16 %v338
    %v3084 = vunpack.c.h.b16 %v338
    %v3085 = vunpack.c.l.b16 %v339
    %v3086 = vunpack.c.h.b16 %v339
    %v3087 = vunpack.c.l.b16 %v340
    %v3088 = vunpack.c.h.b16 %v340
    %v3089 = vunpack.c.l.b16 %v341
    %v3090 = vunpack.c.h.b16 %v341
    %v3091 = vunpack.c.l.b16 %v342
    %v3092 = vunpack.c.h.b16 %v342
    %v3093 = vunpack.c.l.b16 %v343
    %v3094 = vunpack.c.h.b16 %v343
    %v3095 = vunpack.c.l.b16 %v344
    %v3096 = vunpack.c.h.b16 %v344
    %v3097 = vunpack.c.l.b16 %v345
    %v3098 = vunpack.c.h.b16 %v345
    %v3099 = vunpack.c.l.b16 %v346
    %v3100 = vunpack.c.h.b16 %v346
    %v3101 = vunpack.c.l.b16 %v347
    %v3102 = vunpack.c.h.b16 %v347
    %v3103 = vunpack.c.l.b16 %v348
    %v3104 = vunpack.c.h.b16 %v348
    %v3105 = vunpack.c.l.b16 %v349
    %v3106 = vunpack.c.h.b16 %v349
    %v3107 = vunpack.c.l.b16 %v350
    %v3108 = vunpack.c.h.b16 %v350
    %v3109 = vunpack.c.l.b16 %v351
    %v3110 = vunpack.c.h.b16 %v351
    %v3111 = vunpack.c.l.b16 %v352
    %v3112 = vunpack.c.h.b16 %v352
    %v3113 = vunpack.c.l.b16 %v353
    %v3114 = vunpack.c.h.b16 %v353
    %v3115 = vunpack.c.l.b16 %v354
    %v3116 = vunpack.c.h.b16 %v354
    %v3117 = vunpack.c.l.b16 %v355
    %v3118 = vunpack.c.h.b16 %v355
    %v3119 = vunpack.c.l.b16 %v356
    %v3120 = vunpack.c.h.b16 %v356
    %v3121 = vunpack.c.l.b16 %v357
    %v3122 = vunpack.c.h.b16 %v357
    %v3123 = vunpack.c.l.b16 %v358
    %v3124 = vunpack.c.h.b16 %v358
    %v3125 = vunpack.c.l.b16 %v359
    %v3126 = vunpack.c.h.b16 %v359
    %v3127 = vunpack.c.l.b16 %v360
    %v3128 = vunpack.c.h.b16 %v360
    %v3129 = vunpack.c.l.b16 %v361
    %v3130 = vunpack.c.h.b16 %v361
    %v3131 = vunpack.c.l.b16 %v362
    %v3132 = vunpack.c.h.b16 %v362
    %v3133 = vunpack.c.l.b16 %v363
    %v3134 = vunpack.c.h.b16 %v363
    %v3135 = vunpack.c.l.b16 %v364
    %v3136 = vunpack.c.h.b16 %v364
    %v3137 = vunpack.c.l.b16 %v365
    %v3138 = vunpack.c.h.b16 %v365
    %v3139 = vunpack.c.l.b16 %v366
    %v3140 = vunpack.c.h.b16 %v366
    %v3141 = vunpack.c.l.b16 %v367
    %v3142 = vunpack.c.h.b16 %v367
    %v3143 = vunpack.c.l.b16 %v368
    %v3144 = vunpack.c.h.b16 %v368
    %v3145 = vunpack.c.l.b16 %v369
    %v3146 = vunpack.c.h.b16 %v369
    %v3147 = vunpack.c.l.b16 %v370
    %v3148 = vunpack.c.h.b16 %v370
    %v3149 = vunpack.c.l.b16 %v371
    %v3150 = vunpack.c.h.b16 %v371
    %v3151 = vunpack.c.l.b16 %v372
    %v3152 = vunpack.c.h.b16 %v372
    %v3153 = vunpack.c.l.b16 %v373
    %v3154 = vunpack.c.h.b16 %v373
    %v3155 = vunpack.c.l.b16 %v374
    %v3156 = vunpack.c.h.b16 %v374
    %v3157 = vunpack.c.l.b16 %v375
    %v3158 = vunpack.c.h.b16 %v375
    %v3159 = vunpack.c.l.b16 %v376
    %v3160 = vunpack.c.h.b16 %v376
    %v3161 = vunpack.c.l.b16 %v377
    %v3162 = vunpack.c.h.b16 %v377
    %v3163 = vunpack.c.l.b16 %v378
    %v3164 = vunpack.c.h.b16 %v378
    %v3165 = vunpack.c.l.b16 %v379
    %v3166 = vunpack.c.h.b16 %v379
    %v3167 = vunpack.c.l.b16 %v380
    %v3168 = vunpack.c.h.b16 %v380
    %v3169 = vunpack.c.l.b16 %v381
    %v3170 = vunpack.c.h.b16 %v381
    %v3171 = vunpack.c.l.b16 %v382
    %v3172 = vunpack.c.h.b16 %v382
    %v3173 = vunpack.c.l.b16 %v383
    %v3174 = vunpack.c.h.b16 %v383
    %v3175 = vunpack.c.l.b16 %v384
    %v3176 = vunpack.c.h.b16 %v384
    %v3177 = vunpack.c.l.b16 %v385
    %v3178 = vunpack.c.h.b16 %v385
    %v3179 = vunpack.c.l.b16 %v386
    %v3180 = vunpack.c.h.b16 %v386
    %v3181 = vunpack.c.l.b16 %v387
    %v3182 = vunpack.c.h.b16 %v387
    %v3183 = vunpack.c.l.b16 %v388
    %v3184 = vunpack.c.h.b16 %v388
    %v3185 = vunpack.c.l.b16 %v389
    %v3186 = vunpack.c.h.b16 %v389
    %v3187 = vunpack.c.l.b16 %v390
    %v3188 = vunpack.c.h.b16 %v390
    %v3189 = vunpack.c.l.b16 %v391
    %v3190 = vunpack.c.h.b16 %v391
    %v3191 = vunpack.c.l.b16 %v392
    %v3192 = vunpack.c.h.b16 %v392
    %v3193 = vunpack.c.l.b16 %v393
    %v3194 = vunpack.c.h.b16 %v393
    %v3195 = vunpack.c.l.b16 %v394
    %v3196 = vunpack.c.h.b16 %v394
    %v3197 = vunpack.c.l.b16 %v395
    %v3198 = vunpack.c.h.b16 %v395
    %v3199 = vunpack.c.l.b16 %v396
    %v3200 = vunpack.c.h.b16 %v396
    %v3201 = vunpack.c.l.b16 %v397
    %v3202 = vunpack.c.h.b16 %v397
    %v3203 = vunpack.c.l.b16 %v398
    %v3204 = vunpack.c.h.b16 %v398
    %v3205 = vunpack.c.l.b16 %v399
    %v3206 = vunpack.c.h.b16 %v399
    %v3207 = vunpack.c.l.b16 %v400
    %v3208 = vunpack.c.h.b16 %v400
    %v3209 = vunpack.c.l.b16 %v401
    %v3210 = vunpack.c.h.b16 %v401
    %v3211 = vunpack.c.l.b16 %v402
    %v3212 = vunpack.c.h.b16 %v402
    %v3213 = vunpack.c.l.b16 %v403
    %v3214 = vunpack.c.h.b16 %v403
    %v3215 = vunpack.c.l.b16 %v404
    %v3216 = vunpack.c.h.b16 %v404
    %v3217 = vunpack.c.l.b16 %v405
    %v3218 = vunpack.c.h.b16 %v405
    %v3219 = vunpack.c.l.b16 %v406
    %v3220 = vunpack.c.h.b16 %v406
    %v3221 = vunpack.c.l.b16 %v407
    %v3222 = vunpack.c.h.b16 %v407
    %v3223 = vunpack.c.l.b16 %v408
    %v3224 = vunpack.c.h.b16 %v408
    %v3225 = vunpack.c.l.b16 %v409
    %v3226 = vunpack.c.h.b16 %v409
    %v3227 = vunpack.c.l.b16 %v410
    %v3228 = vunpack.c.h.b16 %v410
    %v3229 = vunpack.c.l.b16 %v411
    %v3230 = vunpack.c.h.b16 %v411
    %v3231 = vunpack.c.l.b16 %v412
    %v3232 = vunpack.c.h.b16 %v412
    %v3233 = vunpack.c.l.b16 %v413
    %v3234 = vunpack.c.h.b16 %v413
    %v3235 = vunpack.c.l.b16 %v414
    %v3236 = vunpack.c.h.b16 %v414
    %v3237 = vunpack.c.l.b16 %v415
    %v3238 = vunpack.c.h.b16 %v415
    %v3239 = vunpack.c.l.b16 %v416
    %v3240 = vunpack.c.h.b16 %v416
    %v3241 = vunpack.c.l.b16 %v417
    %v3242 = vunpack.c.h.b16 %v417
    %v3243 = vunpack.c.l.b16 %v418
    %v3244 = vunpack.c.h.b16 %v418
    %v3245 = vunpack.c.l.b16 %v419
    %v3246 = vunpack.c.h.b16 %v419
    %v3247 = vunpack.c.l.b16 %v420
    %v3248 = vunpack.c.h.b16 %v420
    %v3249 = vunpack.c.l.b16 %v421
    %v3250 = vunpack.c.h.b16 %v421
    %v3251 = vunpack.c.l.b16 %v422
    %v3252 = vunpack.c.h.b16 %v422
    %v3253 = vunpack.c.l.b16 %v423
    %v3254 = vunpack.c.h.b16 %v423
    %v3255 = vunpack.c.l.b16 %v424
    %v3256 = vunpack.c.h.b16 %v424
    %v3257 = vunpack.c.l.b16 %v425
    %v3258 = vunpack.c.h.b16 %v425
    %v3259 = vunpack.c.l.b16 %v426
    %v3260 = vunpack.c.h.b16 %v426
    %v3261 = vunpack.c.l.b16 %v427
    %v3262 = vunpack.c.h.b16 %v427
    %v3263 = vunpack.c.l.b16 %v428
    %v3264 = vunpack.c.h.b16 %v428
    %v3265 = vunpack.c.l.b16 %v429
    %v3266 = vunpack.c.h.b16 %v429
    %v3267 = vunpack.c.l.b16 %v430
    %v3268 = vunpack.c.h.b16 %v430
    %v3269 = vunpack.c.l.b16 %v431
    %v3270 = vunpack.c.h.b16 %v431
    %v3271 = vunpack.c.l.b16 %v432
    %v3272 = vunpack.c.h.b16 %v432
    %v3273 = vunpack.c.l.b16 %v433
    %v3274 = vunpack.c.h.b16 %v433
    %v3275 = vunpack.c.l.b16 %v434
    %v3276 = vunpack.c.h.b16 %v434
    %v3277 = vunpack.c.l.b16 %v435
    %v3278 = vunpack.c.h.b16 %v435
    %v3279 = vunpack.c.l.b16 %v436
    %v3280 = vunpack.c.h.b16 %v436
    %v3281 = vunpack.c.l.b16 %v437
    %v3282 = vunpack.c.h.b16 %v437
    %v3283 = vunpack.c.l.b16 %v438
    %v3284 = vunpack.c.h.b16 %v438
    %v3285 = vunpack.c.l.b16 %v439
    %v3286 = vunpack.c.h.b16 %v439
    %v3287 = vunpack.c.l.b16 %v440
    %v3288 = vunpack.c.h.b16 %v440
    %v3289 = vunpack.c.l.b16 %v441
    %v3290 = vunpack.c.h.b16 %v441
    %v3291 = vunpack.c.l.b16 %v442
    %v3292 = vunpack.c.h.b16 %v442
    %v3293 = vunpack.c.l.b16 %v443
    %v3294 = vunpack.c.h.b16 %v443
    %v3295 = vunpack.c.l.b16 %v444
    %v3296 = vunpack.c.h.b16 %v444
    %v3297 = vunpack.c.l.b16 %v445
    %v3298 = vunpack.c.h.b16 %v445
    %v3299 = vunpack.c.l.b16 %v446
    %v3300 = vunpack.c.h.b16 %v446
    %v3301 = vunpack.c.l.b16 %v447
    %v3302 = vunpack.c.h.b16 %v447
    %v3303 = vunpack.c.l.b16 %v448
    %v3304 = vunpack.c.h.b16 %v448
    %v3305 = vunpack.c.l.b16 %v449
    %v3306 = vunpack.c.h.b16 %v449
    %v3307 = vunpack.c.l.b16 %v450
    %v3308 = vunpack.c.h.b16 %v450
    %v3309 = vunpack.c.l.b16 %v451
    %v3310 = vunpack.c.h.b16 %v451
    %v3311 = vunpack.c.l.b16 %v452
    %v3312 = vunpack.c.h.b16 %v452
    %v3313 = vunpack.c.l.b16 %v453
    %v3314 = vunpack.c.h.b16 %v453
    %v3315 = vunpack.c.l.b16 %v454
    %v3316 = vunpack.c.h.b16 %v454
    %v3317 = vunpack.c.l.b16 %v455
    %v3318 = vunpack.c.h.b16 %v455
    %v3319 = vunpack.c.l.b16 %v456
    %v3320 = vunpack.c.h.b16 %v456
    %v3321 = vunpack.c.l.b16 %v457
    %v3322 = vunpack.c.h.b16 %v457
    %v3323 = vunpack.c.l.b16 %v458
    %v3324 = vunpack.c.h.b16 %v458
    %v3325 = vunpack.c.l.b16 %v459
    %v3326 = vunpack.c.h.b16 %v459
    %v3327 = vunpack.c.l.b16 %v460
    %v3328 = vunpack.c.h.b16 %v460
    %v3329 = vunpack.c.l.b16 %v461
    %v3330 = vunpack.c.h.b16 %v461
    %v3331 = vunpack.c.l.b16 %v462
    %v3332 = vunpack.c.h.b16 %v462
    %v3333 = vunpack.c.l.b16 %v463
    %v3334 = vunpack.c.h.b16 %v463
    %v3335 = vunpack.c.l.b16 %v464
    %v3336 = vunpack.c.h.b16 %v464
    %v3337 = vunpack.c.l.b16 %v465
    %v3338 = vunpack.c.h.b16 %v465
    %v3339 = vunpack.c.l.b16 %v466
    %v3340 = vunpack.c.h.b16 %v466
    %v3341 = vunpack.c.l.b16 %v467
    %v3342 = vunpack.c.h.b16 %v467
    %v3343 = vunpack.c.l.b16 %v468
    %v3344 = vunpack.c.h.b16 %v468
    %v3345 = vunpack.c.l.b16 %v469
    %v3346 = vunpack.c.h.b16 %v469
    %v3347 = vunpack.c.l.b16 %v470
    %v3348 = vunpack.c.h.b16 %v470
    %v3349 = vunpack.c.l.b16 %v471
    %v3350 = vunpack.c.h.b16 %v471
    %v3351 = vunpack.c.l.b16 %v472
    %v3352 = vunpack.c.h.b16 %v472
    %v3353 = vunpack.c.l.b16 %v473
    %v3354 = vunpack.c.h.b16 %v473
    %v3355 = vunpack.c.l.b16 %v474
    %v3356 = vunpack.c.h.b16 %v474
    %v3357 = vunpack.c.l.b16 %v475
    %v3358 = vunpack.c.h.b16 %v475
    %v3359 = vunpack.c.l.b16 %v476
    %v3360 = vunpack.c.h.b16 %v476
    %v3361 = vunpack.c.l.b16 %v477
    %v3362 = vunpack.c.h.b16 %v477
    %v3363 = vunpack.c.l.b16 %v478
    %v3364 = vunpack.c.h.b16 %v478
    %v3365 = vunpack.c.l.b16 %v479
    %v3366 = vunpack.c.h.b16 %v479
    %v3367 = vunpack.c.l.b16 %v480
    %v3368 = vunpack.c.h.b16 %v480
    %v3369 = vunpack.c.l.b16 %v481
    %v3370 = vunpack.c.h.b16 %v481
    %v3371 = vunpack.c.l.b16 %v482
    %v3372 = vunpack.c.h.b16 %v482
    %v3373 = vunpack.c.l.b16 %v483
    %v3374 = vunpack.c.h.b16 %v483
    %v3375 = vunpack.c.l.b16 %v484
    %v3376 = vunpack.c.h.b16 %v484
    %v3377 = vunpack.c.l.b16 %v485
    %v3378 = vunpack.c.h.b16 %v485
    %v3379 = vunpack.c.l.b16 %v486
    %v3380 = vunpack.c.h.b16 %v486
    %v3381 = vunpack.c.l.b16 %v487
    %v3382 = vunpack.c.h.b16 %v487
    %v3383 = vunpack.c.l.b16 %v488
    %v3384 = vunpack.c.h.b16 %v488
    %v3385 = vunpack.c.l.b16 %v489
    %v3386 = vunpack.c.h.b16 %v489
    %v3387 = vunpack.c.l.b16 %v490
    %v3388 = vunpack.c.h.b16 %v490
    %v3389 = vunpack.c.l.b16 %v491
    %v3390 = vunpack.c.h.b16 %v491
    %v3391 = vunpack.c.l.b16 %v492
    %v3392 = vunpack.c.h.b16 %v492
    %v3393 = vunpack.c.l.b16 %v493
    %v3394 = vunpack.c.h.b16 %v493
    %v3395 = vunpack.c.l.b16 %v494
    %v3396 = vunpack.c.h.b16 %v494
    %v3397 = vunpack.c.l.b16 %v495
    %v3398 = vunpack.c.h.b16 %v495
    %v3399 = vunpack.c.l.b16 %v496
    %v3400 = vunpack.c.h.b16 %v496
    %v3401 = vunpack.c.l.b16 %v497
    %v3402 = vunpack.c.h.b16 %v497
    %v3403 = vunpack.c.l.b16 %v498
    %v3404 = vunpack.c.h.b16 %v498
    %v3405 = vunpack.c.l.b16 %v499
    %v3406 = vunpack.c.h.b16 %v499
    %v3407 = vunpack.c.l.b16 %v500
    %v3408 = vunpack.c.h.b16 %v500
    %v3409 = vunpack.c.l.b16 %v501
    %v3410 = vunpack.c.h.b16 %v501
    %v3411 = vunpack.c.l.b16 %v502
    %v3412 = vunpack.c.h.b16 %v502
    %v3413 = vunpack.c.l.b16 %v503
    %v3414 = vunpack.c.h.b16 %v503
    %v3415 = vunpack.c.l.b16 %v504
    %v3416 = vunpack.c.h.b16 %v504
    %v3417 = vunpack.c.l.b16 %v505
    %v3418 = vunpack.c.h.b16 %v505
    %v3419 = vunpack.c.l.b16 %v506
    %v3420 = vunpack.c.h.b16 %v506
    %v3421 = vunpack.c.l.b16 %v507
    %v3422 = vunpack.c.h.b16 %v507
    %v3423 = vunpack.c.l.b16 %v508
    %v3424 = vunpack.c.h.b16 %v508
    %v3425 = vunpack.c.l.b16 %v509
    %v3426 = vunpack.c.h.b16 %v509
    %v3427 = vunpack.c.l.b16 %v510
    %v3428 = vunpack.c.h.b16 %v510
    %v3429 = vunpack.c.l.b16 %v511
    %v3430 = vunpack.c.h.b16 %v511
    %v3431 = vunpack.c.l.b16 %v512
    %v3432 = vunpack.c.h.b16 %v512
    %v3433 = vunpack.c.l.b16 %v513
    %v3434 = vunpack.c.h.b16 %v513
    %v3435 = vunpack.c.l.b16 %v514
    %v3436 = vunpack.c.h.b16 %v514
    %v3437 = vunpack.c.l.b16 %v515
    %v3438 = vunpack.c.h.b16 %v515
    %v3439 = vunpack.c.l.b16 %v516
    %v3440 = vunpack.c.h.b16 %v516
    %v3441 = vunpack.c.l.b16 %v517
    %v3442 = vunpack.c.h.b16 %v517
    %v3443 = vunpack.c.l.b16 %v518
    %v3444 = vunpack.c.h.b16 %v518
    %v3445 = vunpack.c.l.b16 %v519
    %v3446 = vunpack.c.h.b16 %v519
    %v3447 = vunpack.c.l.b16 %v520
    %v3448 = vunpack.c.h.b16 %v520
    %v3449 = vunpack.c.l.b16 %v521
    %v3450 = vunpack.c.h.b16 %v521
    %v3451 = vunpack.c.l.b16 %v522
    %v3452 = vunpack.c.h.b16 %v522
    %v3453 = vunpack.c.l.b16 %v523
    %v3454 = vunpack.c.h.b16 %v523
    %v3455 = vunpack.c.l.b16 %v524
    %v3456 = vunpack.c.h.b16 %v524
    %v3457 = vunpack.c.l.b16 %v525
    %v3458 = vunpack.c.h.b16 %v525
    %v3459 = vunpack.c.l.b16 %v526
    %v3460 = vunpack.c.h.b16 %v526
    %v3461 = vunpack.c.l.b16 %v527
    %v3462 = vunpack.c.h.b16 %v527
    %v3463 = vunpack.c.l.b16 %v528
    %v3464 = vunpack.c.h.b16 %v528
    %v3465 = vunpack.c.l.b16 %v529
    %v3466 = vunpack.c.h.b16 %v529
    %v3467 = vunpack.c.l.b16 %v530
    %v3468 = vunpack.c.h.b16 %v530
    %v3469 = vunpack.c.l.b16 %v531
    %v3470 = vunpack.c.h.b16 %v531
    %v3471 = vunpack.c.l.b16 %v532
    %v3472 = vunpack.c.h.b16 %v532
    %v3473 = vunpack.c.l.b16 %v533
    %v3474 = vunpack.c.h.b16 %v533
    %v3475 = vunpack.c.l.b16 %v534
    %v3476 = vunpack.c.h.b16 %v534
    %v3477 = vunpack.c.l.b16 %v535
    %v3478 = vunpack.c.h.b16 %v535
    %v3479 = vunpack.c.l.b16 %v536
    %v3480 = vunpack.c.h.b16 %v536
    %v3481 = vunpack.c.l.b16 %v537
    %v3482 = vunpack.c.h.b16 %v537
    %v3483 = vunpack.c.l.b16 %v538
    %v3484 = vunpack.c.h.b16 %v538
    %v3485 = vunpack.c.l.b16 %v539
    %v3486 = vunpack.c.h.b16 %v539
    %v3487 = vunpack.c.l.b16 %v540
    %v3488 = vunpack.c.h.b16 %v540
    %v3489 = vunpack.c.l.b16 %v541
    %v3490 = vunpack.c.h.b16 %v541
    %v3491 = vunpack.c.l.b16 %v542
    %v3492 = vunpack.c.h.b16 %v542
    %v3493 = vunpack.c.l.b16 %v543
    %v3494 = vunpack.c.h.b16 %v543
    %v3495 = vunpack.c.l.b16 %v544
    %v3496 = vunpack.c.h.b16 %v544
    %v3497 = vunpack.c.l.b16 %v545
    %v3498 = vunpack.c.h.b16 %v545
    %v3499 = vunpack.c.l.b16 %v546
    %v3500 = vunpack.c.h.b16 %v546
    %v3501 = vunpack.c.l.b16 %v547
    %v3502 = vunpack.c.h.b16 %v547
    %v3503 = vunpack.c.l.b16 %v548
    %v3504 = vunpack.c.h.b16 %v548
    %v3505 = vunpack.c.l.b16 %v549
    %v3506 = vunpack.c.h.b16 %v549
    %v3507 = vunpack.c.l.b16 %v550
    %v3508 = vunpack.c.h.b16 %v550
    %v3509 = vunpack.c.l.b16 %v551
    %v3510 = vunpack.c.h.b16 %v551
    %v3511 = vunpack.c.l.b16 %v552
    %v3512 = vunpack.c.h.b16 %v552
    %v3513 = vunpack.c.l.b16 %v553
    %v3514 = vunpack.c.h.b16 %v553
    %v3515 = vunpack.c.l.b16 %v554
    %v3516 = vunpack.c.h.b16 %v554
    %v3517 = vunpack.c.l.b16 %v555
    %v3518 = vunpack.c.h.b16 %v555
    %v3519 = vunpack.c.l.b16 %v556
    %v3520 = vunpack.c.h.b16 %v556
    %v3521 = vunpack.c.l.b16 %v557
    %v3522 = vunpack.c.h.b16 %v557
    %v3523 = vunpack.c.l.b16 %v558
    %v3524 = vunpack.c.h.b16 %v558
    %v3525 = vunpack.c.l.b16 %v559
    %v3526 = vunpack.c.h.b16 %v559
    %v3527 = vunpack.c.l.b16 %v560
    %v3528 = vunpack.c.h.b16 %v560
    %v3529 = vunpack.c.l.b16 %v561
    %v3530 = vunpack.c.h.b16 %v561
    %v3531 = vunpack.c.l.b16 %v562
    %v3532 = vunpack.c.h.b16 %v562
    %v3533 = vunpack.c.l.b16 %v563
    %v3534 = vunpack.c.h.b16 %v563
    %v3535 = vunpack.c.l.b16 %v564
    %v3536 = vunpack.c.h.b16 %v564
    %v3537 = vunpack.c.l.b16 %v565
    %v3538 = vunpack.c.h.b16 %v565
    %v3539 = vunpack.c.l.b16 %v566
    %v3540 = vunpack.c.h.b16 %v566
    %v3541 = vunpack.c.l.b16 %v567
    %v3542 = vunpack.c.h.b16 %v567
    %v3543 = vunpack.c.l.b16 %v568
    %v3544 = vunpack.c.h.b16 %v568
    %v3545 = vunpack.c.l.b16 %v569
    %v3546 = vunpack.c.h.b16 %v569
    %v3547 = vunpack.c.l.b16 %v570
    %v3548 = vunpack.c.h.b16 %v570
    %v3549 = vunpack.c.l.b16 %v571
    %v3550 = vunpack.c.h.b16 %v571
    %v3551 = vunpack.c.l.b16 %v572
    %v3552 = vunpack.c.h.b16 %v572
    %v3553 = vunpack.c.l.b16 %v573
    %v3554 = vunpack.c.h.b16 %v573
    %v3555 = vunpack.c.l.b16 %v574
    %v3556 = vunpack.c.h.b16 %v574
    %v3557 = vunpack.c.l.b16 %v575
    %v3558 = vunpack.c.h.b16 %v575
    %v3559 = vunpack.c.l.b16 %v576
    %v3560 = vunpack.c.h.b16 %v576
    %v3561 = vunpack.c.l.b16 %v577
    %v3562 = vunpack.c.h.b16 %v577
    %v3563 = vunpack.c.l.b16 %v578
    %v3564 = vunpack.c.h.b16 %v578
    %v3565 = vunpack.c.l.b16 %v579
    %v3566 = vunpack.c.h.b16 %v579
    %v3567 = vunpack.c.l.b16 %v580
    %v3568 = vunpack.c.h.b16 %v580
    %v3569 = vunpack.c.l.b16 %v581
    %v3570 = vunpack.c.h.b16 %v581
    %v3571 = vunpack.c.l.b16 %v582
    %v3572 = vunpack.c.h.b16 %v582
    %v3573 = vunpack.c.l.b16 %v583
    %v3574 = vunpack.c.h.b16 %v583
    %v3575 = vunpack.c.l.b16 %v584
    %v3576 = vunpack.c.h.b16 %v584
    %v3577 = vunpack.c.l.b16 %v585
    %v3578 = vunpack.c.h.b16 %v585
    %v3579 = vunpack.c.l.b16 %v586
    %v3580 = vunpack.c.h.b16 %v586
    %v3581 = vunpack.c.l.b16 %v587
    %v3582 = vunpack.c.h.b16 %v587
    %v3583 = vunpack.c.l.b16 %v588
    %v3584 = vunpack.c.h.b16 %v588
    %v3585 = vunpack.c.l.b16 %v589
    %v3586 = vunpack.c.h.b16 %v589
    %v3587 = vunpack.c.l.b16 %v590
    %v3588 = vunpack.c.h.b16 %v590
    %v3589 = vunpack.c.l.b16 %v591
    %v3590 = vunpack.c.h.b16 %v591
    %v3591 = vunpack.c.l.b16 %v592
    %v3592 = vunpack.c.h.b16 %v592
    %v3593 = vunpack.c.l.b16 %v593
    %v3594 = vunpack.c.h.b16 %v593
    %v3595 = vunpack.c.l.b16 %v594
    %v3596 = vunpack.c.h.b16 %v594
    %v3597 = vunpack.c.l.b16 %v595
    %v3598 = vunpack.c.h.b16 %v595
    %v3599 = vunpack.c.l.b16 %v596
    %v3600 = vunpack.c.h.b16 %v596
    %v3601 = vunpack.c.l.b16 %v597
    %v3602 = vunpack.c.h.b16 %v597
    %v3603 = vunpack.c.l.b16 %v598
    %v3604 = vunpack.c.h.b16 %v598
    %v3605 = vunpack.c.l.b16 %v599
    %v3606 = vunpack.c.h.b16 %v599
    %v3607 = vunpack.c.l.b16 %v600
    %v3608 = vunpack.c.h.b16 %v600
    %v3609 = vunpack.c.l.b16 %v601
    %v3610 = vunpack.c.h.b16 %v601
    %v3611 = vunpack.c.l.b16 %v602
    %v3612 = vunpack.c.h.b16 %v602
    %v3613 = vunpack.c.l.b16 %v603
    %v3614 = vunpack.c.h.b16 %v603
    %v3615 = vunpack.c.l.b16 %v604
    %v3616 = vunpack.c.h.b16 %v604
    %v3617 = vunpack.c.l.b16 %v605
    %v3618 = vunpack.c.h.b16 %v605
    %v3619 = vunpack.c.l.b16 %v606
    %v3620 = vunpack.c.h.b16 %v606
    %v3621 = vunpack.c.l.b16 %v607
    %v3622 = vunpack.c.h.b16 %v607
    %v3623 = vunpack.c.l.b16 %v608
    %v3624 = vunpack.c.h.b16 %v608
    %v3625 = vunpack.c.l.b16 %v609
    %v3626 = vunpack.c.h.b16 %v609
    %v3627 = vunpack.c.l.b16 %v610
    %v3628 = vunpack.c.h.b16 %v610
    %v3629 = vunpack.c.l.b16 %v611
    %v3630 = vunpack.c.h.b16 %v611
    %v3631 = vunpack.c.l.b16 %v612
    %v3632 = vunpack.c.h.b16 %v612
    %v3633 = vunpack.c.l.b16 %v613
    %v3634 = vunpack.c.h.b16 %v613
    %v3635 = vunpack.c.l.b16 %v614
    %v3636 = vunpack.c.h.b16 %v614
    %v3637 = vunpack.c.l.b16 %v615
    %v3638 = vunpack.c.h.b16 %v615
    %v3639 = vunpack.c.l.b16 %v616
    %v3640 = vunpack.c.h.b16 %v616
    %v3641 = vunpack.c.l.b16 %v617
    %v3642 = vunpack.c.h.b16 %v617
    %v3643 = vunpack.c.l.b16 %v618
    %v3644 = vunpack.c.h.b16 %v618
    %v3645 = vunpack.c.l.b16 %v619
    %v3646 = vunpack.c.h.b16 %v619
    %v3647 = vunpack.c.l.b16 %v620
    %v3648 = vunpack.c.h.b16 %v620
    %v3649 = vunpack.c.l.b16 %v621
    %v3650 = vunpack.c.h.b16 %v621
    %v3651 = vunpack.c.l.b16 %v622
    %v3652 = vunpack.c.h.b16 %v622
    %v3653 = vunpack.c.l.b16 %v623
    %v3654 = vunpack.c.h.b16 %v623
    %v3655 = vunpack.c.l.b16 %v624
    %v3656 = vunpack.c.h.b16 %v624
    %v3657 = vunpack.c.l.b16 %v625
    %v3658 = vunpack.c.h.b16 %v625
    %v3659 = vunpack.c.l.b16 %v626
    %v3660 = vunpack.c.h.b16 %v626
    %v3661 = vunpack.c.l.b16 %v627
    %v3662 = vunpack.c.h.b16 %v627
    %v3663 = vunpack.c.l.b16 %v628
    %v3664 = vunpack.c.h.b16 %v628
    %v3665 = vunpack.c.l.b16 %v629
    %v3666 = vunpack.c.h.b16 %v629
    %v3667 = vunpack.c.l.b16 %v630
    %v3668 = vunpack.c.h.b16 %v630
    %v3669 = vunpack.c.l.b16 %v631
    %v3670 = vunpack.c.h.b16 %v631
    %v3671 = vunpack.c.l.b16 %v632
    %v3672 = vunpack.c.h.b16 %v632
    %v3673 = vunpack.c.l.b16 %v633
    %v3674 = vunpack.c.h.b16 %v633
    %v3675 = vunpack.c.l.b16 %v634
    %v3676 = vunpack.c.h.b16 %v634
    %v3677 = vunpack.c.l.b16 %v635
    %v3678 = vunpack.c.h.b16 %v635
    %v3679 = vunpack.c.l.b16 %v636
    %v3680 = vunpack.c.h.b16 %v636
    %v3681 = vunpack.c.l.b16 %v637
    %v3682 = vunpack.c.h.b16 %v637
    %v3683 = vunpack.c.l.b16 %v638
    %v3684 = vunpack.c.h.b16 %v638
    %v3685 = vunpack.c.l.b16 %v639
    %v3686 = vunpack.c.h.b16 %v639
    %v3687 = vunpack.c.l.b16 %v640
    %v3688 = vunpack.c.h.b16 %v640
    %v3689 = vunpack.c.l.b16 %v641
    %v3690 = vunpack.c.h.b16 %v641
    %v3691 = vunpack.c.l.b16 %v642
    %v3692 = vunpack.c.h.b16 %v642
    %v3693 = vunpack.c.l.b16 %v643
    %v3694 = vunpack.c.h.b16 %v643
    %v3695 = vunpack.c.l.b16 %v644
    %v3696 = vunpack.c.h.b16 %v644
    %v3697 = vunpack.c.l.b16 %v645
    %v3698 = vunpack.c.h.b16 %v645
    %v3699 = vunpack.c.l.b16 %v646
    %v3700 = vunpack.c.h.b16 %v646
    %v3701 = vunpack.c.l.b16 %v647
    %v3702 = vunpack.c.h.b16 %v647
    %v3703 = vunpack.c.l.b16 %v648
    %v3704 = vunpack.c.h.b16 %v648
    %v3705 = vunpack.c.l.b16 %v649
    %v3706 = vunpack.c.h.b16 %v649
    %v3707 = vunpack.c.l.b16 %v650
    %v3708 = vunpack.c.h.b16 %v650
    %v3709 = vunpack.c.l.b16 %v651
    %v3710 = vunpack.c.h.b16 %v651
    %v3711 = vunpack.c.l.b16 %v652
    %v3712 = vunpack.c.h.b16 %v652
    %v3713 = vunpack.c.l.b16 %v653
    %v3714 = vunpack.c.h.b16 %v653
    %v3715 = vunpack.c.l.b16 %v654
    %v3716 = vunpack.c.h.b16 %v654
    %v3717 = vunpack.c.l.b16 %v655
    %v3718 = vunpack.c.h.b16 %v655
    %v3719 = vunpack.c.l.b16 %v656
    %v3720 = vunpack.c.h.b16 %v656
    %v3721 = vunpack.c.l.b16 %v657
    %v3722 = vunpack.c.h.b16 %v657
    %v3723 = vunpack.c.l.b16 %v658
    %v3724 = vunpack.c.h.b16 %v658
    %v3725 = vunpack.c.l.b16 %v659
    %v3726 = vunpack.c.h.b16 %v659
    %v3727 = vunpack.c.l.b16 %v660
    %v3728 = vunpack.c.h.b16 %v660
    %v3729 = vunpack.c.l.b16 %v661
    %v3730 = vunpack.c.h.b16 %v661
    %v3731 = vunpack.c.l.b16 %v662
    %v3732 = vunpack.c.h.b16 %v662
    %v3733 = vunpack.c.l.b16 %v663
    %v3734 = vunpack.c.h.b16 %v663
    %v3735 = vunpack.c.l.b16 %v664
    %v3736 = vunpack.c.h.b16 %v664
    %v3737 = vunpack.c.l.b16 %v665
    %v3738 = vunpack.c.h.b16 %v665
    %v3739 = vunpack.c.l.b16 %v666
    %v3740 = vunpack.c.h.b16 %v666
    %v3741 = vunpack.c.l.b16 %v667
    %v3742 = vunpack.c.h.b16 %v667
    %v3743 = vunpack.c.l.b16 %v668
    %v3744 = vunpack.c.h.b16 %v668
    %v3745 = vunpack.c.l.b16 %v669
    %v3746 = vunpack.c.h.b16 %v669
    %v3747 = vunpack.c.l.b16 %v670
    %v3748 = vunpack.c.h.b16 %v670
    %v3749 = vunpack.c.l.b16 %v671
    %v3750 = vunpack.c.h.b16 %v671
    %v3751 = vunpack.c.l.b16 %v672
    %v3752 = vunpack.c.h.b16 %v672
    %v3753 = vunpack.c.l.b16 %v673
    %v3754 = vunpack.c.h.b16 %v673
    %v3755 = vunpack.c.l.b16 %v674
    %v3756 = vunpack.c.h.b16 %v674
    %v3757 = vunpack.c.l.b16 %v675
    %v3758 = vunpack.c.h.b16 %v675
    %v3759 = vunpack.c.l.b16 %v676
    %v3760 = vunpack.c.h.b16 %v676
    %v3761 = vunpack.c.l.b16 %v677
    %v3762 = vunpack.c.h.b16 %v677
    %v3763 = vunpack.c.l.b16 %v678
    %v3764 = vunpack.c.h.b16 %v678
    %v3765 = vunpack.c.l.b16 %v679
    %v3766 = vunpack.c.h.b16 %v679
    %v3767 = vunpack.c.l.b16 %v680
    %v3768 = vunpack.c.h.b16 %v680
    %v3769 = vunpack.c.l.b16 %v681
    %v3770 = vunpack.c.h.b16 %v681
    %v3771 = vunpack.c.l.b16 %v682
    %v3772 = vunpack.c.h.b16 %v682
    %v3773 = vunpack.c.l.b16 %v683
    %v3774 = vunpack.c.h.b16 %v683
    %v3775 = vunpack.c.l.b16 %v684
    %v3776 = vunpack.c.h.b16 %v684
    %v3777 = vunpack.c.l.b16 %v685
    %v3778 = vunpack.c.h.b16 %v685
    %v3779 = vunpack.c.l.b16 %v686
    %v3780 = vunpack.c.h.b16 %v686
    %v3781 = vunpack.c.l.b16 %v687
    %v3782 = vunpack.c.h.b16 %v687
    %v3783 = vunpack.c.l.b16 %v688
    %v3784 = vunpack.c.h.b16 %v688
    %v3785 = vunpack.c.l.b16 %v689
    %v3786 = vunpack.c.h.b16 %v689
    %v3787 = vunpack.c.l.b16 %v690
    %v3788 = vunpack.c.h.b16 %v690
    %v3789 = vunpack.c.l.b16 %v691
    %v3790 = vunpack.c.h.b16 %v691
    %v3791 = vunpack.c.l.b16 %v692
    %v3792 = vunpack.c.h.b16 %v692
    %v3793 = vunpack.c.l.b16 %v693
    %v3794 = vunpack.c.h.b16 %v693
    %v3795 = vunpack.c.l.b16 %v694
    %v3796 = vunpack.c.h.b16 %v694
    %v3797 = vunpack.c.l.b16 %v695
    %v3798 = vunpack.c.h.b16 %v695
    %v3799 = vunpack.c.l.b16 %v696
    %v3800 = vunpack.c.h.b16 %v696
    %v3801 = vunpack.c.l.b16 %v697
    %v3802 = vunpack.c.h.b16 %v697
    %v3803 = vunpack.c.l.b16 %v698
    %v3804 = vunpack.c.h.b16 %v698
    %v3805 = vunpack.c.l.b16 %v699
    %v3806 = vunpack.c.h.b16 %v699
    %v3807 = vunpack.c.l.b16 %v700
    %v3808 = vunpack.c.h.b16 %v700
    %v3809 = vunpack.c.l.b16 %v701
    %v3810 = vunpack.c.h.b16 %v701
    %v3811 = vunpack.c.l.b16 %v702
    %v3812 = vunpack.c.h.b16 %v702
    %v3813 = vunpack.c.l.b16 %v703
    %v3814 = vunpack.c.h.b16 %v703
    %v3815 = vunpack.c.l.b16 %v704
    %v3816 = vunpack.c.h.b16 %v704
    %v3817 = vunpack.c.l.b16 %v705
    %v3818 = vunpack.c.h.b16 %v705
    %v3819 = vunpack.c.l.b16 %v706
    %v3820 = vunpack.c.h.b16 %v706
    %v3821 = vunpack.c.l.b16 %v707
    %v3822 = vunpack.c.h.b16 %v707
    %v3823 = vunpack.c.l.b16 %v708
    %v3824 = vunpack.c.h.b16 %v708
    %v3825 = vunpack.c.l.b16 %v709
    %v3826 = vunpack.c.h.b16 %v709
    %v3827 = vunpack.c.l.b16 %v710
    %v3828 = vunpack.c.h.b16 %v710
    %v3829 = vunpack.c.l.b16 %v711
    %v3830 = vunpack.c.h.b16 %v711
    %v3831 = vunpack.c.l.b16 %v712
    %v3832 = vunpack.c.h.b16 %v712
    %v3833 = vunpack.c.l.b16 %v713
    %v3834 = vunpack.c.h.b16 %v713
    %v3835 = vunpack.c.l.b16 %v714
    %v3836 = vunpack.c.h.b16 %v714
    %v3837 = vunpack.c.l.b16 %v715
    %v3838 = vunpack.c.h.b16 %v715
    %v3839 = vunpack.c.l.b16 %v716
    %v3840 = vunpack.c.h.b16 %v716
    %v3841 = vunpack.c.l.b16 %v717
    %v3842 = vunpack.c.h.b16 %v717
    %v3843 = vunpack.c.l.b16 %v718
    %v3844 = vunpack.c.h.b16 %v718
    %v3845 = vunpack.c.l.b16 %v719
    %v3846 = vunpack.c.h.b16 %v719
    %v3847 = vunpack.c.l.b16 %v720
    %v3848 = vunpack.c.h.b16 %v720
    %v3849 = vunpack.c.l.b16 %v721
    %v3850 = vunpack.c.h.b16 %v721
    %v3851 = vunpack.c.l.b16 %v722
    %v3852 = vunpack.c.h.b16 %v722
    %v3853 = vunpack.c.l.b16 %v723
    %v3854 = vunpack.c.h.b16 %v723
    %v3855 = vunpack.c.l.b16 %v724
    %v3856 = vunpack.c.h.b16 %v724
    %v3857 = vunpack.c.l.b16 %v725
    %v3858 = vunpack.c.h.b16 %v725
    %v3859 = vunpack.c.l.b16 %v726
    %v3860 = vunpack.c.h.b16 %v726
    %v3861 = vunpack.c.l.b16 %v727
    %v3862 = vunpack.c.h.b16 %v727
    %v3863 = vunpack.c.l.b16 %v728
    %v3864 = vunpack.c.h.b16 %v728
    %v3865 = vunpack.c.l.b16 %v729
    %v3866 = vunpack.c.h.b16 %v729
    %v3867 = vunpack.c.l.b16 %v730
    %v3868 = vunpack.c.h.b16 %v730
    %v3869 = vunpack.c.l.b16 %v731
    %v3870 = vunpack.c.h.b16 %v731
    %v3871 = vunpack.c.l.b16 %v732
    %v3872 = vunpack.c.h.b16 %v732
    %v3873 = vunpack.c.l.b16 %v733
    %v3874 = vunpack.c.h.b16 %v733
    %v3875 = vunpack.c.l.b16 %v734
    %v3876 = vunpack.c.h.b16 %v734
    %v3877 = vunpack.c.l.b16 %v735
    %v3878 = vunpack.c.h.b16 %v735
    %v3879 = vunpack.c.l.b16 %v736
    %v3880 = vunpack.c.h.b16 %v736
    %v3881 = vunpack.c.l.b16 %v737
    %v3882 = vunpack.c.h.b16 %v737
    %v3883 = vunpack.c.l.b16 %v738
    %v3884 = vunpack.c.h.b16 %v738
    %v3885 = vunpack.c.l.b16 %v739
    %v3886 = vunpack.c.h.b16 %v739
    %v3887 = vunpack.c.l.b16 %v740
    %v3888 = vunpack.c.h.b16 %v740
    %v3889 = vunpack.c.l.b16 %v741
    %v3890 = vunpack.c.h.b16 %v741
    %v3891 = vunpack.c.l.b16 %v742
    %v3892 = vunpack.c.h.b16 %v742
    %v3893 = vunpack.c.l.b16 %v743
    %v3894 = vunpack.c.h.b16 %v743
    %v3895 = vunpack.c.l.b16 %v744
    %v3896 = vunpack.c.h.b16 %v744
    %v3897 = vunpack.c.l.b16 %v745
    %v3898 = vunpack.c.h.b16 %v745
    %v3899 = vunpack.c.l.b16 %v746
    %v3900 = vunpack.c.h.b16 %v746
    %v3901 = vunpack.c.l.b16 %v747
    %v3902 = vunpack.c.h.b16 %v747
    %v3903 = vunpack.c.l.b16 %v748
    %v3904 = vunpack.c.h.b16 %v748
    %v3905 = vunpack.c.l.b16 %v749
    %v3906 = vunpack.c.h.b16 %v749
    %v3907 = vunpack.c.l.b16 %v750
    %v3908 = vunpack.c.h.b16 %v750
    %v3909 = vunpack.c.l.b16 %v751
    %v3910 = vunpack.c.h.b16 %v751
    %v3911 = vunpack.c.l.b16 %v752
    %v3912 = vunpack.c.h.b16 %v752
    %v3913 = vunpack.c.l.b16 %v753
    %v3914 = vunpack.c.h.b16 %v753
    %v3915 = vunpack.c.l.b16 %v754
    %v3916 = vunpack.c.h.b16 %v754
    %v3917 = vunpack.c.l.b16 %v755
    %v3918 = vunpack.c.h.b16 %v755
    %v3919 = vunpack.c.l.b16 %v756
    %v3920 = vunpack.c.h.b16 %v756
    %v3921 = vunpack.c.l.b16 %v757
    %v3922 = vunpack.c.h.b16 %v757
    %v3923 = vunpack.c.l.b16 %v758
    %v3924 = vunpack.c.h.b16 %v758
    %v3925 = vunpack.c.l.b16 %v759
    %v3926 = vunpack.c.h.b16 %v759
    %v3927 = vunpack.c.l.b16 %v760
    %v3928 = vunpack.c.h.b16 %v760
    %v3929 = vunpack.c.l.b16 %v761
    %v3930 = vunpack.c.h.b16 %v761
    %v3931 = vunpack.c.l.b16 %v762
    %v3932 = vunpack.c.h.b16 %v762
    %v3933 = vunpack.c.l.b16 %v763
    %v3934 = vunpack.c.h.b16 %v763
    %v3935 = vunpack.c.l.b16 %v764
    %v3936 = vunpack.c.h.b16 %v764
    %v3937 = vunpack.c.l.b16 %v765
    %v3938 = vunpack.c.h.b16 %v765
    %v3939 = vunpack.c.l.b16 %v766
    %v3940 = vunpack.c.h.b16 %v766
    %v3941 = vunpack.c.l.b16 %v767
    %v3942 = vunpack.c.h.b16 %v767
    %v3943 = vunpack.c.l.b16 %v768
    %v3944 = vunpack.c.h.b16 %v768
    %v3945 = vunpack.c.l.b16 %v769
    %v3946 = vunpack.c.h.b16 %v769
    %v3947 = vunpack.c.l.b16 %v770
    %v3948 = vunpack.c.h.b16 %v770
    %v3949 = vunpack.c.l.b16 %v771
    %v3950 = vunpack.c.h.b16 %v771
    %v3951 = vunpack.c.l.b16 %v772
    %v3952 = vunpack.c.h.b16 %v772
    %v3953 = vunpack.c.l.b16 %v773
    %v3954 = vunpack.c.h.b16 %v773
    %v3955 = vunpack.c.l.b16 %v774
    %v3956 = vunpack.c.h.b16 %v774
    %v3957 = vunpack.c.l.b16 %v775
    %v3958 = vunpack.c.h.b16 %v775
    %v3959 = vunpack.c.l.b16 %v776
    %v3960 = vunpack.c.h.b16 %v776
    %v3961 = vunpack.c.l.b16 %v777
    %v3962 = vunpack.c.h.b16 %v777
    %v3963 = vunpack.c.l.b16 %v778
    %v3964 = vunpack.c.h.b16 %v778
    %v3965 = vunpack.c.l.b16 %v779
    %v3966 = vunpack.c.h.b16 %v779
    %v3967 = vunpack.c.l.b16 %v780
    %v3968 = vunpack.c.h.b16 %v780
    %v3969 = vunpack.c.l.b16 %v781
    %v3970 = vunpack.c.h.b16 %v781
    %v3971 = vunpack.c.l.b16 %v782
    %v3972 = vunpack.c.h.b16 %v782
    %v3973 = vunpack.c.l.b16 %v783
    %v3974 = vunpack.c.h.b16 %v783
    %v3975 = vunpack.c.l.b16 %v784
    %v3976 = vunpack.c.h.b16 %v784
    %v3977 = vunpack.c.l.b16 %v785
    %v3978 = vunpack.c.h.b16 %v785
    %v3979 = vunpack.c.l.b16 %v786
    %v3980 = vunpack.c.h.b16 %v786
    %v3981 = vunpack.c.l.b16 %v787
    %v3982 = vunpack.c.h.b16 %v787
    %v3983 = vunpack.c.l.b16 %v788
    %v3984 = vunpack.c.h.b16 %v788
    %v3985 = vunpack.c.l.b16 %v789
    %v3986 = vunpack.c.h.b16 %v789
    %v3987 = vunpack.c.l.b16 %v790
    %v3988 = vunpack.c.h.b16 %v790
    %v3989 = vunpack.c.l.b16 %v791
    %v3990 = vunpack.c.h.b16 %v791
    %v3991 = vunpack.c.l.b16 %v792
    %v3992 = vunpack.c.h.b16 %v792
    %v3993 = vunpack.c.l.b16 %v793
    %v3994 = vunpack.c.h.b16 %v793
    %v3995 = vunpack.c.l.b16 %v794
    %v3996 = vunpack.c.h.b16 %v794
    %v3997 = vunpack.c.l.b16 %v795
    %v3998 = vunpack.c.h.b16 %v795
    %v3999 = vunpack.c.l.b16 %v796
    %v4000 = vunpack.c.h.b16 %v796
    %v4001 = vunpack.c.l.b16 %v797
    %v4002 = vunpack.c.h.b16 %v797
    %v4003 = vunpack.c.l.b16 %v798
    %v4004 = vunpack.c.h.b16 %v798
    %v4005 = vunpack.c.l.b16 %v799
    %v4006 = vunpack.c.h.b16 %v799
    %v4007 = vunpack.c.l.b16 %v800
    %v4008 = vunpack.c.h.b16 %v800
    %v4009 = vunpack.c.l.b16 %v801
    %v4010 = vunpack.c.h.b16 %v801
    %v4011 = vunpack.c.l.b16 %v802
    %v4012 = vunpack.c.h.b16 %v802
    %v4013 = vunpack.c.l.b16 %v803
    %v4014 = vunpack.c.h.b16 %v803
    %v4015 = vunpack.c.l.b16 %v804
    %v4016 = vunpack.c.h.b16 %v804
    %v4017 = vunpack.c.l.b16 %v805
    %v4018 = vunpack.c.h.b16 %v805
    %v4019 = vunpack.c.l.b16 %v806
    %v4020 = vunpack.c.h.b16 %v806
    %v4021 = vunpack.c.l.b16 %v807
    %v4022 = vunpack.c.h.b16 %v807
    %v4023 = vunpack.c.l.b16 %v808
    %v4024 = vunpack.c.h.b16 %v808
    %v4025 = vunpack.c.l.b16 %v809
    %v4026 = vunpack.c.h.b16 %v809
    %v4027 = vunpack.c.l.b16 %v810
    %v4028 = vunpack.c.h.b16 %v810
    %v4029 = vunpack.c.l.b16 %v811
    %v4030 = vunpack.c.h.b16 %v811
    %v4031 = vunpack.c.l.b16 %v812
    %v4032 = vunpack.c.h.b16 %v812
    %v4033 = vunpack.c.l.b16 %v813
    %v4034 = vunpack.c.h.b16 %v813
    %v4035 = vunpack.c.l.b16 %v814
    %v4036 = vunpack.c.h.b16 %v814
    %v4037 = vunpack.c.l.b16 %v815
    %v4038 = vunpack.c.h.b16 %v815
    %v4039 = vunpack.c.l.b16 %v816
    %v4040 = vunpack.c.h.b16 %v816
    %v4041 = vunpack.c.l.b16 %v817
    %v4042 = vunpack.c.h.b16 %v817
    %v4043 = vunpack.c.l.b16 %v818
    %v4044 = vunpack.c.h.b16 %v818
    %v4045 = vunpack.c.l.b16 %v819
    %v4046 = vunpack.c.h.b16 %v819
    %v4047 = vunpack.c.l.b16 %v820
    %v4048 = vunpack.c.h.b16 %v820
    %v4049 = vunpack.c.l.b16 %v821
    %v4050 = vunpack.c.h.b16 %v821
    %v4051 = vunpack.c.l.b16 %v822
    %v4052 = vunpack.c.h.b16 %v822
    %v4053 = vunpack.c.l.b16 %v823
    %v4054 = vunpack.c.h.b16 %v823
    %v4055 = vunpack.c.l.b16 %v824
    %v4056 = vunpack.c.h.b16 %v824
    %v4057 = vunpack.c.l.b16 %v825
    %v4058 = vunpack.c.h.b16 %v825
    %v4059 = vunpack.c.l.b16 %v826
    %v4060 = vunpack.c.h.b16 %v826
    %v4061 = vunpack.c.l.b16 %v827
    %v4062 = vunpack.c.h.b16 %v827
    %v4063 = vunpack.c.l.b16 %v828
    %v4064 = vunpack.c.h.b16 %v828
    %v4065 = vunpack.c.l.b16 %v829
    %v4066 = vunpack.c.h.b16 %v829
    %v4067 = vunpack.c.l.b16 %v830
    %v4068 = vunpack.c.h.b16 %v830
    %v4069 = vunpack.c.l.b16 %v831
    %v4070 = vunpack.c.h.b16 %v831
    %v4071 = vunpack.c.l.b16 %v832
    %v4072 = vunpack.c.h.b16 %v832
    %v4073 = vunpack.c.l.b16 %v833
    %v4074 = vunpack.c.h.b16 %v833
    %v4075 = vunpack.c.l.b16 %v834
    %v4076 = vunpack.c.h.b16 %v834
    %v4077 = vunpack.c.l.b16 %v835
    %v4078 = vunpack.c.h.b16 %v835
    %v4079 = vunpack.c.l.b16 %v836
    %v4080 = vunpack.c.h.b16 %v836
    %v4081 = vunpack.c.l.b16 %v837
    %v4082 = vunpack.c.h.b16 %v837
    %v4083 = vunpack.c.l.b16 %v838
    %v4084 = vunpack.c.h.b16 %v838
    %v4085 = vunpack.c.l.b16 %v839
    %v4086 = vunpack.c.h.b16 %v839
    %v4087 = vunpack.c.l.b16 %v840
    %v4088 = vunpack.c.h.b16 %v840
    %v4089 = vunpack.c.l.b16 %v841
    %v4090 = vunpack.c.h.b16 %v841
    %v4091 = vunpack.c.l.b16 %v842
    %v4092 = vunpack.c.h.b16 %v842
    %v4093 = vunpack.c.l.b16 %v843
    %v4094 = vunpack.c.h.b16 %v843
    %v4095 = vunpack.c.l.b16 %v844
    %v4096 = vunpack.c.h.b16 %v844
    %v4097 = vunpack.c.l.b16 %v845
    %v4098 = vunpack.c.h.b16 %v845
    %v4099 = vunpack.c.l.b16 %v846
    %v4100 = vunpack.c.h.b16 %v846
    %v4101 = vunpack.c.l.b16 %v847
    %v4102 = vunpack.c.h.b16 %v847
    %v4103 = vunpack.c.l.b16 %v848
    %v4104 = vunpack.c.h.b16 %v848
    %v4105 = vunpack.c.l.b16 %v849
    %v4106 = vunpack.c.h.b16 %v849
    %v4107 = vunpack.c.l.b16 %v850
    %v4108 = vunpack.c.h.b16 %v850
    %v4109 = vunpack.c.l.b16 %v851
    %v4110 = vunpack.c.h.b16 %v851
    %v4111 = vunpack.c.l.b16 %v852
    %v4112 = vunpack.c.h.b16 %v852
    %v4113 = vunpack.c.l.b16 %v853
    %v4114 = vunpack.c.h.b16 %v853
    %v4115 = vunpack.c.l.b16 %v854
    %v4116 = vunpack.c.h.b16 %v854
    %v4117 = vunpack.c.l.b16 %v855
    %v4118 = vunpack.c.h.b16 %v855
    %v4119 = vunpack.c.l.b16 %v856
    %v4120 = vunpack.c.h.b16 %v856
    %v4121 = vunpack.c.l.b16 %v857
    %v4122 = vunpack.c.h.b16 %v857
    %v4123 = vunpack.c.l.b16 %v858
    %v4124 = vunpack.c.h.b16 %v858
    %v4125 = vunpack.c.l.b16 %v859
    %v4126 = vunpack.c.h.b16 %v859
    %v4127 = vunpack.c.l.b16 %v860
    %v4128 = vunpack.c.h.b16 %v860
    %v4129 = vunpack.c.l.b16 %v861
    %v4130 = vunpack.c.h.b16 %v861
    %v4131 = vunpack.c.l.b16 %v862
    %v4132 = vunpack.c.h.b16 %v862
    %v4133 = vunpack.c.l.b16 %v863
    %v4134 = vunpack.c.h.b16 %v863
    %v4135 = vunpack.c.l.b16 %v864
    %v4136 = vunpack.c.h.b16 %v864
    %v4137 = vunpack.c.l.b16 %v865
    %v4138 = vunpack.c.h.b16 %v865
    %v4139 = vunpack.c.l.b16 %v866
    %v4140 = vunpack.c.h.b16 %v866
    %v4141 = vunpack.c.l.b16 %v867
    %v4142 = vunpack.c.h.b16 %v867
    %v4143 = vunpack.c.l.b16 %v868
    %v4144 = vunpack.c.h.b16 %v868
    %v4145 = vunpack.c.l.b16 %v869
    %v4146 = vunpack.c.h.b16 %v869
    %v4147 = vunpack.c.l.b16 %v870
    %v4148 = vunpack.c.h.b16 %v870
    %v4149 = vunpack.c.l.b16 %v871
    %v4150 = vunpack.c.h.b16 %v871
    %v4151 = vunpack.c.l.b16 %v872
    %v4152 = vunpack.c.h.b16 %v872
    %v4153 = vunpack.c.l.b16 %v873
    %v4154 = vunpack.c.h.b16 %v873
    %v4155 = vunpack.c.l.b16 %v874
    %v4156 = vunpack.c.h.b16 %v874
    %v4157 = vunpack.c.l.b16 %v875
    %v4158 = vunpack.c.h.b16 %v875
    %v4159 = vunpack.c.l.b16 %v876
    %v4160 = vunpack.c.h.b16 %v876
    %v4161 = vunpack.c.l.b16 %v877
    %v4162 = vunpack.c.h.b16 %v877
    %v4163 = vunpack.c.l.b16 %v878
    %v4164 = vunpack.c.h.b16 %v878
    %v4165 = vunpack.c.l.b16 %v879
    %v4166 = vunpack.c.h.b16 %v879
    %v4167 = vunpack.c.l.b16 %v880
    %v4168 = vunpack.c.h.b16 %v880
    %v4169 = vunpack.c.l.b16 %v881
    %v4170 = vunpack.c.h.b16 %v881
    %v4171 = vunpack.c.l.b16 %v882
    %v4172 = vunpack.c.h.b16 %v882
    %v4173 = vunpack.c.l.b16 %v883
    %v4174 = vunpack.c.h.b16 %v883
    %v4175 = vunpack.c.l.b16 %v884
    %v4176 = vunpack.c.h.b16 %v884
    %v4177 = vunpack.c.l.b16 %v885
    %v4178 = vunpack.c.h.b16 %v885
    %v4179 = vunpack.c.l.b16 %v886
    %v4180 = vunpack.c.h.b16 %v886
    %v4181 = vunpack.c.l.b16 %v887
    %v4182 = vunpack.c.h.b16 %v887
    %v4183 = vunpack.c.l.b16 %v888
    %v4184 = vunpack.c.h.b16 %v888
    %v4185 = vunpack.c.l.b16 %v889
    %v4186 = vunpack.c.h.b16 %v889
    %v4187 = vunpack.c.l.b16 %v890
    %v4188 = vunpack.c.h.b16 %v890
    %v4189 = vunpack.c.l.b16 %v891
    %v4190 = vunpack.c.h.b16 %v891
    %v4191 = vunpack.c.l.b16 %v892
    %v4192 = vunpack.c.h.b16 %v892
    %v4193 = vunpack.c.l.b16 %v893
    %v4194 = vunpack.c.h.b16 %v893
    %v4195 = vunpack.c.l.b16 %v894
    %v4196 = vunpack.c.h.b16 %v894
    %v4197 = vunpack.c.l.b16 %v895
    %v4198 = vunpack.c.h.b16 %v895
    %v4199 = vunpack.c.l.b16 %v896
    %v4200 = vunpack.c.h.b16 %v896
    %v4201 = vunpack.c.l.b16 %v897
    %v4202 = vunpack.c.h.b16 %v897
    %v4203 = vunpack.c.l.b16 %v898
    %v4204 = vunpack.c.h.b16 %v898
    %v4205 = vunpack.c.l.b16 %v899
    %v4206 = vunpack.c.h.b16 %v899
    %v4207 = vunpack.c.l.b16 %v900
    %v4208 = vunpack.c.h.b16 %v900
    %v4209 = vunpack.c.l.b16 %v901
    %v4210 = vunpack.c.h.b16 %v901
    %v4211 = vunpack.c.l.b16 %v902
    %v4212 = vunpack.c.h.b16 %v902
    %v4213 = vunpack.c.l.b16 %v903
    %v4214 = vunpack.c.h.b16 %v903
    %v4215 = vunpack.c.l.b16 %v904
    %v4216 = vunpack.c.h.b16 %v904
    %v4217 = vunpack.c.l.b16 %v905
    %v4218 = vunpack.c.h.b16 %v905
    %v4219 = vunpack.c.l.b16 %v906
    %v4220 = vunpack.c.h.b16 %v906
    %v4221 = vunpack.c.l.b16 %v907
    %v4222 = vunpack.c.h.b16 %v907
    %v4223 = vunpack.c.l.b16 %v908
    %v4224 = vunpack.c.h.b16 %v908
    %v4225 = vunpack.c.l.b16 %v909
    %v4226 = vunpack.c.h.b16 %v909
    %v4227 = vunpack.c.l.b16 %v910
    %v4228 = vunpack.c.h.b16 %v910
    %v4229 = vunpack.c.l.b16 %v911
    %v4230 = vunpack.c.h.b16 %v911
    %v4231 = vunpack.c.l.b16 %v912
    %v4232 = vunpack.c.h.b16 %v912
    %v4233 = vunpack.c.l.b16 %v913
    %v4234 = vunpack.c.h.b16 %v913
    %v4235 = vunpack.c.l.b16 %v914
    %v4236 = vunpack.c.h.b16 %v914
    %v4237 = vunpack.c.l.b16 %v915
    %v4238 = vunpack.c.h.b16 %v915
    %v4239 = vunpack.c.l.b16 %v916
    %v4240 = vunpack.c.h.b16 %v916
    %v4241 = vunpack.c.l.b16 %v917
    %v4242 = vunpack.c.h.b16 %v917
    %v4243 = vunpack.c.l.b16 %v918
    %v4244 = vunpack.c.h.b16 %v918
    %v4245 = vunpack.c.l.b16 %v919
    %v4246 = vunpack.c.h.b16 %v919
    %v4247 = vunpack.c.l.b16 %v920
    %v4248 = vunpack.c.h.b16 %v920
    %v4249 = vunpack.c.l.b16 %v921
    %v4250 = vunpack.c.h.b16 %v921
    %v4251 = vunpack.c.l.b16 %v922
    %v4252 = vunpack.c.h.b16 %v922
    %v4253 = vunpack.c.l.b16 %v923
    %v4254 = vunpack.c.h.b16 %v923
    %v4255 = vunpack.c.l.b16 %v924
    %v4256 = vunpack.c.h.b16 %v924
    %v4257 = vunpack.c.l.b16 %v925
    %v4258 = vunpack.c.h.b16 %v925
    %v4259 = vunpack.c.l.b16 %v926
    %v4260 = vunpack.c.h.b16 %v926
    %v4261 = vunpack.c.l.b16 %v927
    %v4262 = vunpack.c.h.b16 %v927
    %v4263 = vunpack.c.l.b16 %v928
    %v4264 = vunpack.c.h.b16 %v928
    %v4265 = vunpack.c.l.b16 %v929
    %v4266 = vunpack.c.h.b16 %v929
    %v4267 = vunpack.c.l.b16 %v930
    %v4268 = vunpack.c.h.b16 %v930
    %v4269 = vunpack.c.l.b16 %v931
    %v4270 = vunpack.c.h.b16 %v931
    %v4271 = vunpack.c.l.b16 %v932
    %v4272 = vunpack.c.h.b16 %v932
    %v4273 = vunpack.c.l.b16 %v933
    %v4274 = vunpack.c.h.b16 %v933
    %v4275 = vunpack.c.l.b16 %v934
    %v4276 = vunpack.c.h.b16 %v934
    %v4277 = vunpack.c.l.b16 %v935
    %v4278 = vunpack.c.h.b16 %v935
    %v4279 = vunpack.c.l.b16 %v936
    %v4280 = vunpack.c.h.b16 %v936
    %v4281 = vunpack.c.l.b16 %v937
    %v4282 = vunpack.c.h.b16 %v937
    %v4283 = vunpack.c.l.b16 %v938
    %v4284 = vunpack.c.h.b16 %v938
    %v4285 = vunpack.c.l.b16 %v939
    %v4286 = vunpack.c.h.b16 %v939
    %v4287 = vunpack.c.l.b16 %v940
    %v4288 = vunpack.c.h.b16 %v940
    %v4289 = vunpack.c.l.b16 %v941
    %v4290 = vunpack.c.h.b16 %v941
    %v4291 = vunpack.c.l.b16 %v942
    %v4292 = vunpack.c.h.b16 %v942
    %v4293 = vunpack.c.l.b16 %v943
    %v4294 = vunpack.c.h.b16 %v943
    %v4295 = vunpack.c.l.b16 %v944
    %v4296 = vunpack.c.h.b16 %v944
    %v4297 = vunpack.c.l.b16 %v945
    %v4298 = vunpack.c.h.b16 %v945
    %v4299 = vunpack.c.l.b16 %v946
    %v4300 = vunpack.c.h.b16 %v946
    %v4301 = vunpack.c.l.b16 %v947
    %v4302 = vunpack.c.h.b16 %v947
    %v4303 = vunpack.c.l.b16 %v948
    %v4304 = vunpack.c.h.b16 %v948
    %v4305 = vunpack.c.l.b16 %v949
    %v4306 = vunpack.c.h.b16 %v949
    %v4307 = vunpack.c.l.b16 %v950
    %v4308 = vunpack.c.h.b16 %v950
    %v4309 = vunpack.c.l.b16 %v951
    %v4310 = vunpack.c.h.b16 %v951
    %v4311 = vunpack.c.l.b16 %v952
    %v4312 = vunpack.c.h.b16 %v952
    %v4313 = vunpack.c.l.b16 %v953
    %v4314 = vunpack.c.h.b16 %v953
    %v4315 = vunpack.c.l.b16 %v954
    %v4316 = vunpack.c.h.b16 %v954
    %v4317 = vunpack.c.l.b16 %v955
    %v4318 = vunpack.c.h.b16 %v955
    %v4319 = vunpack.c.l.b16 %v956
    %v4320 = vunpack.c.h.b16 %v956
    %v4321 = vunpack.c.l.b16 %v957
    %v4322 = vunpack.c.h.b16 %v957
    %v4323 = vunpack.c.l.b16 %v958
    %v4324 = vunpack.c.h.b16 %v958
    %v4325 = vunpack.c.l.b16 %v959
    %v4326 = vunpack.c.h.b16 %v959
    %v4327 = vunpack.c.l.b16 %v960
    %v4328 = vunpack.c.h.b16 %v960
    %v4329 = vunpack.c.l.b16 %v961
    %v4330 = vunpack.c.h.b16 %v961
    %v4331 = vunpack.c.l.b16 %v962
    %v4332 = vunpack.c.h.b16 %v962
    %v4333 = vunpack.c.l.b16 %v963
    %v4334 = vunpack.c.h.b16 %v963
    %v4335 = vunpack.c.l.b16 %v964
    %v4336 = vunpack.c.h.b16 %v964
    %v4337 = vunpack.c.l.b16 %v965
    %v4338 = vunpack.c.h.b16 %v965
    %v4339 = vunpack.c.l.b16 %v966
    %v4340 = vunpack.c.h.b16 %v966
    %v4341 = vunpack.c.l.b16 %v967
    %v4342 = vunpack.c.h.b16 %v967
    %v4343 = vunpack.c.l.b16 %v968
    %v4344 = vunpack.c.h.b16 %v968
    %v4345 = vunpack.c.l.b16 %v969
    %v4346 = vunpack.c.h.b16 %v969
    %v4347 = vunpack.c.l.b16 %v970
    %v4348 = vunpack.c.h.b16 %v970
    %v4349 = vunpack.c.l.b16 %v971
    %v4350 = vunpack.c.h.b16 %v971
    %v4351 = vunpack.c.l.b16 %v972
    %v4352 = vunpack.c.h.b16 %v972
    %v4353 = vunpack.c.l.b16 %v973
    %v4354 = vunpack.c.h.b16 %v973
    %v4355 = vunpack.c.l.b16 %v974
    %v4356 = vunpack.c.h.b16 %v974
    %v4357 = vunpack.c.l.b16 %v975
    %v4358 = vunpack.c.h.b16 %v975
    %v4359 = vunpack.c.l.b16 %v976
    %v4360 = vunpack.c.h.b16 %v976
    %v4361 = vunpack.c.l.b16 %v977
    %v4362 = vunpack.c.h.b16 %v977
    %v4363 = vunpack.c.l.b16 %v978
    %v4364 = vunpack.c.h.b16 %v978
    %v4365 = vunpack.c.l.b16 %v979
    %v4366 = vunpack.c.h.b16 %v979
    %v4367 = vunpack.c.l.b16 %v980
    %v4368 = vunpack.c.h.b16 %v980
    %v4369 = vunpack.c.l.b16 %v981
    %v4370 = vunpack.c.h.b16 %v981
    %v4371 = vunpack.c.l.b16 %v982
    %v4372 = vunpack.c.h.b16 %v982
    %v4373 = vunpack.c.l.b16 %v983
    %v4374 = vunpack.c.h.b16 %v983
    %v4375 = vunpack.c.l.b16 %v984
    %v4376 = vunpack.c.h.b16 %v984
    %v4377 = vunpack.c.l.b16 %v985
    %v4378 = vunpack.c.h.b16 %v985
    %v4379 = vunpack.c.l.b16 %v986
    %v4380 = vunpack.c.h.b16 %v986
    %v4381 = vunpack.c.l.b16 %v987
    %v4382 = vunpack.c.h.b16 %v987
    %v4383 = vunpack.c.l.b16 %v988
    %v4384 = vunpack.c.h.b16 %v988
    %v4385 = vunpack.c.l.b16 %v989
    %v4386 = vunpack.c.h.b16 %v989
    %v4387 = vunpack.c.l.b16 %v990
    %v4388 = vunpack.c.h.b16 %v990
    %v4389 = vunpack.c.l.b16 %v991
    %v4390 = vunpack.c.h.b16 %v991
    %v4391 = vunpack.c.l.b16 %v992
    %v4392 = vunpack.c.h.b16 %v992
    %v4393 = vunpack.c.l.b16 %v993
    %v4394 = vunpack.c.h.b16 %v993
    %v4395 = vunpack.c.l.b16 %v994
    %v4396 = vunpack.c.h.b16 %v994
    %v4397 = vunpack.c.l.b16 %v995
    %v4398 = vunpack.c.h.b16 %v995
    %v4399 = vunpack.c.l.b16 %v996
    %v4400 = vunpack.c.h.b16 %v996
    %v4401 = vunpack.c.l.b16 %v997
    %v4402 = vunpack.c.h.b16 %v997
    %v4403 = vunpack.c.l.b16 %v998
    %v4404 = vunpack.c.h.b16 %v998
    %v4405 = vunpack.c.l.b16 %v999
    %v4406 = vunpack.c.h.b16 %v999
    %v4407 = vunpack.c.l.b16 %v1000
    %v4408 = vunpack.c.h.b16 %v1000
    %v4409 = vunpack.c.l.b16 %v1001
    %v4410 = vunpack.c.h.b16 %v1001
    %v4411 = vunpack.c.l.b16 %v1002
    %v4412 = vunpack.c.h.b16 %v1002
    %v4413 = vunpack.c.l.b16 %v1003
    %v4414 = vunpack.c.h.b16 %v1003
    %v4415 = vunpack.c.l.b16 %v1004
    %v4416 = vunpack.c.h.b16 %v1004
    %v4417 = vunpack.c.l.b16 %v1005
    %v4418 = vunpack.c.h.b16 %v1005
    %v4419 = vunpack.c.l.b16 %v1006
    %v4420 = vunpack.c.h.b16 %v1006
    %v4421 = vunpack.c.l.b16 %v1007
    %v4422 = vunpack.c.h.b16 %v1007
    %v4423 = vunpack.c.l.b16 %v1008
    %v4424 = vunpack.c.h.b16 %v1008
    %v4425 = vunpack.c.l.b16 %v1009
    %v4426 = vunpack.c.h.b16 %v1009
    %v4427 = vunpack.c.l.b16 %v1010
    %v4428 = vunpack.c.h.b16 %v1010
    %v4429 = vunpack.c.l.b16 %v1011
    %v4430 = vunpack.c.h.b16 %v1011
    %v4431 = vunpack.c.l.b16 %v1012
    %v4432 = vunpack.c.h.b16 %v1012
    %v4433 = vunpack.c.l.b16 %v1013
    %v4434 = vunpack.c.h.b16 %v1013
    %v4435 = vunpack.c.l.b16 %v1014
    %v4436 = vunpack.c.h.b16 %v1014
    %v4437 = vunpack.c.l.b16 %v1015
    %v4438 = vunpack.c.h.b16 %v1015
    %v4439 = vunpack.c.l.b16 %v1016
    %v4440 = vunpack.c.h.b16 %v1016
    %v4441 = vunpack.c.l.b16 %v1017
    %v4442 = vunpack.c.h.b16 %v1017
    %v4443 = vunpack.c.l.b16 %v1018
    %v4444 = vunpack.c.h.b16 %v1018
    %v4445 = vunpack.c.l.b16 %v1019
    %v4446 = vunpack.c.h.b16 %v1019
    %v4447 = vunpack.c.l.b16 %v1020
    %v4448 = vunpack.c.h.b16 %v1020
    %v4449 = vunpack.c.l.b16 %v1021
    %v4450 = vunpack.c.h.b16 %v1021
    %v4451 = vunpack.c.l.b16 %v1022
    %v4452 = vunpack.c.h.b16 %v1022
    %v4453 = vunpack.c.l.b16 %v1023
    %v4454 = vunpack.c.h.b16 %v1023
    %v4455 = vunpack.c.l.b16 %v1024
    %v4456 = vunpack.c.h.b16 %v1024
    %v4457 = vunpack.c.l.b16 %v1025
    %v4458 = vunpack.c.h.b16 %v1025
    %v4459 = vunpack.c.l.b16 %v1026
    %v4460 = vunpack.c.h.b16 %v1026
    %v4461 = vunpack.c.l.b16 %v1027
    %v4462 = vunpack.c.h.b16 %v1027
    %v4463 = vunpack.c.l.b16 %v1028
    %v4464 = vunpack.c.h.b16 %v1028
    %v4465 = vunpack.c.l.b16 %v1029
    %v4466 = vunpack.c.h.b16 %v1029
    %v4467 = vunpack.c.l.b16 %v1030
    %v4468 = vunpack.c.h.b16 %v1030
    %v4469 = vunpack.c.l.b16 %v1031
    %v4470 = vunpack.c.h.b16 %v1031
    %v4471 = vunpack.c.l.b16 %v1032
    %v4472 = vunpack.c.h.b16 %v1032
    %v4473 = vunpack.c.l.b16 %v1033
    %v4474 = vunpack.c.h.b16 %v1033
    %v4475 = vunpack.c.l.b16 %v1034
    %v4476 = vunpack.c.h.b16 %v1034
    %v4477 = vunpack.c.l.b16 %v1035
    %v4478 = vunpack.c.h.b16 %v1035
    %v4479 = vunpack.c.l.b16 %v1036
    %v4480 = vunpack.c.h.b16 %v1036
    %v4481 = vunpack.c.l.b16 %v1037
    %v4482 = vunpack.c.h.b16 %v1037
    %v4483 = vunpack.c.l.b16 %v1038
    %v4484 = vunpack.c.h.b16 %v1038
    %v4485 = vunpack.c.l.b16 %v1039
    %v4486 = vunpack.c.h.b16 %v1039
    %v4487 = vunpack.c.l.b16 %v1040
    %v4488 = vunpack.c.h.b16 %v1040
    %v4489 = vunpack.c.l.b16 %v1041
    %v4490 = vunpack.c.h.b16 %v1041
    %v4491 = vunpack.c.l.b16 %v1042
    %v4492 = vunpack.c.h.b16 %v1042
    %v4493 = vunpack.c.l.b16 %v1043
    %v4494 = vunpack.c.h.b16 %v1043
    %v4495 = vunpack.c.l.b16 %v1044
    %v4496 = vunpack.c.h.b16 %v1044
    %v4497 = vunpack.c.l.b16 %v1045
    %v4498 = vunpack.c.h.b16 %v1045
    %v4499 = vunpack.c.l.b16 %v1046
    %v4500 = vunpack.c.h.b16 %v1046
    %v4501 = vunpack.c.l.b16 %v1047
    %v4502 = vunpack.c.h.b16 %v1047
    %v4503 = vunpack.c.l.b16 %v1048
    %v4504 = vunpack.c.h.b16 %v1048
    %v4505 = vunpack.c.l.b16 %v1049
    %v4506 = vunpack.c.h.b16 %v1049
    %v4507 = vunpack.c.l.b16 %v1050
    %v4508 = vunpack.c.h.b16 %v1050
    %v4509 = vunpack.c.l.b16 %v1051
    %v4510 = vunpack.c.h.b16 %v1051
    %v4511 = vunpack.c.l.b16 %v1052
    %v4512 = vunpack.c.h.b16 %v1052
    %v4513 = vunpack.c.l.b16 %v1053
    %v4514 = vunpack.c.h.b16 %v1053
    %v4515 = vunpack.c.l.b16 %v1054
    %v4516 = vunpack.c.h.b16 %v1054
    %v4517 = vunpack.c.l.b16 %v1055
    %v4518 = vunpack.c.h.b16 %v1055
    %v4519 = vunpack.c.l.b16 %v1056
    %v4520 = vunpack.c.h.b16 %v1056
    %v4521 = vunpack.c.l.b16 %v1057
    %v4522 = vunpack.c.h.b16 %v1057
    %v4523 = vunpack.c.l.b16 %v1058
    %v4524 = vunpack.c.h.b16 %v1058
    %v4525 = vunpack.c.l.b16 %v1059
    %v4526 = vunpack.c.h.b16 %v1059
    %v4527 = vunpack.c.l.b16 %v1060
    %v4528 = vunpack.c.h.b16 %v1060
    %v4529 = vunpack.c.l.b16 %v1061
    %v4530 = vunpack.c.h.b16 %v1061
    %v4531 = vunpack.c.l.b16 %v1062
    %v4532 = vunpack.c.h.b16 %v1062
    %v4533 = vunpack.c.l.b16 %v1063
    %v4534 = vunpack.c.h.b16 %v1063
    %v4535 = vunpack.c.l.b16 %v1064
    %v4536 = vunpack.c.h.b16 %v1064
    %v4537 = vunpack.c.l.b16 %v1065
    %v4538 = vunpack.c.h.b16 %v1065
    %v4539 = vunpack.c.l.b16 %v1066
    %v4540 = vunpack.c.h.b16 %v1066
    %v4541 = vunpack.c.l.b16 %v1067
    %v4542 = vunpack.c.h.b16 %v1067
    %v4543 = vunpack.c.l.b16 %v1068
    %v4544 = vunpack.c.h.b16 %v1068
    %v4545 = vunpack.c.l.b16 %v1069
    %v4546 = vunpack.c.h.b16 %v1069
    %v4547 = vunpack.c.l.b16 %v1070
    %v4548 = vunpack.c.h.b16 %v1070
    %v4549 = vunpack.c.l.b16 %v1071
    %v4550 = vunpack.c.h.b16 %v1071
    %v4551 = vunpack.c.l.b16 %v1072
    %v4552 = vunpack.c.h.b16 %v1072
    %v4553 = vunpack.c.l.b16 %v1073
    %v4554 = vunpack.c.h.b16 %v1073
    %v4555 = vunpack.c.l.b16 %v1074
    %v4556 = vunpack.c.h.b16 %v1074
    %v4557 = vunpack.c.l.b16 %v1075
    %v4558 = vunpack.c.h.b16 %v1075
    %v4559 = vunpack.c.l.b16 %v1076
    %v4560 = vunpack.c.h.b16 %v1076
    %v4561 = vunpack.c.l.b16 %v1077
    %v4562 = vunpack.c.h.b16 %v1077
    %v4563 = vunpack.c.l.b16 %v1078
    %v4564 = vunpack.c.h.b16 %v1078
    %v4565 = vunpack.c.l.b16 %v1079
    %v4566 = vunpack.c.h.b16 %v1079
    %v4567 = vunpack.c.l.b16 %v1080
    %v4568 = vunpack.c.h.b16 %v1080
    %v4569 = vunpack.c.l.b16 %v1081
    %v4570 = vunpack.c.h.b16 %v1081
    %v4571 = vunpack.c.l.b16 %v1082
    %v4572 = vunpack.c.h.b16 %v1082
    %v4573 = vunpack.c.l.b16 %v1083
    %v4574 = vunpack.c.h.b16 %v1083
    %v4575 = vunpack.c.l.b16 %v1084
    %v4576 = vunpack.c.h.b16 %v1084
    %v4577 = vunpack.c.l.b16 %v1085
    %v4578 = vunpack.c.h.b16 %v1085
    %v4579 = vunpack.c.l.b16 %v1086
    %v4580 = vunpack.c.h.b16 %v1086
    %v4581 = vunpack.c.l.b16 %v1087
    %v4582 = vunpack.c.h.b16 %v1087
    %v4583 = vunpack.c.l.b16 %v1088
    %v4584 = vunpack.c.h.b16 %v1088
    %v4585 = vunpack.c.l.b16 %v1089
    %v4586 = vunpack.c.h.b16 %v1089
    %v4587 = vunpack.c.l.b16 %v1090
    %v4588 = vunpack.c.h.b16 %v1090
    %v4589 = vunpack.c.l.b16 %v1091
    %v4590 = vunpack.c.h.b16 %v1091
    %v4591 = vunpack.c.l.b16 %v1092
    %v4592 = vunpack.c.h.b16 %v1092
    %v4593 = vunpack.c.l.b16 %v1093
    %v4594 = vunpack.c.h.b16 %v1093
    %v4595 = vunpack.c.l.b16 %v1094
    %v4596 = vunpack.c.h.b16 %v1094
    %v4597 = vunpack.c.l.b16 %v1095
    %v4598 = vunpack.c.h.b16 %v1095
    %v4599 = vunpack.c.l.b16 %v1096
    %v4600 = vunpack.c.h.b16 %v1096
    %v4601 = vunpack.c.l.b16 %v1097
    %v4602 = vunpack.c.h.b16 %v1097
    %v4603 = vunpack.c.l.b16 %v1098
    %v4604 = vunpack.c.h.b16 %v1098
    %v4605 = vunpack.c.l.b16 %v1099
    %v4606 = vunpack.c.h.b16 %v1099
    %v4607 = vunpack.c.l.b16 %v1100
    %v4608 = vunpack.c.h.b16 %v1100
    %v4609 = vunpack.c.l.b16 %v1101
    %v4610 = vunpack.c.h.b16 %v1101
    %v4611 = vunpack.c.l.b16 %v1102
    %v4612 = vunpack.c.h.b16 %v1102
    %v4613 = vunpack.c.l.b16 %v1103
    %v4614 = vunpack.c.h.b16 %v1103
    %v4615 = vunpack.c.l.b16 %v1104
    %v4616 = vunpack.c.h.b16 %v1104
    %v4617 = vunpack.c.l.b16 %v1105
    %v4618 = vunpack.c.h.b16 %v1105
    %v4619 = vunpack.c.l.b16 %v1106
    %v4620 = vunpack.c.h.b16 %v1106
    %v4621 = vunpack.c.l.b16 %v1107
    %v4622 = vunpack.c.h.b16 %v1107
    %v4623 = vunpack.c.l.b16 %v1108
    %v4624 = vunpack.c.h.b16 %v1108
    %v4625 = vunpack.c.l.b16 %v1109
    %v4626 = vunpack.c.h.b16 %v1109
    %v4627 = vunpack.c.l.b16 %v1110
    %v4628 = vunpack.c.h.b16 %v1110
    %v4629 = vunpack.c.l.b16 %v1111
    %v4630 = vunpack.c.h.b16 %v1111
    %v4631 = vunpack.c.l.b16 %v1112
    %v4632 = vunpack.c.h.b16 %v1112
    %v4633 = vunpack.c.l.b16 %v1113
    %v4634 = vunpack.c.h.b16 %v1113
    %v4635 = vunpack.c.l.b16 %v1114
    %v4636 = vunpack.c.h.b16 %v1114
    %v4637 = vunpack.c.l.b16 %v1115
    %v4638 = vunpack.c.h.b16 %v1115
    %v4639 = vunpack.c.l.b16 %v1116
    %v4640 = vunpack.c.h.b16 %v1116
    %v4641 = vunpack.c.l.b16 %v1117
    %v4642 = vunpack.c.h.b16 %v1117
    %v4643 = vunpack.c.l.b16 %v1118
    %v4644 = vunpack.c.h.b16 %v1118
    %v4645 = vunpack.c.l.b16 %v1119
    %v4646 = vunpack.c.h.b16 %v1119
    %v4647 = vunpack.c.l.b16 %v1120
    %v4648 = vunpack.c.h.b16 %v1120
    %v4649 = vunpack.c.l.b16 %v1121
    %v4650 = vunpack.c.h.b16 %v1121
    %v4651 = vunpack.c.l.b16 %v1122
    %v4652 = vunpack.c.h.b16 %v1122
    %v4653 = vunpack.c.l.b16 %v1123
    %v4654 = vunpack.c.h.b16 %v1123
    %v4655 = vunpack.c.l.b16 %v1124
    %v4656 = vunpack.c.h.b16 %v1124
    %v4657 = vunpack.c.l.b16 %v1125
    %v4658 = vunpack.c.h.b16 %v1125
    %v4659 = vunpack.c.l.b16 %v1126
    %v4660 = vunpack.c.h.b16 %v1126
    %v4661 = vunpack.c.l.b16 %v1127
    %v4662 = vunpack.c.h.b16 %v1127
    %v4663 = vunpack.c.l.b16 %v1128
    %v4664 = vunpack.c.h.b16 %v1128
    %v4665 = vunpack.c.l.b16 %v1129
    %v4666 = vunpack.c.h.b16 %v1129
    %v4667 = vunpack.c.l.b16 %v1130
    %v4668 = vunpack.c.h.b16 %v1130
    %v4669 = vunpack.c.l.b16 %v1131
    %v4670 = vunpack.c.h.b16 %v1131
    %v4671 = vunpack.c.l.b16 %v1132
    %v4672 = vunpack.c.h.b16 %v1132
    %v4673 = vunpack.c.l.b16 %v1133
    %v4674 = vunpack.c.h.b16 %v1133
    %v4675 = vunpack.c.l.b16 %v1134
    %v4676 = vunpack.c.h.b16 %v1134
    %v4677 = vunpack.c.l.b16 %v1135
    %v4678 = vunpack.c.h.b16 %v1135
    %v4679 = vunpack.c.l.b16 %v1136
    %v4680 = vunpack.c.h.b16 %v1136
    %v4681 = vunpack.c.l.b16 %v1137
    %v4682 = vunpack.c.h.b16 %v1137
    %v4683 = vunpack.c.l.b16 %v1138
    %v4684 = vunpack.c.h.b16 %v1138
    %v4685 = vunpack.c.l.b16 %v1139
    %v4686 = vunpack.c.h.b16 %v1139
    %v4687 = vunpack.c.l.b16 %v1140
    %v4688 = vunpack.c.h.b16 %v1140
    %v4689 = vunpack.c.l.b16 %v1141
    %v4690 = vunpack.c.h.b16 %v1141
    %v4691 = vunpack.c.l.b16 %v1142
    %v4692 = vunpack.c.h.b16 %v1142
    %v4693 = vunpack.c.l.b16 %v1143
    %v4694 = vunpack.c.h.b16 %v1143
    %v4695 = vunpack.c.l.b16 %v1144
    %v4696 = vunpack.c.h.b16 %v1144
    %v4697 = vunpack.c.l.b16 %v1145
    %v4698 = vunpack.c.h.b16 %v1145
    %v4699 = vunpack.c.l.b16 %v1146
    %v4700 = vunpack.c.h.b16 %v1146
    %v4701 = vunpack.c.l.b16 %v1147
    %v4702 = vunpack.c.h.b16 %v1147
    %v4703 = vunpack.c.l.b16 %v1148
    %v4704 = vunpack.c.h.b16 %v1148
    %v4705 = vunpack.c.l.b16 %v1149
    %v4706 = vunpack.c.h.b16 %v1149
    %v4707 = vunpack.c.l.b16 %v1150
    %v4708 = vunpack.c.h.b16 %v1150
    %v4709 = vunpack.c.l.b16 %v1151
    %v4710 = vunpack.c.h.b16 %v1151
    %v4711 = vunpack.c.l.b16 %v1152
    %v4712 = vunpack.c.h.b16 %v1152
    %v4713 = vunpack.c.l.b16 %v1153
    %v4714 = vunpack.c.h.b16 %v1153
    %v4715 = vunpack.c.l.b16 %v1154
    %v4716 = vunpack.c.h.b16 %v1154
    %v4717 = vunpack.c.l.b16 %v1155
    %v4718 = vunpack.c.h.b16 %v1155
    %v4719 = vunpack.c.l.b16 %v1156
    %v4720 = vunpack.c.h.b16 %v1156
    %v4721 = vunpack.c.l.b16 %v1157
    %v4722 = vunpack.c.h.b16 %v1157
    %v4723 = vunpack.c.l.b16 %v1158
    %v4724 = vunpack.c.h.b16 %v1158
    %v4725 = vunpack.c.l.b16 %v1159
    %v4726 = vunpack.c.h.b16 %v1159
    %v4727 = vunpack.c.l.b16 %v1160
    %v4728 = vunpack.c.h.b16 %v1160
    %v4729 = vunpack.c.l.b16 %v1161
    %v4730 = vunpack.c.h.b16 %v1161
    %v4731 = vunpack.c.l.b16 %v1162
    %v4732 = vunpack.c.h.b16 %v1162
    %v4733 = vunpack.c.l.b16 %v1163
    %v4734 = vunpack.c.h.b16 %v1163
    %v4735 = vunpack.c.l.b16 %v1164
    %v4736 = vunpack.c.h.b16 %v1164
    %v4737 = vunpack.c.l.b16 %v1165
    %v4738 = vunpack.c.h.b16 %v1165
    %v4739 = vunpack.c.l.b16 %v1166
    %v4740 = vunpack.c.h.b16 %v1166
    %v4741 = vunpack.c.l.b16 %v1167
    %v4742 = vunpack.c.h.b16 %v1167
    %v4743 = vunpack.c.l.b16 %v1168
    %v4744 = vunpack.c.h.b16 %v1168
    %v4745 = vunpack.c.l.b16 %v1169
    %v4746 = vunpack.c.h.b16 %v1169
    %v4747 = vunpack.c.l.b16 %v1170
    %v4748 = vunpack.c.h.b16 %v1170
    %v4749 = vunpack.c.l.b16 %v1171
    %v4750 = vunpack.c.h.b16 %v1171
    %v4751 = vunpack.c.l.b16 %v1172
    %v4752 = vunpack.c.h.b16 %v1172
    %v4753 = vunpack.c.l.b16 %v1173
    %v4754 = vunpack.c.h.b16 %v1173
    %v4755 = vunpack.c.l.b16 %v1174
    %v4756 = vunpack.c.h.b16 %v1174
    %v4757 = vunpack.c.l.b16 %v1175
    %v4758 = vunpack.c.h.b16 %v1175
    %v4759 = vunpack.c.l.b16 %v1176
    %v4760 = vunpack.c.h.b16 %v1176
    %v4761 = vunpack.c.l.b16 %v1177
    %v4762 = vunpack.c.h.b16 %v1177
    %v4763 = vunpack.c.l.b16 %v1178
    %v4764 = vunpack.c.h.b16 %v1178
    %v4765 = vunpack.c.l.b16 %v1179
    %v4766 = vunpack.c.h.b16 %v1179
    %v4767 = vunpack.c.l.b16 %v1180
    %v4768 = vunpack.c.h.b16 %v1180
    %v4769 = vunpack.c.l.b16 %v1181
    %v4770 = vunpack.c.h.b16 %v1181
    %v4771 = vunpack.c.l.b16 %v1182
    %v4772 = vunpack.c.h.b16 %v1182
    %v4773 = vunpack.c.l.b16 %v1183
    %v4774 = vunpack.c.h.b16 %v1183
    %v4775 = vunpack.c.l.b16 %v1184
    %v4776 = vunpack.c.h.b16 %v1184
    %v4777 = vunpack.c.l.b16 %v1185
    %v4778 = vunpack.c.h.b16 %v1185
    %v4779 = vunpack.c.l.b16 %v1186
    %v4780 = vunpack.c.h.b16 %v1186
    %v4781 = vunpack.c.l.b16 %v1187
    %v4782 = vunpack.c.h.b16 %v1187
    %v4783 = vunpack.c.l.b16 %v1188
    %v4784 = vunpack.c.h.b16 %v1188
    %v4785 = vunpack.c.l.b16 %v1189
    %v4786 = vunpack.c.h.b16 %v1189
    %v4787 = vunpack.c.l.b16 %v1190
    %v4788 = vunpack.c.h.b16 %v1190
    %v4789 = vunpack.c.l.b16 %v1191
    %v4790 = vunpack.c.h.b16 %v1191
    %v4791 = vunpack.c.l.b16 %v1192
    %v4792 = vunpack.c.h.b16 %v1192
    %v4793 = vunpack.c.l.b16 %v1193
    %v4794 = vunpack.c.h.b16 %v1193
    %v4795 = vunpack.c.l.b16 %v1194
    %v4796 = vunpack.c.h.b16 %v1194
    %v4797 = vunpack.c.l.b16 %v1195
    %v4798 = vunpack.c.h.b16 %v1195
    %v4799 = vunpack.c.l.b16 %v1196
    %v4800 = vunpack.c.h.b16 %v1196
    %v4801 = vunpack.c.l.b16 %v1197
    %v4802 = vunpack.c.h.b16 %v1197
    %v4803 = vunpack.c.l.b16 %v1198
    %v4804 = vunpack.c.h.b16 %v1198
    %v4805 = vunpack.c.l.b16 %v1199
    %v4806 = vunpack.c.h.b16 %v1199
    %v4807 = vunpack.c.l.b16 %v1200
    %v4808 = vunpack.c.h.b16 %v1200
    %v4809 = vunpack.c.l.b16 %v1201
    %v4810 = vunpack.c.h.b16 %v1201
    %v4811 = vunpack.c.l.b16 %v1202
    %v4812 = vunpack.c.h.b16 %v1202
    %v4813 = vunpack.c.l.b16 %v1203
    %v4814 = vunpack.c.h.b16 %v1203
    %v4815 = vunpack.c.l.b16 %v1204
    %v4816 = vunpack.c.h.b16 %v1204
    %v4817 = vunpack.c.l.b16 %v1205
    %v4818 = vunpack.c.h.b16 %v1205
    %v4819 = vunpack.c.l.b16 %v1206
    %v4820 = vunpack.c.h.b16 %v1206
    %v4821 = vunpack.c.l.b16 %v1207
    %v4822 = vunpack.c.h.b16 %v1207
    %v4823 = vunpack.c.l.b16 %v1208
    %v4824 = vunpack.c.h.b16 %v1208
    %v4825 = vunpack.c.l.b16 %v1209
    %v4826 = vunpack.c.h.b16 %v1209
    %v4827 = vunpack.c.l.b16 %v1210
    %v4828 = vunpack.c.h.b16 %v1210
    %v4829 = vunpack.c.l.b16 %v1211
    %v4830 = vunpack.c.h.b16 %v1211
    %v4831 = vunpack.c.l.b16 %v1212
    %v4832 = vunpack.c.h.b16 %v1212
    %v4833 = vunpack.c.l.b16 %v1213
    %v4834 = vunpack.c.h.b16 %v1213
    %v4835 = vunpack.c.l.b16 %v1214
    %v4836 = vunpack.c.h.b16 %v1214
    %v4837 = vunpack.c.l.b16 %v1215
    %v4838 = vunpack.c.h.b16 %v1215
    %v4839 = vunpack.c.l.b16 %v1216
    %v4840 = vunpack.c.h.b16 %v1216
    %v4841 = vunpack.c.l.b16 %v1217
    %v4842 = vunpack.c.h.b16 %v1217
    %v4843 = vunpack.c.l.b16 %v1218
    %v4844 = vunpack.c.h.b16 %v1218
    %v4845 = vunpack.c.l.b16 %v1219
    %v4846 = vunpack.c.h.b16 %v1219
    %v4847 = vunpack.c.l.b16 %v1220
    %v4848 = vunpack.c.h.b16 %v1220
    %v4849 = vunpack.c.l.b16 %v1221
    %v4850 = vunpack.c.h.b16 %v1221
    %v4851 = vunpack.c.l.b16 %v1222
    %v4852 = vunpack.c.h.b16 %v1222
    %v4853 = vunpack.c.l.b16 %v1223
    %v4854 = vunpack.c.h.b16 %v1223
    %v4855 = vunpack.c.l.b16 %v1224
    %v4856 = vunpack.c.h.b16 %v1224
    %v4857 = vunpack.c.l.b16 %v1225
    %v4858 = vunpack.c.h.b16 %v1225
    %v4859 = vunpack.c.l.b16 %v1226
    %v4860 = vunpack.c.h.b16 %v1226
    %v4861 = vunpack.c.l.b16 %v1227
    %v4862 = vunpack.c.h.b16 %v1227
    %v4863 = vunpack.c.l.b16 %v1228
    %v4864 = vunpack.c.h.b16 %v1228
    %v4865 = vunpack.c.l.b16 %v1229
    %v4866 = vunpack.c.h.b16 %v1229
    %v4867 = vunpack.c.l.b16 %v1230
    %v4868 = vunpack.c.h.b16 %v1230
    %v4869 = vunpack.c.l.b16 %v1231
    %v4870 = vunpack.c.h.b16 %v1231
    %v4871 = vunpack.c.l.b16 %v1232
    %v4872 = vunpack.c.h.b16 %v1232
    %v4873 = vunpack.c.l.b16 %v1233
    %v4874 = vunpack.c.h.b16 %v1233
    %v4875 = vunpack.c.l.b16 %v1234
    %v4876 = vunpack.c.h.b16 %v1234
    %v4877 = vunpack.c.l.b16 %v1235
    %v4878 = vunpack.c.h.b16 %v1235
    %v4879 = vunpack.c.l.b16 %v1236
    %v4880 = vunpack.c.h.b16 %v1236
    %v4881 = vunpack.c.l.b16 %v1237
    %v4882 = vunpack.c.h.b16 %v1237
    %v4883 = vunpack.c.l.b16 %v1238
    %v4884 = vunpack.c.h.b16 %v1238
    %v4885 = vunpack.c.l.b16 %v1239
    %v4886 = vunpack.c.h.b16 %v1239
    %v4887 = vunpack.c.l.b16 %v1240
    %v4888 = vunpack.c.h.b16 %v1240
    %v4889 = vunpack.c.l.b16 %v1241
    %v4890 = vunpack.c.h.b16 %v1241
    %v4891 = vunpack.c.l.b16 %v1242
    %v4892 = vunpack.c.h.b16 %v1242
    %v4893 = vunpack.c.l.b16 %v1243
    %v4894 = vunpack.c.h.b16 %v1243
    %v4895 = vunpack.c.l.b16 %v1244
    %v4896 = vunpack.c.h.b16 %v1244
    %v4897 = vunpack.c.l.b16 %v1245
    %v4898 = vunpack.c.h.b16 %v1245
    %v4899 = vunpack.c.l.b16 %v1246
    %v4900 = vunpack.c.h.b16 %v1246
    %v4901 = vunpack.c.l.b16 %v1247
    %v4902 = vunpack.c.h.b16 %v1247
    %v4903 = vunpack.c.l.b16 %v1248
    %v4904 = vunpack.c.h.b16 %v1248
    %v4905 = vunpack.c.l.b16 %v1249
    %v4906 = vunpack.c.h.b16 %v1249
    %v4907 = vunpack.c.l.b16 %v1250
    %v4908 = vunpack.c.h.b16 %v1250
    %v4909 = vunpack.c.l.b16 %v1251
    %v4910 = vunpack.c.h.b16 %v1251
    %v4911 = vunpack.c.l.b16 %v1252
    %v4912 = vunpack.c.h.b16 %v1252
    %v4913 = vunpack.c.l.b16 %v1253
    %v4914 = vunpack.c.h.b16 %v1253
    %v4915 = vunpack.c.l.b16 %v1254
    %v4916 = vunpack.c.h.b16 %v1254
    %v4917 = vunpack.c.l.b16 %v1255
    %v4918 = vunpack.c.h.b16 %v1255
    %v4919 = vunpack.c.l.b16 %v1256
    %v4920 = vunpack.c.h.b16 %v1256
    %v4921 = vunpack.c.l.b16 %v1257
    %v4922 = vunpack.c.h.b16 %v1257
    %v4923 = vunpack.c.l.b16 %v1258
    %v4924 = vunpack.c.h.b16 %v1258
    %v4925 = vunpack.c.l.b16 %v1259
    %v4926 = vunpack.c.h.b16 %v1259
    %v4927 = vunpack.c.l.b16 %v1260
    %v4928 = vunpack.c.h.b16 %v1260
    %v4929 = vunpack.c.l.b16 %v1261
    %v4930 = vunpack.c.h.b16 %v1261
    %v4931 = vunpack.c.l.b16 %v1262
    %v4932 = vunpack.c.h.b16 %v1262
    %v4933 = vunpack.c.l.b16 %v1263
    %v4934 = vunpack.c.h.b16 %v1263
    %v4935 = vunpack.c.l.b16 %v1264
    %v4936 = vunpack.c.h.b16 %v1264
    %v4937 = vunpack.c.l.b16 %v1265
    %v4938 = vunpack.c.h.b16 %v1265
    %v4939 = vunpack.c.l.b16 %v1266
    %v4940 = vunpack.c.h.b16 %v1266
    %v4941 = vunpack.c.l.b16 %v1267
    %v4942 = vunpack.c.h.b16 %v1267
    %v4943 = vunpack.c.l.b16 %v1268
    %v4944 = vunpack.c.h.b16 %v1268
    %v4945 = vunpack.c.l.b16 %v1269
    %v4946 = vunpack.c.h.b16 %v1269
    %v4947 = vunpack.c.l.b16 %v1270
    %v4948 = vunpack.c.h.b16 %v1270
    %v4949 = vunpack.c.l.b16 %v1271
    %v4950 = vunpack.c.h.b16 %v1271
    %v4951 = vunpack.c.l.b16 %v1272
    %v4952 = vunpack.c.h.b16 %v1272
    %v4953 = vunpack.c.l.b16 %v1273
    %v4954 = vunpack.c.h.b16 %v1273
    %v4955 = vunpack.c.l.b16 %v1274
    %v4956 = vunpack.c.h.b16 %v1274
    %v4957 = vunpack.c.l.b16 %v1275
    %v4958 = vunpack.c.h.b16 %v1275
    %v4959 = vunpack.c.l.b16 %v1276
    %v4960 = vunpack.c.h.b16 %v1276
    %v4961 = vunpack.c.l.b16 %v1277
    %v4962 = vunpack.c.h.b16 %v1277
    %v4963 = vunpack.c.l.b16 %v1278
    %v4964 = vunpack.c.h.b16 %v1278
    %v4965 = vunpack.c.l.b16 %v1279
    %v4966 = vunpack.c.h.b16 %v1279
    %v4967 = vunpack.c.l.b16 %v1280
    %v4968 = vunpack.c.h.b16 %v1280
    %v4969 = vunpack.c.l.b16 %v1281
    %v4970 = vunpack.c.h.b16 %v1281
    %v4971 = vunpack.c.l.b16 %v1282
    %v4972 = vunpack.c.h.b16 %v1282
    %v4973 = vunpack.c.l.b16 %v1283
    %v4974 = vunpack.c.h.b16 %v1283
    %v4975 = vunpack.c.l.b16 %v1284
    %v4976 = vunpack.c.h.b16 %v1284
    %v4977 = vunpack.c.l.b16 %v1285
    %v4978 = vunpack.c.h.b16 %v1285
    %v4979 = vunpack.c.l.b16 %v1286
    %v4980 = vunpack.c.h.b16 %v1286
    %v4981 = vunpack.c.l.b16 %v1287
    %v4982 = vunpack.c.h.b16 %v1287
    %v4983 = vunpack.c.l.b16 %v1288
    %v4984 = vunpack.c.h.b16 %v1288
    %v4985 = vunpack.c.l.b16 %v1289
    %v4986 = vunpack.c.h.b16 %v1289
    %v4987 = vunpack.c.l.b16 %v1290
    %v4988 = vunpack.c.h.b16 %v1290
    %v4989 = vunpack.c.l.b16 %v1291
    %v4990 = vunpack.c.h.b16 %v1291
    %v4991 = vunpack.c.l.b16 %v1292
    %v4992 = vunpack.c.h.b16 %v1292
    %v4993 = vunpack.c.l.b16 %v1293
    %v4994 = vunpack.c.h.b16 %v1293
    %v4995 = vunpack.c.l.b16 %v1294
    %v4996 = vunpack.c.h.b16 %v1294
    %v4997 = vunpack.c.l.b16 %v1295
    %v4998 = vunpack.c.h.b16 %v1295
    %v4999 = vunpack.c.l.b16 %v1296
    %v5000 = vunpack.c.h.b16 %v1296
    %v5001 = vunpack.c.l.b16 %v1297
    %v5002 = vunpack.c.h.b16 %v1297
    %v5003 = vunpack.c.l.b16 %v1298
    %v5004 = vunpack.c.h.b16 %v1298
    %v5005 = vunpack.c.l.b16 %v1299
    %v5006 = vunpack.c.h.b16 %v1299
    %v5007 = vunpack.c.l.b16 %v1300
    %v5008 = vunpack.c.h.b16 %v1300
    %v5009 = vpack.c.b16 %v2617, %v2609
    %v5010 = vpack.c.b16 %v2618, %v2610
    %v5011 = vpack.c.b16 %v2619, %v2611
    %v5012 = vpack.c.b16 %v2620, %v2612
    %v5013 = vpack.c.b16 %v2621, %v2613
    %v5014 = vpack.c.b16 %v2622, %v2614
    %v5015 = vpack.c.b16 %v2623, %v2615
    %v5016 = vpack.c.b16 %v2624, %v2616
    %v5017 = vpack.c.b16 %v2633, %v2625
    %v5018 = vpack.c.b16 %v2634, %v2626
    %v5019 = vpack.c.b16 %v2635, %v2627
    %v5020 = vpack.c.b16 %v2636, %v2628
    %v5021 = vpack.c.b16 %v2637, %v2629
    %v5022 = vpack.c.b16 %v2638, %v2630
    %v5023 = vpack.c.b16 %v2639, %v2631
    %v5024 = vpack.c.b16 %v2640, %v2632
    %v5025 = vpack.c.b16 %v2649, %v2641
    %v5026 = vpack.c.b16 %v2650, %v2642
    %v5027 = vpack.c.b16 %v2651, %v2643
    %v5028 = vpack.c.b16 %v2652, %v2644
    %v5029 = vpack.c.b16 %v2653, %v2645
    %v5030 = vpack.c.b16 %v2654, %v2646
    %v5031 = vpack.c.b16 %v2655, %v2647
    %v5032 = vpack.c.b16 %v2656, %v2648
    %v5033 = vpack.c.b16 %v2665, %v2657
    %v5034 = vpack.c.b16 %v2666, %v2658
    %v5035 = vpack.c.b16 %v2667, %v2659
    %v5036 = vpack.c.b16 %v2668, %v2660
    %v5037 = vpack.c.b16 %v2669, %v2661
    %v5038 = vpack.c.b16 %v2670, %v2662
    %v5039 = vpack.c.b16 %v2671, %v2663
    %v5040 = vpack.c.b16 %v2672, %v2664
    %v5041 = vpack.c.b16 %v2681, %v2673
    %v5042 = vpack.c.b16 %v2682, %v2674
    %v5043 = vpack.c.b16 %v2683, %v2675
    %v5044 = vpack.c.b16 %v2684, %v2676
    %v5045 = vpack.c.b16 %v2685, %v2677
    %v5046 = vpack.c.b16 %v2686, %v2678
    %v5047 = vpack.c.b16 %v2687, %v2679
    %v5048 = vpack.c.b16 %v2688, %v2680
    %v5049 = vpack.c.b16 %v2697, %v2689
    %v5050 = vpack.c.b16 %v2698, %v2690
    %v5051 = vpack.c.b16 %v2699, %v2691
    %v5052 = vpack.c.b16 %v2700, %v2692
    %v5053 = vpack.c.b16 %v2701, %v2693
    %v5054 = vpack.c.b16 %v2702, %v2694
    %v5055 = vpack.c.b16 %v2703, %v2695
    %v5056 = vpack.c.b16 %v2704, %v2696
    %v5057 = vpack.c.b16 %v2713, %v2705
    %v5058 = vpack.c.b16 %v2714, %v2706
    %v5059 = vpack.c.b16 %v2715, %v2707
    %v5060 = vpack.c.b16 %v2716, %v2708
    %v5061 = vpack.c.b16 %v2717, %v2709
    %v5062 = vpack.c.b16 %v2718, %v2710
    %v5063 = vpack.c.b16 %v2719, %v2711
    %v5064 = vpack.c.b16 %v2720, %v2712
    %v5065 = vpack.c.b16 %v2729, %v2721
    %v5066 = vpack.c.b16 %v2730, %v2722
    %v5067 = vpack.c.b16 %v2731, %v2723
    %v5068 = vpack.c.b16 %v2732, %v2724
    %v5069 = vpack.c.b16 %v2733, %v2725
    %v5070 = vpack.c.b16 %v2734, %v2726
    %v5071 = vpack.c.b16 %v2735, %v2727
    %v5072 = vpack.c.b16 %v2736, %v2728
    %v5073 = vpack.c.b16 %v2745, %v2737
    %v5074 = vpack.c.b16 %v2746, %v2738
    %v5075 = vpack.c.b16 %v2747, %v2739
    %v5076 = vpack.c.b16 %v2748, %v2740
    %v5077 = vpack.c.b16 %v2749, %v2741
    %v5078 = vpack.c.b16 %v2750, %v2742
    %v5079 = vpack.c.b16 %v2751, %v2743
    %v5080 = vpack.c.b16 %v2752, %v2744
    %v5081 = vpack.c.b16 %v2761, %v2753
    %v5082 = vpack.c.b16 %v2762, %v2754
    %v5083 = vpack.c.b16 %v2763, %v2755
    %v5084 = vpack.c.b16 %v2764, %v2756
    %v5085 = vpack.c.b16 %v2765, %v2757
    %v5086 = vpack.c.b16 %v2766, %v2758
    %v5087 = vpack.c.b16 %v2767, %v2759
    %v5088 = vpack.c.b16 %v2768, %v2760
    %v5089 = vpack.c.b16 %v2777, %v2769
    %v5090 = vpack.c.b16 %v2778, %v2770
    %v5091 = vpack.c.b16 %v2779, %v2771
    %v5092 = vpack.c.b16 %v2780, %v2772
    %v5093 = vpack.c.b16 %v2781, %v2773
    %v5094 = vpack.c.b16 %v2782, %v2774
    %v5095 = vpack.c.b16 %v2783, %v2775
    %v5096 = vpack.c.b16 %v2784, %v2776
    %v5097 = vpack.c.b16 %v2793, %v2785
    %v5098 = vpack.c.b16 %v2794, %v2786
    %v5099 = vpack.c.b16 %v2795, %v2787
    %v5100 = vpack.c.b16 %v2796, %v2788
    %v5101 = vpack.c.b16 %v2797, %v2789
    %v5102 = vpack.c.b16 %v2798, %v2790
    %v5103 = vpack.c.b16 %v2799, %v2791
    %v5104 = vpack.c.b16 %v2800, %v2792
    %v5105 = vpack.c.b16 %v2809, %v2801
    %v5106 = vpack.c.b16 %v2810, %v2802
    %v5107 = vpack.c.b16 %v2811, %v2803
    %v5108 = vpack.c.b16 %v2812, %v2804
    %v5109 = vpack.c.b16 %v2813, %v2805
    %v5110 = vpack.c.b16 %v2814, %v2806
    %v5111 = vpack.c.b16 %v2815, %v2807
    %v5112 = vpack.c.b16 %v2816, %v2808
    %v5113 = vpack.c.b16 %v2825, %v2817
    %v5114 = vpack.c.b16 %v2826, %v2818
    %v5115 = vpack.c.b16 %v2827, %v2819
    %v5116 = vpack.c.b16 %v2828, %v2820
    %v5117 = vpack.c.b16 %v2829, %v2821
    %v5118 = vpack.c.b16 %v2830, %v2822
    %v5119 = vpack.c.b16 %v2831, %v2823
    %v5120 = vpack.c.b16 %v2832, %v2824
    %v5121 = vpack.c.b16 %v2841, %v2833
    %v5122 = vpack.c.b16 %v2842, %v2834
    %v5123 = vpack.c.b16 %v2843, %v2835
    %v5124 = vpack.c.b16 %v2844, %v2836
    %v5125 = vpack.c.b16 %v2845, %v2837
    %v5126 = vpack.c.b16 %v2846, %v2838
    %v5127 = vpack.c.b16 %v2847, %v2839
    %v5128 = vpack.c.b16 %v2848, %v2840
    %v5129 = vpack.c.b16 %v2857, %v2849
    %v5130 = vpack.c.b16 %v2858, %v2850
    %v5131 = vpack.c.b16 %v2859, %v2851
    %v5132 = vpack.c.b16 %v2860, %v2852
    %v5133 = vpack.c.b16 %v2861, %v2853
    %v5134 = vpack.c.b16 %v2862, %v2854
    %v5135 = vpack.c.b16 %v2863, %v2855
    %v5136 = vpack.c.b16 %v2864, %v2856
    %v5137 = vpack.c.b16 %v2873, %v2865
    %v5138 = vpack.c.b16 %v2874, %v2866
    %v5139 = vpack.c.b16 %v2875, %v2867
    %v5140 = vpack.c.b16 %v2876, %v2868
    %v5141 = vpack.c.b16 %v2877, %v2869
    %v5142 = vpack.c.b16 %v2878, %v2870
    %v5143 = vpack.c.b16 %v2879, %v2871
    %v5144 = vpack.c.b16 %v2880, %v2872
    %v5145 = vpack.c.b16 %v2889, %v2881
    %v5146 = vpack.c.b16 %v2890, %v2882
    %v5147 = vpack.c.b16 %v2891, %v2883
    %v5148 = vpack.c.b16 %v2892, %v2884
    %v5149 = vpack.c.b16 %v2893, %v2885
    %v5150 = vpack.c.b16 %v2894, %v2886
    %v5151 = vpack.c.b16 %v2895, %v2887
    %v5152 = vpack.c.b16 %v2896, %v2888
    %v5153 = vpack.c.b16 %v2905, %v2897
    %v5154 = vpack.c.b16 %v2906, %v2898
    %v5155 = vpack.c.b16 %v2907, %v2899
    %v5156 = vpack.c.b16 %v2908, %v2900
    %v5157 = vpack.c.b16 %v2909, %v2901
    %v5158 = vpack.c.b16 %v2910, %v2902
    %v5159 = vpack.c.b16 %v2911, %v2903
    %v5160 = vpack.c.b16 %v2912, %v2904
    %v5161 = vpack.c.b16 %v2921, %v2913
    %v5162 = vpack.c.b16 %v2922, %v2914
    %v5163 = vpack.c.b16 %v2923, %v2915
    %v5164 = vpack.c.b16 %v2924, %v2916
    %v5165 = vpack.c.b16 %v2925, %v2917
    %v5166 = vpack.c.b16 %v2926, %v2918
    %v5167 = vpack.c.b16 %v2927, %v2919
    %v5168 = vpack.c.b16 %v2928, %v2920
    %v5169 = vpack.c.b16 %v2937, %v2929
    %v5170 = vpack.c.b16 %v2938, %v2930
    %v5171 = vpack.c.b16 %v2939, %v2931
    %v5172 = vpack.c.b16 %v2940, %v2932
    %v5173 = vpack.c.b16 %v2941, %v2933
    %v5174 = vpack.c.b16 %v2942, %v2934
    %v5175 = vpack.c.b16 %v2943, %v2935
    %v5176 = vpack.c.b16 %v2944, %v2936
    %v5177 = vpack.c.b16 %v2953, %v2945
    %v5178 = vpack.c.b16 %v2954, %v2946
    %v5179 = vpack.c.b16 %v2955, %v2947
    %v5180 = vpack.c.b16 %v2956, %v2948
    %v5181 = vpack.c.b16 %v2957, %v2949
    %v5182 = vpack.c.b16 %v2958, %v2950
    %v5183 = vpack.c.b16 %v2959, %v2951
    %v5184 = vpack.c.b16 %v2960, %v2952
    %v5185 = vpack.c.b16 %v2969, %v2961
    %v5186 = vpack.c.b16 %v2970, %v2962
    %v5187 = vpack.c.b16 %v2971, %v2963
    %v5188 = vpack.c.b16 %v2972, %v2964
    %v5189 = vpack.c.b16 %v2973, %v2965
    %v5190 = vpack.c.b16 %v2974, %v2966
    %v5191 = vpack.c.b16 %v2975, %v2967
    %v5192 = vpack.c.b16 %v2976, %v2968
    %v5193 = vpack.c.b16 %v2985, %v2977
    %v5194 = vpack.c.b16 %v2986, %v2978
    %v5195 = vpack.c.b16 %v2987, %v2979
    %v5196 = vpack.c.b16 %v2988, %v2980
    %v5197 = vpack.c.b16 %v2989, %v2981
    %v5198 = vpack.c.b16 %v2990, %v2982
    %v5199 = vpack.c.b16 %v2991, %v2983
    %v5200 = vpack.c.b16 %v2992, %v2984
    %v5201 = vpack.c.b16 %v3001, %v2993
    %v5202 = vpack.c.b16 %v3002, %v2994
    %v5203 = vpack.c.b16 %v3003, %v2995
    %v5204 = vpack.c.b16 %v3004, %v2996
    %v5205 = vpack.c.b16 %v3005, %v2997
    %v5206 = vpack.c.b16 %v3006, %v2998
    %v5207 = vpack.c.b16 %v3007, %v2999
    %v5208 = vpack.c.b16 %v3008, %v3000
    %v5209 = vpack.c.b16 %v3017, %v3009
    %v5210 = vpack.c.b16 %v3018, %v3010
    %v5211 = vpack.c.b16 %v3019, %v3011
    %v5212 = vpack.c.b16 %v3020, %v3012
    %v5213 = vpack.c.b16 %v3021, %v3013
    %v5214 = vpack.c.b16 %v3022, %v3014
    %v5215 = vpack.c.b16 %v3023, %v3015
    %v5216 = vpack.c.b16 %v3024, %v3016
    %v5217 = vpack.c.b16 %v3033, %v3025
    %v5218 = vpack.c.b16 %v3034, %v3026
    %v5219 = vpack.c.b16 %v3035, %v3027
    %v5220 = vpack.c.b16 %v3036, %v3028
    %v5221 = vpack.c.b16 %v3037, %v3029
    %v5222 = vpack.c.b16 %v3038, %v3030
    %v5223 = vpack.c.b16 %v3039, %v3031
    %v5224 = vpack.c.b16 %v3040, %v3032
    %v5225 = vpack.c.b16 %v3049, %v3041
    %v5226 = vpack.c.b16 %v3050, %v3042
    %v5227 = vpack.c.b16 %v3051, %v3043
    %v5228 = vpack.c.b16 %v3052, %v3044
    %v5229 = vpack.c.b16 %v3053, %v3045
    %v5230 = vpack.c.b16 %v3054, %v3046
    %v5231 = vpack.c.b16 %v3055, %v3047
    %v5232 = vpack.c.b16 %v3056, %v3048
    %v5233 = vpack.c.b16 %v3065, %v3057
    %v5234 = vpack.c.b16 %v3066, %v3058
    %v5235 = vpack.c.b16 %v3067, %v3059
    %v5236 = vpack.c.b16 %v3068, %v3060
    %v5237 = vpack.c.b16 %v3069, %v3061
    %v5238 = vpack.c.b16 %v3070, %v3062
    %v5239 = vpack.c.b16 %v3071, %v3063
    %v5240 = vpack.c.b16 %v3072, %v3064
    %v5241 = vpack.c.b16 %v3081, %v3073
    %v5242 = vpack.c.b16 %v3082, %v3074
    %v5243 = vpack.c.b16 %v3083, %v3075
    %v5244 = vpack.c.b16 %v3084, %v3076
    %v5245 = vpack.c.b16 %v3085, %v3077
    %v5246 = vpack.c.b16 %v3086, %v3078
    %v5247 = vpack.c.b16 %v3087, %v3079
    %v5248 = vpack.c.b16 %v3088, %v3080
    %v5249 = vpack.c.b16 %v3097, %v3089
    %v5250 = vpack.c.b16 %v3098, %v3090
    %v5251 = vpack.c.b16 %v3099, %v3091
    %v5252 = vpack.c.b16 %v3100, %v3092
    %v5253 = vpack.c.b16 %v3101, %v3093
    %v5254 = vpack.c.b16 %v3102, %v3094
    %v5255 = vpack.c.b16 %v3103, %v3095
    %v5256 = vpack.c.b16 %v3104, %v3096
    %v5257 = vpack.c.b16 %v3113, %v3105
    %v5258 = vpack.c.b16 %v3114, %v3106
    %v5259 = vpack.c.b16 %v3115, %v3107
    %v5260 = vpack.c.b16 %v3116, %v3108
    %v5261 = vpack.c.b16 %v3117, %v3109
    %v5262 = vpack.c.b16 %v3118, %v3110
    %v5263 = vpack.c.b16 %v3119, %v3111
    %v5264 = vpack.c.b16 %v3120, %v3112
    %v5265 = vpack.c.b16 %v3129, %v3121
    %v5266 = vpack.c.b16 %v3130, %v3122
    %v5267 = vpack.c.b16 %v3131, %v3123
    %v5268 = vpack.c.b16 %v3132, %v3124
    %v5269 = vpack.c.b16 %v3133, %v3125
    %v5270 = vpack.c.b16 %v3134, %v3126
    %v5271 = vpack.c.b16 %v3135, %v3127
    %v5272 = vpack.c.b16 %v3136, %v3128
    %v5273 = vpack.c.b16 %v3145, %v3137
    %v5274 = vpack.c.b16 %v3146, %v3138
    %v5275 = vpack.c.b16 %v3147, %v3139
    %v5276 = vpack.c.b16 %v3148, %v3140
    %v5277 = vpack.c.b16 %v3149, %v3141
    %v5278 = vpack.c.b16 %v3150, %v3142
    %v5279 = vpack.c.b16 %v3151, %v3143
    %v5280 = vpack.c.b16 %v3152, %v3144
    %v5281 = vpack.c.b16 %v3161, %v3153
    %v5282 = vpack.c.b16 %v3162, %v3154
    %v5283 = vpack.c.b16 %v3163, %v3155
    %v5284 = vpack.c.b16 %v3164, %v3156
    %v5285 = vpack.c.b16 %v3165, %v3157
    %v5286 = vpack.c.b16 %v3166, %v3158
    %v5287 = vpack.c.b16 %v3167, %v3159
    %v5288 = vpack.c.b16 %v3168, %v3160
    %v5289 = vpack.c.b16 %v3177, %v3169
    %v5290 = vpack.c.b16 %v3178, %v3170
    %v5291 = vpack.c.b16 %v3179, %v3171
    %v5292 = vpack.c.b16 %v3180, %v3172
    %v5293 = vpack.c.b16 %v3181, %v3173
    %v5294 = vpack.c.b16 %v3182, %v3174
    %v5295 = vpack.c.b16 %v3183, %v3175
    %v5296 = vpack.c.b16 %v3184, %v3176
    %v5297 = vpack.c.b16 %v3193, %v3185
    %v5298 = vpack.c.b16 %v3194, %v3186
    %v5299 = vpack.c.b16 %v3195, %v3187
    %v5300 = vpack.c.b16 %v3196, %v3188
    %v5301 = vpack.c.b16 %v3197, %v3189
    %v5302 = vpack.c.b16 %v3198, %v3190
    %v5303 = vpack.c.b16 %v3199, %v3191
    %v5304 = vpack.c.b16 %v3200, %v3192
    %v5305 = vpack.c.b16 %v3209, %v3201
    %v5306 = vpack.c.b16 %v3210, %v3202
    %v5307 = vpack.c.b16 %v3211, %v3203
    %v5308 = vpack.c.b16 %v3212, %v3204
    %v5309 = vpack.c.b16 %v3213, %v3205
    %v5310 = vpack.c.b16 %v3214, %v3206
    %v5311 = vpack.c.b16 %v3215, %v3207
    %v5312 = vpack.c.b16 %v3216, %v3208
    %v5313 = vpack.c.b16 %v3225, %v3217
    %v5314 = vpack.c.b16 %v3226, %v3218
    %v5315 = vpack.c.b16 %v3227, %v3219
    %v5316 = vpack.c.b16 %v3228, %v3220
    %v5317 = vpack.c.b16 %v3229, %v3221
    %v5318 = vpack.c.b16 %v3230, %v3222
    %v5319 = vpack.c.b16 %v3231, %v3223
    %v5320 = vpack.c.b16 %v3232, %v3224
    %v5321 = vpack.c.b16 %v3241, %v3233
    %v5322 = vpack.c.b16 %v3242, %v3234
    %v5323 = vpack.c.b16 %v3243, %v3235
    %v5324 = vpack.c.b16 %v3244, %v3236
    %v5325 = vpack.c.b16 %v3245, %v3237
    %v5326 = vpack.c.b16 %v3246, %v3238
    %v5327 = vpack.c.b16 %v3247, %v3239
    %v5328 = vpack.c.b16 %v3248, %v3240
    %v5329 = vpack.c.b16 %v3257, %v3249
    %v5330 = vpack.c.b16 %v3258, %v3250
    %v5331 = vpack.c.b16 %v3259, %v3251
    %v5332 = vpack.c.b16 %v3260, %v3252
    %v5333 = vpack.c.b16 %v3261, %v3253
    %v5334 = vpack.c.b16 %v3262, %v3254
    %v5335 = vpack.c.b16 %v3263, %v3255
    %v5336 = vpack.c.b16 %v3264, %v3256
    %v5337 = vpack.c.b16 %v3273, %v3265
    %v5338 = vpack.c.b16 %v3274, %v3266
    %v5339 = vpack.c.b16 %v3275, %v3267
    %v5340 = vpack.c.b16 %v3276, %v3268
    %v5341 = vpack.c.b16 %v3277, %v3269
    %v5342 = vpack.c.b16 %v3278, %v3270
    %v5343 = vpack.c.b16 %v3279, %v3271
    %v5344 = vpack.c.b16 %v3280, %v3272
    %v5345 = vpack.c.b16 %v3289, %v3281
    %v5346 = vpack.c.b16 %v3290, %v3282
    %v5347 = vpack.c.b16 %v3291, %v3283
    %v5348 = vpack.c.b16 %v3292, %v3284
    %v5349 = vpack.c.b16 %v3293, %v3285
    %v5350 = vpack.c.b16 %v3294, %v3286
    %v5351 = vpack.c.b16 %v3295, %v3287
    %v5352 = vpack.c.b16 %v3296, %v3288
    %v5353 = vpack.c.b16 %v3305, %v3297
    %v5354 = vpack.c.b16 %v3306, %v3298
    %v5355 = vpack.c.b16 %v3307, %v3299
    %v5356 = vpack.c.b16 %v3308, %v3300
    %v5357 = vpack.c.b16 %v3309, %v3301
    %v5358 = vpack.c.b16 %v3310, %v3302
    %v5359 = vpack.c.b16 %v3311, %v3303
    %v5360 = vpack.c.b16 %v3312, %v3304
    %v5361 = vpack.c.b16 %v3321, %v3313
    %v5362 = vpack.c.b16 %v3322, %v3314
    %v5363 = vpack.c.b16 %v3323, %v3315
    %v5364 = vpack.c.b16 %v3324, %v3316
    %v5365 = vpack.c.b16 %v3325, %v3317
    %v5366 = vpack.c.b16 %v3326, %v3318
    %v5367 = vpack.c.b16 %v3327, %v3319
    %v5368 = vpack.c.b16 %v3328, %v3320
    %v5369 = vpack.c.b16 %v3337, %v3329
    %v5370 = vpack.c.b16 %v3338, %v3330
    %v5371 = vpack.c.b16 %v3339, %v3331
    %v5372 = vpack.c.b16 %v3340, %v3332
    %v5373 = vpack.c.b16 %v3341, %v3333
    %v5374 = vpack.c.b16 %v3342, %v3334
    %v5375 = vpack.c.b16 %v3343, %v3335
    %v5376 = vpack.c.b16 %v3344, %v3336
    %v5377 = vpack.c.b16 %v3353, %v3345
    %v5378 = vpack.c.b16 %v3354, %v3346
    %v5379 = vpack.c.b16 %v3355, %v3347
    %v5380 = vpack.c.b16 %v3356, %v3348
    %v5381 = vpack.c.b16 %v3357, %v3349
    %v5382 = vpack.c.b16 %v3358, %v3350
    %v5383 = vpack.c.b16 %v3359, %v3351
    %v5384 = vpack.c.b16 %v3360, %v3352
    %v5385 = vpack.c.b16 %v3369, %v3361
    %v5386 = vpack.c.b16 %v3370, %v3362
    %v5387 = vpack.c.b16 %v3371, %v3363
    %v5388 = vpack.c.b16 %v3372, %v3364
    %v5389 = vpack.c.b16 %v3373, %v3365
    %v5390 = vpack.c.b16 %v3374, %v3366
    %v5391 = vpack.c.b16 %v3375, %v3367
    %v5392 = vpack.c.b16 %v3376, %v3368
    %v5393 = vpack.c.b16 %v3385, %v3377
    %v5394 = vpack.c.b16 %v3386, %v3378
    %v5395 = vpack.c.b16 %v3387, %v3379
    %v5396 = vpack.c.b16 %v3388, %v3380
    %v5397 = vpack.c.b16 %v3389, %v3381
    %v5398 = vpack.c.b16 %v3390, %v3382
    %v5399 = vpack.c.b16 %v3391, %v3383
    %v5400 = vpack.c.b16 %v3392, %v3384
    %v5401 = vpack.c.b16 %v3401, %v3393
    %v5402 = vpack.c.b16 %v3402, %v3394
    %v5403 = vpack.c.b16 %v3403, %v3395
    %v5404 = vpack.c.b16 %v3404, %v3396
    %v5405 = vpack.c.b16 %v3405, %v3397
    %v5406 = vpack.c.b16 %v3406, %v3398
    %v5407 = vpack.c.b16 %v3407, %v3399
    %v5408 = vpack.c.b16 %v3408, %v3400
    %v5409 = vpack.c.b16 %v3417, %v3409
    %v5410 = vpack.c.b16 %v3418, %v3410
    %v5411 = vpack.c.b16 %v3419, %v3411
    %v5412 = vpack.c.b16 %v3420, %v3412
    %v5413 = vpack.c.b16 %v3421, %v3413
    %v5414 = vpack.c.b16 %v3422, %v3414
    %v5415 = vpack.c.b16 %v3423, %v3415
    %v5416 = vpack.c.b16 %v3424, %v3416
    %v5417 = vpack.c.b16 %v3433, %v3425
    %v5418 = vpack.c.b16 %v3434, %v3426
    %v5419 = vpack.c.b16 %v3435, %v3427
    %v5420 = vpack.c.b16 %v3436, %v3428
    %v5421 = vpack.c.b16 %v3437, %v3429
    %v5422 = vpack.c.b16 %v3438, %v3430
    %v5423 = vpack.c.b16 %v3439, %v3431
    %v5424 = vpack.c.b16 %v3440, %v3432
    %v5425 = vpack.c.b16 %v3449, %v3441
    %v5426 = vpack.c.b16 %v3450, %v3442
    %v5427 = vpack.c.b16 %v3451, %v3443
    %v5428 = vpack.c.b16 %v3452, %v3444
    %v5429 = vpack.c.b16 %v3453, %v3445
    %v5430 = vpack.c.b16 %v3454, %v3446
    %v5431 = vpack.c.b16 %v3455, %v3447
    %v5432 = vpack.c.b16 %v3456, %v3448
    %v5433 = vpack.c.b16 %v3465, %v3457
    %v5434 = vpack.c.b16 %v3466, %v3458
    %v5435 = vpack.c.b16 %v3467, %v3459
    %v5436 = vpack.c.b16 %v3468, %v3460
    %v5437 = vpack.c.b16 %v3469, %v3461
    %v5438 = vpack.c.b16 %v3470, %v3462
    %v5439 = vpack.c.b16 %v3471, %v3463
    %v5440 = vpack.c.b16 %v3472, %v3464
    %v5441 = vpack.c.b16 %v3481, %v3473
    %v5442 = vpack.c.b16 %v3482, %v3474
    %v5443 = vpack.c.b16 %v3483, %v3475
    %v5444 = vpack.c.b16 %v3484, %v3476
    %v5445 = vpack.c.b16 %v3485, %v3477
    %v5446 = vpack.c.b16 %v3486, %v3478
    %v5447 = vpack.c.b16 %v3487, %v3479
    %v5448 = vpack.c.b16 %v3488, %v3480
    %v5449 = vpack.c.b16 %v3497, %v3489
    %v5450 = vpack.c.b16 %v3498, %v3490
    %v5451 = vpack.c.b16 %v3499, %v3491
    %v5452 = vpack.c.b16 %v3500, %v3492
    %v5453 = vpack.c.b16 %v3501, %v3493
    %v5454 = vpack.c.b16 %v3502, %v3494
    %v5455 = vpack.c.b16 %v3503, %v3495
    %v5456 = vpack.c.b16 %v3504, %v3496
    %v5457 = vpack.c.b16 %v3513, %v3505
    %v5458 = vpack.c.b16 %v3514, %v3506
    %v5459 = vpack.c.b16 %v3515, %v3507
    %v5460 = vpack.c.b16 %v3516, %v3508
    %v5461 = vpack.c.b16 %v3517, %v3509
    %v5462 = vpack.c.b16 %v3518, %v3510
    %v5463 = vpack.c.b16 %v3519, %v3511
    %v5464 = vpack.c.b16 %v3520, %v3512
    %v5465 = vpack.c.b16 %v3529, %v3521
    %v5466 = vpack.c.b16 %v3530, %v3522
    %v5467 = vpack.c.b16 %v3531, %v3523
    %v5468 = vpack.c.b16 %v3532, %v3524
    %v5469 = vpack.c.b16 %v3533, %v3525
    %v5470 = vpack.c.b16 %v3534, %v3526
    %v5471 = vpack.c.b16 %v3535, %v3527
    %v5472 = vpack.c.b16 %v3536, %v3528
    %v5473 = vpack.c.b16 %v3545, %v3537
    %v5474 = vpack.c.b16 %v3546, %v3538
    %v5475 = vpack.c.b16 %v3547, %v3539
    %v5476 = vpack.c.b16 %v3548, %v3540
    %v5477 = vpack.c.b16 %v3549, %v3541
    %v5478 = vpack.c.b16 %v3550, %v3542
    %v5479 = vpack.c.b16 %v3551, %v3543
    %v5480 = vpack.c.b16 %v3552, %v3544
    %v5481 = vpack.c.b16 %v3561, %v3553
    %v5482 = vpack.c.b16 %v3562, %v3554
    %v5483 = vpack.c.b16 %v3563, %v3555
    %v5484 = vpack.c.b16 %v3564, %v3556
    %v5485 = vpack.c.b16 %v3565, %v3557
    %v5486 = vpack.c.b16 %v3566, %v3558
    %v5487 = vpack.c.b16 %v3567, %v3559
    %v5488 = vpack.c.b16 %v3568, %v3560
    %v5489 = vpack.c.b16 %v3577, %v3569
    %v5490 = vpack.c.b16 %v3578, %v3570
    %v5491 = vpack.c.b16 %v3579, %v3571
    %v5492 = vpack.c.b16 %v3580, %v3572
    %v5493 = vpack.c.b16 %v3581, %v3573
    %v5494 = vpack.c.b16 %v3582, %v3574
    %v5495 = vpack.c.b16 %v3583, %v3575
    %v5496 = vpack.c.b16 %v3584, %v3576
    %v5497 = vpack.c.b16 %v3593, %v3585
    %v5498 = vpack.c.b16 %v3594, %v3586
    %v5499 = vpack.c.b16 %v3595, %v3587
    %v5500 = vpack.c.b16 %v3596, %v3588
    %v5501 = vpack.c.b16 %v3597, %v3589
    %v5502 = vpack.c.b16 %v3598, %v3590
    %v5503 = vpack.c.b16 %v3599, %v3591
    %v5504 = vpack.c.b16 %v3600, %v3592
    %v5505 = vpack.c.b16 %v3609, %v3601
    %v5506 = vpack.c.b16 %v3610, %v3602
    %v5507 = vpack.c.b16 %v3611, %v3603
    %v5508 = vpack.c.b16 %v3612, %v3604
    %v5509 = vpack.c.b16 %v3613, %v3605
    %v5510 = vpack.c.b16 %v3614, %v3606
    %v5511 = vpack.c.b16 %v3615, %v3607
    %v5512 = vpack.c.b16 %v3616, %v3608
    %v5513 = vpack.c.b16 %v3625, %v3617
    %v5514 = vpack.c.b16 %v3626, %v3618
    %v5515 = vpack.c.b16 %v3627, %v3619
    %v5516 = vpack.c.b16 %v3628, %v3620
    %v5517 = vpack.c.b16 %v3629, %v3621
    %v5518 = vpack.c.b16 %v3630, %v3622
    %v5519 = vpack.c.b16 %v3631, %v3623
    %v5520 = vpack.c.b16 %v3632, %v3624
    %v5521 = vpack.c.b16 %v3641, %v3633
    %v5522 = vpack.c.b16 %v3642, %v3634
    %v5523 = vpack.c.b16 %v3643, %v3635
    %v5524 = vpack.c.b16 %v3644, %v3636
    %v5525 = vpack.c.b16 %v3645, %v3637
    %v5526 = vpack.c.b16 %v3646, %v3638
    %v5527 = vpack.c.b16 %v3647, %v3639
    %v5528 = vpack.c.b16 %v3648, %v3640
    %v5529 = vpack.c.b16 %v3657, %v3649
    %v5530 = vpack.c.b16 %v3658, %v3650
    %v5531 = vpack.c.b16 %v3659, %v3651
    %v5532 = vpack.c.b16 %v3660, %v3652
    %v5533 = vpack.c.b16 %v3661, %v3653
    %v5534 = vpack.c.b16 %v3662, %v3654
    %v5535 = vpack.c.b16 %v3663, %v3655
    %v5536 = vpack.c.b16 %v3664, %v3656
    %v5537 = vpack.c.b16 %v3673, %v3665
    %v5538 = vpack.c.b16 %v3674, %v3666
    %v5539 = vpack.c.b16 %v3675, %v3667
    %v5540 = vpack.c.b16 %v3676, %v3668
    %v5541 = vpack.c.b16 %v3677, %v3669
    %v5542 = vpack.c.b16 %v3678, %v3670
    %v5543 = vpack.c.b16 %v3679, %v3671
    %v5544 = vpack.c.b16 %v3680, %v3672
    %v5545 = vpack.c.b16 %v3689, %v3681
    %v5546 = vpack.c.b16 %v3690, %v3682
    %v5547 = vpack.c.b16 %v3691, %v3683
    %v5548 = vpack.c.b16 %v3692, %v3684
    %v5549 = vpack.c.b16 %v3693, %v3685
    %v5550 = vpack.c.b16 %v3694, %v3686
    %v5551 = vpack.c.b16 %v3695, %v3687
    %v5552 = vpack.c.b16 %v3696, %v3688
    %v5553 = vpack.c.b16 %v3705, %v3697
    %v5554 = vpack.c.b16 %v3706, %v3698
    %v5555 = vpack.c.b16 %v3707, %v3699
    %v5556 = vpack.c.b16 %v3708, %v3700
    %v5557 = vpack.c.b16 %v3709, %v3701
    %v5558 = vpack.c.b16 %v3710, %v3702
    %v5559 = vpack.c.b16 %v3711, %v3703
    %v5560 = vpack.c.b16 %v3712, %v3704
    %v5561 = vpack.c.b16 %v3721, %v3713
    %v5562 = vpack.c.b16 %v3722, %v3714
    %v5563 = vpack.c.b16 %v3723, %v3715
    %v5564 = vpack.c.b16 %v3724, %v3716
    %v5565 = vpack.c.b16 %v3725, %v3717
    %v5566 = vpack.c.b16 %v3726, %v3718
    %v5567 = vpack.c.b16 %v3727, %v3719
    %v5568 = vpack.c.b16 %v3728, %v3720
    %v5569 = vpack.c.b16 %v3737, %v3729
    %v5570 = vpack.c.b16 %v3738, %v3730
    %v5571 = vpack.c.b16 %v3739, %v3731
    %v5572 = vpack.c.b16 %v3740, %v3732
    %v5573 = vpack.c.b16 %v3741, %v3733
    %v5574 = vpack.c.b16 %v3742, %v3734
    %v5575 = vpack.c.b16 %v3743, %v3735
    %v5576 = vpack.c.b16 %v3744, %v3736
    %v5577 = vpack.c.b16 %v3753, %v3745
    %v5578 = vpack.c.b16 %v3754, %v3746
    %v5579 = vpack.c.b16 %v3755, %v3747
    %v5580 = vpack.c.b16 %v3756, %v3748
    %v5581 = vpack.c.b16 %v3757, %v3749
    %v5582 = vpack.c.b16 %v3758, %v3750
    %v5583 = vpack.c.b16 %v3759, %v3751
    %v5584 = vpack.c.b16 %v3760, %v3752
    %v5585 = vpack.c.b16 %v3769, %v3761
    %v5586 = vpack.c.b16 %v3770, %v3762
    %v5587 = vpack.c.b16 %v3771, %v3763
    %v5588 = vpack.c.b16 %v3772, %v3764
    %v5589 = vpack.c.b16 %v3773, %v3765
    %v5590 = vpack.c.b16 %v3774, %v3766
    %v5591 = vpack.c.b16 %v3775, %v3767
    %v5592 = vpack.c.b16 %v3776, %v3768
    %v5593 = vpack.c.b16 %v3785, %v3777
    %v5594 = vpack.c.b16 %v3786, %v3778
    %v5595 = vpack.c.b16 %v3787, %v3779
    %v5596 = vpack.c.b16 %v3788, %v3780
    %v5597 = vpack.c.b16 %v3789, %v3781
    %v5598 = vpack.c.b16 %v3790, %v3782
    %v5599 = vpack.c.b16 %v3791, %v3783
    %v5600 = vpack.c.b16 %v3792, %v3784
    %v5601 = vpack.c.b16 %v3801, %v3793
    %v5602 = vpack.c.b16 %v3802, %v3794
    %v5603 = vpack.c.b16 %v3803, %v3795
    %v5604 = vpack.c.b16 %v3804, %v3796
    %v5605 = vpack.c.b16 %v3805, %v3797
    %v5606 = vpack.c.b16 %v3806, %v3798
    %v5607 = vpack.c.b16 %v3807, %v3799
    %v5608 = vpack.c.b16 %v3808, %v3800
    %v5609 = vpack.c.b16 %v3817, %v3809
    %v5610 = vpack.c.b16 %v3818, %v3810
    %v5611 = vpack.c.b16 %v3819, %v3811
    %v5612 = vpack.c.b16 %v3820, %v3812
    %v5613 = vpack.c.b16 %v3821, %v3813
    %v5614 = vpack.c.b16 %v3822, %v3814
    %v5615 = vpack.c.b16 %v3823, %v3815
    %v5616 = vpack.c.b16 %v3824, %v3816
    %v5617 = vpack.c.b16 %v3833, %v3825
    %v5618 = vpack.c.b16 %v3834, %v3826
    %v5619 = vpack.c.b16 %v3835, %v3827
    %v5620 = vpack.c.b16 %v3836, %v3828
    %v5621 = vpack.c.b16 %v3837, %v3829
    %v5622 = vpack.c.b16 %v3838, %v3830
    %v5623 = vpack.c.b16 %v3839, %v3831
    %v5624 = vpack.c.b16 %v3840, %v3832
    %v5625 = vpack.c.b16 %v3849, %v3841
    %v5626 = vpack.c.b16 %v3850, %v3842
    %v5627 = vpack.c.b16 %v3851, %v3843
    %v5628 = vpack.c.b16 %v3852, %v3844
    %v5629 = vpack.c.b16 %v3853, %v3845
    %v5630 = vpack.c.b16 %v3854, %v3846
    %v5631 = vpack.c.b16 %v3855, %v3847
    %v5632 = vpack.c.b16 %v3856, %v3848
    %v5633 = vpack.c.b16 %v3865, %v3857
    %v5634 = vpack.c.b16 %v3866, %v3858
    %v5635 = vpack.c.b16 %v3867, %v3859
    %v5636 = vpack.c.b16 %v3868, %v3860
    %v5637 = vpack.c.b16 %v3869, %v3861
    %v5638 = vpack.c.b16 %v3870, %v3862
    %v5639 = vpack.c.b16 %v3871, %v3863
    %v5640 = vpack.c.b16 %v3872, %v3864
    %v5641 = vpack.c.b16 %v3881, %v3873
    %v5642 = vpack.c.b16 %v3882, %v3874
    %v5643 = vpack.c.b16 %v3883, %v3875
    %v5644 = vpack.c.b16 %v3884, %v3876
    %v5645 = vpack.c.b16 %v3885, %v3877
    %v5646 = vpack.c.b16 %v3886, %v3878
    %v5647 = vpack.c.b16 %v3887, %v3879
    %v5648 = vpack.c.b16 %v3888, %v3880
    %v5649 = vpack.c.b16 %v3897, %v3889
    %v5650 = vpack.c.b16 %v3898, %v3890
    %v5651 = vpack.c.b16 %v3899, %v3891
    %v5652 = vpack.c.b16 %v3900, %v3892
    %v5653 = vpack.c.b16 %v3901, %v3893
    %v5654 = vpack.c.b16 %v3902, %v3894
    %v5655 = vpack.c.b16 %v3903, %v3895
    %v5656 = vpack.c.b16 %v3904, %v3896
    %v5657 = vpack.c.b16 %v3913, %v3905
    %v5658 = vpack.c.b16 %v3914, %v3906
    %v5659 = vpack.c.b16 %v3915, %v3907
    %v5660 = vpack.c.b16 %v3916, %v3908
    %v5661 = vpack.c.b16 %v3917, %v3909
    %v5662 = vpack.c.b16 %v3918, %v3910
    %v5663 = vpack.c.b16 %v3919, %v3911
    %v5664 = vpack.c.b16 %v3920, %v3912
    %v5665 = vpack.c.b16 %v3929, %v3921
    %v5666 = vpack.c.b16 %v3930, %v3922
    %v5667 = vpack.c.b16 %v3931, %v3923
    %v5668 = vpack.c.b16 %v3932, %v3924
    %v5669 = vpack.c.b16 %v3933, %v3925
    %v5670 = vpack.c.b16 %v3934, %v3926
    %v5671 = vpack.c.b16 %v3935, %v3927
    %v5672 = vpack.c.b16 %v3936, %v3928
    %v5673 = vpack.c.b16 %v3945, %v3937
    %v5674 = vpack.c.b16 %v3946, %v3938
    %v5675 = vpack.c.b16 %v3947, %v3939
    %v5676 = vpack.c.b16 %v3948, %v3940
    %v5677 = vpack.c.b16 %v3949, %v3941
    %v5678 = vpack.c.b16 %v3950, %v3942
    %v5679 = vpack.c.b16 %v3951, %v3943
    %v5680 = vpack.c.b16 %v3952, %v3944
    %v5681 = vpack.c.b16 %v3961, %v3953
    %v5682 = vpack.c.b16 %v3962, %v3954
    %v5683 = vpack.c.b16 %v3963, %v3955
    %v5684 = vpack.c.b16 %v3964, %v3956
    %v5685 = vpack.c.b16 %v3965, %v3957
    %v5686 = vpack.c.b16 %v3966, %v3958
    %v5687 = vpack.c.b16 %v3967, %v3959
    %v5688 = vpack.c.b16 %v3968, %v3960
    %v5689 = vpack.c.b16 %v3977, %v3969
    %v5690 = vpack.c.b16 %v3978, %v3970
    %v5691 = vpack.c.b16 %v3979, %v3971
    %v5692 = vpack.c.b16 %v3980, %v3972
    %v5693 = vpack.c.b16 %v3981, %v3973
    %v5694 = vpack.c.b16 %v3982, %v3974
    %v5695 = vpack.c.b16 %v3983, %v3975
    %v5696 = vpack.c.b16 %v3984, %v3976
    %v5697 = vpack.c.b16 %v3993, %v3985
    %v5698 = vpack.c.b16 %v3994, %v3986
    %v5699 = vpack.c.b16 %v3995, %v3987
    %v5700 = vpack.c.b16 %v3996, %v3988
    %v5701 = vpack.c.b16 %v3997, %v3989
    %v5702 = vpack.c.b16 %v3998, %v3990
    %v5703 = vpack.c.b16 %v3999, %v3991
    %v5704 = vpack.c.b16 %v4000, %v3992
    %v5705 = vpack.c.b16 %v4009, %v4001
    %v5706 = vpack.c.b16 %v4010, %v4002
    %v5707 = vpack.c.b16 %v4011, %v4003
    %v5708 = vpack.c.b16 %v4012, %v4004
    %v5709 = vpack.c.b16 %v4013, %v4005
    %v5710 = vpack.c.b16 %v4014, %v4006
    %v5711 = vpack.c.b16 %v4015, %v4007
    %v5712 = vpack.c.b16 %v4016, %v4008
    %v5713 = vpack.c.b16 %v4025, %v4017
    %v5714 = vpack.c.b16 %v4026, %v4018
    %v5715 = vpack.c.b16 %v4027, %v4019
    %v5716 = vpack.c.b16 %v4028, %v4020
    %v5717 = vpack.c.b16 %v4029, %v4021
    %v5718 = vpack.c.b16 %v4030, %v4022
    %v5719 = vpack.c.b16 %v4031, %v4023
    %v5720 = vpack.c.b16 %v4032, %v4024
    %v5721 = vpack.c.b16 %v4041, %v4033
    %v5722 = vpack.c.b16 %v4042, %v4034
    %v5723 = vpack.c.b16 %v4043, %v4035
    %v5724 = vpack.c.b16 %v4044, %v4036
    %v5725 = vpack.c.b16 %v4045, %v4037
    %v5726 = vpack.c.b16 %v4046, %v4038
    %v5727 = vpack.c.b16 %v4047, %v4039
    %v5728 = vpack.c.b16 %v4048, %v4040
    %v5729 = vpack.c.b16 %v4057, %v4049
    %v5730 = vpack.c.b16 %v4058, %v4050
    %v5731 = vpack.c.b16 %v4059, %v4051
    %v5732 = vpack.c.b16 %v4060, %v4052
    %v5733 = vpack.c.b16 %v4061, %v4053
    %v5734 = vpack.c.b16 %v4062, %v4054
    %v5735 = vpack.c.b16 %v4063, %v4055
    %v5736 = vpack.c.b16 %v4064, %v4056
    %v5737 = vpack.c.b16 %v4073, %v4065
    %v5738 = vpack.c.b16 %v4074, %v4066
    %v5739 = vpack.c.b16 %v4075, %v4067
    %v5740 = vpack.c.b16 %v4076, %v4068
    %v5741 = vpack.c.b16 %v4077, %v4069
    %v5742 = vpack.c.b16 %v4078, %v4070
    %v5743 = vpack.c.b16 %v4079, %v4071
    %v5744 = vpack.c.b16 %v4080, %v4072
    %v5745 = vpack.c.b16 %v4089, %v4081
    %v5746 = vpack.c.b16 %v4090, %v4082
    %v5747 = vpack.c.b16 %v4091, %v4083
    %v5748 = vpack.c.b16 %v4092, %v4084
    %v5749 = vpack.c.b16 %v4093, %v4085
    %v5750 = vpack.c.b16 %v4094, %v4086
    %v5751 = vpack.c.b16 %v4095, %v4087
    %v5752 = vpack.c.b16 %v4096, %v4088
    %v5753 = vpack.c.b16 %v4105, %v4097
    %v5754 = vpack.c.b16 %v4106, %v4098
    %v5755 = vpack.c.b16 %v4107, %v4099
    %v5756 = vpack.c.b16 %v4108, %v4100
    %v5757 = vpack.c.b16 %v4109, %v4101
    %v5758 = vpack.c.b16 %v4110, %v4102
    %v5759 = vpack.c.b16 %v4111, %v4103
    %v5760 = vpack.c.b16 %v4112, %v4104
    %v5761 = vpack.c.b16 %v4121, %v4113
    %v5762 = vpack.c.b16 %v4122, %v4114
    %v5763 = vpack.c.b16 %v4123, %v4115
    %v5764 = vpack.c.b16 %v4124, %v4116
    %v5765 = vpack.c.b16 %v4125, %v4117
    %v5766 = vpack.c.b16 %v4126, %v4118
    %v5767 = vpack.c.b16 %v4127, %v4119
    %v5768 = vpack.c.b16 %v4128, %v4120
    %v5769 = vpack.c.b16 %v4137, %v4129
    %v5770 = vpack.c.b16 %v4138, %v4130
    %v5771 = vpack.c.b16 %v4139, %v4131
    %v5772 = vpack.c.b16 %v4140, %v4132
    %v5773 = vpack.c.b16 %v4141, %v4133
    %v5774 = vpack.c.b16 %v4142, %v4134
    %v5775 = vpack.c.b16 %v4143, %v4135
    %v5776 = vpack.c.b16 %v4144, %v4136
    %v5777 = vpack.c.b16 %v4153, %v4145
    %v5778 = vpack.c.b16 %v4154, %v4146
    %v5779 = vpack.c.b16 %v4155, %v4147
    %v5780 = vpack.c.b16 %v4156, %v4148
    %v5781 = vpack.c.b16 %v4157, %v4149
    %v5782 = vpack.c.b16 %v4158, %v4150
    %v5783 = vpack.c.b16 %v4159, %v4151
    %v5784 = vpack.c.b16 %v4160, %v4152
    %v5785 = vpack.c.b16 %v4169, %v4161
    %v5786 = vpack.c.b16 %v4170, %v4162
    %v5787 = vpack.c.b16 %v4171, %v4163
    %v5788 = vpack.c.b16 %v4172, %v4164
    %v5789 = vpack.c.b16 %v4173, %v4165
    %v5790 = vpack.c.b16 %v4174, %v4166
    %v5791 = vpack.c.b16 %v4175, %v4167
    %v5792 = vpack.c.b16 %v4176, %v4168
    %v5793 = vpack.c.b16 %v4185, %v4177
    %v5794 = vpack.c.b16 %v4186, %v4178
    %v5795 = vpack.c.b16 %v4187, %v4179
    %v5796 = vpack.c.b16 %v4188, %v4180
    %v5797 = vpack.c.b16 %v4189, %v4181
    %v5798 = vpack.c.b16 %v4190, %v4182
    %v5799 = vpack.c.b16 %v4191, %v4183
    %v5800 = vpack.c.b16 %v4192, %v4184
    %v5801 = vpack.c.b16 %v4201, %v4193
    %v5802 = vpack.c.b16 %v4202, %v4194
    %v5803 = vpack.c.b16 %v4203, %v4195
    %v5804 = vpack.c.b16 %v4204, %v4196
    %v5805 = vpack.c.b16 %v4205, %v4197
    %v5806 = vpack.c.b16 %v4206, %v4198
    %v5807 = vpack.c.b16 %v4207, %v4199
    %v5808 = vpack.c.b16 %v4208, %v4200
    %v5809 = vpack.c.b16 %v4217, %v4209
    %v5810 = vpack.c.b16 %v4218, %v4210
    %v5811 = vpack.c.b16 %v4219, %v4211
    %v5812 = vpack.c.b16 %v4220, %v4212
    %v5813 = vpack.c.b16 %v4221, %v4213
    %v5814 = vpack.c.b16 %v4222, %v4214
    %v5815 = vpack.c.b16 %v4223, %v4215
    %v5816 = vpack.c.b16 %v4224, %v4216
    %v5817 = vpack.c.b16 %v4233, %v4225
    %v5818 = vpack.c.b16 %v4234, %v4226
    %v5819 = vpack.c.b16 %v4235, %v4227
    %v5820 = vpack.c.b16 %v4236, %v4228
    %v5821 = vpack.c.b16 %v4237, %v4229
    %v5822 = vpack.c.b16 %v4238, %v4230
    %v5823 = vpack.c.b16 %v4239, %v4231
    %v5824 = vpack.c.b16 %v4240, %v4232
    %v5825 = vpack.c.b16 %v4249, %v4241
    %v5826 = vpack.c.b16 %v4250, %v4242
    %v5827 = vpack.c.b16 %v4251, %v4243
    %v5828 = vpack.c.b16 %v4252, %v4244
    %v5829 = vpack.c.b16 %v4253, %v4245
    %v5830 = vpack.c.b16 %v4254, %v4246
    %v5831 = vpack.c.b16 %v4255, %v4247
    %v5832 = vpack.c.b16 %v4256, %v4248
    %v5833 = vpack.c.b16 %v4265, %v4257
    %v5834 = vpack.c.b16 %v4266, %v4258
    %v5835 = vpack.c.b16 %v4267, %v4259
    %v5836 = vpack.c.b16 %v4268, %v4260
    %v5837 = vpack.c.b16 %v4269, %v4261
    %v5838 = vpack.c.b16 %v4270, %v4262
    %v5839 = vpack.c.b16 %v4271, %v4263
    %v5840 = vpack.c.b16 %v4272, %v4264
    %v5841 = vpack.c.b16 %v4281, %v4273
    %v5842 = vpack.c.b16 %v4282, %v4274
    %v5843 = vpack.c.b16 %v4283, %v4275
    %v5844 = vpack.c.b16 %v4284, %v4276
    %v5845 = vpack.c.b16 %v4285, %v4277
    %v5846 = vpack.c.b16 %v4286, %v4278
    %v5847 = vpack.c.b16 %v4287, %v4279
    %v5848 = vpack.c.b16 %v4288, %v4280
    %v5849 = vpack.c.b16 %v4297, %v4289
    %v5850 = vpack.c.b16 %v4298, %v4290
    %v5851 = vpack.c.b16 %v4299, %v4291
    %v5852 = vpack.c.b16 %v4300, %v4292
    %v5853 = vpack.c.b16 %v4301, %v4293
    %v5854 = vpack.c.b16 %v4302, %v4294
    %v5855 = vpack.c.b16 %v4303, %v4295
    %v5856 = vpack.c.b16 %v4304, %v4296
    %v5857 = vpack.c.b16 %v4313, %v4305
    %v5858 = vpack.c.b16 %v4314, %v4306
    %v5859 = vpack.c.b16 %v4315, %v4307
    %v5860 = vpack.c.b16 %v4316, %v4308
    %v5861 = vpack.c.b16 %v4317, %v4309
    %v5862 = vpack.c.b16 %v4318, %v4310
    %v5863 = vpack.c.b16 %v4319, %v4311
    %v5864 = vpack.c.b16 %v4320, %v4312
    %v5865 = vpack.c.b16 %v4329, %v4321
    %v5866 = vpack.c.b16 %v4330, %v4322
    %v5867 = vpack.c.b16 %v4331, %v4323
    %v5868 = vpack.c.b16 %v4332, %v4324
    %v5869 = vpack.c.b16 %v4333, %v4325
    %v5870 = vpack.c.b16 %v4334, %v4326
    %v5871 = vpack.c.b16 %v4335, %v4327
    %v5872 = vpack.c.b16 %v4336, %v4328
    %v5873 = vpack.c.b16 %v4345, %v4337
    %v5874 = vpack.c.b16 %v4346, %v4338
    %v5875 = vpack.c.b16 %v4347, %v4339
    %v5876 = vpack.c.b16 %v4348, %v4340
    %v5877 = vpack.c.b16 %v4349, %v4341
    %v5878 = vpack.c.b16 %v4350, %v4342
    %v5879 = vpack.c.b16 %v4351, %v4343
    %v5880 = vpack.c.b16 %v4352, %v4344
    %v5881 = vpack.c.b16 %v4361, %v4353
    %v5882 = vpack.c.b16 %v4362, %v4354
    %v5883 = vpack.c.b16 %v4363, %v4355
    %v5884 = vpack.c.b16 %v4364, %v4356
    %v5885 = vpack.c.b16 %v4365, %v4357
    %v5886 = vpack.c.b16 %v4366, %v4358
    %v5887 = vpack.c.b16 %v4367, %v4359
    %v5888 = vpack.c.b16 %v4368, %v4360
    %v5889 = vpack.c.b16 %v4377, %v4369
    %v5890 = vpack.c.b16 %v4378, %v4370
    %v5891 = vpack.c.b16 %v4379, %v4371
    %v5892 = vpack.c.b16 %v4380, %v4372
    %v5893 = vpack.c.b16 %v4381, %v4373
    %v5894 = vpack.c.b16 %v4382, %v4374
    %v5895 = vpack.c.b16 %v4383, %v4375
    %v5896 = vpack.c.b16 %v4384, %v4376
    %v5897 = vpack.c.b16 %v4393, %v4385
    %v5898 = vpack.c.b16 %v4394, %v4386
    %v5899 = vpack.c.b16 %v4395, %v4387
    %v5900 = vpack.c.b16 %v4396, %v4388
    %v5901 = vpack.c.b16 %v4397, %v4389
    %v5902 = vpack.c.b16 %v4398, %v4390
    %v5903 = vpack.c.b16 %v4399, %v4391
    %v5904 = vpack.c.b16 %v4400, %v4392
    %v5905 = vpack.c.b16 %v4409, %v4401
    %v5906 = vpack.c.b16 %v4410, %v4402
    %v5907 = vpack.c.b16 %v4411, %v4403
    %v5908 = vpack.c.b16 %v4412, %v4404
    %v5909 = vpack.c.b16 %v4413, %v4405
    %v5910 = vpack.c.b16 %v4414, %v4406
    %v5911 = vpack.c.b16 %v4415, %v4407
    %v5912 = vpack.c.b16 %v4416, %v4408
    %v5913 = vpack.c.b16 %v4425, %v4417
    %v5914 = vpack.c.b16 %v4426, %v4418
    %v5915 = vpack.c.b16 %v4427, %v4419
    %v5916 = vpack.c.b16 %v4428, %v4420
    %v5917 = vpack.c.b16 %v4429, %v4421
    %v5918 = vpack.c.b16 %v4430, %v4422
    %v5919 = vpack.c.b16 %v4431, %v4423
    %v5920 = vpack.c.b16 %v4432, %v4424
    %v5921 = vpack.c.b16 %v4441, %v4433
    %v5922 = vpack.c.b16 %v4442, %v4434
    %v5923 = vpack.c.b16 %v4443, %v4435
    %v5924 = vpack.c.b16 %v4444, %v4436
    %v5925 = vpack.c.b16 %v4445, %v4437
    %v5926 = vpack.c.b16 %v4446, %v4438
    %v5927 = vpack.c.b16 %v4447, %v4439
    %v5928 = vpack.c.b16 %v4448, %v4440
    %v5929 = vpack.c.b16 %v4457, %v4449
    %v5930 = vpack.c.b16 %v4458, %v4450
    %v5931 = vpack.c.b16 %v4459, %v4451
    %v5932 = vpack.c.b16 %v4460, %v4452
    %v5933 = vpack.c.b16 %v4461, %v4453
    %v5934 = vpack.c.b16 %v4462, %v4454
    %v5935 = vpack.c.b16 %v4463, %v4455
    %v5936 = vpack.c.b16 %v4464, %v4456
    %v5937 = vpack.c.b16 %v4473, %v4465
    %v5938 = vpack.c.b16 %v4474, %v4466
    %v5939 = vpack.c.b16 %v4475, %v4467
    %v5940 = vpack.c.b16 %v4476, %v4468
    %v5941 = vpack.c.b16 %v4477, %v4469
    %v5942 = vpack.c.b16 %v4478, %v4470
    %v5943 = vpack.c.b16 %v4479, %v4471
    %v5944 = vpack.c.b16 %v4480, %v4472
    %v5945 = vpack.c.b16 %v4489, %v4481
    %v5946 = vpack.c.b16 %v4490, %v4482
    %v5947 = vpack.c.b16 %v4491, %v4483
    %v5948 = vpack.c.b16 %v4492, %v4484
    %v5949 = vpack.c.b16 %v4493, %v4485
    %v5950 = vpack.c.b16 %v4494, %v4486
    %v5951 = vpack.c.b16 %v4495, %v4487
    %v5952 = vpack.c.b16 %v4496, %v4488
    %v5953 = vpack.c.b16 %v4505, %v4497
    %v5954 = vpack.c.b16 %v4506, %v4498
    %v5955 = vpack.c.b16 %v4507, %v4499
    %v5956 = vpack.c.b16 %v4508, %v4500
    %v5957 = vpack.c.b16 %v4509, %v4501
    %v5958 = vpack.c.b16 %v4510, %v4502
    %v5959 = vpack.c.b16 %v4511, %v4503
    %v5960 = vpack.c.b16 %v4512, %v4504
    %v5961 = vpack.c.b16 %v4521, %v4513
    %v5962 = vpack.c.b16 %v4522, %v4514
    %v5963 = vpack.c.b16 %v4523, %v4515
    %v5964 = vpack.c.b16 %v4524, %v4516
    %v5965 = vpack.c.b16 %v4525, %v4517
    %v5966 = vpack.c.b16 %v4526, %v4518
    %v5967 = vpack.c.b16 %v4527, %v4519
    %v5968 = vpack.c.b16 %v4528, %v4520
    %v5969 = vpack.c.b16 %v4537, %v4529
    %v5970 = vpack.c.b16 %v4538, %v4530
    %v5971 = vpack.c.b16 %v4539, %v4531
    %v5972 = vpack.c.b16 %v4540, %v4532
    %v5973 = vpack.c.b16 %v4541, %v4533
    %v5974 = vpack.c.b16 %v4542, %v4534
    %v5975 = vpack.c.b16 %v4543, %v4535
    %v5976 = vpack.c.b16 %v4544, %v4536
    %v5977 = vpack.c.b16 %v4553, %v4545
    %v5978 = vpack.c.b16 %v4554, %v4546
    %v5979 = vpack.c.b16 %v4555, %v4547
    %v5980 = vpack.c.b16 %v4556, %v4548
    %v5981 = vpack.c.b16 %v4557, %v4549
    %v5982 = vpack.c.b16 %v4558, %v4550
    %v5983 = vpack.c.b16 %v4559, %v4551
    %v5984 = vpack.c.b16 %v4560, %v4552
    %v5985 = vpack.c.b16 %v4569, %v4561
    %v5986 = vpack.c.b16 %v4570, %v4562
    %v5987 = vpack.c.b16 %v4571, %v4563
    %v5988 = vpack.c.b16 %v4572, %v4564
    %v5989 = vpack.c.b16 %v4573, %v4565
    %v5990 = vpack.c.b16 %v4574, %v4566
    %v5991 = vpack.c.b16 %v4575, %v4567
    %v5992 = vpack.c.b16 %v4576, %v4568
    %v5993 = vpack.c.b16 %v4585, %v4577
    %v5994 = vpack.c.b16 %v4586, %v4578
    %v5995 = vpack.c.b16 %v4587, %v4579
    %v5996 = vpack.c.b16 %v4588, %v4580
    %v5997 = vpack.c.b16 %v4589, %v4581
    %v5998 = vpack.c.b16 %v4590, %v4582
    %v5999 = vpack.c.b16 %v4591, %v4583
    %v6000 = vpack.c.b16 %v4592, %v4584
    %v6001 = vpack.c.b16 %v4601, %v4593
    %v6002 = vpack.c.b16 %v4602, %v4594
    %v6003 = vpack.c.b16 %v4603, %v4595
    %v6004 = vpack.c.b16 %v4604, %v4596
    %v6005 = vpack.c.b16 %v4605, %v4597
    %v6006 = vpack.c.b16 %v4606, %v4598
    %v6007 = vpack.c.b16 %v4607, %v4599
    %v6008 = vpack.c.b16 %v4608, %v4600
    %v6009 = vpack.c.b16 %v4617, %v4609
    %v6010 = vpack.c.b16 %v4618, %v4610
    %v6011 = vpack.c.b16 %v4619, %v4611
    %v6012 = vpack.c.b16 %v4620, %v4612
    %v6013 = vpack.c.b16 %v4621, %v4613
    %v6014 = vpack.c.b16 %v4622, %v4614
    %v6015 = vpack.c.b16 %v4623, %v4615
    %v6016 = vpack.c.b16 %v4624, %v4616
    %v6017 = vpack.c.b16 %v4633, %v4625
    %v6018 = vpack.c.b16 %v4634, %v4626
    %v6019 = vpack.c.b16 %v4635, %v4627
    %v6020 = vpack.c.b16 %v4636, %v4628
    %v6021 = vpack.c.b16 %v4637, %v4629
    %v6022 = vpack.c.b16 %v4638, %v4630
    %v6023 = vpack.c.b16 %v4639, %v4631
    %v6024 = vpack.c.b16 %v4640, %v4632
    %v6025 = vpack.c.b16 %v4649, %v4641
    %v6026 = vpack.c.b16 %v4650, %v4642
    %v6027 = vpack.c.b16 %v4651, %v4643
    %v6028 = vpack.c.b16 %v4652, %v4644
    %v6029 = vpack.c.b16 %v4653, %v4645
    %v6030 = vpack.c.b16 %v4654, %v4646
    %v6031 = vpack.c.b16 %v4655, %v4647
    %v6032 = vpack.c.b16 %v4656, %v4648
    %v6033 = vpack.c.b16 %v4665, %v4657
    %v6034 = vpack.c.b16 %v4666, %v4658
    %v6035 = vpack.c.b16 %v4667, %v4659
    %v6036 = vpack.c.b16 %v4668, %v4660
    %v6037 = vpack.c.b16 %v4669, %v4661
    %v6038 = vpack.c.b16 %v4670, %v4662
    %v6039 = vpack.c.b16 %v4671, %v4663
    %v6040 = vpack.c.b16 %v4672, %v4664
    %v6041 = vpack.c.b16 %v4681, %v4673
    %v6042 = vpack.c.b16 %v4682, %v4674
    %v6043 = vpack.c.b16 %v4683, %v4675
    %v6044 = vpack.c.b16 %v4684, %v4676
    %v6045 = vpack.c.b16 %v4685, %v4677
    %v6046 = vpack.c.b16 %v4686, %v4678
    %v6047 = vpack.c.b16 %v4687, %v4679
    %v6048 = vpack.c.b16 %v4688, %v4680
    %v6049 = vpack.c.b16 %v4697, %v4689
    %v6050 = vpack.c.b16 %v4698, %v4690
    %v6051 = vpack.c.b16 %v4699, %v4691
    %v6052 = vpack.c.b16 %v4700, %v4692
    %v6053 = vpack.c.b16 %v4701, %v4693
    %v6054 = vpack.c.b16 %v4702, %v4694
    %v6055 = vpack.c.b16 %v4703, %v4695
    %v6056 = vpack.c.b16 %v4704, %v4696
    %v6057 = vpack.c.b16 %v4713, %v4705
    %v6058 = vpack.c.b16 %v4714, %v4706
    %v6059 = vpack.c.b16 %v4715, %v4707
    %v6060 = vpack.c.b16 %v4716, %v4708
    %v6061 = vpack.c.b16 %v4717, %v4709
    %v6062 = vpack.c.b16 %v4718, %v4710
    %v6063 = vpack.c.b16 %v4719, %v4711
    %v6064 = vpack.c.b16 %v4720, %v4712
    %v6065 = vpack.c.b16 %v4729, %v4721
    %v6066 = vpack.c.b16 %v4730, %v4722
    %v6067 = vpack.c.b16 %v4731, %v4723
    %v6068 = vpack.c.b16 %v4732, %v4724
    %v6069 = vpack.c.b16 %v4733, %v4725
    %v6070 = vpack.c.b16 %v4734, %v4726
    %v6071 = vpack.c.b16 %v4735, %v4727
    %v6072 = vpack.c.b16 %v4736, %v4728
    %v6073 = vpack.c.b16 %v4745, %v4737
    %v6074 = vpack.c.b16 %v4746, %v4738
    %v6075 = vpack.c.b16 %v4747, %v4739
    %v6076 = vpack.c.b16 %v4748, %v4740
    %v6077 = vpack.c.b16 %v4749, %v4741
    %v6078 = vpack.c.b16 %v4750, %v4742
    %v6079 = vpack.c.b16 %v4751, %v4743
    %v6080 = vpack.c.b16 %v4752, %v4744
    %v6081 = vpack.c.b16 %v4761, %v4753
    %v6082 = vpack.c.b16 %v4762, %v4754
    %v6083 = vpack.c.b16 %v4763, %v4755
    %v6084 = vpack.c.b16 %v4764, %v4756
    %v6085 = vpack.c.b16 %v4765, %v4757
    %v6086 = vpack.c.b16 %v4766, %v4758
    %v6087 = vpack.c.b16 %v4767, %v4759
    %v6088 = vpack.c.b16 %v4768, %v4760
    %v6089 = vpack.c.b16 %v4777, %v4769
    %v6090 = vpack.c.b16 %v4778, %v4770
    %v6091 = vpack.c.b16 %v4779, %v4771
    %v6092 = vpack.c.b16 %v4780, %v4772
    %v6093 = vpack.c.b16 %v4781, %v4773
    %v6094 = vpack.c.b16 %v4782, %v4774
    %v6095 = vpack.c.b16 %v4783, %v4775
    %v6096 = vpack.c.b16 %v4784, %v4776
    %v6097 = vpack.c.b16 %v4793, %v4785
    %v6098 = vpack.c.b16 %v4794, %v4786
    %v6099 = vpack.c.b16 %v4795, %v4787
    %v6100 = vpack.c.b16 %v4796, %v4788
    %v6101 = vpack.c.b16 %v4797, %v4789
    %v6102 = vpack.c.b16 %v4798, %v4790
    %v6103 = vpack.c.b16 %v4799, %v4791
    %v6104 = vpack.c.b16 %v4800, %v4792
    %v6105 = vpack.c.b16 %v4809, %v4801
    %v6106 = vpack.c.b16 %v4810, %v4802
    %v6107 = vpack.c.b16 %v4811, %v4803
    %v6108 = vpack.c.b16 %v4812, %v4804
    %v6109 = vpack.c.b16 %v4813, %v4805
    %v6110 = vpack.c.b16 %v4814, %v4806
    %v6111 = vpack.c.b16 %v4815, %v4807
    %v6112 = vpack.c.b16 %v4816, %v4808
    %v6113 = vpack.c.b16 %v4825, %v4817
    %v6114 = vpack.c.b16 %v4826, %v4818
    %v6115 = vpack.c.b16 %v4827, %v4819
    %v6116 = vpack.c.b16 %v4828, %v4820
    %v6117 = vpack.c.b16 %v4829, %v4821
    %v6118 = vpack.c.b16 %v4830, %v4822
    %v6119 = vpack.c.b16 %v4831, %v4823
    %v6120 = vpack.c.b16 %v4832, %v4824
    %v6121 = vpack.c.b16 %v4841, %v4833
    %v6122 = vpack.c.b16 %v4842, %v4834
    %v6123 = vpack.c.b16 %v4843, %v4835
    %v6124 = vpack.c.b16 %v4844, %v4836
    %v6125 = vpack.c.b16 %v4845, %v4837
    %v6126 = vpack.c.b16 %v4846, %v4838
    %v6127 = vpack.c.b16 %v4847, %v4839
    %v6128 = vpack.c.b16 %v4848, %v4840
    %v6129 = vpack.c.b16 %v4857, %v4849
    %v6130 = vpack.c.b16 %v4858, %v4850
    %v6131 = vpack.c.b16 %v4859, %v4851
    %v6132 = vpack.c.b16 %v4860, %v4852
    %v6133 = vpack.c.b16 %v4861, %v4853
    %v6134 = vpack.c.b16 %v4862, %v4854
    %v6135 = vpack.c.b16 %v4863, %v4855
    %v6136 = vpack.c.b16 %v4864, %v4856
    %v6137 = vpack.c.b16 %v4873, %v4865
    %v6138 = vpack.c.b16 %v4874, %v4866
    %v6139 = vpack.c.b16 %v4875, %v4867
    %v6140 = vpack.c.b16 %v4876, %v4868
    %v6141 = vpack.c.b16 %v4877, %v4869
    %v6142 = vpack.c.b16 %v4878, %v4870
    %v6143 = vpack.c.b16 %v4879, %v4871
    %v6144 = vpack.c.b16 %v4880, %v4872
    %v6145 = vpack.c.b16 %v4889, %v4881
    %v6146 = vpack.c.b16 %v4890, %v4882
    %v6147 = vpack.c.b16 %v4891, %v4883
    %v6148 = vpack.c.b16 %v4892, %v4884
    %v6149 = vpack.c.b16 %v4893, %v4885
    %v6150 = vpack.c.b16 %v4894, %v4886
    %v6151 = vpack.c.b16 %v4895, %v4887
    %v6152 = vpack.c.b16 %v4896, %v4888
    %v6153 = vpack.c.b16 %v4905, %v4897
    %v6154 = vpack.c.b16 %v4906, %v4898
    %v6155 = vpack.c.b16 %v4907, %v4899
    %v6156 = vpack.c.b16 %v4908, %v4900
    %v6157 = vpack.c.b16 %v4909, %v4901
    %v6158 = vpack.c.b16 %v4910, %v4902
    %v6159 = vpack.c.b16 %v4911, %v4903
    %v6160 = vpack.c.b16 %v4912, %v4904
    %v6161 = vpack.c.b16 %v4921, %v4913
    %v6162 = vpack.c.b16 %v4922, %v4914
    %v6163 = vpack.c.b16 %v4923, %v4915
    %v6164 = vpack.c.b16 %v4924, %v4916
    %v6165 = vpack.c.b16 %v4925, %v4917
    %v6166 = vpack.c.b16 %v4926, %v4918
    %v6167 = vpack.c.b16 %v4927, %v4919
    %v6168 = vpack.c.b16 %v4928, %v4920
    %v6169 = vpack.c.b16 %v4937, %v4929
    %v6170 = vpack.c.b16 %v4938, %v4930
    %v6171 = vpack.c.b16 %v4939, %v4931
    %v6172 = vpack.c.b16 %v4940, %v4932
    %v6173 = vpack.c.b16 %v4941, %v4933
    %v6174 = vpack.c.b16 %v4942, %v4934
    %v6175 = vpack.c.b16 %v4943, %v4935
    %v6176 = vpack.c.b16 %v4944, %v4936
    %v6177 = vpack.c.b16 %v4953, %v4945
    %v6178 = vpack.c.b16 %v4954, %v4946
    %v6179 = vpack.c.b16 %v4955, %v4947
    %v6180 = vpack.c.b16 %v4956, %v4948
    %v6181 = vpack.c.b16 %v4957, %v4949
    %v6182 = vpack.c.b16 %v4958, %v4950
    %v6183 = vpack.c.b16 %v4959, %v4951
    %v6184 = vpack.c.b16 %v4960, %v4952
    %v6185 = vpack.c.b16 %v4969, %v4961
    %v6186 = vpack.c.b16 %v4970, %v4962
    %v6187 = vpack.c.b16 %v4971, %v4963
    %v6188 = vpack.c.b16 %v4972, %v4964
    %v6189 = vpack.c.b16 %v4973, %v4965
    %v6190 = vpack.c.b16 %v4974, %v4966
    %v6191 = vpack.c.b16 %v4975, %v4967
    %v6192 = vpack.c.b16 %v4976, %v4968
    %v6193 = vpack.c.b16 %v4985, %v4977
    %v6194 = vpack.c.b16 %v4986, %v4978
    %v6195 = vpack.c.b16 %v4987, %v4979
    %v6196 = vpack.c.b16 %v4988, %v4980
    %v6197 = vpack.c.b16 %v4989, %v4981
    %v6198 = vpack.c.b16 %v4990, %v4982
    %v6199 = vpack.c.b16 %v4991, %v4983
    %v6200 = vpack.c.b16 %v4992, %v4984
    %v6201 = vpack.c.b16 %v5001, %v4993
    %v6202 = vpack.c.b16 %v5002, %v4994
    %v6203 = vpack.c.b16 %v5003, %v4995
    %v6204 = vpack.c.b16 %v5004, %v4996
    %v6205 = vpack.c.b16 %v5005, %v4997
    %v6206 = vpack.c.b16 %v5006, %v4998
    %v6207 = vpack.c.b16 %v5007, %v4999
    %v6208 = vpack.c.b16 %v5008, %v5000
    %vm7409 = vcmask 785408
    %v7411 = vsel %vm7409, %v1390, 0
    %7413 = vmatprep.subr.bf16.mxu0 %v5066
    %7414 = vmatpush1.bf16.msra.mxu0 %v5065
    %7415 = vmatprep.subr.bf16.mxu0 %v5058
    %7416 = vmatpush1.bf16.msra.mxu0 %v5057
    %7417 = vmatprep.subr.bf16.mxu0 %v5050
    %7418 = vmatpush1.bf16.msra.mxu0 %v5049
    %7419 = vmatprep.subr.bf16.mxu0 %v5042
    %7420 = vmatpush1.bf16.msra.mxu0 %v5041
    %7421 = vmatprep.subr.bf16.mxu0 %v5034
    %7422 = vmatpush1.bf16.msra.mxu0 %v5033
    %7423 = vmatprep.subr.bf16.mxu0 %v5026
    %7424 = vmatpush1.bf16.msra.mxu0 %v5025
    %7425 = vmatprep.subr.bf16.mxu0 %v5018
    %7426 = vmatpush1.bf16.msra.mxu0 %v5017
    %7427 = vmatprep.subr.bf16.mxu0 %v5010
    %7428 = vmatpush1.bf16.msra.mxu0 %v5009
    %7429 = vmatprep.subr.bf16.mxu0 %v5130
    %7430 = vmatpush2.bf16.msra.mxu0 %v5129
    %7431 = vmatprep.subr.bf16.mxu0 %v5122
    %7432 = vmatpush2.bf16.msra.mxu0 %v5121
    %7433 = vmatprep.subr.bf16.mxu0 %v5114
    %7434 = vmatpush2.bf16.msra.mxu0 %v5113
    %7435 = vmatprep.subr.bf16.mxu0 %v5106
    %7436 = vmatpush2.bf16.msra.mxu0 %v5105
    %7437 = vmatprep.subr.bf16.mxu0 %v5098
    %7438 = vmatpush2.bf16.msra.mxu0 %v5097
    %7439 = vmatprep.subr.bf16.mxu0 %v5090
    %7440 = vmatpush2.bf16.msra.mxu0 %v5089
    %7441 = vmatprep.subr.bf16.mxu0 %v5082
    %7442 = vmatpush2.bf16.msra.mxu0 %v5081
    %7443 = vmatprep.subr.bf16.mxu0 %v5074
    %7444 = vmatpush2.bf16.msra.mxu0 %v5073
    %7445 = vmatprep.mubr.bf16.mxu0 %v1373
    %7446 = vmatmul.mubr.bf16.gmra.mxu0 %v1372
    %v7447 = vpop.f32.mrf.mxu0
    %v7448 = vadd.f32 %v1306, %v7447
    %v7449 = vpop.f32.mrf.mxu0
    %v7450 = vadd.f32 %v1310, %v7449
    %v7451 = vpop.f32.mrf.mxu0
    %v7452 = vpop.f32.mrf.mxu0
    %7453 = vdwg.mxu0
    %7454 = vmatprep.subr.bf16.mxu0 %v5194
    %7455 = vmatpush1.bf16.msra.mxu0 %v5193
    %7456 = vmatprep.subr.bf16.mxu0 %v5186
    %7457 = vmatpush1.bf16.msra.mxu0 %v5185
    %7458 = vmatprep.subr.bf16.mxu0 %v5178
    %7459 = vmatpush1.bf16.msra.mxu0 %v5177
    %7460 = vmatprep.subr.bf16.mxu0 %v5170
    %7461 = vmatpush1.bf16.msra.mxu0 %v5169
    %7462 = vmatprep.subr.bf16.mxu0 %v5162
    %7463 = vmatpush1.bf16.msra.mxu0 %v5161
    %7464 = vmatprep.subr.bf16.mxu0 %v5154
    %7465 = vmatpush1.bf16.msra.mxu0 %v5153
    %7466 = vmatprep.subr.bf16.mxu0 %v5146
    %7467 = vmatpush1.bf16.msra.mxu0 %v5145
    %7468 = vmatprep.subr.bf16.mxu0 %v5138
    %7469 = vmatpush1.bf16.msra.mxu0 %v5137
    %7470 = vmatprep.subr.bf16.mxu0 %v5258
    %7471 = vmatpush2.bf16.msra.mxu0 %v5257
    %7472 = vmatprep.subr.bf16.mxu0 %v5250
    %7473 = vmatpush2.bf16.msra.mxu0 %v5249
    %7474 = vmatprep.subr.bf16.mxu0 %v5242
    %7475 = vmatpush2.bf16.msra.mxu0 %v5241
    %7476 = vmatprep.subr.bf16.mxu0 %v5234
    %7477 = vmatpush2.bf16.msra.mxu0 %v5233
    %7478 = vmatprep.subr.bf16.mxu0 %v5226
    %7479 = vmatpush2.bf16.msra.mxu0 %v5225
    %7480 = vmatprep.subr.bf16.mxu0 %v5218
    %7481 = vmatpush2.bf16.msra.mxu0 %v5217
    %7482 = vmatprep.subr.bf16.mxu0 %v5210
    %7483 = vmatpush2.bf16.msra.mxu0 %v5209
    %7484 = vmatprep.subr.bf16.mxu0 %v5202
    %7485 = vmatpush2.bf16.msra.mxu0 %v5201
    %7486 = vmatprep.mubr.bf16.mxu0 %v1375
    %7487 = vmatmul.mubr.bf16.gmra.mxu0 %v1374
    %v7488 = vpop.f32.mrf.mxu0
    %v7489 = vadd.f32 %v7448, %v7488
    %v7490 = vpop.f32.mrf.mxu0
    %v7491 = vadd.f32 %v7450, %v7490
    %v7492 = vpop.f32.mrf.mxu0
    %v7493 = vpop.f32.mrf.mxu0
    %7494 = vdwg.mxu0
    %7495 = vmatprep.subr.bf16.mxu0 %v5322
    %7496 = vmatpush1.bf16.msra.mxu0 %v5321
    %7497 = vmatprep.subr.bf16.mxu0 %v5314
    %7498 = vmatpush1.bf16.msra.mxu0 %v5313
    %7499 = vmatprep.subr.bf16.mxu0 %v5306
    %7500 = vmatpush1.bf16.msra.mxu0 %v5305
    %7501 = vmatprep.subr.bf16.mxu0 %v5298
    %7502 = vmatpush1.bf16.msra.mxu0 %v5297
    %7503 = vmatprep.subr.bf16.mxu0 %v5290
    %7504 = vmatpush1.bf16.msra.mxu0 %v5289
    %7505 = vmatprep.subr.bf16.mxu0 %v5282
    %7506 = vmatpush1.bf16.msra.mxu0 %v5281
    %7507 = vmatprep.subr.bf16.mxu0 %v5274
    %7508 = vmatpush1.bf16.msra.mxu0 %v5273
    %7509 = vmatprep.subr.bf16.mxu0 %v5266
    %7510 = vmatpush1.bf16.msra.mxu0 %v5265
    %7511 = vmatprep.subr.bf16.mxu0 %v5386
    %7512 = vmatpush2.bf16.msra.mxu0 %v5385
    %7513 = vmatprep.subr.bf16.mxu0 %v5378
    %7514 = vmatpush2.bf16.msra.mxu0 %v5377
    %7515 = vmatprep.subr.bf16.mxu0 %v5370
    %7516 = vmatpush2.bf16.msra.mxu0 %v5369
    %7517 = vmatprep.subr.bf16.mxu0 %v5362
    %7518 = vmatpush2.bf16.msra.mxu0 %v5361
    %7519 = vmatprep.subr.bf16.mxu0 %v5354
    %7520 = vmatpush2.bf16.msra.mxu0 %v5353
    %7521 = vmatprep.subr.bf16.mxu0 %v5346
    %7522 = vmatpush2.bf16.msra.mxu0 %v5345
    %7523 = vmatprep.subr.bf16.mxu0 %v5338
    %7524 = vmatpush2.bf16.msra.mxu0 %v5337
    %7525 = vmatprep.subr.bf16.mxu0 %v5330
    %7526 = vmatpush2.bf16.msra.mxu0 %v5329
    %7527 = vmatprep.mubr.bf16.mxu0 %v1377
    %7528 = vmatmul.mubr.bf16.gmra.mxu0 %v1376
    %v7529 = vpop.f32.mrf.mxu0
    %v7530 = vadd.f32 %v7489, %v7529
    %v7531 = vpop.f32.mrf.mxu0
    %v7532 = vadd.f32 %v7491, %v7531
    %v7533 = vpop.f32.mrf.mxu0
    %v7534 = vpop.f32.mrf.mxu0
    %7535 = vdwg.mxu0
    %7536 = vmatprep.subr.bf16.mxu0 %v5450
    %7537 = vmatpush1.bf16.msra.mxu0 %v5449
    %7538 = vmatprep.subr.bf16.mxu0 %v5442
    %7539 = vmatpush1.bf16.msra.mxu0 %v5441
    %7540 = vmatprep.subr.bf16.mxu0 %v5434
    %7541 = vmatpush1.bf16.msra.mxu0 %v5433
    %7542 = vmatprep.subr.bf16.mxu0 %v5426
    %7543 = vmatpush1.bf16.msra.mxu0 %v5425
    %7544 = vmatprep.subr.bf16.mxu0 %v5418
    %7545 = vmatpush1.bf16.msra.mxu0 %v5417
    %7546 = vmatprep.subr.bf16.mxu0 %v5410
    %7547 = vmatpush1.bf16.msra.mxu0 %v5409
    %7548 = vmatprep.subr.bf16.mxu0 %v5402
    %7549 = vmatpush1.bf16.msra.mxu0 %v5401
    %7550 = vmatprep.subr.bf16.mxu0 %v5394
    %7551 = vmatpush1.bf16.msra.mxu0 %v5393
    %7552 = vmatprep.subr.bf16.mxu0 %v5514
    %7553 = vmatpush2.bf16.msra.mxu0 %v5513
    %7554 = vmatprep.subr.bf16.mxu0 %v5506
    %7555 = vmatpush2.bf16.msra.mxu0 %v5505
    %7556 = vmatprep.subr.bf16.mxu0 %v5498
    %7557 = vmatpush2.bf16.msra.mxu0 %v5497
    %7558 = vmatprep.subr.bf16.mxu0 %v5490
    %7559 = vmatpush2.bf16.msra.mxu0 %v5489
    %7560 = vmatprep.subr.bf16.mxu0 %v5482
    %7561 = vmatpush2.bf16.msra.mxu0 %v5481
    %7562 = vmatprep.subr.bf16.mxu0 %v5474
    %7563 = vmatpush2.bf16.msra.mxu0 %v5473
    %7564 = vmatprep.subr.bf16.mxu0 %v5466
    %7565 = vmatpush2.bf16.msra.mxu0 %v5465
    %7566 = vmatprep.subr.bf16.mxu0 %v5458
    %7567 = vmatpush2.bf16.msra.mxu0 %v5457
    %7568 = vmatprep.mubr.bf16.mxu0 %v1379
    %7569 = vmatmul.mubr.bf16.gmra.mxu0 %v1378
    %v7570 = vpop.f32.mrf.mxu0
    %v7571 = vadd.f32 %v7530, %v7570
    %v7572 = vpop.f32.mrf.mxu0
    %v7573 = vadd.f32 %v7532, %v7572
    %v7574 = vpop.f32.mrf.mxu0
    %v7575 = vpop.f32.mrf.mxu0
    %7576 = vdwg.mxu0
    %7577 = vmatprep.subr.bf16.mxu0 %v5578
    %7578 = vmatpush1.bf16.msra.mxu0 %v5577
    %7579 = vmatprep.subr.bf16.mxu0 %v5570
    %7580 = vmatpush1.bf16.msra.mxu0 %v5569
    %7581 = vmatprep.subr.bf16.mxu0 %v5562
    %7582 = vmatpush1.bf16.msra.mxu0 %v5561
    %7583 = vmatprep.subr.bf16.mxu0 %v5554
    %7584 = vmatpush1.bf16.msra.mxu0 %v5553
    %7585 = vmatprep.subr.bf16.mxu0 %v5546
    %7586 = vmatpush1.bf16.msra.mxu0 %v5545
    %7587 = vmatprep.subr.bf16.mxu0 %v5538
    %7588 = vmatpush1.bf16.msra.mxu0 %v5537
    %7589 = vmatprep.subr.bf16.mxu0 %v5530
    %7590 = vmatpush1.bf16.msra.mxu0 %v5529
    %7591 = vmatprep.subr.bf16.mxu0 %v5522
    %7592 = vmatpush1.bf16.msra.mxu0 %v5521
    %7593 = vmatprep.subr.bf16.mxu0 %v5642
    %7594 = vmatpush2.bf16.msra.mxu0 %v5641
    %7595 = vmatprep.subr.bf16.mxu0 %v5634
    %7596 = vmatpush2.bf16.msra.mxu0 %v5633
    %7597 = vmatprep.subr.bf16.mxu0 %v5626
    %7598 = vmatpush2.bf16.msra.mxu0 %v5625
    %7599 = vmatprep.subr.bf16.mxu0 %v5618
    %7600 = vmatpush2.bf16.msra.mxu0 %v5617
    %7601 = vmatprep.subr.bf16.mxu0 %v5610
    %7602 = vmatpush2.bf16.msra.mxu0 %v5609
    %7603 = vmatprep.subr.bf16.mxu0 %v5602
    %7604 = vmatpush2.bf16.msra.mxu0 %v5601
    %7605 = vmatprep.subr.bf16.mxu0 %v5594
    %7606 = vmatpush2.bf16.msra.mxu0 %v5593
    %7607 = vmatprep.subr.bf16.mxu0 %v5586
    %7608 = vmatpush2.bf16.msra.mxu0 %v5585
    %7609 = vmatprep.mubr.bf16.mxu0 %v1381
    %7610 = vmatmul.mubr.bf16.gmra.mxu0 %v1380
    %v7611 = vpop.f32.mrf.mxu0
    %v7612 = vadd.f32 %v7571, %v7611
    %v7613 = vpop.f32.mrf.mxu0
    %v7614 = vadd.f32 %v7573, %v7613
    %v7615 = vpop.f32.mrf.mxu0
    %v7616 = vpop.f32.mrf.mxu0
    %7617 = vdwg.mxu0
    %7618 = vmatprep.subr.bf16.mxu0 %v5706
    %7619 = vmatpush1.bf16.msra.mxu0 %v5705
    %7620 = vmatprep.subr.bf16.mxu0 %v5698
    %7621 = vmatpush1.bf16.msra.mxu0 %v5697
    %7622 = vmatprep.subr.bf16.mxu0 %v5690
    %7623 = vmatpush1.bf16.msra.mxu0 %v5689
    %7624 = vmatprep.subr.bf16.mxu0 %v5682
    %7625 = vmatpush1.bf16.msra.mxu0 %v5681
    %7626 = vmatprep.subr.bf16.mxu0 %v5674
    %7627 = vmatpush1.bf16.msra.mxu0 %v5673
    %7628 = vmatprep.subr.bf16.mxu0 %v5666
    %7629 = vmatpush1.bf16.msra.mxu0 %v5665
    %7630 = vmatprep.subr.bf16.mxu0 %v5658
    %7631 = vmatpush1.bf16.msra.mxu0 %v5657
    %7632 = vmatprep.subr.bf16.mxu0 %v5650
    %7633 = vmatpush1.bf16.msra.mxu0 %v5649
    %7634 = vmatprep.subr.bf16.mxu0 %v5770
    %7635 = vmatpush2.bf16.msra.mxu0 %v5769
    %7636 = vmatprep.subr.bf16.mxu0 %v5762
    %7637 = vmatpush2.bf16.msra.mxu0 %v5761
    %7638 = vmatprep.subr.bf16.mxu0 %v5754
    %7639 = vmatpush2.bf16.msra.mxu0 %v5753
    %7640 = vmatprep.subr.bf16.mxu0 %v5746
    %7641 = vmatpush2.bf16.msra.mxu0 %v5745
    %7642 = vmatprep.subr.bf16.mxu0 %v5738
    %7643 = vmatpush2.bf16.msra.mxu0 %v5737
    %7644 = vmatprep.subr.bf16.mxu0 %v5730
    %7645 = vmatpush2.bf16.msra.mxu0 %v5729
    %7646 = vmatprep.subr.bf16.mxu0 %v5722
    %7647 = vmatpush2.bf16.msra.mxu0 %v5721
    %7648 = vmatprep.subr.bf16.mxu0 %v5714
    %7649 = vmatpush2.bf16.msra.mxu0 %v5713
    %7650 = vmatprep.mubr.bf16.mxu0 %v1383
    %7651 = vmatmul.mubr.bf16.gmra.mxu0 %v1382
    %v7652 = vpop.f32.mrf.mxu0
    %v7653 = vadd.f32 %v7612, %v7652
    %v7654 = vpop.f32.mrf.mxu0
    %v7655 = vadd.f32 %v7614, %v7654
    %v7656 = vpop.f32.mrf.mxu0
    %v7657 = vpop.f32.mrf.mxu0
    %7658 = vdwg.mxu0
    %7659 = vmatprep.subr.bf16.mxu0 %v5834
    %7660 = vmatpush1.bf16.msra.mxu0 %v5833
    %7661 = vmatprep.subr.bf16.mxu0 %v5826
    %7662 = vmatpush1.bf16.msra.mxu0 %v5825
    %7663 = vmatprep.subr.bf16.mxu0 %v5818
    %7664 = vmatpush1.bf16.msra.mxu0 %v5817
    %7665 = vmatprep.subr.bf16.mxu0 %v5810
    %7666 = vmatpush1.bf16.msra.mxu0 %v5809
    %7667 = vmatprep.subr.bf16.mxu0 %v5802
    %7668 = vmatpush1.bf16.msra.mxu0 %v5801
    %7669 = vmatprep.subr.bf16.mxu0 %v5794
    %7670 = vmatpush1.bf16.msra.mxu0 %v5793
    %7671 = vmatprep.subr.bf16.mxu0 %v5786
    %7672 = vmatpush1.bf16.msra.mxu0 %v5785
    %7673 = vmatprep.subr.bf16.mxu0 %v5778
    %7674 = vmatpush1.bf16.msra.mxu0 %v5777
    %7675 = vmatprep.subr.bf16.mxu0 %v5898
    %7676 = vmatpush2.bf16.msra.mxu0 %v5897
    %7677 = vmatprep.subr.bf16.mxu0 %v5890
    %7678 = vmatpush2.bf16.msra.mxu0 %v5889
    %7679 = vmatprep.subr.bf16.mxu0 %v5882
    %7680 = vmatpush2.bf16.msra.mxu0 %v5881
    %7681 = vmatprep.subr.bf16.mxu0 %v5874
    %7682 = vmatpush2.bf16.msra.mxu0 %v5873
    %7683 = vmatprep.subr.bf16.mxu0 %v5866
    %7684 = vmatpush2.bf16.msra.mxu0 %v5865
    %7685 = vmatprep.subr.bf16.mxu0 %v5858
    %7686 = vmatpush2.bf16.msra.mxu0 %v5857
    %7687 = vmatprep.subr.bf16.mxu0 %v5850
    %7688 = vmatpush2.bf16.msra.mxu0 %v5849
    %7689 = vmatprep.subr.bf16.mxu0 %v5842
    %7690 = vmatpush2.bf16.msra.mxu0 %v5841
    %7691 = vmatprep.mubr.bf16.mxu0 %v1385
    %7692 = vmatmul.mubr.bf16.gmra.mxu0 %v1384
    %v7693 = vpop.f32.mrf.mxu0
    %v7694 = vadd.f32 %v7653, %v7693
    %v7695 = vpop.f32.mrf.mxu0
    %v7696 = vadd.f32 %v7655, %v7695
    %v7697 = vpop.f32.mrf.mxu0
    %v7698 = vpop.f32.mrf.mxu0
    %7699 = vdwg.mxu0
    %7700 = vmatprep.subr.bf16.mxu0 %v5962
    %7701 = vmatpush1.bf16.msra.mxu0 %v5961
    %7702 = vmatprep.subr.bf16.mxu0 %v5954
    %7703 = vmatpush1.bf16.msra.mxu0 %v5953
    %7704 = vmatprep.subr.bf16.mxu0 %v5946
    %7705 = vmatpush1.bf16.msra.mxu0 %v5945
    %7706 = vmatprep.subr.bf16.mxu0 %v5938
    %7707 = vmatpush1.bf16.msra.mxu0 %v5937
    %7708 = vmatprep.subr.bf16.mxu0 %v5930
    %7709 = vmatpush1.bf16.msra.mxu0 %v5929
    %7710 = vmatprep.subr.bf16.mxu0 %v5922
    %7711 = vmatpush1.bf16.msra.mxu0 %v5921
    %7712 = vmatprep.subr.bf16.mxu0 %v5914
    %7713 = vmatpush1.bf16.msra.mxu0 %v5913
    %7714 = vmatprep.subr.bf16.mxu0 %v5906
    %7715 = vmatpush1.bf16.msra.mxu0 %v5905
    %7716 = vmatprep.subr.bf16.mxu0 %v6026
    %7717 = vmatpush2.bf16.msra.mxu0 %v6025
    %7718 = vmatprep.subr.bf16.mxu0 %v6018
    %7719 = vmatpush2.bf16.msra.mxu0 %v6017
    %7720 = vmatprep.subr.bf16.mxu0 %v6010
    %7721 = vmatpush2.bf16.msra.mxu0 %v6009
    %7722 = vmatprep.subr.bf16.mxu0 %v6002
    %7723 = vmatpush2.bf16.msra.mxu0 %v6001
    %7724 = vmatprep.subr.bf16.mxu0 %v5994
    %7725 = vmatpush2.bf16.msra.mxu0 %v5993
    %7726 = vmatprep.subr.bf16.mxu0 %v5986
    %7727 = vmatpush2.bf16.msra.mxu0 %v5985
    %7728 = vmatprep.subr.bf16.mxu0 %v5978
    %7729 = vmatpush2.bf16.msra.mxu0 %v5977
    %7730 = vmatprep.subr.bf16.mxu0 %v5970
    %7731 = vmatpush2.bf16.msra.mxu0 %v5969
    %7732 = vmatprep.mubr.bf16.mxu0 %v1387
    %7733 = vmatmul.mubr.bf16.gmra.mxu0 %v1386
    %v7734 = vpop.f32.mrf.mxu0
    %v7735 = vadd.f32 %v7694, %v7734
    %v7736 = vpop.f32.mrf.mxu0
    %v7737 = vadd.f32 %v7696, %v7736
    %v7738 = vpop.f32.mrf.mxu0
    %v7739 = vpop.f32.mrf.mxu0
    %7740 = vdwg.mxu0
    %7741 = vmatprep.subr.bf16.mxu0 %v6090
    %7742 = vmatpush1.bf16.msra.mxu0 %v6089
    %7743 = vmatprep.subr.bf16.mxu0 %v6082
    %7744 = vmatpush1.bf16.msra.mxu0 %v6081
    %7745 = vmatprep.subr.bf16.mxu0 %v6074
    %7746 = vmatpush1.bf16.msra.mxu0 %v6073
    %7747 = vmatprep.subr.bf16.mxu0 %v6066
    %7748 = vmatpush1.bf16.msra.mxu0 %v6065
    %7749 = vmatprep.subr.bf16.mxu0 %v6058
    %7750 = vmatpush1.bf16.msra.mxu0 %v6057
    %7751 = vmatprep.subr.bf16.mxu0 %v6050
    %7752 = vmatpush1.bf16.msra.mxu0 %v6049
    %7753 = vmatprep.subr.bf16.mxu0 %v6042
    %7754 = vmatpush1.bf16.msra.mxu0 %v6041
    %7755 = vmatprep.subr.bf16.mxu0 %v6034
    %7756 = vmatpush1.bf16.msra.mxu0 %v6033
    %7757 = vmatprep.subr.bf16.mxu0 %v6154
    %7758 = vmatpush2.bf16.msra.mxu0 %v6153
    %7759 = vmatprep.subr.bf16.mxu0 %v6146
    %7760 = vmatpush2.bf16.msra.mxu0 %v6145
    %7761 = vmatprep.subr.bf16.mxu0 %v6138
    %7762 = vmatpush2.bf16.msra.mxu0 %v6137
    %7763 = vmatprep.subr.bf16.mxu0 %v6130
    %7764 = vmatpush2.bf16.msra.mxu0 %v6129
    %7765 = vmatprep.subr.bf16.mxu0 %v6122
    %7766 = vmatpush2.bf16.msra.mxu0 %v6121
    %7767 = vmatprep.subr.bf16.mxu0 %v6114
    %7768 = vmatpush2.bf16.msra.mxu0 %v6113
    %7769 = vmatprep.subr.bf16.mxu0 %v6106
    %7770 = vmatpush2.bf16.msra.mxu0 %v6105
    %7771 = vmatprep.subr.bf16.mxu0 %v6098
    %7772 = vmatpush2.bf16.msra.mxu0 %v6097
    %7773 = vmatprep.mubr.bf16.mxu0 %v1389
    %7774 = vmatmul.mubr.bf16.gmra.mxu0 %v1388
    %v7775 = vpop.f32.mrf.mxu0
    %v7776 = vadd.f32 %v7735, %v7775
    %v7777 = vpop.f32.mrf.mxu0
    %v7778 = vadd.f32 %v7737, %v7777
    %v7779 = vpop.f32.mrf.mxu0
    %v7780 = vpop.f32.mrf.mxu0
    %7781 = vdwg.mxu0
    %7782 = vmatprep.subr.bf16.mxu0 0
    %7783 = vmatpush1.bf16.msra.mxu0 0
    %7784 = vmatprep.subr.bf16.mxu0 0
    %7785 = vmatpush1.bf16.msra.mxu0 0
    %7786 = vmatprep.subr.bf16.mxu0 %v6202
    %7787 = vmatpush1.bf16.msra.mxu0 %v6201
    %7788 = vmatprep.subr.bf16.mxu0 %v6194
    %7789 = vmatpush1.bf16.msra.mxu0 %v6193
    %7790 = vmatprep.subr.bf16.mxu0 %v6186
    %7791 = vmatpush1.bf16.msra.mxu0 %v6185
    %7792 = vmatprep.subr.bf16.mxu0 %v6178
    %7793 = vmatpush1.bf16.msra.mxu0 %v6177
    %7794 = vmatprep.subr.bf16.mxu0 %v6170
    %7795 = vmatpush1.bf16.msra.mxu0 %v6169
    %7796 = vmatprep.subr.bf16.mxu0 %v6162
    %7797 = vmatpush1.bf16.msra.mxu0 %v6161
    %7798 = vmatprep.subr.bf16.mxu0 0
    %7799 = vmatpush2.bf16.msra.mxu0 0
    %7800 = vmatprep.subr.bf16.mxu0 0
    %7801 = vmatpush2.bf16.msra.mxu0 0
    %7802 = vmatprep.subr.bf16.mxu0 0
    %7803 = vmatpush2.bf16.msra.mxu0 0
    %7804 = vmatprep.subr.bf16.mxu0 0
    %7805 = vmatpush2.bf16.msra.mxu0 0
    %7806 = vmatprep.subr.bf16.mxu0 0
    %7807 = vmatpush2.bf16.msra.mxu0 0
    %7808 = vmatprep.subr.bf16.mxu0 0
    %7809 = vmatpush2.bf16.msra.mxu0 0
    %7810 = vmatprep.subr.bf16.mxu0 0
    %7811 = vmatpush2.bf16.msra.mxu0 0
    %7812 = vmatprep.subr.bf16.mxu0 0
    %7813 = vmatpush2.bf16.msra.mxu0 0
    %7814 = vmatprep.mubr.bf16.mxu0 0
    %7815 = vmatmul.mubr.bf16.gmra.mxu0 %v7411
    %v7816 = vpop.f32.mrf.mxu0
    %v7817 = vadd.f32 %v7776, %v7816
    %v7818 = vpop.f32.mrf.mxu0
    %v7819 = vadd.f32 %v7778, %v7818
    %v7820 = vpop.f32.mrf.mxu0
    %v7821 = vpop.f32.mrf.mxu0
    %7822 = vdwg.mxu0
    %7823 = vmatprep.subr.bf16.mxu0 %v5068
    %7824 = vmatpush1.bf16.msra.mxu0 %v5067
    %7825 = vmatprep.subr.bf16.mxu0 %v5060
    %7826 = vmatpush1.bf16.msra.mxu0 %v5059
    %7827 = vmatprep.subr.bf16.mxu0 %v5052
    %7828 = vmatpush1.bf16.msra.mxu0 %v5051
    %7829 = vmatprep.subr.bf16.mxu0 %v5044
    %7830 = vmatpush1.bf16.msra.mxu0 %v5043
    %7831 = vmatprep.subr.bf16.mxu0 %v5036
    %7832 = vmatpush1.bf16.msra.mxu0 %v5035
    %7833 = vmatprep.subr.bf16.mxu0 %v5028
    %7834 = vmatpush1.bf16.msra.mxu0 %v5027
    %7835 = vmatprep.subr.bf16.mxu0 %v5020
    %7836 = vmatpush1.bf16.msra.mxu0 %v5019
    %7837 = vmatprep.subr.bf16.mxu0 %v5012
    %7838 = vmatpush1.bf16.msra.mxu0 %v5011
    %7839 = vmatprep.subr.bf16.mxu0 %v5132
    %7840 = vmatpush2.bf16.msra.mxu0 %v5131
    %7841 = vmatprep.subr.bf16.mxu0 %v5124
    %7842 = vmatpush2.bf16.msra.mxu0 %v5123
    %7843 = vmatprep.subr.bf16.mxu0 %v5116
    %7844 = vmatpush2.bf16.msra.mxu0 %v5115
    %7845 = vmatprep.subr.bf16.mxu0 %v5108
    %7846 = vmatpush2.bf16.msra.mxu0 %v5107
    %7847 = vmatprep.subr.bf16.mxu0 %v5100
    %7848 = vmatpush2.bf16.msra.mxu0 %v5099
    %7849 = vmatprep.subr.bf16.mxu0 %v5092
    %7850 = vmatpush2.bf16.msra.mxu0 %v5091
    %7851 = vmatprep.subr.bf16.mxu0 %v5084
    %7852 = vmatpush2.bf16.msra.mxu0 %v5083
    %7853 = vmatprep.subr.bf16.mxu0 %v5076
    %7854 = vmatpush2.bf16.msra.mxu0 %v5075
    %7855 = vmatprep.mubr.bf16.mxu0 %v1373
    %7856 = vmatmul.mubr.bf16.gmra.mxu0 %v1372
    %v7857 = vpop.f32.mrf.mxu0
    %v7858 = vadd.f32 %v1314, %v7857
    %v7859 = vpop.f32.mrf.mxu0
    %v7860 = vadd.f32 %v1318, %v7859
    %v7861 = vpop.f32.mrf.mxu0
    %v7862 = vpop.f32.mrf.mxu0
    %7863 = vdwg.mxu0
    %7864 = vmatprep.subr.bf16.mxu0 %v5196
    %7865 = vmatpush1.bf16.msra.mxu0 %v5195
    %7866 = vmatprep.subr.bf16.mxu0 %v5188
    %7867 = vmatpush1.bf16.msra.mxu0 %v5187
    %7868 = vmatprep.subr.bf16.mxu0 %v5180
    %7869 = vmatpush1.bf16.msra.mxu0 %v5179
    %7870 = vmatprep.subr.bf16.mxu0 %v5172
    %7871 = vmatpush1.bf16.msra.mxu0 %v5171
    %7872 = vmatprep.subr.bf16.mxu0 %v5164
    %7873 = vmatpush1.bf16.msra.mxu0 %v5163
    %7874 = vmatprep.subr.bf16.mxu0 %v5156
    %7875 = vmatpush1.bf16.msra.mxu0 %v5155
    %7876 = vmatprep.subr.bf16.mxu0 %v5148
    %7877 = vmatpush1.bf16.msra.mxu0 %v5147
    %7878 = vmatprep.subr.bf16.mxu0 %v5140
    %7879 = vmatpush1.bf16.msra.mxu0 %v5139
    %7880 = vmatprep.subr.bf16.mxu0 %v5260
    %7881 = vmatpush2.bf16.msra.mxu0 %v5259
    %7882 = vmatprep.subr.bf16.mxu0 %v5252
    %7883 = vmatpush2.bf16.msra.mxu0 %v5251
    %7884 = vmatprep.subr.bf16.mxu0 %v5244
    %7885 = vmatpush2.bf16.msra.mxu0 %v5243
    %7886 = vmatprep.subr.bf16.mxu0 %v5236
    %7887 = vmatpush2.bf16.msra.mxu0 %v5235
    %7888 = vmatprep.subr.bf16.mxu0 %v5228
    %7889 = vmatpush2.bf16.msra.mxu0 %v5227
    %7890 = vmatprep.subr.bf16.mxu0 %v5220
    %7891 = vmatpush2.bf16.msra.mxu0 %v5219
    %7892 = vmatprep.subr.bf16.mxu0 %v5212
    %7893 = vmatpush2.bf16.msra.mxu0 %v5211
    %7894 = vmatprep.subr.bf16.mxu0 %v5204
    %7895 = vmatpush2.bf16.msra.mxu0 %v5203
    %7896 = vmatprep.mubr.bf16.mxu0 %v1375
    %7897 = vmatmul.mubr.bf16.gmra.mxu0 %v1374
    %v7898 = vpop.f32.mrf.mxu0
    %v7899 = vadd.f32 %v7858, %v7898
    %v7900 = vpop.f32.mrf.mxu0
    %v7901 = vadd.f32 %v7860, %v7900
    %v7902 = vpop.f32.mrf.mxu0
    %v7903 = vpop.f32.mrf.mxu0
    %7904 = vdwg.mxu0
    %7905 = vmatprep.subr.bf16.mxu0 %v5324
    %7906 = vmatpush1.bf16.msra.mxu0 %v5323
    %7907 = vmatprep.subr.bf16.mxu0 %v5316
    %7908 = vmatpush1.bf16.msra.mxu0 %v5315
    %7909 = vmatprep.subr.bf16.mxu0 %v5308
    %7910 = vmatpush1.bf16.msra.mxu0 %v5307
    %7911 = vmatprep.subr.bf16.mxu0 %v5300
    %7912 = vmatpush1.bf16.msra.mxu0 %v5299
    %7913 = vmatprep.subr.bf16.mxu0 %v5292
    %7914 = vmatpush1.bf16.msra.mxu0 %v5291
    %7915 = vmatprep.subr.bf16.mxu0 %v5284
    %7916 = vmatpush1.bf16.msra.mxu0 %v5283
    %7917 = vmatprep.subr.bf16.mxu0 %v5276
    %7918 = vmatpush1.bf16.msra.mxu0 %v5275
    %7919 = vmatprep.subr.bf16.mxu0 %v5268
    %7920 = vmatpush1.bf16.msra.mxu0 %v5267
    %7921 = vmatprep.subr.bf16.mxu0 %v5388
    %7922 = vmatpush2.bf16.msra.mxu0 %v5387
    %7923 = vmatprep.subr.bf16.mxu0 %v5380
    %7924 = vmatpush2.bf16.msra.mxu0 %v5379
    %7925 = vmatprep.subr.bf16.mxu0 %v5372
    %7926 = vmatpush2.bf16.msra.mxu0 %v5371
    %7927 = vmatprep.subr.bf16.mxu0 %v5364
    %7928 = vmatpush2.bf16.msra.mxu0 %v5363
    %7929 = vmatprep.subr.bf16.mxu0 %v5356
    %7930 = vmatpush2.bf16.msra.mxu0 %v5355
    %7931 = vmatprep.subr.bf16.mxu0 %v5348
    %7932 = vmatpush2.bf16.msra.mxu0 %v5347
    %7933 = vmatprep.subr.bf16.mxu0 %v5340
    %7934 = vmatpush2.bf16.msra.mxu0 %v5339
    %7935 = vmatprep.subr.bf16.mxu0 %v5332
    %7936 = vmatpush2.bf16.msra.mxu0 %v5331
    %7937 = vmatprep.mubr.bf16.mxu0 %v1377
    %7938 = vmatmul.mubr.bf16.gmra.mxu0 %v1376
    %v7939 = vpop.f32.mrf.mxu0
    %v7940 = vadd.f32 %v7899, %v7939
    %v7941 = vpop.f32.mrf.mxu0
    %v7942 = vadd.f32 %v7901, %v7941
    %v7943 = vpop.f32.mrf.mxu0
    %v7944 = vpop.f32.mrf.mxu0
    %7945 = vdwg.mxu0
    %7946 = vmatprep.subr.bf16.mxu0 %v5452
    %7947 = vmatpush1.bf16.msra.mxu0 %v5451
    %7948 = vmatprep.subr.bf16.mxu0 %v5444
    %7949 = vmatpush1.bf16.msra.mxu0 %v5443
    %7950 = vmatprep.subr.bf16.mxu0 %v5436
    %7951 = vmatpush1.bf16.msra.mxu0 %v5435
    %7952 = vmatprep.subr.bf16.mxu0 %v5428
    %7953 = vmatpush1.bf16.msra.mxu0 %v5427
    %7954 = vmatprep.subr.bf16.mxu0 %v5420
    %7955 = vmatpush1.bf16.msra.mxu0 %v5419
    %7956 = vmatprep.subr.bf16.mxu0 %v5412
    %7957 = vmatpush1.bf16.msra.mxu0 %v5411
    %7958 = vmatprep.subr.bf16.mxu0 %v5404
    %7959 = vmatpush1.bf16.msra.mxu0 %v5403
    %7960 = vmatprep.subr.bf16.mxu0 %v5396
    %7961 = vmatpush1.bf16.msra.mxu0 %v5395
    %7962 = vmatprep.subr.bf16.mxu0 %v5516
    %7963 = vmatpush2.bf16.msra.mxu0 %v5515
    %7964 = vmatprep.subr.bf16.mxu0 %v5508
    %7965 = vmatpush2.bf16.msra.mxu0 %v5507
    %7966 = vmatprep.subr.bf16.mxu0 %v5500
    %7967 = vmatpush2.bf16.msra.mxu0 %v5499
    %7968 = vmatprep.subr.bf16.mxu0 %v5492
    %7969 = vmatpush2.bf16.msra.mxu0 %v5491
    %7970 = vmatprep.subr.bf16.mxu0 %v5484
    %7971 = vmatpush2.bf16.msra.mxu0 %v5483
    %7972 = vmatprep.subr.bf16.mxu0 %v5476
    %7973 = vmatpush2.bf16.msra.mxu0 %v5475
    %7974 = vmatprep.subr.bf16.mxu0 %v5468
    %7975 = vmatpush2.bf16.msra.mxu0 %v5467
    %7976 = vmatprep.subr.bf16.mxu0 %v5460
    %7977 = vmatpush2.bf16.msra.mxu0 %v5459
    %7978 = vmatprep.mubr.bf16.mxu0 %v1379
    %7979 = vmatmul.mubr.bf16.gmra.mxu0 %v1378
    %v7980 = vpop.f32.mrf.mxu0
    %v7981 = vadd.f32 %v7940, %v7980
    %v7982 = vpop.f32.mrf.mxu0
    %v7983 = vadd.f32 %v7942, %v7982
    %v7984 = vpop.f32.mrf.mxu0
    %v7985 = vpop.f32.mrf.mxu0
    %7986 = vdwg.mxu0
    %7987 = vmatprep.subr.bf16.mxu0 %v5580
    %7988 = vmatpush1.bf16.msra.mxu0 %v5579
    %7989 = vmatprep.subr.bf16.mxu0 %v5572
    %7990 = vmatpush1.bf16.msra.mxu0 %v5571
    %7991 = vmatprep.subr.bf16.mxu0 %v5564
    %7992 = vmatpush1.bf16.msra.mxu0 %v5563
    %7993 = vmatprep.subr.bf16.mxu0 %v5556
    %7994 = vmatpush1.bf16.msra.mxu0 %v5555
    %7995 = vmatprep.subr.bf16.mxu0 %v5548
    %7996 = vmatpush1.bf16.msra.mxu0 %v5547
    %7997 = vmatprep.subr.bf16.mxu0 %v5540
    %7998 = vmatpush1.bf16.msra.mxu0 %v5539
    %7999 = vmatprep.subr.bf16.mxu0 %v5532
    %8000 = vmatpush1.bf16.msra.mxu0 %v5531
    %8001 = vmatprep.subr.bf16.mxu0 %v5524
    %8002 = vmatpush1.bf16.msra.mxu0 %v5523
    %8003 = vmatprep.subr.bf16.mxu0 %v5644
    %8004 = vmatpush2.bf16.msra.mxu0 %v5643
    %8005 = vmatprep.subr.bf16.mxu0 %v5636
    %8006 = vmatpush2.bf16.msra.mxu0 %v5635
    %8007 = vmatprep.subr.bf16.mxu0 %v5628
    %8008 = vmatpush2.bf16.msra.mxu0 %v5627
    %8009 = vmatprep.subr.bf16.mxu0 %v5620
    %8010 = vmatpush2.bf16.msra.mxu0 %v5619
    %8011 = vmatprep.subr.bf16.mxu0 %v5612
    %8012 = vmatpush2.bf16.msra.mxu0 %v5611
    %8013 = vmatprep.subr.bf16.mxu0 %v5604
    %8014 = vmatpush2.bf16.msra.mxu0 %v5603
    %8015 = vmatprep.subr.bf16.mxu0 %v5596
    %8016 = vmatpush2.bf16.msra.mxu0 %v5595
    %8017 = vmatprep.subr.bf16.mxu0 %v5588
    %8018 = vmatpush2.bf16.msra.mxu0 %v5587
    %8019 = vmatprep.mubr.bf16.mxu0 %v1381
    %8020 = vmatmul.mubr.bf16.gmra.mxu0 %v1380
    %v8021 = vpop.f32.mrf.mxu0
    %v8022 = vadd.f32 %v7981, %v8021
    %v8023 = vpop.f32.mrf.mxu0
    %v8024 = vadd.f32 %v7983, %v8023
    %v8025 = vpop.f32.mrf.mxu0
    %v8026 = vpop.f32.mrf.mxu0
    %8027 = vdwg.mxu0
    %8028 = vmatprep.subr.bf16.mxu0 %v5708
    %8029 = vmatpush1.bf16.msra.mxu0 %v5707
    %8030 = vmatprep.subr.bf16.mxu0 %v5700
    %8031 = vmatpush1.bf16.msra.mxu0 %v5699
    %8032 = vmatprep.subr.bf16.mxu0 %v5692
    %8033 = vmatpush1.bf16.msra.mxu0 %v5691
    %8034 = vmatprep.subr.bf16.mxu0 %v5684
    %8035 = vmatpush1.bf16.msra.mxu0 %v5683
    %8036 = vmatprep.subr.bf16.mxu0 %v5676
    %8037 = vmatpush1.bf16.msra.mxu0 %v5675
    %8038 = vmatprep.subr.bf16.mxu0 %v5668
    %8039 = vmatpush1.bf16.msra.mxu0 %v5667
    %8040 = vmatprep.subr.bf16.mxu0 %v5660
    %8041 = vmatpush1.bf16.msra.mxu0 %v5659
    %8042 = vmatprep.subr.bf16.mxu0 %v5652
    %8043 = vmatpush1.bf16.msra.mxu0 %v5651
    %8044 = vmatprep.subr.bf16.mxu0 %v5772
    %8045 = vmatpush2.bf16.msra.mxu0 %v5771
    %8046 = vmatprep.subr.bf16.mxu0 %v5764
    %8047 = vmatpush2.bf16.msra.mxu0 %v5763
    %8048 = vmatprep.subr.bf16.mxu0 %v5756
    %8049 = vmatpush2.bf16.msra.mxu0 %v5755
    %8050 = vmatprep.subr.bf16.mxu0 %v5748
    %8051 = vmatpush2.bf16.msra.mxu0 %v5747
    %8052 = vmatprep.subr.bf16.mxu0 %v5740
    %8053 = vmatpush2.bf16.msra.mxu0 %v5739
    %8054 = vmatprep.subr.bf16.mxu0 %v5732
    %8055 = vmatpush2.bf16.msra.mxu0 %v5731
    %8056 = vmatprep.subr.bf16.mxu0 %v5724
    %8057 = vmatpush2.bf16.msra.mxu0 %v5723
    %8058 = vmatprep.subr.bf16.mxu0 %v5716
    %8059 = vmatpush2.bf16.msra.mxu0 %v5715
    %8060 = vmatprep.mubr.bf16.mxu0 %v1383
    %8061 = vmatmul.mubr.bf16.gmra.mxu0 %v1382
    %v8062 = vpop.f32.mrf.mxu0
    %v8063 = vadd.f32 %v8022, %v8062
    %v8064 = vpop.f32.mrf.mxu0
    %v8065 = vadd.f32 %v8024, %v8064
    %v8066 = vpop.f32.mrf.mxu0
    %v8067 = vpop.f32.mrf.mxu0
    %8068 = vdwg.mxu0
    %8069 = vmatprep.subr.bf16.mxu0 %v5836
    %8070 = vmatpush1.bf16.msra.mxu0 %v5835
    %8071 = vmatprep.subr.bf16.mxu0 %v5828
    %8072 = vmatpush1.bf16.msra.mxu0 %v5827
    %8073 = vmatprep.subr.bf16.mxu0 %v5820
    %8074 = vmatpush1.bf16.msra.mxu0 %v5819
    %8075 = vmatprep.subr.bf16.mxu0 %v5812
    %8076 = vmatpush1.bf16.msra.mxu0 %v5811
    %8077 = vmatprep.subr.bf16.mxu0 %v5804
    %8078 = vmatpush1.bf16.msra.mxu0 %v5803
    %8079 = vmatprep.subr.bf16.mxu0 %v5796
    %8080 = vmatpush1.bf16.msra.mxu0 %v5795
    %8081 = vmatprep.subr.bf16.mxu0 %v5788
    %8082 = vmatpush1.bf16.msra.mxu0 %v5787
    %8083 = vmatprep.subr.bf16.mxu0 %v5780
    %8084 = vmatpush1.bf16.msra.mxu0 %v5779
    %8085 = vmatprep.subr.bf16.mxu0 %v5900
    %8086 = vmatpush2.bf16.msra.mxu0 %v5899
    %8087 = vmatprep.subr.bf16.mxu0 %v5892
    %8088 = vmatpush2.bf16.msra.mxu0 %v5891
    %8089 = vmatprep.subr.bf16.mxu0 %v5884
    %8090 = vmatpush2.bf16.msra.mxu0 %v5883
    %8091 = vmatprep.subr.bf16.mxu0 %v5876
    %8092 = vmatpush2.bf16.msra.mxu0 %v5875
    %8093 = vmatprep.subr.bf16.mxu0 %v5868
    %8094 = vmatpush2.bf16.msra.mxu0 %v5867
    %8095 = vmatprep.subr.bf16.mxu0 %v5860
    %8096 = vmatpush2.bf16.msra.mxu0 %v5859
    %8097 = vmatprep.subr.bf16.mxu0 %v5852
    %8098 = vmatpush2.bf16.msra.mxu0 %v5851
    %8099 = vmatprep.subr.bf16.mxu0 %v5844
    %8100 = vmatpush2.bf16.msra.mxu0 %v5843
    %8101 = vmatprep.mubr.bf16.mxu0 %v1385
    %8102 = vmatmul.mubr.bf16.gmra.mxu0 %v1384
    %v8103 = vpop.f32.mrf.mxu0
    %v8104 = vadd.f32 %v8063, %v8103
    %v8105 = vpop.f32.mrf.mxu0
    %v8106 = vadd.f32 %v8065, %v8105
    %v8107 = vpop.f32.mrf.mxu0
    %v8108 = vpop.f32.mrf.mxu0
    %8109 = vdwg.mxu0
    %8110 = vmatprep.subr.bf16.mxu0 %v5964
    %8111 = vmatpush1.bf16.msra.mxu0 %v5963
    %8112 = vmatprep.subr.bf16.mxu0 %v5956
    %8113 = vmatpush1.bf16.msra.mxu0 %v5955
    %8114 = vmatprep.subr.bf16.mxu0 %v5948
    %8115 = vmatpush1.bf16.msra.mxu0 %v5947
    %8116 = vmatprep.subr.bf16.mxu0 %v5940
    %8117 = vmatpush1.bf16.msra.mxu0 %v5939
    %8118 = vmatprep.subr.bf16.mxu0 %v5932
    %8119 = vmatpush1.bf16.msra.mxu0 %v5931
    %8120 = vmatprep.subr.bf16.mxu0 %v5924
    %8121 = vmatpush1.bf16.msra.mxu0 %v5923
    %8122 = vmatprep.subr.bf16.mxu0 %v5916
    %8123 = vmatpush1.bf16.msra.mxu0 %v5915
    %8124 = vmatprep.subr.bf16.mxu0 %v5908
    %8125 = vmatpush1.bf16.msra.mxu0 %v5907
    %8126 = vmatprep.subr.bf16.mxu0 %v6028
    %8127 = vmatpush2.bf16.msra.mxu0 %v6027
    %8128 = vmatprep.subr.bf16.mxu0 %v6020
    %8129 = vmatpush2.bf16.msra.mxu0 %v6019
    %8130 = vmatprep.subr.bf16.mxu0 %v6012
    %8131 = vmatpush2.bf16.msra.mxu0 %v6011
    %8132 = vmatprep.subr.bf16.mxu0 %v6004
    %8133 = vmatpush2.bf16.msra.mxu0 %v6003
    %8134 = vmatprep.subr.bf16.mxu0 %v5996
    %8135 = vmatpush2.bf16.msra.mxu0 %v5995
    %8136 = vmatprep.subr.bf16.mxu0 %v5988
    %8137 = vmatpush2.bf16.msra.mxu0 %v5987
    %8138 = vmatprep.subr.bf16.mxu0 %v5980
    %8139 = vmatpush2.bf16.msra.mxu0 %v5979
    %8140 = vmatprep.subr.bf16.mxu0 %v5972
    %8141 = vmatpush2.bf16.msra.mxu0 %v5971
    %8142 = vmatprep.mubr.bf16.mxu0 %v1387
    %8143 = vmatmul.mubr.bf16.gmra.mxu0 %v1386
    %v8144 = vpop.f32.mrf.mxu0
    %v8145 = vadd.f32 %v8104, %v8144
    %v8146 = vpop.f32.mrf.mxu0
    %v8147 = vadd.f32 %v8106, %v8146
    %v8148 = vpop.f32.mrf.mxu0
    %v8149 = vpop.f32.mrf.mxu0
    %8150 = vdwg.mxu0
    %8151 = vmatprep.subr.bf16.mxu0 %v6092
    %8152 = vmatpush1.bf16.msra.mxu0 %v6091
    %8153 = vmatprep.subr.bf16.mxu0 %v6084
    %8154 = vmatpush1.bf16.msra.mxu0 %v6083
    %8155 = vmatprep.subr.bf16.mxu0 %v6076
    %8156 = vmatpush1.bf16.msra.mxu0 %v6075
    %8157 = vmatprep.subr.bf16.mxu0 %v6068
    %8158 = vmatpush1.bf16.msra.mxu0 %v6067
    %8159 = vmatprep.subr.bf16.mxu0 %v6060
    %8160 = vmatpush1.bf16.msra.mxu0 %v6059
    %8161 = vmatprep.subr.bf16.mxu0 %v6052
    %8162 = vmatpush1.bf16.msra.mxu0 %v6051
    %8163 = vmatprep.subr.bf16.mxu0 %v6044
    %8164 = vmatpush1.bf16.msra.mxu0 %v6043
    %8165 = vmatprep.subr.bf16.mxu0 %v6036
    %8166 = vmatpush1.bf16.msra.mxu0 %v6035
    %8167 = vmatprep.subr.bf16.mxu0 %v6156
    %8168 = vmatpush2.bf16.msra.mxu0 %v6155
    %8169 = vmatprep.subr.bf16.mxu0 %v6148
    %8170 = vmatpush2.bf16.msra.mxu0 %v6147
    %8171 = vmatprep.subr.bf16.mxu0 %v6140
    %8172 = vmatpush2.bf16.msra.mxu0 %v6139
    %8173 = vmatprep.subr.bf16.mxu0 %v6132
    %8174 = vmatpush2.bf16.msra.mxu0 %v6131
    %8175 = vmatprep.subr.bf16.mxu0 %v6124
    %8176 = vmatpush2.bf16.msra.mxu0 %v6123
    %8177 = vmatprep.subr.bf16.mxu0 %v6116
    %8178 = vmatpush2.bf16.msra.mxu0 %v6115
    %8179 = vmatprep.subr.bf16.mxu0 %v6108
    %8180 = vmatpush2.bf16.msra.mxu0 %v6107
    %8181 = vmatprep.subr.bf16.mxu0 %v6100
    %8182 = vmatpush2.bf16.msra.mxu0 %v6099
    %8183 = vmatprep.mubr.bf16.mxu0 %v1389
    %8184 = vmatmul.mubr.bf16.gmra.mxu0 %v1388
    %v8185 = vpop.f32.mrf.mxu0
    %v8186 = vadd.f32 %v8145, %v8185
    %v8187 = vpop.f32.mrf.mxu0
    %v8188 = vadd.f32 %v8147, %v8187
    %v8189 = vpop.f32.mrf.mxu0
    %v8190 = vpop.f32.mrf.mxu0
    %8191 = vdwg.mxu0
    %8192 = vmatprep.subr.bf16.mxu0 0
    %8193 = vmatpush1.bf16.msra.mxu0 0
    %8194 = vmatprep.subr.bf16.mxu0 0
    %8195 = vmatpush1.bf16.msra.mxu0 0
    %8196 = vmatprep.subr.bf16.mxu0 %v6204
    %8197 = vmatpush1.bf16.msra.mxu0 %v6203
    %8198 = vmatprep.subr.bf16.mxu0 %v6196
    %8199 = vmatpush1.bf16.msra.mxu0 %v6195
    %8200 = vmatprep.subr.bf16.mxu0 %v6188
    %8201 = vmatpush1.bf16.msra.mxu0 %v6187
    %8202 = vmatprep.subr.bf16.mxu0 %v6180
    %8203 = vmatpush1.bf16.msra.mxu0 %v6179
    %8204 = vmatprep.subr.bf16.mxu0 %v6172
    %8205 = vmatpush1.bf16.msra.mxu0 %v6171
    %8206 = vmatprep.subr.bf16.mxu0 %v6164
    %8207 = vmatpush1.bf16.msra.mxu0 %v6163
    %8208 = vmatprep.subr.bf16.mxu0 0
    %8209 = vmatpush2.bf16.msra.mxu0 0
    %8210 = vmatprep.subr.bf16.mxu0 0
    %8211 = vmatpush2.bf16.msra.mxu0 0
    %8212 = vmatprep.subr.bf16.mxu0 0
    %8213 = vmatpush2.bf16.msra.mxu0 0
    %8214 = vmatprep.subr.bf16.mxu0 0
    %8215 = vmatpush2.bf16.msra.mxu0 0
    %8216 = vmatprep.subr.bf16.mxu0 0
    %8217 = vmatpush2.bf16.msra.mxu0 0
    %8218 = vmatprep.subr.bf16.mxu0 0
    %8219 = vmatpush2.bf16.msra.mxu0 0
    %8220 = vmatprep.subr.bf16.mxu0 0
    %8221 = vmatpush2.bf16.msra.mxu0 0
    %8222 = vmatprep.subr.bf16.mxu0 0
    %8223 = vmatpush2.bf16.msra.mxu0 0
    %8224 = vmatprep.mubr.bf16.mxu0 0
    %8225 = vmatmul.mubr.bf16.gmra.mxu0 %v7411
    %v8226 = vpop.f32.mrf.mxu0
    %v8227 = vadd.f32 %v8186, %v8226
    %v8228 = vpop.f32.mrf.mxu0
    %v8229 = vadd.f32 %v8188, %v8228
    %v8230 = vpop.f32.mrf.mxu0
    %v8231 = vpop.f32.mrf.mxu0
    %8232 = vdwg.mxu0
    %8233 = vmatprep.subr.bf16.mxu0 %v5070
    %8234 = vmatpush1.bf16.msra.mxu0 %v5069
    %8235 = vmatprep.subr.bf16.mxu0 %v5062
    %8236 = vmatpush1.bf16.msra.mxu0 %v5061
    %8237 = vmatprep.subr.bf16.mxu0 %v5054
    %8238 = vmatpush1.bf16.msra.mxu0 %v5053
    %8239 = vmatprep.subr.bf16.mxu0 %v5046
    %8240 = vmatpush1.bf16.msra.mxu0 %v5045
    %8241 = vmatprep.subr.bf16.mxu0 %v5038
    %8242 = vmatpush1.bf16.msra.mxu0 %v5037
    %8243 = vmatprep.subr.bf16.mxu0 %v5030
    %8244 = vmatpush1.bf16.msra.mxu0 %v5029
    %8245 = vmatprep.subr.bf16.mxu0 %v5022
    %8246 = vmatpush1.bf16.msra.mxu0 %v5021
    %8247 = vmatprep.subr.bf16.mxu0 %v5014
    %8248 = vmatpush1.bf16.msra.mxu0 %v5013
    %8249 = vmatprep.subr.bf16.mxu0 %v5134
    %8250 = vmatpush2.bf16.msra.mxu0 %v5133
    %8251 = vmatprep.subr.bf16.mxu0 %v5126
    %8252 = vmatpush2.bf16.msra.mxu0 %v5125
    %8253 = vmatprep.subr.bf16.mxu0 %v5118
    %8254 = vmatpush2.bf16.msra.mxu0 %v5117
    %8255 = vmatprep.subr.bf16.mxu0 %v5110
    %8256 = vmatpush2.bf16.msra.mxu0 %v5109
    %8257 = vmatprep.subr.bf16.mxu0 %v5102
    %8258 = vmatpush2.bf16.msra.mxu0 %v5101
    %8259 = vmatprep.subr.bf16.mxu0 %v5094
    %8260 = vmatpush2.bf16.msra.mxu0 %v5093
    %8261 = vmatprep.subr.bf16.mxu0 %v5086
    %8262 = vmatpush2.bf16.msra.mxu0 %v5085
    %8263 = vmatprep.subr.bf16.mxu0 %v5078
    %8264 = vmatpush2.bf16.msra.mxu0 %v5077
    %8265 = vmatprep.mubr.bf16.mxu0 %v1373
    %8266 = vmatmul.mubr.bf16.gmra.mxu0 %v1372
    %v8267 = vpop.f32.mrf.mxu0
    %v8268 = vadd.f32 %v1322, %v8267
    %v8269 = vpop.f32.mrf.mxu0
    %v8270 = vadd.f32 %v1326, %v8269
    %v8271 = vpop.f32.mrf.mxu0
    %v8272 = vpop.f32.mrf.mxu0
    %8273 = vdwg.mxu0
    %8274 = vmatprep.subr.bf16.mxu0 %v5198
    %8275 = vmatpush1.bf16.msra.mxu0 %v5197
    %8276 = vmatprep.subr.bf16.mxu0 %v5190
    %8277 = vmatpush1.bf16.msra.mxu0 %v5189
    %8278 = vmatprep.subr.bf16.mxu0 %v5182
    %8279 = vmatpush1.bf16.msra.mxu0 %v5181
    %8280 = vmatprep.subr.bf16.mxu0 %v5174
    %8281 = vmatpush1.bf16.msra.mxu0 %v5173
    %8282 = vmatprep.subr.bf16.mxu0 %v5166
    %8283 = vmatpush1.bf16.msra.mxu0 %v5165
    %8284 = vmatprep.subr.bf16.mxu0 %v5158
    %8285 = vmatpush1.bf16.msra.mxu0 %v5157
    %8286 = vmatprep.subr.bf16.mxu0 %v5150
    %8287 = vmatpush1.bf16.msra.mxu0 %v5149
    %8288 = vmatprep.subr.bf16.mxu0 %v5142
    %8289 = vmatpush1.bf16.msra.mxu0 %v5141
    %8290 = vmatprep.subr.bf16.mxu0 %v5262
    %8291 = vmatpush2.bf16.msra.mxu0 %v5261
    %8292 = vmatprep.subr.bf16.mxu0 %v5254
    %8293 = vmatpush2.bf16.msra.mxu0 %v5253
    %8294 = vmatprep.subr.bf16.mxu0 %v5246
    %8295 = vmatpush2.bf16.msra.mxu0 %v5245
    %8296 = vmatprep.subr.bf16.mxu0 %v5238
    %8297 = vmatpush2.bf16.msra.mxu0 %v5237
    %8298 = vmatprep.subr.bf16.mxu0 %v5230
    %8299 = vmatpush2.bf16.msra.mxu0 %v5229
    %8300 = vmatprep.subr.bf16.mxu0 %v5222
    %8301 = vmatpush2.bf16.msra.mxu0 %v5221
    %8302 = vmatprep.subr.bf16.mxu0 %v5214
    %8303 = vmatpush2.bf16.msra.mxu0 %v5213
    %8304 = vmatprep.subr.bf16.mxu0 %v5206
    %8305 = vmatpush2.bf16.msra.mxu0 %v5205
    %8306 = vmatprep.mubr.bf16.mxu0 %v1375
    %8307 = vmatmul.mubr.bf16.gmra.mxu0 %v1374
    %v8308 = vpop.f32.mrf.mxu0
    %v8309 = vadd.f32 %v8268, %v8308
    %v8310 = vpop.f32.mrf.mxu0
    %v8311 = vadd.f32 %v8270, %v8310
    %v8312 = vpop.f32.mrf.mxu0
    %v8313 = vpop.f32.mrf.mxu0
    %8314 = vdwg.mxu0
    %8315 = vmatprep.subr.bf16.mxu0 %v5326
    %8316 = vmatpush1.bf16.msra.mxu0 %v5325
    %8317 = vmatprep.subr.bf16.mxu0 %v5318
    %8318 = vmatpush1.bf16.msra.mxu0 %v5317
    %8319 = vmatprep.subr.bf16.mxu0 %v5310
    %8320 = vmatpush1.bf16.msra.mxu0 %v5309
    %8321 = vmatprep.subr.bf16.mxu0 %v5302
    %8322 = vmatpush1.bf16.msra.mxu0 %v5301
    %8323 = vmatprep.subr.bf16.mxu0 %v5294
    %8324 = vmatpush1.bf16.msra.mxu0 %v5293
    %8325 = vmatprep.subr.bf16.mxu0 %v5286
    %8326 = vmatpush1.bf16.msra.mxu0 %v5285
    %8327 = vmatprep.subr.bf16.mxu0 %v5278
    %8328 = vmatpush1.bf16.msra.mxu0 %v5277
    %8329 = vmatprep.subr.bf16.mxu0 %v5270
    %8330 = vmatpush1.bf16.msra.mxu0 %v5269
    %8331 = vmatprep.subr.bf16.mxu0 %v5390
    %8332 = vmatpush2.bf16.msra.mxu0 %v5389
    %8333 = vmatprep.subr.bf16.mxu0 %v5382
    %8334 = vmatpush2.bf16.msra.mxu0 %v5381
    %8335 = vmatprep.subr.bf16.mxu0 %v5374
    %8336 = vmatpush2.bf16.msra.mxu0 %v5373
    %8337 = vmatprep.subr.bf16.mxu0 %v5366
    %8338 = vmatpush2.bf16.msra.mxu0 %v5365
    %8339 = vmatprep.subr.bf16.mxu0 %v5358
    %8340 = vmatpush2.bf16.msra.mxu0 %v5357
    %8341 = vmatprep.subr.bf16.mxu0 %v5350
    %8342 = vmatpush2.bf16.msra.mxu0 %v5349
    %8343 = vmatprep.subr.bf16.mxu0 %v5342
    %8344 = vmatpush2.bf16.msra.mxu0 %v5341
    %8345 = vmatprep.subr.bf16.mxu0 %v5334
    %8346 = vmatpush2.bf16.msra.mxu0 %v5333
    %8347 = vmatprep.mubr.bf16.mxu0 %v1377
    %8348 = vmatmul.mubr.bf16.gmra.mxu0 %v1376
    %v8349 = vpop.f32.mrf.mxu0
    %v8350 = vadd.f32 %v8309, %v8349
    %v8351 = vpop.f32.mrf.mxu0
    %v8352 = vadd.f32 %v8311, %v8351
    %v8353 = vpop.f32.mrf.mxu0
    %v8354 = vpop.f32.mrf.mxu0
    %8355 = vdwg.mxu0
    %8356 = vmatprep.subr.bf16.mxu0 %v5454
    %8357 = vmatpush1.bf16.msra.mxu0 %v5453
    %8358 = vmatprep.subr.bf16.mxu0 %v5446
    %8359 = vmatpush1.bf16.msra.mxu0 %v5445
    %8360 = vmatprep.subr.bf16.mxu0 %v5438
    %8361 = vmatpush1.bf16.msra.mxu0 %v5437
    %8362 = vmatprep.subr.bf16.mxu0 %v5430
    %8363 = vmatpush1.bf16.msra.mxu0 %v5429
    %8364 = vmatprep.subr.bf16.mxu0 %v5422
    %8365 = vmatpush1.bf16.msra.mxu0 %v5421
    %8366 = vmatprep.subr.bf16.mxu0 %v5414
    %8367 = vmatpush1.bf16.msra.mxu0 %v5413
    %8368 = vmatprep.subr.bf16.mxu0 %v5406
    %8369 = vmatpush1.bf16.msra.mxu0 %v5405
    %8370 = vmatprep.subr.bf16.mxu0 %v5398
    %8371 = vmatpush1.bf16.msra.mxu0 %v5397
    %8372 = vmatprep.subr.bf16.mxu0 %v5518
    %8373 = vmatpush2.bf16.msra.mxu0 %v5517
    %8374 = vmatprep.subr.bf16.mxu0 %v5510
    %8375 = vmatpush2.bf16.msra.mxu0 %v5509
    %8376 = vmatprep.subr.bf16.mxu0 %v5502
    %8377 = vmatpush2.bf16.msra.mxu0 %v5501
    %8378 = vmatprep.subr.bf16.mxu0 %v5494
    %8379 = vmatpush2.bf16.msra.mxu0 %v5493
    %8380 = vmatprep.subr.bf16.mxu0 %v5486
    %8381 = vmatpush2.bf16.msra.mxu0 %v5485
    %8382 = vmatprep.subr.bf16.mxu0 %v5478
    %8383 = vmatpush2.bf16.msra.mxu0 %v5477
    %8384 = vmatprep.subr.bf16.mxu0 %v5470
    %8385 = vmatpush2.bf16.msra.mxu0 %v5469
    %8386 = vmatprep.subr.bf16.mxu0 %v5462
    %8387 = vmatpush2.bf16.msra.mxu0 %v5461
    %8388 = vmatprep.mubr.bf16.mxu0 %v1379
    %8389 = vmatmul.mubr.bf16.gmra.mxu0 %v1378
    %v8390 = vpop.f32.mrf.mxu0
    %v8391 = vadd.f32 %v8350, %v8390
    %v8392 = vpop.f32.mrf.mxu0
    %v8393 = vadd.f32 %v8352, %v8392
    %v8394 = vpop.f32.mrf.mxu0
    %v8395 = vpop.f32.mrf.mxu0
    %8396 = vdwg.mxu0
    %8397 = vmatprep.subr.bf16.mxu0 %v5582
    %8398 = vmatpush1.bf16.msra.mxu0 %v5581
    %8399 = vmatprep.subr.bf16.mxu0 %v5574
    %8400 = vmatpush1.bf16.msra.mxu0 %v5573
    %8401 = vmatprep.subr.bf16.mxu0 %v5566
    %8402 = vmatpush1.bf16.msra.mxu0 %v5565
    %8403 = vmatprep.subr.bf16.mxu0 %v5558
    %8404 = vmatpush1.bf16.msra.mxu0 %v5557
    %8405 = vmatprep.subr.bf16.mxu0 %v5550
    %8406 = vmatpush1.bf16.msra.mxu0 %v5549
    %8407 = vmatprep.subr.bf16.mxu0 %v5542
    %8408 = vmatpush1.bf16.msra.mxu0 %v5541
    %8409 = vmatprep.subr.bf16.mxu0 %v5534
    %8410 = vmatpush1.bf16.msra.mxu0 %v5533
    %8411 = vmatprep.subr.bf16.mxu0 %v5526
    %8412 = vmatpush1.bf16.msra.mxu0 %v5525
    %8413 = vmatprep.subr.bf16.mxu0 %v5646
    %8414 = vmatpush2.bf16.msra.mxu0 %v5645
    %8415 = vmatprep.subr.bf16.mxu0 %v5638
    %8416 = vmatpush2.bf16.msra.mxu0 %v5637
    %8417 = vmatprep.subr.bf16.mxu0 %v5630
    %8418 = vmatpush2.bf16.msra.mxu0 %v5629
    %8419 = vmatprep.subr.bf16.mxu0 %v5622
    %8420 = vmatpush2.bf16.msra.mxu0 %v5621
    %8421 = vmatprep.subr.bf16.mxu0 %v5614
    %8422 = vmatpush2.bf16.msra.mxu0 %v5613
    %8423 = vmatprep.subr.bf16.mxu0 %v5606
    %8424 = vmatpush2.bf16.msra.mxu0 %v5605
    %8425 = vmatprep.subr.bf16.mxu0 %v5598
    %8426 = vmatpush2.bf16.msra.mxu0 %v5597
    %8427 = vmatprep.subr.bf16.mxu0 %v5590
    %8428 = vmatpush2.bf16.msra.mxu0 %v5589
    %8429 = vmatprep.mubr.bf16.mxu0 %v1381
    %8430 = vmatmul.mubr.bf16.gmra.mxu0 %v1380
    %v8431 = vpop.f32.mrf.mxu0
    %v8432 = vadd.f32 %v8391, %v8431
    %v8433 = vpop.f32.mrf.mxu0
    %v8434 = vadd.f32 %v8393, %v8433
    %v8435 = vpop.f32.mrf.mxu0
    %v8436 = vpop.f32.mrf.mxu0
    %8437 = vdwg.mxu0
    %8438 = vmatprep.subr.bf16.mxu0 %v5710
    %8439 = vmatpush1.bf16.msra.mxu0 %v5709
    %8440 = vmatprep.subr.bf16.mxu0 %v5702
    %8441 = vmatpush1.bf16.msra.mxu0 %v5701
    %8442 = vmatprep.subr.bf16.mxu0 %v5694
    %8443 = vmatpush1.bf16.msra.mxu0 %v5693
    %8444 = vmatprep.subr.bf16.mxu0 %v5686
    %8445 = vmatpush1.bf16.msra.mxu0 %v5685
    %8446 = vmatprep.subr.bf16.mxu0 %v5678
    %8447 = vmatpush1.bf16.msra.mxu0 %v5677
    %8448 = vmatprep.subr.bf16.mxu0 %v5670
    %8449 = vmatpush1.bf16.msra.mxu0 %v5669
    %8450 = vmatprep.subr.bf16.mxu0 %v5662
    %8451 = vmatpush1.bf16.msra.mxu0 %v5661
    %8452 = vmatprep.subr.bf16.mxu0 %v5654
    %8453 = vmatpush1.bf16.msra.mxu0 %v5653
    %8454 = vmatprep.subr.bf16.mxu0 %v5774
    %8455 = vmatpush2.bf16.msra.mxu0 %v5773
    %8456 = vmatprep.subr.bf16.mxu0 %v5766
    %8457 = vmatpush2.bf16.msra.mxu0 %v5765
    %8458 = vmatprep.subr.bf16.mxu0 %v5758
    %8459 = vmatpush2.bf16.msra.mxu0 %v5757
    %8460 = vmatprep.subr.bf16.mxu0 %v5750
    %8461 = vmatpush2.bf16.msra.mxu0 %v5749
    %8462 = vmatprep.subr.bf16.mxu0 %v5742
    %8463 = vmatpush2.bf16.msra.mxu0 %v5741
    %8464 = vmatprep.subr.bf16.mxu0 %v5734
    %8465 = vmatpush2.bf16.msra.mxu0 %v5733
    %8466 = vmatprep.subr.bf16.mxu0 %v5726
    %8467 = vmatpush2.bf16.msra.mxu0 %v5725
    %8468 = vmatprep.subr.bf16.mxu0 %v5718
    %8469 = vmatpush2.bf16.msra.mxu0 %v5717
    %8470 = vmatprep.mubr.bf16.mxu0 %v1383
    %8471 = vmatmul.mubr.bf16.gmra.mxu0 %v1382
    %v8472 = vpop.f32.mrf.mxu0
    %v8473 = vadd.f32 %v8432, %v8472
    %v8474 = vpop.f32.mrf.mxu0
    %v8475 = vadd.f32 %v8434, %v8474
    %v8476 = vpop.f32.mrf.mxu0
    %v8477 = vpop.f32.mrf.mxu0
    %8478 = vdwg.mxu0
    %8479 = vmatprep.subr.bf16.mxu0 %v5838
    %8480 = vmatpush1.bf16.msra.mxu0 %v5837
    %8481 = vmatprep.subr.bf16.mxu0 %v5830
    %8482 = vmatpush1.bf16.msra.mxu0 %v5829
    %8483 = vmatprep.subr.bf16.mxu0 %v5822
    %8484 = vmatpush1.bf16.msra.mxu0 %v5821
    %8485 = vmatprep.subr.bf16.mxu0 %v5814
    %8486 = vmatpush1.bf16.msra.mxu0 %v5813
    %8487 = vmatprep.subr.bf16.mxu0 %v5806
    %8488 = vmatpush1.bf16.msra.mxu0 %v5805
    %8489 = vmatprep.subr.bf16.mxu0 %v5798
    %8490 = vmatpush1.bf16.msra.mxu0 %v5797
    %8491 = vmatprep.subr.bf16.mxu0 %v5790
    %8492 = vmatpush1.bf16.msra.mxu0 %v5789
    %8493 = vmatprep.subr.bf16.mxu0 %v5782
    %8494 = vmatpush1.bf16.msra.mxu0 %v5781
    %8495 = vmatprep.subr.bf16.mxu0 %v5902
    %8496 = vmatpush2.bf16.msra.mxu0 %v5901
    %8497 = vmatprep.subr.bf16.mxu0 %v5894
    %8498 = vmatpush2.bf16.msra.mxu0 %v5893
    %8499 = vmatprep.subr.bf16.mxu0 %v5886
    %8500 = vmatpush2.bf16.msra.mxu0 %v5885
    %8501 = vmatprep.subr.bf16.mxu0 %v5878
    %8502 = vmatpush2.bf16.msra.mxu0 %v5877
    %8503 = vmatprep.subr.bf16.mxu0 %v5870
    %8504 = vmatpush2.bf16.msra.mxu0 %v5869
    %8505 = vmatprep.subr.bf16.mxu0 %v5862
    %8506 = vmatpush2.bf16.msra.mxu0 %v5861
    %8507 = vmatprep.subr.bf16.mxu0 %v5854
    %8508 = vmatpush2.bf16.msra.mxu0 %v5853
    %8509 = vmatprep.subr.bf16.mxu0 %v5846
    %8510 = vmatpush2.bf16.msra.mxu0 %v5845
    %8511 = vmatprep.mubr.bf16.mxu0 %v1385
    %8512 = vmatmul.mubr.bf16.gmra.mxu0 %v1384
    %v8513 = vpop.f32.mrf.mxu0
    %v8514 = vadd.f32 %v8473, %v8513
    %v8515 = vpop.f32.mrf.mxu0
    %v8516 = vadd.f32 %v8475, %v8515
    %v8517 = vpop.f32.mrf.mxu0
    %v8518 = vpop.f32.mrf.mxu0
    %8519 = vdwg.mxu0
    %8520 = vmatprep.subr.bf16.mxu0 %v5966
    %8521 = vmatpush1.bf16.msra.mxu0 %v5965
    %8522 = vmatprep.subr.bf16.mxu0 %v5958
    %8523 = vmatpush1.bf16.msra.mxu0 %v5957
    %8524 = vmatprep.subr.bf16.mxu0 %v5950
    %8525 = vmatpush1.bf16.msra.mxu0 %v5949
    %8526 = vmatprep.subr.bf16.mxu0 %v5942
    %8527 = vmatpush1.bf16.msra.mxu0 %v5941
    %8528 = vmatprep.subr.bf16.mxu0 %v5934
    %8529 = vmatpush1.bf16.msra.mxu0 %v5933
    %8530 = vmatprep.subr.bf16.mxu0 %v5926
    %8531 = vmatpush1.bf16.msra.mxu0 %v5925
    %8532 = vmatprep.subr.bf16.mxu0 %v5918
    %8533 = vmatpush1.bf16.msra.mxu0 %v5917
    %8534 = vmatprep.subr.bf16.mxu0 %v5910
    %8535 = vmatpush1.bf16.msra.mxu0 %v5909
    %8536 = vmatprep.subr.bf16.mxu0 %v6030
    %8537 = vmatpush2.bf16.msra.mxu0 %v6029
    %8538 = vmatprep.subr.bf16.mxu0 %v6022
    %8539 = vmatpush2.bf16.msra.mxu0 %v6021
    %8540 = vmatprep.subr.bf16.mxu0 %v6014
    %8541 = vmatpush2.bf16.msra.mxu0 %v6013
    %8542 = vmatprep.subr.bf16.mxu0 %v6006
    %8543 = vmatpush2.bf16.msra.mxu0 %v6005
    %8544 = vmatprep.subr.bf16.mxu0 %v5998
    %8545 = vmatpush2.bf16.msra.mxu0 %v5997
    %8546 = vmatprep.subr.bf16.mxu0 %v5990
    %8547 = vmatpush2.bf16.msra.mxu0 %v5989
    %8548 = vmatprep.subr.bf16.mxu0 %v5982
    %8549 = vmatpush2.bf16.msra.mxu0 %v5981
    %8550 = vmatprep.subr.bf16.mxu0 %v5974
    %8551 = vmatpush2.bf16.msra.mxu0 %v5973
    %8552 = vmatprep.mubr.bf16.mxu0 %v1387
    %8553 = vmatmul.mubr.bf16.gmra.mxu0 %v1386
    %v8554 = vpop.f32.mrf.mxu0
    %v8555 = vadd.f32 %v8514, %v8554
    %v8556 = vpop.f32.mrf.mxu0
    %v8557 = vadd.f32 %v8516, %v8556
    %v8558 = vpop.f32.mrf.mxu0
    %v8559 = vpop.f32.mrf.mxu0
    %8560 = vdwg.mxu0
    %8561 = vmatprep.subr.bf16.mxu0 %v6094
    %8562 = vmatpush1.bf16.msra.mxu0 %v6093
    %8563 = vmatprep.subr.bf16.mxu0 %v6086
    %8564 = vmatpush1.bf16.msra.mxu0 %v6085
    %8565 = vmatprep.subr.bf16.mxu0 %v6078
    %8566 = vmatpush1.bf16.msra.mxu0 %v6077
    %8567 = vmatprep.subr.bf16.mxu0 %v6070
    %8568 = vmatpush1.bf16.msra.mxu0 %v6069
    %8569 = vmatprep.subr.bf16.mxu0 %v6062
    %8570 = vmatpush1.bf16.msra.mxu0 %v6061
    %8571 = vmatprep.subr.bf16.mxu0 %v6054
    %8572 = vmatpush1.bf16.msra.mxu0 %v6053
    %8573 = vmatprep.subr.bf16.mxu0 %v6046
    %8574 = vmatpush1.bf16.msra.mxu0 %v6045
    %8575 = vmatprep.subr.bf16.mxu0 %v6038
    %8576 = vmatpush1.bf16.msra.mxu0 %v6037
    %8577 = vmatprep.subr.bf16.mxu0 %v6158
    %8578 = vmatpush2.bf16.msra.mxu0 %v6157
    %8579 = vmatprep.subr.bf16.mxu0 %v6150
    %8580 = vmatpush2.bf16.msra.mxu0 %v6149
    %8581 = vmatprep.subr.bf16.mxu0 %v6142
    %8582 = vmatpush2.bf16.msra.mxu0 %v6141
    %8583 = vmatprep.subr.bf16.mxu0 %v6134
    %8584 = vmatpush2.bf16.msra.mxu0 %v6133
    %8585 = vmatprep.subr.bf16.mxu0 %v6126
    %8586 = vmatpush2.bf16.msra.mxu0 %v6125
    %8587 = vmatprep.subr.bf16.mxu0 %v6118
    %8588 = vmatpush2.bf16.msra.mxu0 %v6117
    %8589 = vmatprep.subr.bf16.mxu0 %v6110
    %8590 = vmatpush2.bf16.msra.mxu0 %v6109
    %8591 = vmatprep.subr.bf16.mxu0 %v6102
    %8592 = vmatpush2.bf16.msra.mxu0 %v6101
    %8593 = vmatprep.mubr.bf16.mxu0 %v1389
    %8594 = vmatmul.mubr.bf16.gmra.mxu0 %v1388
    %v8595 = vpop.f32.mrf.mxu0
    %v8596 = vadd.f32 %v8555, %v8595
    %v8597 = vpop.f32.mrf.mxu0
    %v8598 = vadd.f32 %v8557, %v8597
    %v8599 = vpop.f32.mrf.mxu0
    %v8600 = vpop.f32.mrf.mxu0
    %8601 = vdwg.mxu0
    %8602 = vmatprep.subr.bf16.mxu0 0
    %8603 = vmatpush1.bf16.msra.mxu0 0
    %8604 = vmatprep.subr.bf16.mxu0 0
    %8605 = vmatpush1.bf16.msra.mxu0 0
    %8606 = vmatprep.subr.bf16.mxu0 %v6206
    %8607 = vmatpush1.bf16.msra.mxu0 %v6205
    %8608 = vmatprep.subr.bf16.mxu0 %v6198
    %8609 = vmatpush1.bf16.msra.mxu0 %v6197
    %8610 = vmatprep.subr.bf16.mxu0 %v6190
    %8611 = vmatpush1.bf16.msra.mxu0 %v6189
    %8612 = vmatprep.subr.bf16.mxu0 %v6182
    %8613 = vmatpush1.bf16.msra.mxu0 %v6181
    %8614 = vmatprep.subr.bf16.mxu0 %v6174
    %8615 = vmatpush1.bf16.msra.mxu0 %v6173
    %8616 = vmatprep.subr.bf16.mxu0 %v6166
    %8617 = vmatpush1.bf16.msra.mxu0 %v6165
    %8618 = vmatprep.subr.bf16.mxu0 0
    %8619 = vmatpush2.bf16.msra.mxu0 0
    %8620 = vmatprep.subr.bf16.mxu0 0
    %8621 = vmatpush2.bf16.msra.mxu0 0
    %8622 = vmatprep.subr.bf16.mxu0 0
    %8623 = vmatpush2.bf16.msra.mxu0 0
    %8624 = vmatprep.subr.bf16.mxu0 0
    %8625 = vmatpush2.bf16.msra.mxu0 0
    %8626 = vmatprep.subr.bf16.mxu0 0
    %8627 = vmatpush2.bf16.msra.mxu0 0
    %8628 = vmatprep.subr.bf16.mxu0 0
    %8629 = vmatpush2.bf16.msra.mxu0 0
    %8630 = vmatprep.subr.bf16.mxu0 0
    %8631 = vmatpush2.bf16.msra.mxu0 0
    %8632 = vmatprep.subr.bf16.mxu0 0
    %8633 = vmatpush2.bf16.msra.mxu0 0
    %8634 = vmatprep.mubr.bf16.mxu0 0
    %8635 = vmatmul.mubr.bf16.gmra.mxu0 %v7411
    %v8636 = vpop.f32.mrf.mxu0
    %v8637 = vadd.f32 %v8596, %v8636
    %v8638 = vpop.f32.mrf.mxu0
    %v8639 = vadd.f32 %v8598, %v8638
    %v8640 = vpop.f32.mrf.mxu0
    %v8641 = vpop.f32.mrf.mxu0
    %8642 = vdwg.mxu0
    %8643 = vmatprep.subr.bf16.mxu0 %v5072
    %8644 = vmatpush1.bf16.msra.mxu0 %v5071
    %8645 = vmatprep.subr.bf16.mxu0 %v5064
    %8646 = vmatpush1.bf16.msra.mxu0 %v5063
    %8647 = vmatprep.subr.bf16.mxu0 %v5056
    %8648 = vmatpush1.bf16.msra.mxu0 %v5055
    %8649 = vmatprep.subr.bf16.mxu0 %v5048
    %8650 = vmatpush1.bf16.msra.mxu0 %v5047
    %8651 = vmatprep.subr.bf16.mxu0 %v5040
    %8652 = vmatpush1.bf16.msra.mxu0 %v5039
    %8653 = vmatprep.subr.bf16.mxu0 %v5032
    %8654 = vmatpush1.bf16.msra.mxu0 %v5031
    %8655 = vmatprep.subr.bf16.mxu0 %v5024
    %8656 = vmatpush1.bf16.msra.mxu0 %v5023
    %8657 = vmatprep.subr.bf16.mxu0 %v5016
    %8658 = vmatpush1.bf16.msra.mxu0 %v5015
    %8659 = vmatprep.subr.bf16.mxu0 %v5136
    %8660 = vmatpush2.bf16.msra.mxu0 %v5135
    %8661 = vmatprep.subr.bf16.mxu0 %v5128
    %8662 = vmatpush2.bf16.msra.mxu0 %v5127
    %8663 = vmatprep.subr.bf16.mxu0 %v5120
    %8664 = vmatpush2.bf16.msra.mxu0 %v5119
    %8665 = vmatprep.subr.bf16.mxu0 %v5112
    %8666 = vmatpush2.bf16.msra.mxu0 %v5111
    %8667 = vmatprep.subr.bf16.mxu0 %v5104
    %8668 = vmatpush2.bf16.msra.mxu0 %v5103
    %8669 = vmatprep.subr.bf16.mxu0 %v5096
    %8670 = vmatpush2.bf16.msra.mxu0 %v5095
    %8671 = vmatprep.subr.bf16.mxu0 %v5088
    %8672 = vmatpush2.bf16.msra.mxu0 %v5087
    %8673 = vmatprep.subr.bf16.mxu0 %v5080
    %8674 = vmatpush2.bf16.msra.mxu0 %v5079
    %8675 = vmatprep.mubr.bf16.mxu0 %v1373
    %8676 = vmatmul.mubr.bf16.gmra.mxu0 %v1372
    %v8677 = vpop.f32.mrf.mxu0
    %v8678 = vadd.f32 %v1330, %v8677
    %v8679 = vpop.f32.mrf.mxu0
    %v8680 = vadd.f32 %v1334, %v8679
    %v8681 = vpop.f32.mrf.mxu0
    %v8682 = vpop.f32.mrf.mxu0
    %8683 = vdwg.mxu0
    %8684 = vmatprep.subr.bf16.mxu0 %v5200
    %8685 = vmatpush1.bf16.msra.mxu0 %v5199
    %8686 = vmatprep.subr.bf16.mxu0 %v5192
    %8687 = vmatpush1.bf16.msra.mxu0 %v5191
    %8688 = vmatprep.subr.bf16.mxu0 %v5184
    %8689 = vmatpush1.bf16.msra.mxu0 %v5183
    %8690 = vmatprep.subr.bf16.mxu0 %v5176
    %8691 = vmatpush1.bf16.msra.mxu0 %v5175
    %8692 = vmatprep.subr.bf16.mxu0 %v5168
    %8693 = vmatpush1.bf16.msra.mxu0 %v5167
    %8694 = vmatprep.subr.bf16.mxu0 %v5160
    %8695 = vmatpush1.bf16.msra.mxu0 %v5159
    %8696 = vmatprep.subr.bf16.mxu0 %v5152
    %8697 = vmatpush1.bf16.msra.mxu0 %v5151
    %8698 = vmatprep.subr.bf16.mxu0 %v5144
    %8699 = vmatpush1.bf16.msra.mxu0 %v5143
    %8700 = vmatprep.subr.bf16.mxu0 %v5264
    %8701 = vmatpush2.bf16.msra.mxu0 %v5263
    %8702 = vmatprep.subr.bf16.mxu0 %v5256
    %8703 = vmatpush2.bf16.msra.mxu0 %v5255
    %8704 = vmatprep.subr.bf16.mxu0 %v5248
    %8705 = vmatpush2.bf16.msra.mxu0 %v5247
    %8706 = vmatprep.subr.bf16.mxu0 %v5240
    %8707 = vmatpush2.bf16.msra.mxu0 %v5239
    %8708 = vmatprep.subr.bf16.mxu0 %v5232
    %8709 = vmatpush2.bf16.msra.mxu0 %v5231
    %8710 = vmatprep.subr.bf16.mxu0 %v5224
    %8711 = vmatpush2.bf16.msra.mxu0 %v5223
    %8712 = vmatprep.subr.bf16.mxu0 %v5216
    %8713 = vmatpush2.bf16.msra.mxu0 %v5215
    %8714 = vmatprep.subr.bf16.mxu0 %v5208
    %8715 = vmatpush2.bf16.msra.mxu0 %v5207
    %8716 = vmatprep.mubr.bf16.mxu0 %v1375
    %8717 = vmatmul.mubr.bf16.gmra.mxu0 %v1374
    %v8718 = vpop.f32.mrf.mxu0
    %v8719 = vadd.f32 %v8678, %v8718
    %v8720 = vpop.f32.mrf.mxu0
    %v8721 = vadd.f32 %v8680, %v8720
    %v8722 = vpop.f32.mrf.mxu0
    %v8723 = vpop.f32.mrf.mxu0
    %8724 = vdwg.mxu0
    %8725 = vmatprep.subr.bf16.mxu0 %v5328
    %8726 = vmatpush1.bf16.msra.mxu0 %v5327
    %8727 = vmatprep.subr.bf16.mxu0 %v5320
    %8728 = vmatpush1.bf16.msra.mxu0 %v5319
    %8729 = vmatprep.subr.bf16.mxu0 %v5312
    %8730 = vmatpush1.bf16.msra.mxu0 %v5311
    %8731 = vmatprep.subr.bf16.mxu0 %v5304
    %8732 = vmatpush1.bf16.msra.mxu0 %v5303
    %8733 = vmatprep.subr.bf16.mxu0 %v5296
    %8734 = vmatpush1.bf16.msra.mxu0 %v5295
    %8735 = vmatprep.subr.bf16.mxu0 %v5288
    %8736 = vmatpush1.bf16.msra.mxu0 %v5287
    %8737 = vmatprep.subr.bf16.mxu0 %v5280
    %8738 = vmatpush1.bf16.msra.mxu0 %v5279
    %8739 = vmatprep.subr.bf16.mxu0 %v5272
    %8740 = vmatpush1.bf16.msra.mxu0 %v5271
    %8741 = vmatprep.subr.bf16.mxu0 %v5392
    %8742 = vmatpush2.bf16.msra.mxu0 %v5391
    %8743 = vmatprep.subr.bf16.mxu0 %v5384
    %8744 = vmatpush2.bf16.msra.mxu0 %v5383
    %8745 = vmatprep.subr.bf16.mxu0 %v5376
    %8746 = vmatpush2.bf16.msra.mxu0 %v5375
    %8747 = vmatprep.subr.bf16.mxu0 %v5368
    %8748 = vmatpush2.bf16.msra.mxu0 %v5367
    %8749 = vmatprep.subr.bf16.mxu0 %v5360
    %8750 = vmatpush2.bf16.msra.mxu0 %v5359
    %8751 = vmatprep.subr.bf16.mxu0 %v5352
    %8752 = vmatpush2.bf16.msra.mxu0 %v5351
    %8753 = vmatprep.subr.bf16.mxu0 %v5344
    %8754 = vmatpush2.bf16.msra.mxu0 %v5343
    %8755 = vmatprep.subr.bf16.mxu0 %v5336
    %8756 = vmatpush2.bf16.msra.mxu0 %v5335
    %8757 = vmatprep.mubr.bf16.mxu0 %v1377
    %8758 = vmatmul.mubr.bf16.gmra.mxu0 %v1376
    %v8759 = vpop.f32.mrf.mxu0
    %v8760 = vadd.f32 %v8719, %v8759
    %v8761 = vpop.f32.mrf.mxu0
    %v8762 = vadd.f32 %v8721, %v8761
    %v8763 = vpop.f32.mrf.mxu0
    %v8764 = vpop.f32.mrf.mxu0
    %8765 = vdwg.mxu0
    %8766 = vmatprep.subr.bf16.mxu0 %v5456
    %8767 = vmatpush1.bf16.msra.mxu0 %v5455
    %8768 = vmatprep.subr.bf16.mxu0 %v5448
    %8769 = vmatpush1.bf16.msra.mxu0 %v5447
    %8770 = vmatprep.subr.bf16.mxu0 %v5440
    %8771 = vmatpush1.bf16.msra.mxu0 %v5439
    %8772 = vmatprep.subr.bf16.mxu0 %v5432
    %8773 = vmatpush1.bf16.msra.mxu0 %v5431
    %8774 = vmatprep.subr.bf16.mxu0 %v5424
    %8775 = vmatpush1.bf16.msra.mxu0 %v5423
    %8776 = vmatprep.subr.bf16.mxu0 %v5416
    %8777 = vmatpush1.bf16.msra.mxu0 %v5415
    %8778 = vmatprep.subr.bf16.mxu0 %v5408
    %8779 = vmatpush1.bf16.msra.mxu0 %v5407
    %8780 = vmatprep.subr.bf16.mxu0 %v5400
    %8781 = vmatpush1.bf16.msra.mxu0 %v5399
    %8782 = vmatprep.subr.bf16.mxu0 %v5520
    %8783 = vmatpush2.bf16.msra.mxu0 %v5519
    %8784 = vmatprep.subr.bf16.mxu0 %v5512
    %8785 = vmatpush2.bf16.msra.mxu0 %v5511
    %8786 = vmatprep.subr.bf16.mxu0 %v5504
    %8787 = vmatpush2.bf16.msra.mxu0 %v5503
    %8788 = vmatprep.subr.bf16.mxu0 %v5496
    %8789 = vmatpush2.bf16.msra.mxu0 %v5495
    %8790 = vmatprep.subr.bf16.mxu0 %v5488
    %8791 = vmatpush2.bf16.msra.mxu0 %v5487
    %8792 = vmatprep.subr.bf16.mxu0 %v5480
    %8793 = vmatpush2.bf16.msra.mxu0 %v5479
    %8794 = vmatprep.subr.bf16.mxu0 %v5472
    %8795 = vmatpush2.bf16.msra.mxu0 %v5471
    %8796 = vmatprep.subr.bf16.mxu0 %v5464
    %8797 = vmatpush2.bf16.msra.mxu0 %v5463
    %8798 = vmatprep.mubr.bf16.mxu0 %v1379
    %8799 = vmatmul.mubr.bf16.gmra.mxu0 %v1378
    %v8800 = vpop.f32.mrf.mxu0
    %v8801 = vadd.f32 %v8760, %v8800
    %v8802 = vpop.f32.mrf.mxu0
    %v8803 = vadd.f32 %v8762, %v8802
    %v8804 = vpop.f32.mrf.mxu0
    %v8805 = vpop.f32.mrf.mxu0
    %8806 = vdwg.mxu0
    %8807 = vmatprep.subr.bf16.mxu0 %v5584
    %8808 = vmatpush1.bf16.msra.mxu0 %v5583
    %8809 = vmatprep.subr.bf16.mxu0 %v5576
    %8810 = vmatpush1.bf16.msra.mxu0 %v5575
    %8811 = vmatprep.subr.bf16.mxu0 %v5568
    %8812 = vmatpush1.bf16.msra.mxu0 %v5567
    %8813 = vmatprep.subr.bf16.mxu0 %v5560
    %8814 = vmatpush1.bf16.msra.mxu0 %v5559
    %8815 = vmatprep.subr.bf16.mxu0 %v5552
    %8816 = vmatpush1.bf16.msra.mxu0 %v5551
    %8817 = vmatprep.subr.bf16.mxu0 %v5544
    %8818 = vmatpush1.bf16.msra.mxu0 %v5543
    %8819 = vmatprep.subr.bf16.mxu0 %v5536
    %8820 = vmatpush1.bf16.msra.mxu0 %v5535
    %8821 = vmatprep.subr.bf16.mxu0 %v5528
    %8822 = vmatpush1.bf16.msra.mxu0 %v5527
    %8823 = vmatprep.subr.bf16.mxu0 %v5648
    %8824 = vmatpush2.bf16.msra.mxu0 %v5647
    %8825 = vmatprep.subr.bf16.mxu0 %v5640
    %8826 = vmatpush2.bf16.msra.mxu0 %v5639
    %8827 = vmatprep.subr.bf16.mxu0 %v5632
    %8828 = vmatpush2.bf16.msra.mxu0 %v5631
    %8829 = vmatprep.subr.bf16.mxu0 %v5624
    %8830 = vmatpush2.bf16.msra.mxu0 %v5623
    %8831 = vmatprep.subr.bf16.mxu0 %v5616
    %8832 = vmatpush2.bf16.msra.mxu0 %v5615
    %8833 = vmatprep.subr.bf16.mxu0 %v5608
    %8834 = vmatpush2.bf16.msra.mxu0 %v5607
    %8835 = vmatprep.subr.bf16.mxu0 %v5600
    %8836 = vmatpush2.bf16.msra.mxu0 %v5599
    %8837 = vmatprep.subr.bf16.mxu0 %v5592
    %8838 = vmatpush2.bf16.msra.mxu0 %v5591
    %8839 = vmatprep.mubr.bf16.mxu0 %v1381
    %8840 = vmatmul.mubr.bf16.gmra.mxu0 %v1380
    %v8841 = vpop.f32.mrf.mxu0
    %v8842 = vadd.f32 %v8801, %v8841
    %v8843 = vpop.f32.mrf.mxu0
    %v8844 = vadd.f32 %v8803, %v8843
    %v8845 = vpop.f32.mrf.mxu0
    %v8846 = vpop.f32.mrf.mxu0
    %8847 = vdwg.mxu0
    %8848 = vmatprep.subr.bf16.mxu0 %v5712
    %8849 = vmatpush1.bf16.msra.mxu0 %v5711
    %8850 = vmatprep.subr.bf16.mxu0 %v5704
    %8851 = vmatpush1.bf16.msra.mxu0 %v5703
    %8852 = vmatprep.subr.bf16.mxu0 %v5696
    %8853 = vmatpush1.bf16.msra.mxu0 %v5695
    %8854 = vmatprep.subr.bf16.mxu0 %v5688
    %8855 = vmatpush1.bf16.msra.mxu0 %v5687
    %8856 = vmatprep.subr.bf16.mxu0 %v5680
    %8857 = vmatpush1.bf16.msra.mxu0 %v5679
    %8858 = vmatprep.subr.bf16.mxu0 %v5672
    %8859 = vmatpush1.bf16.msra.mxu0 %v5671
    %8860 = vmatprep.subr.bf16.mxu0 %v5664
    %8861 = vmatpush1.bf16.msra.mxu0 %v5663
    %8862 = vmatprep.subr.bf16.mxu0 %v5656
    %8863 = vmatpush1.bf16.msra.mxu0 %v5655
    %8864 = vmatprep.subr.bf16.mxu0 %v5776
    %8865 = vmatpush2.bf16.msra.mxu0 %v5775
    %8866 = vmatprep.subr.bf16.mxu0 %v5768
    %8867 = vmatpush2.bf16.msra.mxu0 %v5767
    %8868 = vmatprep.subr.bf16.mxu0 %v5760
    %8869 = vmatpush2.bf16.msra.mxu0 %v5759
    %8870 = vmatprep.subr.bf16.mxu0 %v5752
    %8871 = vmatpush2.bf16.msra.mxu0 %v5751
    %8872 = vmatprep.subr.bf16.mxu0 %v5744
    %8873 = vmatpush2.bf16.msra.mxu0 %v5743
    %8874 = vmatprep.subr.bf16.mxu0 %v5736
    %8875 = vmatpush2.bf16.msra.mxu0 %v5735
    %8876 = vmatprep.subr.bf16.mxu0 %v5728
    %8877 = vmatpush2.bf16.msra.mxu0 %v5727
    %8878 = vmatprep.subr.bf16.mxu0 %v5720
    %8879 = vmatpush2.bf16.msra.mxu0 %v5719
    %8880 = vmatprep.mubr.bf16.mxu0 %v1383
    %8881 = vmatmul.mubr.bf16.gmra.mxu0 %v1382
    %v8882 = vpop.f32.mrf.mxu0
    %v8883 = vadd.f32 %v8842, %v8882
    %v8884 = vpop.f32.mrf.mxu0
    %v8885 = vadd.f32 %v8844, %v8884
    %v8886 = vpop.f32.mrf.mxu0
    %v8887 = vpop.f32.mrf.mxu0
    %8888 = vdwg.mxu0
    %8889 = vmatprep.subr.bf16.mxu0 %v5840
    %8890 = vmatpush1.bf16.msra.mxu0 %v5839
    %8891 = vmatprep.subr.bf16.mxu0 %v5832
    %8892 = vmatpush1.bf16.msra.mxu0 %v5831
    %8893 = vmatprep.subr.bf16.mxu0 %v5824
    %8894 = vmatpush1.bf16.msra.mxu0 %v5823
    %8895 = vmatprep.subr.bf16.mxu0 %v5816
    %8896 = vmatpush1.bf16.msra.mxu0 %v5815
    %8897 = vmatprep.subr.bf16.mxu0 %v5808
    %8898 = vmatpush1.bf16.msra.mxu0 %v5807
    %8899 = vmatprep.subr.bf16.mxu0 %v5800
    %8900 = vmatpush1.bf16.msra.mxu0 %v5799
    %8901 = vmatprep.subr.bf16.mxu0 %v5792
    %8902 = vmatpush1.bf16.msra.mxu0 %v5791
    %8903 = vmatprep.subr.bf16.mxu0 %v5784
    %8904 = vmatpush1.bf16.msra.mxu0 %v5783
    %8905 = vmatprep.subr.bf16.mxu0 %v5904
    %8906 = vmatpush2.bf16.msra.mxu0 %v5903
    %8907 = vmatprep.subr.bf16.mxu0 %v5896
    %8908 = vmatpush2.bf16.msra.mxu0 %v5895
    %8909 = vmatprep.subr.bf16.mxu0 %v5888
    %8910 = vmatpush2.bf16.msra.mxu0 %v5887
    %8911 = vmatprep.subr.bf16.mxu0 %v5880
    %8912 = vmatpush2.bf16.msra.mxu0 %v5879
    %8913 = vmatprep.subr.bf16.mxu0 %v5872
    %8914 = vmatpush2.bf16.msra.mxu0 %v5871
    %8915 = vmatprep.subr.bf16.mxu0 %v5864
    %8916 = vmatpush2.bf16.msra.mxu0 %v5863
    %8917 = vmatprep.subr.bf16.mxu0 %v5856
    %8918 = vmatpush2.bf16.msra.mxu0 %v5855
    %8919 = vmatprep.subr.bf16.mxu0 %v5848
    %8920 = vmatpush2.bf16.msra.mxu0 %v5847
    %8921 = vmatprep.mubr.bf16.mxu0 %v1385
    %8922 = vmatmul.mubr.bf16.gmra.mxu0 %v1384
    %v8923 = vpop.f32.mrf.mxu0
    %v8924 = vadd.f32 %v8883, %v8923
    %v8925 = vpop.f32.mrf.mxu0
    %v8926 = vadd.f32 %v8885, %v8925
    %v8927 = vpop.f32.mrf.mxu0
    %v8928 = vpop.f32.mrf.mxu0
    %8929 = vdwg.mxu0
    %8930 = vmatprep.subr.bf16.mxu0 %v5968
    %8931 = vmatpush1.bf16.msra.mxu0 %v5967
    %8932 = vmatprep.subr.bf16.mxu0 %v5960
    %8933 = vmatpush1.bf16.msra.mxu0 %v5959
    %8934 = vmatprep.subr.bf16.mxu0 %v5952
    %8935 = vmatpush1.bf16.msra.mxu0 %v5951
    %8936 = vmatprep.subr.bf16.mxu0 %v5944
    %8937 = vmatpush1.bf16.msra.mxu0 %v5943
    %8938 = vmatprep.subr.bf16.mxu0 %v5936
    %8939 = vmatpush1.bf16.msra.mxu0 %v5935
    %8940 = vmatprep.subr.bf16.mxu0 %v5928
    %8941 = vmatpush1.bf16.msra.mxu0 %v5927
    %8942 = vmatprep.subr.bf16.mxu0 %v5920
    %8943 = vmatpush1.bf16.msra.mxu0 %v5919
    %8944 = vmatprep.subr.bf16.mxu0 %v5912
    %8945 = vmatpush1.bf16.msra.mxu0 %v5911
    %8946 = vmatprep.subr.bf16.mxu0 %v6032
    %8947 = vmatpush2.bf16.msra.mxu0 %v6031
    %8948 = vmatprep.subr.bf16.mxu0 %v6024
    %8949 = vmatpush2.bf16.msra.mxu0 %v6023
    %8950 = vmatprep.subr.bf16.mxu0 %v6016
    %8951 = vmatpush2.bf16.msra.mxu0 %v6015
    %8952 = vmatprep.subr.bf16.mxu0 %v6008
    %8953 = vmatpush2.bf16.msra.mxu0 %v6007
    %8954 = vmatprep.subr.bf16.mxu0 %v6000
    %8955 = vmatpush2.bf16.msra.mxu0 %v5999
    %8956 = vmatprep.subr.bf16.mxu0 %v5992
    %8957 = vmatpush2.bf16.msra.mxu0 %v5991
    %8958 = vmatprep.subr.bf16.mxu0 %v5984
    %8959 = vmatpush2.bf16.msra.mxu0 %v5983
    %8960 = vmatprep.subr.bf16.mxu0 %v5976
    %8961 = vmatpush2.bf16.msra.mxu0 %v5975
    %8962 = vmatprep.mubr.bf16.mxu0 %v1387
    %8963 = vmatmul.mubr.bf16.gmra.mxu0 %v1386
    %v8964 = vpop.f32.mrf.mxu0
    %v8965 = vadd.f32 %v8924, %v8964
    %v8966 = vpop.f32.mrf.mxu0
    %v8967 = vadd.f32 %v8926, %v8966
    %v8968 = vpop.f32.mrf.mxu0
    %v8969 = vpop.f32.mrf.mxu0
    %8970 = vdwg.mxu0
    %8971 = vmatprep.subr.bf16.mxu0 %v6096
    %8972 = vmatpush1.bf16.msra.mxu0 %v6095
    %8973 = vmatprep.subr.bf16.mxu0 %v6088
    %8974 = vmatpush1.bf16.msra.mxu0 %v6087
    %8975 = vmatprep.subr.bf16.mxu0 %v6080
    %8976 = vmatpush1.bf16.msra.mxu0 %v6079
    %8977 = vmatprep.subr.bf16.mxu0 %v6072
    %8978 = vmatpush1.bf16.msra.mxu0 %v6071
    %8979 = vmatprep.subr.bf16.mxu0 %v6064
    %8980 = vmatpush1.bf16.msra.mxu0 %v6063
    %8981 = vmatprep.subr.bf16.mxu0 %v6056
    %8982 = vmatpush1.bf16.msra.mxu0 %v6055
    %8983 = vmatprep.subr.bf16.mxu0 %v6048
    %8984 = vmatpush1.bf16.msra.mxu0 %v6047
    %8985 = vmatprep.subr.bf16.mxu0 %v6040
    %8986 = vmatpush1.bf16.msra.mxu0 %v6039
    %8987 = vmatprep.subr.bf16.mxu0 %v6160
    %8988 = vmatpush2.bf16.msra.mxu0 %v6159
    %8989 = vmatprep.subr.bf16.mxu0 %v6152
    %8990 = vmatpush2.bf16.msra.mxu0 %v6151
    %8991 = vmatprep.subr.bf16.mxu0 %v6144
    %8992 = vmatpush2.bf16.msra.mxu0 %v6143
    %8993 = vmatprep.subr.bf16.mxu0 %v6136
    %8994 = vmatpush2.bf16.msra.mxu0 %v6135
    %8995 = vmatprep.subr.bf16.mxu0 %v6128
    %8996 = vmatpush2.bf16.msra.mxu0 %v6127
    %8997 = vmatprep.subr.bf16.mxu0 %v6120
    %8998 = vmatpush2.bf16.msra.mxu0 %v6119
    %8999 = vmatprep.subr.bf16.mxu0 %v6112
    %9000 = vmatpush2.bf16.msra.mxu0 %v6111
    %9001 = vmatprep.subr.bf16.mxu0 %v6104
    %9002 = vmatpush2.bf16.msra.mxu0 %v6103
    %9003 = vmatprep.mubr.bf16.mxu0 %v1389
    %9004 = vmatmul.mubr.bf16.gmra.mxu0 %v1388
    %v9005 = vpop.f32.mrf.mxu0
    %v9006 = vadd.f32 %v8965, %v9005
    %v9007 = vpop.f32.mrf.mxu0
    %v9008 = vadd.f32 %v8967, %v9007
    %v9009 = vpop.f32.mrf.mxu0
    %v9010 = vpop.f32.mrf.mxu0
    %9011 = vdwg.mxu0
    %9012 = vmatprep.subr.bf16.mxu0 0
    %9013 = vmatpush1.bf16.msra.mxu0 0
    %9014 = vmatprep.subr.bf16.mxu0 0
    %9015 = vmatpush1.bf16.msra.mxu0 0
    %9016 = vmatprep.subr.bf16.mxu0 %v6208
    %9017 = vmatpush1.bf16.msra.mxu0 %v6207
    %9018 = vmatprep.subr.bf16.mxu0 %v6200
    %9019 = vmatpush1.bf16.msra.mxu0 %v6199
    %9020 = vmatprep.subr.bf16.mxu0 %v6192
    %9021 = vmatpush1.bf16.msra.mxu0 %v6191
    %9022 = vmatprep.subr.bf16.mxu0 %v6184
    %9023 = vmatpush1.bf16.msra.mxu0 %v6183
    %9024 = vmatprep.subr.bf16.mxu0 %v6176
    %9025 = vmatpush1.bf16.msra.mxu0 %v6175
    %9026 = vmatprep.subr.bf16.mxu0 %v6168
    %9027 = vmatpush1.bf16.msra.mxu0 %v6167
    %9028 = vmatprep.subr.bf16.mxu0 0
    %9029 = vmatpush2.bf16.msra.mxu0 0
    %9030 = vmatprep.subr.bf16.mxu0 0
    %9031 = vmatpush2.bf16.msra.mxu0 0
    %9032 = vmatprep.subr.bf16.mxu0 0
    %9033 = vmatpush2.bf16.msra.mxu0 0
    %9034 = vmatprep.subr.bf16.mxu0 0
    %9035 = vmatpush2.bf16.msra.mxu0 0
    %9036 = vmatprep.subr.bf16.mxu0 0
    %9037 = vmatpush2.bf16.msra.mxu0 0
    %9038 = vmatprep.subr.bf16.mxu0 0
    %9039 = vmatpush2.bf16.msra.mxu0 0
    %9040 = vmatprep.subr.bf16.mxu0 0
    %9041 = vmatpush2.bf16.msra.mxu0 0
    %9042 = vmatprep.subr.bf16.mxu0 0
    %9043 = vmatpush2.bf16.msra.mxu0 0
    %9044 = vmatprep.mubr.bf16.mxu0 0
    %9045 = vmatmul.mubr.bf16.gmra.mxu0 %v7411
    %v9046 = vpop.f32.mrf.mxu0
    %v9047 = vadd.f32 %v9006, %v9046
    %v9048 = vpop.f32.mrf.mxu0
    %v9049 = vadd.f32 %v9008, %v9048
    %v9050 = vpop.f32.mrf.mxu0
    %v9051 = vpop.f32.mrf.mxu0
    %9052 = vdwg.mxu0
    %v9053 = vmax.f32 %v7817, 0.0
    %v9054 = vmax.f32 %v7819, 0.0
    %v9055 = vmax.f32 %v8227, 0.0
    %v9056 = vmax.f32 %v8229, 0.0
    %v9057 = vmax.f32 %v8637, 0.0
    %v9058 = vmax.f32 %v8639, 0.0
    %v9059 = vmax.f32 %v9047, 0.0
    %v9060 = vmax.f32 %v9049, 0.0
    %v9061 = vld [vmem:[#allocation7] sm:$0xff]
    %v9062 = vld [vmem:[#allocation7 + $0x8] sm:$0xff]
    %v9063 = vld [vmem:[#allocation7 + $0x10] sm:$0xff]
    %v9064 = vld [vmem:[#allocation7 + $0x18] sm:$0xff]
    %v9065 = vld [vmem:[#allocation7 + $0x20] sm:$0xff]
    %v9066 = vld [vmem:[#allocation7 + $0x28] sm:$0xff]
    %v9067 = vld [vmem:[#allocation7 + $0x30] sm:$0xff]
    %v9068 = vld [vmem:[#allocation7 + $0x38] sm:$0xff]
    %v9069 = vld [vmem:[#allocation7 + $0x40] sm:$0xff]
    %v9070 = vld [vmem:[#allocation7 + $0x48] sm:$0xff]
    %v9071 = vld [vmem:[#allocation7 + $0x50] sm:$0xff]
    %v9072 = vld [vmem:[#allocation7 + $0x58] sm:$0xff]
    %v9073 = vld [vmem:[#allocation7 + $0x60] sm:$0xff]
    %v9074 = vld [vmem:[#allocation7 + $0x68] sm:$0xff]
    %v9075 = vld [vmem:[#allocation7 + $0x70] sm:$0xff]
    %v9076 = vld [vmem:[#allocation7 + $0x78] sm:$0xff]
    %v9077 = vld [vmem:[#allocation7 + $0x80] sm:$0xff]
    %v9078 = vld [vmem:[#allocation7 + $0x88] sm:$0xff]
    %v9079 = vld [vmem:[#allocation7 + $0x90] sm:$0xff]
    %v9080 = vld [vmem:[#allocation7 + $0x98] sm:$0xff]
    %v9081 = vld [vmem:[#allocation7 + $0xa0] sm:$0xff]
    %v9082 = vld [vmem:[#allocation7 + $0xa8] sm:$0xff]
    %v9083 = vld [vmem:[#allocation7 + $0xb0] sm:$0xff]
    %v9084 = vld [vmem:[#allocation7 + $0xb8] sm:$0xff]
    %v9085 = vld [vmem:[#allocation7 + $0xc0] sm:$0xff]
    %v9086 = vld [vmem:[#allocation7 + $0xc8] sm:$0xff]
    %v9087 = vld [vmem:[#allocation7 + $0xd0] sm:$0xff]
    %v9088 = vld [vmem:[#allocation7 + $0xd8] sm:$0xff]
    %v9089 = vld [vmem:[#allocation7 + $0xe0] sm:$0xff]
    %v9090 = vld [vmem:[#allocation7 + $0xe8] sm:$0xff]
    %v9091 = vld [vmem:[#allocation7 + $0xf0] sm:$0xff]
    %v9092 = vld [vmem:[#allocation7 + $0xf8] sm:$0xff]
    %v9093 = vld [vmem:[#allocation7 + $0x100] sm:$0xff]
    %v9094 = vld [vmem:[#allocation7 + $0x108] sm:$0xff]
    %v9095 = vld [vmem:[#allocation7 + $0x110] sm:$0xff]
    %v9096 = vld [vmem:[#allocation7 + $0x118] sm:$0xff]
    %v9097 = vld [vmem:[#allocation7 + $0x120] sm:$0xff]
    %v9098 = vld [vmem:[#allocation7 + $0x128] sm:$0xff]
    %v9099 = vld [vmem:[#allocation7 + $0x130] sm:$0xff]
    %v9100 = vld [vmem:[#allocation7 + $0x138] sm:$0xff]
    %v9101 = vld [vmem:[#allocation7 + $0x140] sm:$0xff]
    %v9102 = vld [vmem:[#allocation7 + $0x148] sm:$0xff]
    %v9103 = vld [vmem:[#allocation7 + $0x150] sm:$0xff]
    %v9104 = vld [vmem:[#allocation7 + $0x158] sm:$0xff]
    %v9105 = vld [vmem:[#allocation7 + $0x160] sm:$0xff]
    %v9106 = vld [vmem:[#allocation7 + $0x168] sm:$0xff]
    %v9107 = vld [vmem:[#allocation7 + $0x170] sm:$0xff]
    %v9108 = vld [vmem:[#allocation7 + $0x178] sm:$0xff]
    %v9109 = vld [vmem:[#allocation7 + $0x180] sm:$0xff]
    %v9110 = vld [vmem:[#allocation7 + $0x188] sm:$0xff]
    %v9111 = vld [vmem:[#allocation7 + $0x190] sm:$0xff]
    %v9112 = vld [vmem:[#allocation7 + $0x198] sm:$0xff]
    %v9113 = vld [vmem:[#allocation7 + $0x1a0] sm:$0xff]
    %v9114 = vld [vmem:[#allocation7 + $0x1a8] sm:$0xff]
    %v9115 = vld [vmem:[#allocation7 + $0x1b0] sm:$0xff]
    %v9116 = vld [vmem:[#allocation7 + $0x1b8] sm:$0xff]
    %v9117 = vld [vmem:[#allocation7 + $0x1c0] sm:$0xff]
    %v9118 = vld [vmem:[#allocation7 + $0x1c8] sm:$0xff]
    %v9119 = vld [vmem:[#allocation7 + $0x1d0] sm:$0xff]
    %v9120 = vld [vmem:[#allocation7 + $0x1d8] sm:$0xff]
    %v9121 = vld [vmem:[#allocation7 + $0x1e0] sm:$0xff]
    %v9122 = vld [vmem:[#allocation7 + $0x1e8] sm:$0xff]
    %v9123 = vld [vmem:[#allocation7 + $0x1f0] sm:$0xff]
    %v9124 = vld [vmem:[#allocation7 + $0x1f8] sm:$0xff]
    %v9125 = vld [vmem:[#allocation7 + $0x200] sm:$0xff]
    %v9126 = vld [vmem:[#allocation7 + $0x208] sm:$0xff]
    %v9127 = vld [vmem:[#allocation7 + $0x210] sm:$0xff]
    %v9128 = vld [vmem:[#allocation7 + $0x218] sm:$0xff]
    %v9129 = vld [vmem:[#allocation7 + $0x220] sm:$0xff]
    %v9130 = vld [vmem:[#allocation7 + $0x228] sm:$0xff]
    %v9131 = vld [vmem:[#allocation7 + $0x230] sm:$0xff]
    %v9132 = vld [vmem:[#allocation7 + $0x238] sm:$0xff]
    %v9133 = vld [vmem:[#allocation7 + $0x240] sm:$0xff]
    %v9134 = vld [vmem:[#allocation7 + $0x248] sm:$0xff]
    %v9135 = vld [vmem:[#allocation7 + $0x250] sm:$0xff]
    %v9136 = vld [vmem:[#allocation7 + $0x258] sm:$0xff]
    %v9137 = vld [vmem:[#allocation7 + $0x260] sm:$0xff]
    %v9138 = vld [vmem:[#allocation7 + $0x268] sm:$0xff]
    %v9139 = vld [vmem:[#allocation7 + $0x270] sm:$0xff]
    %v9140 = vld [vmem:[#allocation7 + $0x278] sm:$0xff]
    %v9141 = vld [vmem:[#allocation7 + $0x280] sm:$0xff]
    %v9142 = vld [vmem:[#allocation7 + $0x288] sm:$0xff]
    %v9143 = vld [vmem:[#allocation7 + $0x290] sm:$0xff]
    %v9144 = vld [vmem:[#allocation7 + $0x298] sm:$0xff]
    %v9145 = vld [vmem:[#allocation7 + $0x2a0] sm:$0xff]
    %v9146 = vld [vmem:[#allocation7 + $0x2a8] sm:$0xff]
    %v9147 = vld [vmem:[#allocation7 + $0x2b0] sm:$0xff]
    %v9148 = vld [vmem:[#allocation7 + $0x2b8] sm:$0xff]
    %v9149 = vld [vmem:[#allocation7 + $0x2c0] sm:$0xff]
    %v9150 = vld [vmem:[#allocation7 + $0x2c8] sm:$0xff]
    %v9151 = vld [vmem:[#allocation7 + $0x2d0] sm:$0xff]
    %v9152 = vld [vmem:[#allocation7 + $0x2d8] sm:$0xff]
    %v9153 = vld [vmem:[#allocation7 + $0x2e0] sm:$0xff]
    %v9154 = vld [vmem:[#allocation7 + $0x2e8] sm:$0xff]
    %v9155 = vld [vmem:[#allocation7 + $0x2f0] sm:$0xff]
    %v9156 = vld [vmem:[#allocation7 + $0x2f8] sm:$0xff]
    %v9157 = vld [vmem:[#allocation7 + $0x300] sm:$0xff]
    %v9158 = vld [vmem:[#allocation7 + $0x308] sm:$0xff]
    %v9159 = vld [vmem:[#allocation7 + $0x310] sm:$0xff]
    %v9160 = vld [vmem:[#allocation7 + $0x318] sm:$0xff]
    %v9161 = vld [vmem:[#allocation7 + $0x320] sm:$0xff]
    %v9162 = vld [vmem:[#allocation7 + $0x328] sm:$0xff]
    %v9163 = vld [vmem:[#allocation7 + $0x330] sm:$0xff]
    %v9164 = vld [vmem:[#allocation7 + $0x338] sm:$0xff]
    %v9165 = vld [vmem:[#allocation7 + $0x340] sm:$0xff]
    %v9166 = vld [vmem:[#allocation7 + $0x348] sm:$0xff]
    %v9167 = vld [vmem:[#allocation7 + $0x350] sm:$0xff]
    %v9168 = vld [vmem:[#allocation7 + $0x358] sm:$0xff]
    %v9169 = vld [vmem:[#allocation7 + $0x360] sm:$0xff]
    %v9170 = vld [vmem:[#allocation7 + $0x368] sm:$0xff]
    %v9171 = vld [vmem:[#allocation7 + $0x370] sm:$0xff]
    %v9172 = vld [vmem:[#allocation7 + $0x378] sm:$0xff]
    %v9173 = vld [vmem:[#allocation7 + $0x380] sm:$0xff]
    %v9174 = vld [vmem:[#allocation7 + $0x388] sm:$0xff]
    %v9175 = vld [vmem:[#allocation7 + $0x390] sm:$0xff]
    %v9176 = vld [vmem:[#allocation7 + $0x398] sm:$0xff]
    %v9177 = vld [vmem:[#allocation7 + $0x3a0] sm:$0xff]
    %v9178 = vld [vmem:[#allocation7 + $0x3a8] sm:$0xff]
    %v9179 = vld [vmem:[#allocation7 + $0x3b0] sm:$0xff]
    %v9180 = vld [vmem:[#allocation7 + $0x3b8] sm:$0xff]
    %v9181 = vld [vmem:[#allocation7 + $0x3c0] sm:$0xff]
    %v9182 = vld [vmem:[#allocation7 + $0x3c8] sm:$0xff]
    %v9183 = vld [vmem:[#allocation7 + $0x3d0] sm:$0xff]
    %v9184 = vld [vmem:[#allocation7 + $0x3d8] sm:$0xff]
    %v9185 = vld [vmem:[#allocation7 + $0x3e0] sm:$0xff]
    %v9186 = vld [vmem:[#allocation7 + $0x3e8] sm:$0xff]
    %v9187 = vld [vmem:[#allocation7 + $0x3f0] sm:$0xff]
    %v9188 = vld [vmem:[#allocation7 + $0x3f8] sm:$0xff]
    %v9189 = vld [vmem:[#allocation8] sm:$0x1]
    %v9191 = vlaneseq
    %v9192 = vshrl.u32 %v9191, 7
    %v9193 = vsub.s32 0, %v9192
    %v9194 = vrot.slane %v9189, %v9193
    %9196 = vmatprep.subr.mxu0 0.0
    %9197 = vmatpush1.msra.mxu0 %v9076
    %9198 = vmatprep.subr.mxu0 0.0
    %9199 = vmatpush1.msra.mxu0 %v9075
    %9200 = vmatprep.subr.mxu0 0.0
    %9201 = vmatpush1.msra.mxu0 %v9074
    %9202 = vmatprep.subr.mxu0 0.0
    %9203 = vmatpush1.msra.mxu0 %v9073
    %9204 = vmatprep.subr.mxu0 0.0
    %9205 = vmatpush1.msra.mxu0 %v9072
    %9206 = vmatprep.subr.mxu0 0.0
    %9207 = vmatpush1.msra.mxu0 %v9071
    %9208 = vmatprep.subr.mxu0 0.0
    %9209 = vmatpush1.msra.mxu0 %v9070
    %9210 = vmatprep.subr.mxu0 0.0
    %9211 = vmatpush1.msra.mxu0 %v9069
    %9212 = vmatprep.subr.mxu0 0.0
    %9213 = vmatpush1.msra.mxu0 %v9068
    %9214 = vmatprep.subr.mxu0 0.0
    %9215 = vmatpush1.msra.mxu0 %v9067
    %9216 = vmatprep.subr.mxu0 0.0
    %9217 = vmatpush1.msra.mxu0 %v9066
    %9218 = vmatprep.subr.mxu0 0.0
    %9219 = vmatpush1.msra.mxu0 %v9065
    %9220 = vmatprep.subr.mxu0 0.0
    %9221 = vmatpush1.msra.mxu0 %v9064
    %9222 = vmatprep.subr.mxu0 0.0
    %9223 = vmatpush1.msra.mxu0 %v9063
    %9224 = vmatprep.subr.mxu0 0.0
    %9225 = vmatpush1.msra.mxu0 %v9062
    %9226 = vmatprep.subr.mxu0 0.0
    %9227 = vmatpush1.msra.mxu0 %v9061
    %9228 = vmatprep.subr.mxu0 0.0
    %9229 = vmatpush2.msra.mxu0 %v9092
    %9230 = vmatprep.subr.mxu0 0.0
    %9231 = vmatpush2.msra.mxu0 %v9091
    %9232 = vmatprep.subr.mxu0 0.0
    %9233 = vmatpush2.msra.mxu0 %v9090
    %9234 = vmatprep.subr.mxu0 0.0
    %9235 = vmatpush2.msra.mxu0 %v9089
    %9236 = vmatprep.subr.mxu0 0.0
    %9237 = vmatpush2.msra.mxu0 %v9088
    %9238 = vmatprep.subr.mxu0 0.0
    %9239 = vmatpush2.msra.mxu0 %v9087
    %9240 = vmatprep.subr.mxu0 0.0
    %9241 = vmatpush2.msra.mxu0 %v9086
    %9242 = vmatprep.subr.mxu0 0.0
    %9243 = vmatpush2.msra.mxu0 %v9085
    %9244 = vmatprep.subr.mxu0 0.0
    %9245 = vmatpush2.msra.mxu0 %v9084
    %9246 = vmatprep.subr.mxu0 0.0
    %9247 = vmatpush2.msra.mxu0 %v9083
    %9248 = vmatprep.subr.mxu0 0.0
    %9249 = vmatpush2.msra.mxu0 %v9082
    %9250 = vmatprep.subr.mxu0 0.0
    %9251 = vmatpush2.msra.mxu0 %v9081
    %9252 = vmatprep.subr.mxu0 0.0
    %9253 = vmatpush2.msra.mxu0 %v9080
    %9254 = vmatprep.subr.mxu0 0.0
    %9255 = vmatpush2.msra.mxu0 %v9079
    %9256 = vmatprep.subr.mxu0 0.0
    %9257 = vmatpush2.msra.mxu0 %v9078
    %9258 = vmatprep.subr.mxu0 0.0
    %9259 = vmatpush2.msra.mxu0 %v9077
    %9260 = vmatprep.mubr.f32.mxu0 %v9054
    %9261 = vmatmul.mubr.f32.gmra.mxu0 %v9053
    %v9262 = vpop.f32.mrf.mxu0
    %v9263 = vadd.f32 %v9194, %v9262
    %v9264 = vpop.f32.mrf.mxu0
    %9265 = vdwg.mxu0
    %9266 = vmatprep.subr.mxu0 0.0
    %9267 = vmatpush1.msra.mxu0 %v9108
    %9268 = vmatprep.subr.mxu0 0.0
    %9269 = vmatpush1.msra.mxu0 %v9107
    %9270 = vmatprep.subr.mxu0 0.0
    %9271 = vmatpush1.msra.mxu0 %v9106
    %9272 = vmatprep.subr.mxu0 0.0
    %9273 = vmatpush1.msra.mxu0 %v9105
    %9274 = vmatprep.subr.mxu0 0.0
    %9275 = vmatpush1.msra.mxu0 %v9104
    %9276 = vmatprep.subr.mxu0 0.0
    %9277 = vmatpush1.msra.mxu0 %v9103
    %9278 = vmatprep.subr.mxu0 0.0
    %9279 = vmatpush1.msra.mxu0 %v9102
    %9280 = vmatprep.subr.mxu0 0.0
    %9281 = vmatpush1.msra.mxu0 %v9101
    %9282 = vmatprep.subr.mxu0 0.0
    %9283 = vmatpush1.msra.mxu0 %v9100
    %9284 = vmatprep.subr.mxu0 0.0
    %9285 = vmatpush1.msra.mxu0 %v9099
    %9286 = vmatprep.subr.mxu0 0.0
    %9287 = vmatpush1.msra.mxu0 %v9098
    %9288 = vmatprep.subr.mxu0 0.0
    %9289 = vmatpush1.msra.mxu0 %v9097
    %9290 = vmatprep.subr.mxu0 0.0
    %9291 = vmatpush1.msra.mxu0 %v9096
    %9292 = vmatprep.subr.mxu0 0.0
    %9293 = vmatpush1.msra.mxu0 %v9095
    %9294 = vmatprep.subr.mxu0 0.0
    %9295 = vmatpush1.msra.mxu0 %v9094
    %9296 = vmatprep.subr.mxu0 0.0
    %9297 = vmatpush1.msra.mxu0 %v9093
    %9298 = vmatprep.subr.mxu0 0.0
    %9299 = vmatpush2.msra.mxu0 %v9124
    %9300 = vmatprep.subr.mxu0 0.0
    %9301 = vmatpush2.msra.mxu0 %v9123
    %9302 = vmatprep.subr.mxu0 0.0
    %9303 = vmatpush2.msra.mxu0 %v9122
    %9304 = vmatprep.subr.mxu0 0.0
    %9305 = vmatpush2.msra.mxu0 %v9121
    %9306 = vmatprep.subr.mxu0 0.0
    %9307 = vmatpush2.msra.mxu0 %v9120
    %9308 = vmatprep.subr.mxu0 0.0
    %9309 = vmatpush2.msra.mxu0 %v9119
    %9310 = vmatprep.subr.mxu0 0.0
    %9311 = vmatpush2.msra.mxu0 %v9118
    %9312 = vmatprep.subr.mxu0 0.0
    %9313 = vmatpush2.msra.mxu0 %v9117
    %9314 = vmatprep.subr.mxu0 0.0
    %9315 = vmatpush2.msra.mxu0 %v9116
    %9316 = vmatprep.subr.mxu0 0.0
    %9317 = vmatpush2.msra.mxu0 %v9115
    %9318 = vmatprep.subr.mxu0 0.0
    %9319 = vmatpush2.msra.mxu0 %v9114
    %9320 = vmatprep.subr.mxu0 0.0
    %9321 = vmatpush2.msra.mxu0 %v9113
    %9322 = vmatprep.subr.mxu0 0.0
    %9323 = vmatpush2.msra.mxu0 %v9112
    %9324 = vmatprep.subr.mxu0 0.0
    %9325 = vmatpush2.msra.mxu0 %v9111
    %9326 = vmatprep.subr.mxu0 0.0
    %9327 = vmatpush2.msra.mxu0 %v9110
    %9328 = vmatprep.subr.mxu0 0.0
    %9329 = vmatpush2.msra.mxu0 %v9109
    %9330 = vmatprep.mubr.f32.mxu0 %v9056
    %9331 = vmatmul.mubr.f32.gmra.mxu0 %v9055
    %v9332 = vpop.f32.mrf.mxu0
    %v9333 = vadd.f32 %v9263, %v9332
    %v9334 = vpop.f32.mrf.mxu0
    %9335 = vdwg.mxu0
    %9336 = vmatprep.subr.mxu0 0.0
    %9337 = vmatpush1.msra.mxu0 %v9140
    %9338 = vmatprep.subr.mxu0 0.0
    %9339 = vmatpush1.msra.mxu0 %v9139
    %9340 = vmatprep.subr.mxu0 0.0
    %9341 = vmatpush1.msra.mxu0 %v9138
    %9342 = vmatprep.subr.mxu0 0.0
    %9343 = vmatpush1.msra.mxu0 %v9137
    %9344 = vmatprep.subr.mxu0 0.0
    %9345 = vmatpush1.msra.mxu0 %v9136
    %9346 = vmatprep.subr.mxu0 0.0
    %9347 = vmatpush1.msra.mxu0 %v9135
    %9348 = vmatprep.subr.mxu0 0.0
    %9349 = vmatpush1.msra.mxu0 %v9134
    %9350 = vmatprep.subr.mxu0 0.0
    %9351 = vmatpush1.msra.mxu0 %v9133
    %9352 = vmatprep.subr.mxu0 0.0
    %9353 = vmatpush1.msra.mxu0 %v9132
    %9354 = vmatprep.subr.mxu0 0.0
    %9355 = vmatpush1.msra.mxu0 %v9131
    %9356 = vmatprep.subr.mxu0 0.0
    %9357 = vmatpush1.msra.mxu0 %v9130
    %9358 = vmatprep.subr.mxu0 0.0
    %9359 = vmatpush1.msra.mxu0 %v9129
    %9360 = vmatprep.subr.mxu0 0.0
    %9361 = vmatpush1.msra.mxu0 %v9128
    %9362 = vmatprep.subr.mxu0 0.0
    %9363 = vmatpush1.msra.mxu0 %v9127
    %9364 = vmatprep.subr.mxu0 0.0
    %9365 = vmatpush1.msra.mxu0 %v9126
    %9366 = vmatprep.subr.mxu0 0.0
    %9367 = vmatpush1.msra.mxu0 %v9125
    %9368 = vmatprep.subr.mxu0 0.0
    %9369 = vmatpush2.msra.mxu0 %v9156
    %9370 = vmatprep.subr.mxu0 0.0
    %9371 = vmatpush2.msra.mxu0 %v9155
    %9372 = vmatprep.subr.mxu0 0.0
    %9373 = vmatpush2.msra.mxu0 %v9154
    %9374 = vmatprep.subr.mxu0 0.0
    %9375 = vmatpush2.msra.mxu0 %v9153
    %9376 = vmatprep.subr.mxu0 0.0
    %9377 = vmatpush2.msra.mxu0 %v9152
    %9378 = vmatprep.subr.mxu0 0.0
    %9379 = vmatpush2.msra.mxu0 %v9151
    %9380 = vmatprep.subr.mxu0 0.0
    %9381 = vmatpush2.msra.mxu0 %v9150
    %9382 = vmatprep.subr.mxu0 0.0
    %9383 = vmatpush2.msra.mxu0 %v9149
    %9384 = vmatprep.subr.mxu0 0.0
    %9385 = vmatpush2.msra.mxu0 %v9148
    %9386 = vmatprep.subr.mxu0 0.0
    %9387 = vmatpush2.msra.mxu0 %v9147
    %9388 = vmatprep.subr.mxu0 0.0
    %9389 = vmatpush2.msra.mxu0 %v9146
    %9390 = vmatprep.subr.mxu0 0.0
    %9391 = vmatpush2.msra.mxu0 %v9145
    %9392 = vmatprep.subr.mxu0 0.0
    %9393 = vmatpush2.msra.mxu0 %v9144
    %9394 = vmatprep.subr.mxu0 0.0
    %9395 = vmatpush2.msra.mxu0 %v9143
    %9396 = vmatprep.subr.mxu0 0.0
    %9397 = vmatpush2.msra.mxu0 %v9142
    %9398 = vmatprep.subr.mxu0 0.0
    %9399 = vmatpush2.msra.mxu0 %v9141
    %9400 = vmatprep.mubr.f32.mxu0 %v9058
    %9401 = vmatmul.mubr.f32.gmra.mxu0 %v9057
    %v9402 = vpop.f32.mrf.mxu0
    %v9403 = vadd.f32 %v9333, %v9402
    %v9404 = vpop.f32.mrf.mxu0
    %9405 = vdwg.mxu0
    %9406 = vmatprep.subr.mxu0 0.0
    %9407 = vmatpush1.msra.mxu0 %v9172
    %9408 = vmatprep.subr.mxu0 0.0
    %9409 = vmatpush1.msra.mxu0 %v9171
    %9410 = vmatprep.subr.mxu0 0.0
    %9411 = vmatpush1.msra.mxu0 %v9170
    %9412 = vmatprep.subr.mxu0 0.0
    %9413 = vmatpush1.msra.mxu0 %v9169
    %9414 = vmatprep.subr.mxu0 0.0
    %9415 = vmatpush1.msra.mxu0 %v9168
    %9416 = vmatprep.subr.mxu0 0.0
    %9417 = vmatpush1.msra.mxu0 %v9167
    %9418 = vmatprep.subr.mxu0 0.0
    %9419 = vmatpush1.msra.mxu0 %v9166
    %9420 = vmatprep.subr.mxu0 0.0
    %9421 = vmatpush1.msra.mxu0 %v9165
    %9422 = vmatprep.subr.mxu0 0.0
    %9423 = vmatpush1.msra.mxu0 %v9164
    %9424 = vmatprep.subr.mxu0 0.0
    %9425 = vmatpush1.msra.mxu0 %v9163
    %9426 = vmatprep.subr.mxu0 0.0
    %9427 = vmatpush1.msra.mxu0 %v9162
    %9428 = vmatprep.subr.mxu0 0.0
    %9429 = vmatpush1.msra.mxu0 %v9161
    %9430 = vmatprep.subr.mxu0 0.0
    %9431 = vmatpush1.msra.mxu0 %v9160
    %9432 = vmatprep.subr.mxu0 0.0
    %9433 = vmatpush1.msra.mxu0 %v9159
    %9434 = vmatprep.subr.mxu0 0.0
    %9435 = vmatpush1.msra.mxu0 %v9158
    %9436 = vmatprep.subr.mxu0 0.0
    %9437 = vmatpush1.msra.mxu0 %v9157
    %9438 = vmatprep.subr.mxu0 0.0
    %9439 = vmatpush2.msra.mxu0 %v9188
    %9440 = vmatprep.subr.mxu0 0.0
    %9441 = vmatpush2.msra.mxu0 %v9187
    %9442 = vmatprep.subr.mxu0 0.0
    %9443 = vmatpush2.msra.mxu0 %v9186
    %9444 = vmatprep.subr.mxu0 0.0
    %9445 = vmatpush2.msra.mxu0 %v9185
    %9446 = vmatprep.subr.mxu0 0.0
    %9447 = vmatpush2.msra.mxu0 %v9184
    %9448 = vmatprep.subr.mxu0 0.0
    %9449 = vmatpush2.msra.mxu0 %v9183
    %9450 = vmatprep.subr.mxu0 0.0
    %9451 = vmatpush2.msra.mxu0 %v9182
    %9452 = vmatprep.subr.mxu0 0.0
    %9453 = vmatpush2.msra.mxu0 %v9181
    %9454 = vmatprep.subr.mxu0 0.0
    %9455 = vmatpush2.msra.mxu0 %v9180
    %9456 = vmatprep.subr.mxu0 0.0
    %9457 = vmatpush2.msra.mxu0 %v9179
    %9458 = vmatprep.subr.mxu0 0.0
    %9459 = vmatpush2.msra.mxu0 %v9178
    %9460 = vmatprep.subr.mxu0 0.0
    %9461 = vmatpush2.msra.mxu0 %v9177
    %9462 = vmatprep.subr.mxu0 0.0
    %9463 = vmatpush2.msra.mxu0 %v9176
    %9464 = vmatprep.subr.mxu0 0.0
    %9465 = vmatpush2.msra.mxu0 %v9175
    %9466 = vmatprep.subr.mxu0 0.0
    %9467 = vmatpush2.msra.mxu0 %v9174
    %9468 = vmatprep.subr.mxu0 0.0
    %9469 = vmatpush2.msra.mxu0 %v9173
    %9470 = vmatprep.mubr.f32.mxu0 %v9060
    %9471 = vmatmul.mubr.f32.gmra.mxu0 %v9059
    %v9472 = vpop.f32.mrf.mxu0
    %v9473 = vadd.f32 %v9403, %v9472
    %v9474 = vpop.f32.mrf.mxu0
    %9475 = vdwg.mxu0
    %v9476 = vmax.f32 %v9473, 0.0
    %v9477 = vld [vmem:[#allocation10] sm:$0x1]
    %v9479 = vlaneseq
    %v9480 = vshrl.u32 %v9479, 7
    %v9481 = vsub.s32 0, %v9480
    %v9482 = vrot.slane %v9477, %v9481
    %v9484 = vmul.f32 %v9476, %v9482
    %9485 = vadd.xlane.f32.xlu0 %v9484
    %v9486 = vpop.xlane.xlu0 %9485
    %v9487 = vld [vmem:[#allocation2] sm:$0x1]
    %v9489 = vlaneseq
    %v9490 = vshrl.u32 %v9489, 7
    %v9491 = vsub.s32 0, %v9490
    %v9492 = vrot.slane %v9487, %v9491
    %v9494 = vadd.f32 %v9486, %v9492
    %v9495 = vxor.u32 %v9494, 2147483648
    %v9496 = vmul.f32 %v9495, 1.442695
    %v9497 = vpow.pop %v9496
    %v9498 = vadd.f32 %v9497, 1.0
    %v9499 = vrcp.pop %v9498
    %v9500 = vmul.f32 1.0, %v9499
    %vm9501 = vcmask 7168
    %9502 = vst.msk [vmem:[%s7] sm:$0xff] %vm9501, %v9500
    // Predicated region
    $region50: #{feedforward_nn_forward_batched.1} parent=1 // pred_check
      _
    $region51: #{feedforward_nn_forward_batched.1} parent=1 // pred_check_branch
      %9504 = sbr.rel (0) target = $region53
    $region52: #{feedforward_nn_forward_batched.1} parent=1 // pred_region
      _
    $region53: #{feedforward_nn_forward_batched.1} parent=1 // pred_fallthru
      _
    // Predicated region
    $region54: #{feedforward_nn_forward_batched.1} parent=1 // pred_check
      _
    $region55: #{feedforward_nn_forward_batched.1} parent=1 // pred_check_branch
      %9506 = sbr.rel (0) target = $region57
    $region56: #{feedforward_nn_forward_batched.1} parent=1 // pred_region
      _
    $region57: #{feedforward_nn_forward_batched.1} parent=1 // pred_fallthru
      _
    %9507 = vsyncpa [#allocation4], 1
    %9508 = vsyncpa [#allocation6], 1
    %9509 = vsyncpa [#allocation9], 1

</llo_original>
